<compile_context>
chip_gen: v7x
topology: tpu7x:2x2x1
jax: 0.10.0
libtpu: 0.0.40
codegen_flags: <defaults>
</compile_context>

<pallas_src>
import jax
import jax.numpy as jnp
import numpy as np
from jax.experimental import pallas as pl
from jax.experimental.pallas import tpu as pltpu

_H = 16
_W = 16
_HW = _H * _W
# tap t = (dh+1)*3 + (dw+1) == kh*3 + kw  (matches the tap-major weight layout)
_TAPS = tuple((dh, dw) for dh in (-1, 0, 1) for dw in (-1, 0, 1))

_VMEM = pl.BlockSpec(memory_space=pltpu.MemorySpace.VMEM)
_SMEM = pl.BlockSpec(memory_space=pltpu.MemorySpace.SMEM)


def _fused_basic_block_kernel(
        lam_ref, rk1_ref, phitphi_ref, phitb_ref, z_ref,
        wDx_ref, wDz_ref, w11_ref, b11_ref, w12_ref, b12_ref,
        w21_ref, b21_ref, w22_ref, b22_ref, wG_ref,
        xpred_ref, xback_ref):
    """One grid step == one image; all slabs are channel-major (C, 256)."""
    lam = lam_ref[0]

    # ---- gradient step: x = Rk1 - lam * Rk1 @ PhiTPhi + lam * PhiTb --------
    # PhiTPhi lives in VMEM as bf16 (halves its HBM DMA); accumulate in f32.
    rk1 = rk1_ref[...]                                            # (1, 512) f32
    gx = jnp.dot(rk1.astype(jnp.bfloat16), phitphi_ref[...],
                 preferred_element_type=jnp.float32)              # (1, 512) f32
    x_row = rk1 - lam * gx + lam * phitb_ref[...]                 # (1, 512) f32

    # NCHW-flatten of this image -> channel-major (2, 256), lane-aligned slices
    x_in = jnp.concatenate([x_row[:, :_HW], x_row[:, _HW:]], axis=0)
    z = z_ref[...]                                                # (32, 256)

    # Pixel coordinates along the 256-wide lane axis (for conv zero padding).
    pix = jax.lax.broadcasted_iota(jnp.int32, (1, _HW), 1)
    ii = jnp.right_shift(pix, 4)          # row    index in [0, 16)
    jj = jnp.bitwise_and(pix, _W - 1)     # column index in [0, 16)

    def conv3x3(pairs, bias_ref=None, relu=False, residual=None):
        # pairs: [(w_ref (9, Cout, Cin), v (Cin, 256)), ...] -> (Cout, 256) f32
        acc = None
        for t, (dh, dw) in enumerate(_TAPS):
            part = None
            for w_ref, v in pairs:
                if dh == 0 and dw == 0:
                    src = v
                else:
                    # src[:, p] = v[:, (p + dh*16 + dw) mod 256]   (XLU rotate)
                    src = pltpu.roll(v, (-(dh * _W + dw)) % _HW, axis=1)
                contrib = jnp.dot(w_ref[t], src,
                                  preferred_element_type=jnp.float32)
                part = contrib if part is None else part + contrib
            if dh != 0 or dw != 0:
                # Zero output columns whose source pixel falls outside the
                # 16x16 image; this also exactly covers every wrapped lane of
                # the roll, so no zero-padded input copies are ever built.
                conds = []
                if dh > 0:
                    conds.append(ii < _H - dh)
                if dh < 0:
                    conds.append(ii >= -dh)
                if dw > 0:
                    conds.append(jj < _W - dw)
                if dw < 0:
                    conds.append(jj >= -dw)
                valid = conds[0]
                for extra in conds[1:]:
                    valid = valid & extra
                part = jnp.where(valid, part, 0.0)
            acc = part if acc is None else acc + part
        if bias_ref is not None:
            acc = acc + bias_ref[...]                 # (Cout, 1) broadcast
        if relu:
            acc = jnp.maximum(acc, 0.0)
        if residual is not None:
            acc = acc + residual
        return acc

    # conv_D over concat([x_input, z]) == conv over x_input + conv over z.
    x_D = conv3x3([(wDx_ref, x_in), (wDz_ref, z)])                # 34 -> 32
    y1 = conv3x3([(w11_ref, x_D)], b11_ref, relu=True)            # RB1 conv1
    x1 = conv3x3([(w12_ref, y1)], b12_ref, residual=x_D)          # RB1 out
    y2 = conv3x3([(w21_ref, x1)], b21_ref, relu=True)             # RB2 conv1
    x_back = conv3x3([(w22_ref, y2)], b22_ref, residual=x1)       # RB2 out
    x_G = conv3x3([(wG_ref, x_back)])                             # 32 -> 2

    # Lane-dense writeback (last dim 256, unmasked stores).
    xpred_ref[...] = x_in + x_G                                   # (2, 256)
    xback_ref[...] = x_back                                       # (32, 256)


def _tap_major(w):
    """(Cout, Cin, 3, 3) -> (9, Cout, Cin); tap index t = kh*3 + kw."""
    cout, cin = w.shape[0], w.shape[1]
    return jnp.transpose(w, (2, 3, 0, 1)).reshape(9, cout, cin)


def basic_block_forward(params, Rk1, z, h, c, PhiTPhi, PhiTb):
    B = Rk1.shape[0]

    # Tap-major conv weights; conv_D split into its x (2ch) and z (32ch) parts.
    wD = _tap_major(params['conv_D'])              # (9, 32, 34)
    wDx, wDz = wD[:, :, :2], wD[:, :, 2:]
    w11 = _tap_major(params['rb1_w1'])
    w12 = _tap_major(params['rb1_w2'])
    w21 = _tap_major(params['rb2_w1'])
    w22 = _tap_major(params['rb2_w2'])
    wG = _tap_major(params['conv_G'])              # (9, 2, 32)
    b11 = params['rb1_b1'].reshape(-1, 1)
    b12 = params['rb1_b2'].reshape(-1, 1)
    b21 = params['rb2_b1'].reshape(-1, 1)
    b22 = params['rb2_b2'].reshape(-1, 1)

    phitphi_bf16 = PhiTPhi.astype(jnp.bfloat16)    # halves the dominant DMA
    rk1_3 = Rk1.reshape(B, 1, 512)
    ptb_3 = PhiTb.reshape(B, 1, 512)
    z_3 = z.reshape(B, 32, _HW)

    conv_macs = 9 * _HW * (34 * 32 + 4 * 32 * 32 + 32 * 2)     # per image
    cost = pl.CostEstimate(
        flops=2 * B * (512 * 512 + conv_macs),
        transcendentals=0,
        bytes_accessed=(PhiTPhi.size * 2 + (Rk1.size + PhiTb.size) * 4
                        + z.size * 4
                        + 9 * 4 * (34 * 32 + 4 * 32 * 32 + 2 * 32) + 4 * 32 * 4
                        + B * (2 + 32) * _HW * 4))

    row_spec = pl.BlockSpec((pl.Squeezed(), 1, 512), lambda b: (b, 0, 0))
    z_spec = pl.BlockSpec((pl.Squeezed(), 32, _HW), lambda b: (b, 0, 0))
    pred_spec = pl.BlockSpec((pl.Squeezed(), 2, _HW), lambda b: (b, 0, 0))
    back_spec = pl.BlockSpec((pl.Squeezed(), 32, _HW), lambda b: (b, 0, 0))

    x_pred3, x_back3 = pl.pallas_call(
        _fused_basic_block_kernel,
        out_shape=(jax.ShapeDtypeStruct((B, 2, _HW), jnp.float32),
                   jax.ShapeDtypeStruct((B, 32, _HW), jnp.float32)),
        grid=(B,),
        in_specs=[_SMEM,                 # lambda_step (scalar)
                  row_spec,              # Rk1   (per-image row)
                  _VMEM,                 # PhiTPhi (bf16, whole-array resident)
                  row_spec,              # PhiTb (per-image row)
                  z_spec,                # z     (per-image channel-major slab)
                  _VMEM, _VMEM,          # conv_D (x part, z part)
                  _VMEM, _VMEM, _VMEM, _VMEM,   # RB1 w1, b1, w2, b2
                  _VMEM, _VMEM, _VMEM, _VMEM,   # RB2 w1, b1, w2, b2
                  _VMEM],                # conv_G
        out_specs=(pred_spec, back_spec),
        compiler_params=pltpu.CompilerParams(
            dimension_semantics=("parallel",),
            vmem_limit_bytes=8 * 1024 * 1024),
        cost_estimate=cost,
    )(params['lambda_step'], rk1_3, phitphi_bf16, ptb_3, z_3,
      wDx, wDz, w11, b11, w12, b12, w21, b21, w22, b22, wG)

    x_pred = x_pred3.reshape(B, 2, _H, _W)
    x_backward = x_back3.reshape(B, 32, _H, _W)
    return x_pred, x_backward, h, c                   # h, c pass through


# ---------------------------------------------------------------------------
# Pure-JAX reference (NCHW, lax.conv, full f32) for correctness check
# ---------------------------------------------------------------------------
def reference_forward(params, Rk1, z, h, c, PhiTPhi, PhiTb):
    lam = params['lambda_step'][0]
    x = Rk1 - lam * (Rk1 @ PhiTPhi) + lam * PhiTb
    x_input = x.reshape(-1, 2, 16, 16)

    def conv(inp, w, b):
        y = jax.lax.conv_general_dilated(
            inp, w, (1, 1), ((1, 1), (1, 1)),
            dimension_numbers=('NCHW', 'OIHW', 'NCHW'))
        return y if b is None else y + b.reshape(1, -1, 1, 1)

    def rb(xx, w1, b1, w2, b2):
        y = jax.nn.relu(conv(xx, w1, b1))
        return conv(y, w2, b2) + xx

    x_a = jnp.concatenate([x_input, z], axis=1)
    x_D = conv(x_a, params['conv_D'], None)
    x1 = rb(x_D, params['rb1_w1'], params['rb1_b1'],
            params['rb1_w2'], params['rb1_b2'])
    x_backward = rb(x1, params['rb2_w1'], params['rb2_b1'],
                    params['rb2_w2'], params['rb2_b2'])
    x_G = conv(x_backward, params['conv_G'], None)
    return x_input + x_G, x_backward, h, c


# ---------------------------------------------------------------------------
if __name__ == "__main__":
    key = jax.random.PRNGKey(0)
    ks = jax.random.split(key, 16)
    B = 2

    def xavier_normal(k, shape):
        fan_out = shape[0] * shape[2] * shape[3]
        fan_in = shape[1] * shape[2] * shape[3]
        std = (2.0 / (fan_in + fan_out)) ** 0.5
        return std * jax.random.normal(k, shape, jnp.float32)

    params = {
        'lambda_step': jnp.array([0.5], jnp.float32),
        'conv_D': xavier_normal(ks[0], (32, 34, 3, 3)),
        'conv_G': xavier_normal(ks[1], (2, 32, 3, 3)),
        'rb1_w1': xavier_normal(ks[2], (32, 32, 3, 3)),
        'rb1_b1': 0.01 * jax.random.normal(ks[3], (32,), dtype=jnp.float32),
        'rb1_w2': xavier_normal(ks[4], (32, 32, 3, 3)),
        'rb1_b2': 0.01 * jax.random.normal(ks[5], (32,), dtype=jnp.float32),
        'rb2_w1': xavier_normal(ks[6], (32, 32, 3, 3)),
        'rb2_b1': 0.01 * jax.random.normal(ks[7], (32,), dtype=jnp.float32),
        'rb2_w2': xavier_normal(ks[8], (32, 32, 3, 3)),
        'rb2_b2': 0.01 * jax.random.normal(ks[9], (32,), dtype=jnp.float32),
    }

    Rk1 = jax.random.normal(ks[10], (B, 512), dtype=jnp.float32)
    z = jax.random.normal(ks[11], (B, 32, 16, 16), dtype=jnp.float32)
    h = jax.random.normal(ks[12], (B, 32, 16, 16), dtype=jnp.float32)
    c = jax.random.normal(ks[13], (B, 32, 16, 16), dtype=jnp.float32)
    PhiTPhi = jax.random.normal(ks[14], (512, 512), dtype=jnp.float32) / 512.0
    PhiTb = jax.random.normal(ks[15], (B, 512), dtype=jnp.float32)

    x_pred, x_backward, h_out, c_out = jax.jit(basic_block_forward)(
        params, Rk1, z, h, c, PhiTPhi, PhiTb)
    jax.block_until_ready((x_pred, x_backward, h_out, c_out))

    # correctness check against pure-JAX (f32) reference
    r_pred, r_back, _, _ = reference_forward(params, Rk1, z, h, c, PhiTPhi, PhiTb)
    np.testing.assert_allclose(np.asarray(x_pred), np.asarray(r_pred),
                               rtol=1e-3, atol=1e-3)
    np.testing.assert_allclose(np.asarray(x_backward), np.asarray(r_back),
                               rtol=1e-3, atol=1e-3)
    assert x_pred.shape == (B, 2, 16, 16) and x_backward.shape == (B, 32, 16, 16)

    print("KERNEL_OK")
</pallas_src>

<mosaic_0001>
module attributes {stable_mosaic.version = 11 : i64} {
  func.func @_fused_basic_block_kernel(%arg0: i32, %arg1: memref<1xf32, #tpu.memory_space<smem>>, %arg2: memref<1x1x512xf32, #tpu.memory_space<vmem>>, %arg3: memref<512x512xbf16, #tpu.memory_space<vmem>>, %arg4: memref<1x1x512xf32, #tpu.memory_space<vmem>>, %arg5: memref<1x32x256xf32, #tpu.memory_space<vmem>>, %arg6: memref<9x32x2xf32, #tpu.memory_space<vmem>>, %arg7: memref<9x32x32xf32, #tpu.memory_space<vmem>>, %arg8: memref<9x32x32xf32, #tpu.memory_space<vmem>>, %arg9: memref<32x1xf32, #tpu.memory_space<vmem>>, %arg10: memref<9x32x32xf32, #tpu.memory_space<vmem>>, %arg11: memref<32x1xf32, #tpu.memory_space<vmem>>, %arg12: memref<9x32x32xf32, #tpu.memory_space<vmem>>, %arg13: memref<32x1xf32, #tpu.memory_space<vmem>>, %arg14: memref<9x32x32xf32, #tpu.memory_space<vmem>>, %arg15: memref<32x1xf32, #tpu.memory_space<vmem>>, %arg16: memref<9x2x32xf32, #tpu.memory_space<vmem>>, %arg17: memref<1x2x256xf32, #tpu.memory_space<vmem>>, %arg18: memref<1x32x256xf32, #tpu.memory_space<vmem>>) attributes {dimension_semantics = [#tpu.dimension_semantics<parallel>], iteration_bounds = array<i64: 2>, scalar_prefetch = 0 : i64, scratch_operands = 0 : i64, tpu.core_type = #tpu.core_type<tc>, window_params = [{transform_indices = @transform_0, window_bounds = array<i64: 1>}, {transform_indices = @transform_1, window_bounds = array<i64: 1, 1, 512>}, {pipeline_mode = #tpu.pipeline_mode<synchronous>, transform_indices = @transform_2, window_bounds = array<i64: 512, 512>}, {transform_indices = @transform_3, window_bounds = array<i64: 1, 1, 512>}, {transform_indices = @transform_4, window_bounds = array<i64: 1, 32, 256>}, {pipeline_mode = #tpu.pipeline_mode<synchronous>, transform_indices = @transform_5, window_bounds = array<i64: 9, 32, 2>}, {pipeline_mode = #tpu.pipeline_mode<synchronous>, transform_indices = @transform_6, window_bounds = array<i64: 9, 32, 32>}, {pipeline_mode = #tpu.pipeline_mode<synchronous>, transform_indices = @transform_7, window_bounds = array<i64: 9, 32, 32>}, {pipeline_mode = #tpu.pipeline_mode<synchronous>, transform_indices = @transform_8, window_bounds = array<i64: 32, 1>}, {pipeline_mode = #tpu.pipeline_mode<synchronous>, transform_indices = @transform_9, window_bounds = array<i64: 9, 32, 32>}, {pipeline_mode = #tpu.pipeline_mode<synchronous>, transform_indices = @transform_10, window_bounds = array<i64: 32, 1>}, {pipeline_mode = #tpu.pipeline_mode<synchronous>, transform_indices = @transform_11, window_bounds = array<i64: 9, 32, 32>}, {pipeline_mode = #tpu.pipeline_mode<synchronous>, transform_indices = @transform_12, window_bounds = array<i64: 32, 1>}, {pipeline_mode = #tpu.pipeline_mode<synchronous>, transform_indices = @transform_13, window_bounds = array<i64: 9, 32, 32>}, {pipeline_mode = #tpu.pipeline_mode<synchronous>, transform_indices = @transform_14, window_bounds = array<i64: 32, 1>}, {pipeline_mode = #tpu.pipeline_mode<synchronous>, transform_indices = @transform_15, window_bounds = array<i64: 9, 2, 32>}, {transform_indices = @transform_16, window_bounds = array<i64: 1, 2, 256>}, {transform_indices = @transform_17, window_bounds = array<i64: 1, 32, 256>}]} {
    %c0 = arith.constant 0 : index
    %0 = memref.load %arg1[%c0] : memref<1xf32, #tpu.memory_space<smem>>
    %c0_0 = arith.constant 0 : index
    %c0_1 = arith.constant 0 : index
    %c0_2 = arith.constant 0 : index
    %1 = vector.load %arg2[%c0_0, %c0_1, %c0_2] : memref<1x1x512xf32, #tpu.memory_space<vmem>>, vector<1x1x512xf32>
    %2 = vector.shape_cast %1 : vector<1x1x512xf32> to vector<1x512xf32>
    %3 = arith.truncf %2 : vector<1x512xf32> to vector<1x512xbf16>
    %c0_3 = arith.constant 0 : index
    %c0_4 = arith.constant 0 : index
    %4 = vector.load %arg3[%c0_3, %c0_4] : memref<512x512xbf16, #tpu.memory_space<vmem>>, vector<512x512xbf16>
    %cst = arith.constant dense<0.000000e+00> : vector<1x512xf32>
    %5 = tpu.matmul %3, %4, %cst {dimension_numbers = #tpu.dot_dimension_numbers<[1], [0], [0], [1], [0, 0, 1, 1], [], []>} : vector<1x512xbf16>, vector<512x512xbf16>, vector<1x512xf32> -> vector<1x512xf32>
    %6 = vector.broadcast %0 : f32 to vector<1x512xf32>
    %7 = arith.mulf %6, %5 : vector<1x512xf32>
    %8 = arith.subf %2, %7 : vector<1x512xf32>
    %c0_5 = arith.constant 0 : index
    %c0_6 = arith.constant 0 : index
    %c0_7 = arith.constant 0 : index
    %9 = vector.load %arg4[%c0_5, %c0_6, %c0_7] : memref<1x1x512xf32, #tpu.memory_space<vmem>>, vector<1x1x512xf32>
    %10 = vector.shape_cast %9 : vector<1x1x512xf32> to vector<1x512xf32>
    %11 = vector.broadcast %0 : f32 to vector<1x512xf32>
    %12 = arith.mulf %11, %10 : vector<1x512xf32>
    %13 = arith.addf %8, %12 : vector<1x512xf32>
    %14 = vector.extract_strided_slice %13 {offsets = [0, 0], sizes = [1, 256], strides = [1, 1]} : vector<1x512xf32> to vector<1x256xf32>
    %15 = vector.extract_strided_slice %13 {offsets = [0, 256], sizes = [1, 256], strides = [1, 1]} : vector<1x512xf32> to vector<1x256xf32>
    %16 = tpu.concatenate %14, %15 in 0 : vector<1x256xf32>, vector<1x256xf32> -> vector<2x256xf32>
    %c0_8 = arith.constant 0 : index
    %c0_9 = arith.constant 0 : index
    %c0_10 = arith.constant 0 : index
    %17 = vector.load %arg5[%c0_8, %c0_9, %c0_10] : memref<1x32x256xf32, #tpu.memory_space<vmem>>, vector<1x32x256xf32>
    %18 = vector.shape_cast %17 : vector<1x32x256xf32> to vector<32x256xf32>
    %19 = tpu.iota {dimensions = array<i32: 1>} : vector<1x256xi32>
    %c4_i32 = arith.constant 4 : i32
    %20 = vector.broadcast %c4_i32 : i32 to vector<1x256xi32>
    %21 = arith.shrsi %19, %20 : vector<1x256xi32>
    %c15_i32 = arith.constant 15 : i32
    %22 = vector.broadcast %c15_i32 : i32 to vector<1x256xi32>
    %23 = arith.andi %19, %22 : vector<1x256xi32>
    %c17_i32 = arith.constant 17 : i32
    %24 = tpu.dynamic_rotate %16 by %c17_i32 dim 1 : vector<2x256xf32>, i32 -> vector<2x256xf32>
    %c0_11 = arith.constant 0 : index
    %c0_12 = arith.constant 0 : index
    %c0_13 = arith.constant 0 : index
    %25 = vector.load %arg6[%c0_11, %c0_12, %c0_13] : memref<9x32x2xf32, #tpu.memory_space<vmem>>, vector<1x32x2xf32>
    %26 = vector.shape_cast %25 : vector<1x32x2xf32> to vector<32x2xf32>
    %cst_14 = arith.constant dense<0.000000e+00> : vector<32x256xf32>
    %27 = tpu.matmul %26, %24, %cst_14 {dimension_numbers = #tpu.dot_dimension_numbers<[1], [0], [0], [1], [0, 0, 1, 1], [], []>} : vector<32x2xf32>, vector<2x256xf32>, vector<32x256xf32> -> vector<32x256xf32>
    %c17_i32_15 = arith.constant 17 : i32
    %28 = tpu.dynamic_rotate %18 by %c17_i32_15 dim 1 : vector<32x256xf32>, i32 -> vector<32x256xf32>
    %c0_16 = arith.constant 0 : index
    %c0_17 = arith.constant 0 : index
    %c0_18 = arith.constant 0 : index
    %29 = vector.load %arg7[%c0_16, %c0_17, %c0_18] : memref<9x32x32xf32, #tpu.memory_space<vmem>>, vector<1x32x32xf32>
    %30 = vector.shape_cast %29 : vector<1x32x32xf32> to vector<32x32xf32>
    %cst_19 = arith.constant dense<0.000000e+00> : vector<32x256xf32>
    %31 = tpu.matmul %30, %28, %cst_19 {dimension_numbers = #tpu.dot_dimension_numbers<[1], [0], [0], [1], [0, 0, 1, 1], [], []>} : vector<32x32xf32>, vector<32x256xf32>, vector<32x256xf32> -> vector<32x256xf32>
    %32 = arith.addf %27, %31 : vector<32x256xf32>
    %c1_i32 = arith.constant 1 : i32
    %33 = vector.broadcast %c1_i32 : i32 to vector<1x256xi32>
    %34 = arith.cmpi sge, %21, %33 : vector<1x256xi32>
    %c1_i32_20 = arith.constant 1 : i32
    %35 = vector.broadcast %c1_i32_20 : i32 to vector<1x256xi32>
    %36 = arith.cmpi sge, %23, %35 : vector<1x256xi32>
    %37 = arith.andi %34, %36 : vector<1x256xi1>
    %cst_21 = arith.constant 0.000000e+00 : f32
    %38 = vector.shape_cast %37 : vector<1x256xi1> to vector<1x256xi1>
    %39 = vector.broadcast %38 : vector<1x256xi1> to vector<32x256xi1>
    %40 = vector.broadcast %cst_21 : f32 to vector<32x256xf32>
    %41 = arith.select %39, %32, %40 : vector<32x256xi1>, vector<32x256xf32>
    %c16_i32 = arith.constant 16 : i32
    %42 = tpu.dynamic_rotate %16 by %c16_i32 dim 1 : vector<2x256xf32>, i32 -> vector<2x256xf32>
    %c1 = arith.constant 1 : index
    %c0_22 = arith.constant 0 : index
    %c0_23 = arith.constant 0 : index
    %43 = vector.load %arg6[%c1, %c0_22, %c0_23] : memref<9x32x2xf32, #tpu.memory_space<vmem>>, vector<1x32x2xf32>
    %44 = vector.shape_cast %43 : vector<1x32x2xf32> to vector<32x2xf32>
    %cst_24 = arith.constant dense<0.000000e+00> : vector<32x256xf32>
    %45 = tpu.matmul %44, %42, %cst_24 {dimension_numbers = #tpu.dot_dimension_numbers<[1], [0], [0], [1], [0, 0, 1, 1], [], []>} : vector<32x2xf32>, vector<2x256xf32>, vector<32x256xf32> -> vector<32x256xf32>
    %c16_i32_25 = arith.constant 16 : i32
    %46 = tpu.dynamic_rotate %18 by %c16_i32_25 dim 1 : vector<32x256xf32>, i32 -> vector<32x256xf32>
    %c1_26 = arith.constant 1 : index
    %c0_27 = arith.constant 0 : index
    %c0_28 = arith.constant 0 : index
    %47 = vector.load %arg7[%c1_26, %c0_27, %c0_28] : memref<9x32x32xf32, #tpu.memory_space<vmem>>, vector<1x32x32xf32>
    %48 = vector.shape_cast %47 : vector<1x32x32xf32> to vector<32x32xf32>
    %cst_29 = arith.constant dense<0.000000e+00> : vector<32x256xf32>
    %49 = tpu.matmul %48, %46, %cst_29 {dimension_numbers = #tpu.dot_dimension_numbers<[1], [0], [0], [1], [0, 0, 1, 1], [], []>} : vector<32x32xf32>, vector<32x256xf32>, vector<32x256xf32> -> vector<32x256xf32>
    %50 = arith.addf %45, %49 : vector<32x256xf32>
    %c1_i32_30 = arith.constant 1 : i32
    %51 = vector.broadcast %c1_i32_30 : i32 to vector<1x256xi32>
    %52 = arith.cmpi sge, %21, %51 : vector<1x256xi32>
    %cst_31 = arith.constant 0.000000e+00 : f32
    %53 = vector.shape_cast %52 : vector<1x256xi1> to vector<1x256xi1>
    %54 = vector.broadcast %53 : vector<1x256xi1> to vector<32x256xi1>
    %55 = vector.broadcast %cst_31 : f32 to vector<32x256xf32>
    %56 = arith.select %54, %50, %55 : vector<32x256xi1>, vector<32x256xf32>
    %57 = arith.addf %41, %56 : vector<32x256xf32>
    %c15_i32_32 = arith.constant 15 : i32
    %58 = tpu.dynamic_rotate %16 by %c15_i32_32 dim 1 : vector<2x256xf32>, i32 -> vector<2x256xf32>
    %c2 = arith.constant 2 : index
    %c0_33 = arith.constant 0 : index
    %c0_34 = arith.constant 0 : index
    %59 = vector.load %arg6[%c2, %c0_33, %c0_34] : memref<9x32x2xf32, #tpu.memory_space<vmem>>, vector<1x32x2xf32>
    %60 = vector.shape_cast %59 : vector<1x32x2xf32> to vector<32x2xf32>
    %cst_35 = arith.constant dense<0.000000e+00> : vector<32x256xf32>
    %61 = tpu.matmul %60, %58, %cst_35 {dimension_numbers = #tpu.dot_dimension_numbers<[1], [0], [0], [1], [0, 0, 1, 1], [], []>} : vector<32x2xf32>, vector<2x256xf32>, vector<32x256xf32> -> vector<32x256xf32>
    %c15_i32_36 = arith.constant 15 : i32
    %62 = tpu.dynamic_rotate %18 by %c15_i32_36 dim 1 : vector<32x256xf32>, i32 -> vector<32x256xf32>
    %c2_37 = arith.constant 2 : index
    %c0_38 = arith.constant 0 : index
    %c0_39 = arith.constant 0 : index
    %63 = vector.load %arg7[%c2_37, %c0_38, %c0_39] : memref<9x32x32xf32, #tpu.memory_space<vmem>>, vector<1x32x32xf32>
    %64 = vector.shape_cast %63 : vector<1x32x32xf32> to vector<32x32xf32>
    %cst_40 = arith.constant dense<0.000000e+00> : vector<32x256xf32>
    %65 = tpu.matmul %64, %62, %cst_40 {dimension_numbers = #tpu.dot_dimension_numbers<[1], [0], [0], [1], [0, 0, 1, 1], [], []>} : vector<32x32xf32>, vector<32x256xf32>, vector<32x256xf32> -> vector<32x256xf32>
    %66 = arith.addf %61, %65 : vector<32x256xf32>
    %c1_i32_41 = arith.constant 1 : i32
    %67 = vector.broadcast %c1_i32_41 : i32 to vector<1x256xi32>
    %68 = arith.cmpi sge, %21, %67 : vector<1x256xi32>
    %c15_i32_42 = arith.constant 15 : i32
    %69 = vector.broadcast %c15_i32_42 : i32 to vector<1x256xi32>
    %70 = arith.cmpi slt, %23, %69 : vector<1x256xi32>
    %71 = arith.andi %68, %70 : vector<1x256xi1>
    %cst_43 = arith.constant 0.000000e+00 : f32
    %72 = vector.shape_cast %71 : vector<1x256xi1> to vector<1x256xi1>
    %73 = vector.broadcast %72 : vector<1x256xi1> to vector<32x256xi1>
    %74 = vector.broadcast %cst_43 : f32 to vector<32x256xf32>
    %75 = arith.select %73, %66, %74 : vector<32x256xi1>, vector<32x256xf32>
    %76 = arith.addf %57, %75 : vector<32x256xf32>
    %c1_i32_44 = arith.constant 1 : i32
    %77 = tpu.dynamic_rotate %16 by %c1_i32_44 dim 1 : vector<2x256xf32>, i32 -> vector<2x256xf32>
    %c3 = arith.constant 3 : index
    %c0_45 = arith.constant 0 : index
    %c0_46 = arith.constant 0 : index
    %78 = vector.load %arg6[%c3, %c0_45, %c0_46] : memref<9x32x2xf32, #tpu.memory_space<vmem>>, vector<1x32x2xf32>
    %79 = vector.shape_cast %78 : vector<1x32x2xf32> to vector<32x2xf32>
    %cst_47 = arith.constant dense<0.000000e+00> : vector<32x256xf32>
    %80 = tpu.matmul %79, %77, %cst_47 {dimension_numbers = #tpu.dot_dimension_numbers<[1], [0], [0], [1], [0, 0, 1, 1], [], []>} : vector<32x2xf32>, vector<2x256xf32>, vector<32x256xf32> -> vector<32x256xf32>
    %c1_i32_48 = arith.constant 1 : i32
    %81 = tpu.dynamic_rotate %18 by %c1_i32_48 dim 1 : vector<32x256xf32>, i32 -> vector<32x256xf32>
    %c3_49 = arith.constant 3 : index
    %c0_50 = arith.constant 0 : index
    %c0_51 = arith.constant 0 : index
    %82 = vector.load %arg7[%c3_49, %c0_50, %c0_51] : memref<9x32x32xf32, #tpu.memory_space<vmem>>, vector<1x32x32xf32>
    %83 = vector.shape_cast %82 : vector<1x32x32xf32> to vector<32x32xf32>
    %cst_52 = arith.constant dense<0.000000e+00> : vector<32x256xf32>
    %84 = tpu.matmul %83, %81, %cst_52 {dimension_numbers = #tpu.dot_dimension_numbers<[1], [0], [0], [1], [0, 0, 1, 1], [], []>} : vector<32x32xf32>, vector<32x256xf32>, vector<32x256xf32> -> vector<32x256xf32>
    %85 = arith.addf %80, %84 : vector<32x256xf32>
    %c1_i32_53 = arith.constant 1 : i32
    %86 = vector.broadcast %c1_i32_53 : i32 to vector<1x256xi32>
    %87 = arith.cmpi sge, %23, %86 : vector<1x256xi32>
    %cst_54 = arith.constant 0.000000e+00 : f32
    %88 = vector.shape_cast %87 : vector<1x256xi1> to vector<1x256xi1>
    %89 = vector.broadcast %88 : vector<1x256xi1> to vector<32x256xi1>
    %90 = vector.broadcast %cst_54 : f32 to vector<32x256xf32>
    %91 = arith.select %89, %85, %90 : vector<32x256xi1>, vector<32x256xf32>
    %92 = arith.addf %76, %91 : vector<32x256xf32>
    %c4 = arith.constant 4 : index
    %c0_55 = arith.constant 0 : index
    %c0_56 = arith.constant 0 : index
    %93 = vector.load %arg6[%c4, %c0_55, %c0_56] : memref<9x32x2xf32, #tpu.memory_space<vmem>>, vector<1x32x2xf32>
    %94 = vector.shape_cast %93 : vector<1x32x2xf32> to vector<32x2xf32>
    %cst_57 = arith.constant dense<0.000000e+00> : vector<32x256xf32>
    %95 = tpu.matmul %94, %16, %cst_57 {dimension_numbers = #tpu.dot_dimension_numbers<[1], [0], [0], [1], [0, 0, 1, 1], [], []>} : vector<32x2xf32>, vector<2x256xf32>, vector<32x256xf32> -> vector<32x256xf32>
    %c4_58 = arith.constant 4 : index
    %c0_59 = arith.constant 0 : index
    %c0_60 = arith.constant 0 : index
    %96 = vector.load %arg7[%c4_58, %c0_59, %c0_60] : memref<9x32x32xf32, #tpu.memory_space<vmem>>, vector<1x32x32xf32>
    %97 = vector.shape_cast %96 : vector<1x32x32xf32> to vector<32x32xf32>
    %cst_61 = arith.constant dense<0.000000e+00> : vector<32x256xf32>
    %98 = tpu.matmul %97, %18, %cst_61 {dimension_numbers = #tpu.dot_dimension_numbers<[1], [0], [0], [1], [0, 0, 1, 1], [], []>} : vector<32x32xf32>, vector<32x256xf32>, vector<32x256xf32> -> vector<32x256xf32>
    %99 = arith.addf %95, %98 : vector<32x256xf32>
    %100 = arith.addf %92, %99 : vector<32x256xf32>
    %c255_i32 = arith.constant 255 : i32
    %101 = tpu.dynamic_rotate %16 by %c255_i32 dim 1 : vector<2x256xf32>, i32 -> vector<2x256xf32>
    %c5 = arith.constant 5 : index
    %c0_62 = arith.constant 0 : index
    %c0_63 = arith.constant 0 : index
    %102 = vector.load %arg6[%c5, %c0_62, %c0_63] : memref<9x32x2xf32, #tpu.memory_space<vmem>>, vector<1x32x2xf32>
    %103 = vector.shape_cast %102 : vector<1x32x2xf32> to vector<32x2xf32>
    %cst_64 = arith.constant dense<0.000000e+00> : vector<32x256xf32>
    %104 = tpu.matmul %103, %101, %cst_64 {dimension_numbers = #tpu.dot_dimension_numbers<[1], [0], [0], [1], [0, 0, 1, 1], [], []>} : vector<32x2xf32>, vector<2x256xf32>, vector<32x256xf32> -> vector<32x256xf32>
    %c255_i32_65 = arith.constant 255 : i32
    %105 = tpu.dynamic_rotate %18 by %c255_i32_65 dim 1 : vector<32x256xf32>, i32 -> vector<32x256xf32>
    %c5_66 = arith.constant 5 : index
    %c0_67 = arith.constant 0 : index
    %c0_68 = arith.constant 0 : index
    %106 = vector.load %arg7[%c5_66, %c0_67, %c0_68] : memref<9x32x32xf32, #tpu.memory_space<vmem>>, vector<1x32x32xf32>
    %107 = vector.shape_cast %106 : vector<1x32x32xf32> to vector<32x32xf32>
    %cst_69 = arith.constant dense<0.000000e+00> : vector<32x256xf32>
    %108 = tpu.matmul %107, %105, %cst_69 {dimension_numbers = #tpu.dot_dimension_numbers<[1], [0], [0], [1], [0, 0, 1, 1], [], []>} : vector<32x32xf32>, vector<32x256xf32>, vector<32x256xf32> -> vector<32x256xf32>
    %109 = arith.addf %104, %108 : vector<32x256xf32>
    %c15_i32_70 = arith.constant 15 : i32
    %110 = vector.broadcast %c15_i32_70 : i32 to vector<1x256xi32>
    %111 = arith.cmpi slt, %23, %110 : vector<1x256xi32>
    %cst_71 = arith.constant 0.000000e+00 : f32
    %112 = vector.shape_cast %111 : vector<1x256xi1> to vector<1x256xi1>
    %113 = vector.broadcast %112 : vector<1x256xi1> to vector<32x256xi1>
    %114 = vector.broadcast %cst_71 : f32 to vector<32x256xf32>
    %115 = arith.select %113, %109, %114 : vector<32x256xi1>, vector<32x256xf32>
    %116 = arith.addf %100, %115 : vector<32x256xf32>
    %c241_i32 = arith.constant 241 : i32
    %117 = tpu.dynamic_rotate %16 by %c241_i32 dim 1 : vector<2x256xf32>, i32 -> vector<2x256xf32>
    %c6 = arith.constant 6 : index
    %c0_72 = arith.constant 0 : index
    %c0_73 = arith.constant 0 : index
    %118 = vector.load %arg6[%c6, %c0_72, %c0_73] : memref<9x32x2xf32, #tpu.memory_space<vmem>>, vector<1x32x2xf32>
    %119 = vector.shape_cast %118 : vector<1x32x2xf32> to vector<32x2xf32>
    %cst_74 = arith.constant dense<0.000000e+00> : vector<32x256xf32>
    %120 = tpu.matmul %119, %117, %cst_74 {dimension_numbers = #tpu.dot_dimension_numbers<[1], [0], [0], [1], [0, 0, 1, 1], [], []>} : vector<32x2xf32>, vector<2x256xf32>, vector<32x256xf32> -> vector<32x256xf32>
    %c241_i32_75 = arith.constant 241 : i32
    %121 = tpu.dynamic_rotate %18 by %c241_i32_75 dim 1 : vector<32x256xf32>, i32 -> vector<32x256xf32>
    %c6_76 = arith.constant 6 : index
    %c0_77 = arith.constant 0 : index
    %c0_78 = arith.constant 0 : index
    %122 = vector.load %arg7[%c6_76, %c0_77, %c0_78] : memref<9x32x32xf32, #tpu.memory_space<vmem>>, vector<1x32x32xf32>
    %123 = vector.shape_cast %122 : vector<1x32x32xf32> to vector<32x32xf32>
    %cst_79 = arith.constant dense<0.000000e+00> : vector<32x256xf32>
    %124 = tpu.matmul %123, %121, %cst_79 {dimension_numbers = #tpu.dot_dimension_numbers<[1], [0], [0], [1], [0, 0, 1, 1], [], []>} : vector<32x32xf32>, vector<32x256xf32>, vector<32x256xf32> -> vector<32x256xf32>
    %125 = arith.addf %120, %124 : vector<32x256xf32>
    %c15_i32_80 = arith.constant 15 : i32
    %126 = vector.broadcast %c15_i32_80 : i32 to vector<1x256xi32>
    %127 = arith.cmpi slt, %21, %126 : vector<1x256xi32>
    %c1_i32_81 = arith.constant 1 : i32
    %128 = vector.broadcast %c1_i32_81 : i32 to vector<1x256xi32>
    %129 = arith.cmpi sge, %23, %128 : vector<1x256xi32>
    %130 = arith.andi %127, %129 : vector<1x256xi1>
    %cst_82 = arith.constant 0.000000e+00 : f32
    %131 = vector.shape_cast %130 : vector<1x256xi1> to vector<1x256xi1>
    %132 = vector.broadcast %131 : vector<1x256xi1> to vector<32x256xi1>
    %133 = vector.broadcast %cst_82 : f32 to vector<32x256xf32>
    %134 = arith.select %132, %125, %133 : vector<32x256xi1>, vector<32x256xf32>
    %135 = arith.addf %116, %134 : vector<32x256xf32>
    %c240_i32 = arith.constant 240 : i32
    %136 = tpu.dynamic_rotate %16 by %c240_i32 dim 1 : vector<2x256xf32>, i32 -> vector<2x256xf32>
    %c7 = arith.constant 7 : index
    %c0_83 = arith.constant 0 : index
    %c0_84 = arith.constant 0 : index
    %137 = vector.load %arg6[%c7, %c0_83, %c0_84] : memref<9x32x2xf32, #tpu.memory_space<vmem>>, vector<1x32x2xf32>
    %138 = vector.shape_cast %137 : vector<1x32x2xf32> to vector<32x2xf32>
    %cst_85 = arith.constant dense<0.000000e+00> : vector<32x256xf32>
    %139 = tpu.matmul %138, %136, %cst_85 {dimension_numbers = #tpu.dot_dimension_numbers<[1], [0], [0], [1], [0, 0, 1, 1], [], []>} : vector<32x2xf32>, vector<2x256xf32>, vector<32x256xf32> -> vector<32x256xf32>
    %c240_i32_86 = arith.constant 240 : i32
    %140 = tpu.dynamic_rotate %18 by %c240_i32_86 dim 1 : vector<32x256xf32>, i32 -> vector<32x256xf32>
    %c7_87 = arith.constant 7 : index
    %c0_88 = arith.constant 0 : index
    %c0_89 = arith.constant 0 : index
    %141 = vector.load %arg7[%c7_87, %c0_88, %c0_89] : memref<9x32x32xf32, #tpu.memory_space<vmem>>, vector<1x32x32xf32>
    %142 = vector.shape_cast %141 : vector<1x32x32xf32> to vector<32x32xf32>
    %cst_90 = arith.constant dense<0.000000e+00> : vector<32x256xf32>
    %143 = tpu.matmul %142, %140, %cst_90 {dimension_numbers = #tpu.dot_dimension_numbers<[1], [0], [0], [1], [0, 0, 1, 1], [], []>} : vector<32x32xf32>, vector<32x256xf32>, vector<32x256xf32> -> vector<32x256xf32>
    %144 = arith.addf %139, %143 : vector<32x256xf32>
    %c15_i32_91 = arith.constant 15 : i32
    %145 = vector.broadcast %c15_i32_91 : i32 to vector<1x256xi32>
    %146 = arith.cmpi slt, %21, %145 : vector<1x256xi32>
    %cst_92 = arith.constant 0.000000e+00 : f32
    %147 = vector.shape_cast %146 : vector<1x256xi1> to vector<1x256xi1>
    %148 = vector.broadcast %147 : vector<1x256xi1> to vector<32x256xi1>
    %149 = vector.broadcast %cst_92 : f32 to vector<32x256xf32>
    %150 = arith.select %148, %144, %149 : vector<32x256xi1>, vector<32x256xf32>
    %151 = arith.addf %135, %150 : vector<32x256xf32>
    %c239_i32 = arith.constant 239 : i32
    %152 = tpu.dynamic_rotate %16 by %c239_i32 dim 1 : vector<2x256xf32>, i32 -> vector<2x256xf32>
    %c8 = arith.constant 8 : index
    %c0_93 = arith.constant 0 : index
    %c0_94 = arith.constant 0 : index
    %153 = vector.load %arg6[%c8, %c0_93, %c0_94] : memref<9x32x2xf32, #tpu.memory_space<vmem>>, vector<1x32x2xf32>
    %154 = vector.shape_cast %153 : vector<1x32x2xf32> to vector<32x2xf32>
    %cst_95 = arith.constant dense<0.000000e+00> : vector<32x256xf32>
    %155 = tpu.matmul %154, %152, %cst_95 {dimension_numbers = #tpu.dot_dimension_numbers<[1], [0], [0], [1], [0, 0, 1, 1], [], []>} : vector<32x2xf32>, vector<2x256xf32>, vector<32x256xf32> -> vector<32x256xf32>
    %c239_i32_96 = arith.constant 239 : i32
    %156 = tpu.dynamic_rotate %18 by %c239_i32_96 dim 1 : vector<32x256xf32>, i32 -> vector<32x256xf32>
    %c8_97 = arith.constant 8 : index
    %c0_98 = arith.constant 0 : index
    %c0_99 = arith.constant 0 : index
    %157 = vector.load %arg7[%c8_97, %c0_98, %c0_99] : memref<9x32x32xf32, #tpu.memory_space<vmem>>, vector<1x32x32xf32>
    %158 = vector.shape_cast %157 : vector<1x32x32xf32> to vector<32x32xf32>
    %cst_100 = arith.constant dense<0.000000e+00> : vector<32x256xf32>
    %159 = tpu.matmul %158, %156, %cst_100 {dimension_numbers = #tpu.dot_dimension_numbers<[1], [0], [0], [1], [0, 0, 1, 1], [], []>} : vector<32x32xf32>, vector<32x256xf32>, vector<32x256xf32> -> vector<32x256xf32>
    %160 = arith.addf %155, %159 : vector<32x256xf32>
    %c15_i32_101 = arith.constant 15 : i32
    %161 = vector.broadcast %c15_i32_101 : i32 to vector<1x256xi32>
    %162 = arith.cmpi slt, %21, %161 : vector<1x256xi32>
    %c15_i32_102 = arith.constant 15 : i32
    %163 = vector.broadcast %c15_i32_102 : i32 to vector<1x256xi32>
    %164 = arith.cmpi slt, %23, %163 : vector<1x256xi32>
    %165 = arith.andi %162, %164 : vector<1x256xi1>
    %cst_103 = arith.constant 0.000000e+00 : f32
    %166 = vector.shape_cast %165 : vector<1x256xi1> to vector<1x256xi1>
    %167 = vector.broadcast %166 : vector<1x256xi1> to vector<32x256xi1>
    %168 = vector.broadcast %cst_103 : f32 to vector<32x256xf32>
    %169 = arith.select %167, %160, %168 : vector<32x256xi1>, vector<32x256xf32>
    %170 = arith.addf %151, %169 : vector<32x256xf32>
    %c17_i32_104 = arith.constant 17 : i32
    %171 = tpu.dynamic_rotate %170 by %c17_i32_104 dim 1 : vector<32x256xf32>, i32 -> vector<32x256xf32>
    %c0_105 = arith.constant 0 : index
    %c0_106 = arith.constant 0 : index
    %c0_107 = arith.constant 0 : index
    %172 = vector.load %arg8[%c0_105, %c0_106, %c0_107] : memref<9x32x32xf32, #tpu.memory_space<vmem>>, vector<1x32x32xf32>
    %173 = vector.shape_cast %172 : vector<1x32x32xf32> to vector<32x32xf32>
    %cst_108 = arith.constant dense<0.000000e+00> : vector<32x256xf32>
    %174 = tpu.matmul %173, %171, %cst_108 {dimension_numbers = #tpu.dot_dimension_numbers<[1], [0], [0], [1], [0, 0, 1, 1], [], []>} : vector<32x32xf32>, vector<32x256xf32>, vector<32x256xf32> -> vector<32x256xf32>
    %c1_i32_109 = arith.constant 1 : i32
    %175 = vector.broadcast %c1_i32_109 : i32 to vector<1x256xi32>
    %176 = arith.cmpi sge, %21, %175 : vector<1x256xi32>
    %c1_i32_110 = arith.constant 1 : i32
    %177 = vector.broadcast %c1_i32_110 : i32 to vector<1x256xi32>
    %178 = arith.cmpi sge, %23, %177 : vector<1x256xi32>
    %179 = arith.andi %176, %178 : vector<1x256xi1>
    %cst_111 = arith.constant 0.000000e+00 : f32
    %180 = vector.shape_cast %179 : vector<1x256xi1> to vector<1x256xi1>
    %181 = vector.broadcast %180 : vector<1x256xi1> to vector<32x256xi1>
    %182 = vector.broadcast %cst_111 : f32 to vector<32x256xf32>
    %183 = arith.select %181, %174, %182 : vector<32x256xi1>, vector<32x256xf32>
    %c16_i32_112 = arith.constant 16 : i32
    %184 = tpu.dynamic_rotate %170 by %c16_i32_112 dim 1 : vector<32x256xf32>, i32 -> vector<32x256xf32>
    %c1_113 = arith.constant 1 : index
    %c0_114 = arith.constant 0 : index
    %c0_115 = arith.constant 0 : index
    %185 = vector.load %arg8[%c1_113, %c0_114, %c0_115] : memref<9x32x32xf32, #tpu.memory_space<vmem>>, vector<1x32x32xf32>
    %186 = vector.shape_cast %185 : vector<1x32x32xf32> to vector<32x32xf32>
    %cst_116 = arith.constant dense<0.000000e+00> : vector<32x256xf32>
    %187 = tpu.matmul %186, %184, %cst_116 {dimension_numbers = #tpu.dot_dimension_numbers<[1], [0], [0], [1], [0, 0, 1, 1], [], []>} : vector<32x32xf32>, vector<32x256xf32>, vector<32x256xf32> -> vector<32x256xf32>
    %c1_i32_117 = arith.constant 1 : i32
    %188 = vector.broadcast %c1_i32_117 : i32 to vector<1x256xi32>
    %189 = arith.cmpi sge, %21, %188 : vector<1x256xi32>
    %cst_118 = arith.constant 0.000000e+00 : f32
    %190 = vector.shape_cast %189 : vector<1x256xi1> to vector<1x256xi1>
    %191 = vector.broadcast %190 : vector<1x256xi1> to vector<32x256xi1>
    %192 = vector.broadcast %cst_118 : f32 to vector<32x256xf32>
    %193 = arith.select %191, %187, %192 : vector<32x256xi1>, vector<32x256xf32>
    %194 = arith.addf %183, %193 : vector<32x256xf32>
    %c15_i32_119 = arith.constant 15 : i32
    %195 = tpu.dynamic_rotate %170 by %c15_i32_119 dim 1 : vector<32x256xf32>, i32 -> vector<32x256xf32>
    %c2_120 = arith.constant 2 : index
    %c0_121 = arith.constant 0 : index
    %c0_122 = arith.constant 0 : index
    %196 = vector.load %arg8[%c2_120, %c0_121, %c0_122] : memref<9x32x32xf32, #tpu.memory_space<vmem>>, vector<1x32x32xf32>
    %197 = vector.shape_cast %196 : vector<1x32x32xf32> to vector<32x32xf32>
    %cst_123 = arith.constant dense<0.000000e+00> : vector<32x256xf32>
    %198 = tpu.matmul %197, %195, %cst_123 {dimension_numbers = #tpu.dot_dimension_numbers<[1], [0], [0], [1], [0, 0, 1, 1], [], []>} : vector<32x32xf32>, vector<32x256xf32>, vector<32x256xf32> -> vector<32x256xf32>
    %c1_i32_124 = arith.constant 1 : i32
    %199 = vector.broadcast %c1_i32_124 : i32 to vector<1x256xi32>
    %200 = arith.cmpi sge, %21, %199 : vector<1x256xi32>
    %c15_i32_125 = arith.constant 15 : i32
    %201 = vector.broadcast %c15_i32_125 : i32 to vector<1x256xi32>
    %202 = arith.cmpi slt, %23, %201 : vector<1x256xi32>
    %203 = arith.andi %200, %202 : vector<1x256xi1>
    %cst_126 = arith.constant 0.000000e+00 : f32
    %204 = vector.shape_cast %203 : vector<1x256xi1> to vector<1x256xi1>
    %205 = vector.broadcast %204 : vector<1x256xi1> to vector<32x256xi1>
    %206 = vector.broadcast %cst_126 : f32 to vector<32x256xf32>
    %207 = arith.select %205, %198, %206 : vector<32x256xi1>, vector<32x256xf32>
    %208 = arith.addf %194, %207 : vector<32x256xf32>
    %c1_i32_127 = arith.constant 1 : i32
    %209 = tpu.dynamic_rotate %170 by %c1_i32_127 dim 1 : vector<32x256xf32>, i32 -> vector<32x256xf32>
    %c3_128 = arith.constant 3 : index
    %c0_129 = arith.constant 0 : index
    %c0_130 = arith.constant 0 : index
    %210 = vector.load %arg8[%c3_128, %c0_129, %c0_130] : memref<9x32x32xf32, #tpu.memory_space<vmem>>, vector<1x32x32xf32>
    %211 = vector.shape_cast %210 : vector<1x32x32xf32> to vector<32x32xf32>
    %cst_131 = arith.constant dense<0.000000e+00> : vector<32x256xf32>
    %212 = tpu.matmul %211, %209, %cst_131 {dimension_numbers = #tpu.dot_dimension_numbers<[1], [0], [0], [1], [0, 0, 1, 1], [], []>} : vector<32x32xf32>, vector<32x256xf32>, vector<32x256xf32> -> vector<32x256xf32>
    %c1_i32_132 = arith.constant 1 : i32
    %213 = vector.broadcast %c1_i32_132 : i32 to vector<1x256xi32>
    %214 = arith.cmpi sge, %23, %213 : vector<1x256xi32>
    %cst_133 = arith.constant 0.000000e+00 : f32
    %215 = vector.shape_cast %214 : vector<1x256xi1> to vector<1x256xi1>
    %216 = vector.broadcast %215 : vector<1x256xi1> to vector<32x256xi1>
    %217 = vector.broadcast %cst_133 : f32 to vector<32x256xf32>
    %218 = arith.select %216, %212, %217 : vector<32x256xi1>, vector<32x256xf32>
    %219 = arith.addf %208, %218 : vector<32x256xf32>
    %c4_134 = arith.constant 4 : index
    %c0_135 = arith.constant 0 : index
    %c0_136 = arith.constant 0 : index
    %220 = vector.load %arg8[%c4_134, %c0_135, %c0_136] : memref<9x32x32xf32, #tpu.memory_space<vmem>>, vector<1x32x32xf32>
    %221 = vector.shape_cast %220 : vector<1x32x32xf32> to vector<32x32xf32>
    %cst_137 = arith.constant dense<0.000000e+00> : vector<32x256xf32>
    %222 = tpu.matmul %221, %170, %cst_137 {dimension_numbers = #tpu.dot_dimension_numbers<[1], [0], [0], [1], [0, 0, 1, 1], [], []>} : vector<32x32xf32>, vector<32x256xf32>, vector<32x256xf32> -> vector<32x256xf32>
    %223 = arith.addf %219, %222 : vector<32x256xf32>
    %c255_i32_138 = arith.constant 255 : i32
    %224 = tpu.dynamic_rotate %170 by %c255_i32_138 dim 1 : vector<32x256xf32>, i32 -> vector<32x256xf32>
    %c5_139 = arith.constant 5 : index
    %c0_140 = arith.constant 0 : index
    %c0_141 = arith.constant 0 : index
    %225 = vector.load %arg8[%c5_139, %c0_140, %c0_141] : memref<9x32x32xf32, #tpu.memory_space<vmem>>, vector<1x32x32xf32>
    %226 = vector.shape_cast %225 : vector<1x32x32xf32> to vector<32x32xf32>
    %cst_142 = arith.constant dense<0.000000e+00> : vector<32x256xf32>
    %227 = tpu.matmul %226, %224, %cst_142 {dimension_numbers = #tpu.dot_dimension_numbers<[1], [0], [0], [1], [0, 0, 1, 1], [], []>} : vector<32x32xf32>, vector<32x256xf32>, vector<32x256xf32> -> vector<32x256xf32>
    %c15_i32_143 = arith.constant 15 : i32
    %228 = vector.broadcast %c15_i32_143 : i32 to vector<1x256xi32>
    %229 = arith.cmpi slt, %23, %228 : vector<1x256xi32>
    %cst_144 = arith.constant 0.000000e+00 : f32
    %230 = vector.shape_cast %229 : vector<1x256xi1> to vector<1x256xi1>
    %231 = vector.broadcast %230 : vector<1x256xi1> to vector<32x256xi1>
    %232 = vector.broadcast %cst_144 : f32 to vector<32x256xf32>
    %233 = arith.select %231, %227, %232 : vector<32x256xi1>, vector<32x256xf32>
    %234 = arith.addf %223, %233 : vector<32x256xf32>
    %c241_i32_145 = arith.constant 241 : i32
    %235 = tpu.dynamic_rotate %170 by %c241_i32_145 dim 1 : vector<32x256xf32>, i32 -> vector<32x256xf32>
    %c6_146 = arith.constant 6 : index
    %c0_147 = arith.constant 0 : index
    %c0_148 = arith.constant 0 : index
    %236 = vector.load %arg8[%c6_146, %c0_147, %c0_148] : memref<9x32x32xf32, #tpu.memory_space<vmem>>, vector<1x32x32xf32>
    %237 = vector.shape_cast %236 : vector<1x32x32xf32> to vector<32x32xf32>
    %cst_149 = arith.constant dense<0.000000e+00> : vector<32x256xf32>
    %238 = tpu.matmul %237, %235, %cst_149 {dimension_numbers = #tpu.dot_dimension_numbers<[1], [0], [0], [1], [0, 0, 1, 1], [], []>} : vector<32x32xf32>, vector<32x256xf32>, vector<32x256xf32> -> vector<32x256xf32>
    %c15_i32_150 = arith.constant 15 : i32
    %239 = vector.broadcast %c15_i32_150 : i32 to vector<1x256xi32>
    %240 = arith.cmpi slt, %21, %239 : vector<1x256xi32>
    %c1_i32_151 = arith.constant 1 : i32
    %241 = vector.broadcast %c1_i32_151 : i32 to vector<1x256xi32>
    %242 = arith.cmpi sge, %23, %241 : vector<1x256xi32>
    %243 = arith.andi %240, %242 : vector<1x256xi1>
    %cst_152 = arith.constant 0.000000e+00 : f32
    %244 = vector.shape_cast %243 : vector<1x256xi1> to vector<1x256xi1>
    %245 = vector.broadcast %244 : vector<1x256xi1> to vector<32x256xi1>
    %246 = vector.broadcast %cst_152 : f32 to vector<32x256xf32>
    %247 = arith.select %245, %238, %246 : vector<32x256xi1>, vector<32x256xf32>
    %248 = arith.addf %234, %247 : vector<32x256xf32>
    %c240_i32_153 = arith.constant 240 : i32
    %249 = tpu.dynamic_rotate %170 by %c240_i32_153 dim 1 : vector<32x256xf32>, i32 -> vector<32x256xf32>
    %c7_154 = arith.constant 7 : index
    %c0_155 = arith.constant 0 : index
    %c0_156 = arith.constant 0 : index
    %250 = vector.load %arg8[%c7_154, %c0_155, %c0_156] : memref<9x32x32xf32, #tpu.memory_space<vmem>>, vector<1x32x32xf32>
    %251 = vector.shape_cast %250 : vector<1x32x32xf32> to vector<32x32xf32>
    %cst_157 = arith.constant dense<0.000000e+00> : vector<32x256xf32>
    %252 = tpu.matmul %251, %249, %cst_157 {dimension_numbers = #tpu.dot_dimension_numbers<[1], [0], [0], [1], [0, 0, 1, 1], [], []>} : vector<32x32xf32>, vector<32x256xf32>, vector<32x256xf32> -> vector<32x256xf32>
    %c15_i32_158 = arith.constant 15 : i32
    %253 = vector.broadcast %c15_i32_158 : i32 to vector<1x256xi32>
    %254 = arith.cmpi slt, %21, %253 : vector<1x256xi32>
    %cst_159 = arith.constant 0.000000e+00 : f32
    %255 = vector.shape_cast %254 : vector<1x256xi1> to vector<1x256xi1>
    %256 = vector.broadcast %255 : vector<1x256xi1> to vector<32x256xi1>
    %257 = vector.broadcast %cst_159 : f32 to vector<32x256xf32>
    %258 = arith.select %256, %252, %257 : vector<32x256xi1>, vector<32x256xf32>
    %259 = arith.addf %248, %258 : vector<32x256xf32>
    %c239_i32_160 = arith.constant 239 : i32
    %260 = tpu.dynamic_rotate %170 by %c239_i32_160 dim 1 : vector<32x256xf32>, i32 -> vector<32x256xf32>
    %c8_161 = arith.constant 8 : index
    %c0_162 = arith.constant 0 : index
    %c0_163 = arith.constant 0 : index
    %261 = vector.load %arg8[%c8_161, %c0_162, %c0_163] : memref<9x32x32xf32, #tpu.memory_space<vmem>>, vector<1x32x32xf32>
    %262 = vector.shape_cast %261 : vector<1x32x32xf32> to vector<32x32xf32>
    %cst_164 = arith.constant dense<0.000000e+00> : vector<32x256xf32>
    %263 = tpu.matmul %262, %260, %cst_164 {dimension_numbers = #tpu.dot_dimension_numbers<[1], [0], [0], [1], [0, 0, 1, 1], [], []>} : vector<32x32xf32>, vector<32x256xf32>, vector<32x256xf32> -> vector<32x256xf32>
    %c15_i32_165 = arith.constant 15 : i32
    %264 = vector.broadcast %c15_i32_165 : i32 to vector<1x256xi32>
    %265 = arith.cmpi slt, %21, %264 : vector<1x256xi32>
    %c15_i32_166 = arith.constant 15 : i32
    %266 = vector.broadcast %c15_i32_166 : i32 to vector<1x256xi32>
    %267 = arith.cmpi slt, %23, %266 : vector<1x256xi32>
    %268 = arith.andi %265, %267 : vector<1x256xi1>
    %cst_167 = arith.constant 0.000000e+00 : f32
    %269 = vector.shape_cast %268 : vector<1x256xi1> to vector<1x256xi1>
    %270 = vector.broadcast %269 : vector<1x256xi1> to vector<32x256xi1>
    %271 = vector.broadcast %cst_167 : f32 to vector<32x256xf32>
    %272 = arith.select %270, %263, %271 : vector<32x256xi1>, vector<32x256xf32>
    %273 = arith.addf %259, %272 : vector<32x256xf32>
    %c0_168 = arith.constant 0 : index
    %c0_169 = arith.constant 0 : index
    %274 = vector.load %arg9[%c0_168, %c0_169] : memref<32x1xf32, #tpu.memory_space<vmem>>, vector<32x1xf32>
    %275 = vector.broadcast %274 : vector<32x1xf32> to vector<32x256xf32>
    %276 = arith.addf %273, %275 : vector<32x256xf32>
    %cst_170 = arith.constant 0.000000e+00 : f32
    %277 = vector.broadcast %cst_170 : f32 to vector<32x256xf32>
    %278 = arith.maximumf %276, %277 : vector<32x256xf32>
    %c17_i32_171 = arith.constant 17 : i32
    %279 = tpu.dynamic_rotate %278 by %c17_i32_171 dim 1 : vector<32x256xf32>, i32 -> vector<32x256xf32>
    %c0_172 = arith.constant 0 : index
    %c0_173 = arith.constant 0 : index
    %c0_174 = arith.constant 0 : index
    %280 = vector.load %arg10[%c0_172, %c0_173, %c0_174] : memref<9x32x32xf32, #tpu.memory_space<vmem>>, vector<1x32x32xf32>
    %281 = vector.shape_cast %280 : vector<1x32x32xf32> to vector<32x32xf32>
    %cst_175 = arith.constant dense<0.000000e+00> : vector<32x256xf32>
    %282 = tpu.matmul %281, %279, %cst_175 {dimension_numbers = #tpu.dot_dimension_numbers<[1], [0], [0], [1], [0, 0, 1, 1], [], []>} : vector<32x32xf32>, vector<32x256xf32>, vector<32x256xf32> -> vector<32x256xf32>
    %c1_i32_176 = arith.constant 1 : i32
    %283 = vector.broadcast %c1_i32_176 : i32 to vector<1x256xi32>
    %284 = arith.cmpi sge, %21, %283 : vector<1x256xi32>
    %c1_i32_177 = arith.constant 1 : i32
    %285 = vector.broadcast %c1_i32_177 : i32 to vector<1x256xi32>
    %286 = arith.cmpi sge, %23, %285 : vector<1x256xi32>
    %287 = arith.andi %284, %286 : vector<1x256xi1>
    %cst_178 = arith.constant 0.000000e+00 : f32
    %288 = vector.shape_cast %287 : vector<1x256xi1> to vector<1x256xi1>
    %289 = vector.broadcast %288 : vector<1x256xi1> to vector<32x256xi1>
    %290 = vector.broadcast %cst_178 : f32 to vector<32x256xf32>
    %291 = arith.select %289, %282, %290 : vector<32x256xi1>, vector<32x256xf32>
    %c16_i32_179 = arith.constant 16 : i32
    %292 = tpu.dynamic_rotate %278 by %c16_i32_179 dim 1 : vector<32x256xf32>, i32 -> vector<32x256xf32>
    %c1_180 = arith.constant 1 : index
    %c0_181 = arith.constant 0 : index
    %c0_182 = arith.constant 0 : index
    %293 = vector.load %arg10[%c1_180, %c0_181, %c0_182] : memref<9x32x32xf32, #tpu.memory_space<vmem>>, vector<1x32x32xf32>
    %294 = vector.shape_cast %293 : vector<1x32x32xf32> to vector<32x32xf32>
    %cst_183 = arith.constant dense<0.000000e+00> : vector<32x256xf32>
    %295 = tpu.matmul %294, %292, %cst_183 {dimension_numbers = #tpu.dot_dimension_numbers<[1], [0], [0], [1], [0, 0, 1, 1], [], []>} : vector<32x32xf32>, vector<32x256xf32>, vector<32x256xf32> -> vector<32x256xf32>
    %c1_i32_184 = arith.constant 1 : i32
    %296 = vector.broadcast %c1_i32_184 : i32 to vector<1x256xi32>
    %297 = arith.cmpi sge, %21, %296 : vector<1x256xi32>
    %cst_185 = arith.constant 0.000000e+00 : f32
    %298 = vector.shape_cast %297 : vector<1x256xi1> to vector<1x256xi1>
    %299 = vector.broadcast %298 : vector<1x256xi1> to vector<32x256xi1>
    %300 = vector.broadcast %cst_185 : f32 to vector<32x256xf32>
    %301 = arith.select %299, %295, %300 : vector<32x256xi1>, vector<32x256xf32>
    %302 = arith.addf %291, %301 : vector<32x256xf32>
    %c15_i32_186 = arith.constant 15 : i32
    %303 = tpu.dynamic_rotate %278 by %c15_i32_186 dim 1 : vector<32x256xf32>, i32 -> vector<32x256xf32>
    %c2_187 = arith.constant 2 : index
    %c0_188 = arith.constant 0 : index
    %c0_189 = arith.constant 0 : index
    %304 = vector.load %arg10[%c2_187, %c0_188, %c0_189] : memref<9x32x32xf32, #tpu.memory_space<vmem>>, vector<1x32x32xf32>
    %305 = vector.shape_cast %304 : vector<1x32x32xf32> to vector<32x32xf32>
    %cst_190 = arith.constant dense<0.000000e+00> : vector<32x256xf32>
    %306 = tpu.matmul %305, %303, %cst_190 {dimension_numbers = #tpu.dot_dimension_numbers<[1], [0], [0], [1], [0, 0, 1, 1], [], []>} : vector<32x32xf32>, vector<32x256xf32>, vector<32x256xf32> -> vector<32x256xf32>
    %c1_i32_191 = arith.constant 1 : i32
    %307 = vector.broadcast %c1_i32_191 : i32 to vector<1x256xi32>
    %308 = arith.cmpi sge, %21, %307 : vector<1x256xi32>
    %c15_i32_192 = arith.constant 15 : i32
    %309 = vector.broadcast %c15_i32_192 : i32 to vector<1x256xi32>
    %310 = arith.cmpi slt, %23, %309 : vector<1x256xi32>
    %311 = arith.andi %308, %310 : vector<1x256xi1>
    %cst_193 = arith.constant 0.000000e+00 : f32
    %312 = vector.shape_cast %311 : vector<1x256xi1> to vector<1x256xi1>
    %313 = vector.broadcast %312 : vector<1x256xi1> to vector<32x256xi1>
    %314 = vector.broadcast %cst_193 : f32 to vector<32x256xf32>
    %315 = arith.select %313, %306, %314 : vector<32x256xi1>, vector<32x256xf32>
    %316 = arith.addf %302, %315 : vector<32x256xf32>
    %c1_i32_194 = arith.constant 1 : i32
    %317 = tpu.dynamic_rotate %278 by %c1_i32_194 dim 1 : vector<32x256xf32>, i32 -> vector<32x256xf32>
    %c3_195 = arith.constant 3 : index
    %c0_196 = arith.constant 0 : index
    %c0_197 = arith.constant 0 : index
    %318 = vector.load %arg10[%c3_195, %c0_196, %c0_197] : memref<9x32x32xf32, #tpu.memory_space<vmem>>, vector<1x32x32xf32>
    %319 = vector.shape_cast %318 : vector<1x32x32xf32> to vector<32x32xf32>
    %cst_198 = arith.constant dense<0.000000e+00> : vector<32x256xf32>
    %320 = tpu.matmul %319, %317, %cst_198 {dimension_numbers = #tpu.dot_dimension_numbers<[1], [0], [0], [1], [0, 0, 1, 1], [], []>} : vector<32x32xf32>, vector<32x256xf32>, vector<32x256xf32> -> vector<32x256xf32>
    %c1_i32_199 = arith.constant 1 : i32
    %321 = vector.broadcast %c1_i32_199 : i32 to vector<1x256xi32>
    %322 = arith.cmpi sge, %23, %321 : vector<1x256xi32>
    %cst_200 = arith.constant 0.000000e+00 : f32
    %323 = vector.shape_cast %322 : vector<1x256xi1> to vector<1x256xi1>
    %324 = vector.broadcast %323 : vector<1x256xi1> to vector<32x256xi1>
    %325 = vector.broadcast %cst_200 : f32 to vector<32x256xf32>
    %326 = arith.select %324, %320, %325 : vector<32x256xi1>, vector<32x256xf32>
    %327 = arith.addf %316, %326 : vector<32x256xf32>
    %c4_201 = arith.constant 4 : index
    %c0_202 = arith.constant 0 : index
    %c0_203 = arith.constant 0 : index
    %328 = vector.load %arg10[%c4_201, %c0_202, %c0_203] : memref<9x32x32xf32, #tpu.memory_space<vmem>>, vector<1x32x32xf32>
    %329 = vector.shape_cast %328 : vector<1x32x32xf32> to vector<32x32xf32>
    %cst_204 = arith.constant dense<0.000000e+00> : vector<32x256xf32>
    %330 = tpu.matmul %329, %278, %cst_204 {dimension_numbers = #tpu.dot_dimension_numbers<[1], [0], [0], [1], [0, 0, 1, 1], [], []>} : vector<32x32xf32>, vector<32x256xf32>, vector<32x256xf32> -> vector<32x256xf32>
    %331 = arith.addf %327, %330 : vector<32x256xf32>
    %c255_i32_205 = arith.constant 255 : i32
    %332 = tpu.dynamic_rotate %278 by %c255_i32_205 dim 1 : vector<32x256xf32>, i32 -> vector<32x256xf32>
    %c5_206 = arith.constant 5 : index
    %c0_207 = arith.constant 0 : index
    %c0_208 = arith.constant 0 : index
    %333 = vector.load %arg10[%c5_206, %c0_207, %c0_208] : memref<9x32x32xf32, #tpu.memory_space<vmem>>, vector<1x32x32xf32>
    %334 = vector.shape_cast %333 : vector<1x32x32xf32> to vector<32x32xf32>
    %cst_209 = arith.constant dense<0.000000e+00> : vector<32x256xf32>
    %335 = tpu.matmul %334, %332, %cst_209 {dimension_numbers = #tpu.dot_dimension_numbers<[1], [0], [0], [1], [0, 0, 1, 1], [], []>} : vector<32x32xf32>, vector<32x256xf32>, vector<32x256xf32> -> vector<32x256xf32>
    %c15_i32_210 = arith.constant 15 : i32
    %336 = vector.broadcast %c15_i32_210 : i32 to vector<1x256xi32>
    %337 = arith.cmpi slt, %23, %336 : vector<1x256xi32>
    %cst_211 = arith.constant 0.000000e+00 : f32
    %338 = vector.shape_cast %337 : vector<1x256xi1> to vector<1x256xi1>
    %339 = vector.broadcast %338 : vector<1x256xi1> to vector<32x256xi1>
    %340 = vector.broadcast %cst_211 : f32 to vector<32x256xf32>
    %341 = arith.select %339, %335, %340 : vector<32x256xi1>, vector<32x256xf32>
    %342 = arith.addf %331, %341 : vector<32x256xf32>
    %c241_i32_212 = arith.constant 241 : i32
    %343 = tpu.dynamic_rotate %278 by %c241_i32_212 dim 1 : vector<32x256xf32>, i32 -> vector<32x256xf32>
    %c6_213 = arith.constant 6 : index
    %c0_214 = arith.constant 0 : index
    %c0_215 = arith.constant 0 : index
    %344 = vector.load %arg10[%c6_213, %c0_214, %c0_215] : memref<9x32x32xf32, #tpu.memory_space<vmem>>, vector<1x32x32xf32>
    %345 = vector.shape_cast %344 : vector<1x32x32xf32> to vector<32x32xf32>
    %cst_216 = arith.constant dense<0.000000e+00> : vector<32x256xf32>
    %346 = tpu.matmul %345, %343, %cst_216 {dimension_numbers = #tpu.dot_dimension_numbers<[1], [0], [0], [1], [0, 0, 1, 1], [], []>} : vector<32x32xf32>, vector<32x256xf32>, vector<32x256xf32> -> vector<32x256xf32>
    %c15_i32_217 = arith.constant 15 : i32
    %347 = vector.broadcast %c15_i32_217 : i32 to vector<1x256xi32>
    %348 = arith.cmpi slt, %21, %347 : vector<1x256xi32>
    %c1_i32_218 = arith.constant 1 : i32
    %349 = vector.broadcast %c1_i32_218 : i32 to vector<1x256xi32>
    %350 = arith.cmpi sge, %23, %349 : vector<1x256xi32>
    %351 = arith.andi %348, %350 : vector<1x256xi1>
    %cst_219 = arith.constant 0.000000e+00 : f32
    %352 = vector.shape_cast %351 : vector<1x256xi1> to vector<1x256xi1>
    %353 = vector.broadcast %352 : vector<1x256xi1> to vector<32x256xi1>
    %354 = vector.broadcast %cst_219 : f32 to vector<32x256xf32>
    %355 = arith.select %353, %346, %354 : vector<32x256xi1>, vector<32x256xf32>
    %356 = arith.addf %342, %355 : vector<32x256xf32>
    %c240_i32_220 = arith.constant 240 : i32
    %357 = tpu.dynamic_rotate %278 by %c240_i32_220 dim 1 : vector<32x256xf32>, i32 -> vector<32x256xf32>
    %c7_221 = arith.constant 7 : index
    %c0_222 = arith.constant 0 : index
    %c0_223 = arith.constant 0 : index
    %358 = vector.load %arg10[%c7_221, %c0_222, %c0_223] : memref<9x32x32xf32, #tpu.memory_space<vmem>>, vector<1x32x32xf32>
    %359 = vector.shape_cast %358 : vector<1x32x32xf32> to vector<32x32xf32>
    %cst_224 = arith.constant dense<0.000000e+00> : vector<32x256xf32>
    %360 = tpu.matmul %359, %357, %cst_224 {dimension_numbers = #tpu.dot_dimension_numbers<[1], [0], [0], [1], [0, 0, 1, 1], [], []>} : vector<32x32xf32>, vector<32x256xf32>, vector<32x256xf32> -> vector<32x256xf32>
    %c15_i32_225 = arith.constant 15 : i32
    %361 = vector.broadcast %c15_i32_225 : i32 to vector<1x256xi32>
    %362 = arith.cmpi slt, %21, %361 : vector<1x256xi32>
    %cst_226 = arith.constant 0.000000e+00 : f32
    %363 = vector.shape_cast %362 : vector<1x256xi1> to vector<1x256xi1>
    %364 = vector.broadcast %363 : vector<1x256xi1> to vector<32x256xi1>
    %365 = vector.broadcast %cst_226 : f32 to vector<32x256xf32>
    %366 = arith.select %364, %360, %365 : vector<32x256xi1>, vector<32x256xf32>
    %367 = arith.addf %356, %366 : vector<32x256xf32>
    %c239_i32_227 = arith.constant 239 : i32
    %368 = tpu.dynamic_rotate %278 by %c239_i32_227 dim 1 : vector<32x256xf32>, i32 -> vector<32x256xf32>
    %c8_228 = arith.constant 8 : index
    %c0_229 = arith.constant 0 : index
    %c0_230 = arith.constant 0 : index
    %369 = vector.load %arg10[%c8_228, %c0_229, %c0_230] : memref<9x32x32xf32, #tpu.memory_space<vmem>>, vector<1x32x32xf32>
    %370 = vector.shape_cast %369 : vector<1x32x32xf32> to vector<32x32xf32>
    %cst_231 = arith.constant dense<0.000000e+00> : vector<32x256xf32>
    %371 = tpu.matmul %370, %368, %cst_231 {dimension_numbers = #tpu.dot_dimension_numbers<[1], [0], [0], [1], [0, 0, 1, 1], [], []>} : vector<32x32xf32>, vector<32x256xf32>, vector<32x256xf32> -> vector<32x256xf32>
    %c15_i32_232 = arith.constant 15 : i32
    %372 = vector.broadcast %c15_i32_232 : i32 to vector<1x256xi32>
    %373 = arith.cmpi slt, %21, %372 : vector<1x256xi32>
    %c15_i32_233 = arith.constant 15 : i32
    %374 = vector.broadcast %c15_i32_233 : i32 to vector<1x256xi32>
    %375 = arith.cmpi slt, %23, %374 : vector<1x256xi32>
    %376 = arith.andi %373, %375 : vector<1x256xi1>
    %cst_234 = arith.constant 0.000000e+00 : f32
    %377 = vector.shape_cast %376 : vector<1x256xi1> to vector<1x256xi1>
    %378 = vector.broadcast %377 : vector<1x256xi1> to vector<32x256xi1>
    %379 = vector.broadcast %cst_234 : f32 to vector<32x256xf32>
    %380 = arith.select %378, %371, %379 : vector<32x256xi1>, vector<32x256xf32>
    %381 = arith.addf %367, %380 : vector<32x256xf32>
    %c0_235 = arith.constant 0 : index
    %c0_236 = arith.constant 0 : index
    %382 = vector.load %arg11[%c0_235, %c0_236] : memref<32x1xf32, #tpu.memory_space<vmem>>, vector<32x1xf32>
    %383 = vector.broadcast %382 : vector<32x1xf32> to vector<32x256xf32>
    %384 = arith.addf %381, %383 : vector<32x256xf32>
    %385 = arith.addf %384, %170 : vector<32x256xf32>
    %c17_i32_237 = arith.constant 17 : i32
    %386 = tpu.dynamic_rotate %385 by %c17_i32_237 dim 1 : vector<32x256xf32>, i32 -> vector<32x256xf32>
    %c0_238 = arith.constant 0 : index
    %c0_239 = arith.constant 0 : index
    %c0_240 = arith.constant 0 : index
    %387 = vector.load %arg12[%c0_238, %c0_239, %c0_240] : memref<9x32x32xf32, #tpu.memory_space<vmem>>, vector<1x32x32xf32>
    %388 = vector.shape_cast %387 : vector<1x32x32xf32> to vector<32x32xf32>
    %cst_241 = arith.constant dense<0.000000e+00> : vector<32x256xf32>
    %389 = tpu.matmul %388, %386, %cst_241 {dimension_numbers = #tpu.dot_dimension_numbers<[1], [0], [0], [1], [0, 0, 1, 1], [], []>} : vector<32x32xf32>, vector<32x256xf32>, vector<32x256xf32> -> vector<32x256xf32>
    %c1_i32_242 = arith.constant 1 : i32
    %390 = vector.broadcast %c1_i32_242 : i32 to vector<1x256xi32>
    %391 = arith.cmpi sge, %21, %390 : vector<1x256xi32>
    %c1_i32_243 = arith.constant 1 : i32
    %392 = vector.broadcast %c1_i32_243 : i32 to vector<1x256xi32>
    %393 = arith.cmpi sge, %23, %392 : vector<1x256xi32>
    %394 = arith.andi %391, %393 : vector<1x256xi1>
    %cst_244 = arith.constant 0.000000e+00 : f32
    %395 = vector.shape_cast %394 : vector<1x256xi1> to vector<1x256xi1>
    %396 = vector.broadcast %395 : vector<1x256xi1> to vector<32x256xi1>
    %397 = vector.broadcast %cst_244 : f32 to vector<32x256xf32>
    %398 = arith.select %396, %389, %397 : vector<32x256xi1>, vector<32x256xf32>
    %c16_i32_245 = arith.constant 16 : i32
    %399 = tpu.dynamic_rotate %385 by %c16_i32_245 dim 1 : vector<32x256xf32>, i32 -> vector<32x256xf32>
    %c1_246 = arith.constant 1 : index
    %c0_247 = arith.constant 0 : index
    %c0_248 = arith.constant 0 : index
    %400 = vector.load %arg12[%c1_246, %c0_247, %c0_248] : memref<9x32x32xf32, #tpu.memory_space<vmem>>, vector<1x32x32xf32>
    %401 = vector.shape_cast %400 : vector<1x32x32xf32> to vector<32x32xf32>
    %cst_249 = arith.constant dense<0.000000e+00> : vector<32x256xf32>
    %402 = tpu.matmul %401, %399, %cst_249 {dimension_numbers = #tpu.dot_dimension_numbers<[1], [0], [0], [1], [0, 0, 1, 1], [], []>} : vector<32x32xf32>, vector<32x256xf32>, vector<32x256xf32> -> vector<32x256xf32>
    %c1_i32_250 = arith.constant 1 : i32
    %403 = vector.broadcast %c1_i32_250 : i32 to vector<1x256xi32>
    %404 = arith.cmpi sge, %21, %403 : vector<1x256xi32>
    %cst_251 = arith.constant 0.000000e+00 : f32
    %405 = vector.shape_cast %404 : vector<1x256xi1> to vector<1x256xi1>
    %406 = vector.broadcast %405 : vector<1x256xi1> to vector<32x256xi1>
    %407 = vector.broadcast %cst_251 : f32 to vector<32x256xf32>
    %408 = arith.select %406, %402, %407 : vector<32x256xi1>, vector<32x256xf32>
    %409 = arith.addf %398, %408 : vector<32x256xf32>
    %c15_i32_252 = arith.constant 15 : i32
    %410 = tpu.dynamic_rotate %385 by %c15_i32_252 dim 1 : vector<32x256xf32>, i32 -> vector<32x256xf32>
    %c2_253 = arith.constant 2 : index
    %c0_254 = arith.constant 0 : index
    %c0_255 = arith.constant 0 : index
    %411 = vector.load %arg12[%c2_253, %c0_254, %c0_255] : memref<9x32x32xf32, #tpu.memory_space<vmem>>, vector<1x32x32xf32>
    %412 = vector.shape_cast %411 : vector<1x32x32xf32> to vector<32x32xf32>
    %cst_256 = arith.constant dense<0.000000e+00> : vector<32x256xf32>
    %413 = tpu.matmul %412, %410, %cst_256 {dimension_numbers = #tpu.dot_dimension_numbers<[1], [0], [0], [1], [0, 0, 1, 1], [], []>} : vector<32x32xf32>, vector<32x256xf32>, vector<32x256xf32> -> vector<32x256xf32>
    %c1_i32_257 = arith.constant 1 : i32
    %414 = vector.broadcast %c1_i32_257 : i32 to vector<1x256xi32>
    %415 = arith.cmpi sge, %21, %414 : vector<1x256xi32>
    %c15_i32_258 = arith.constant 15 : i32
    %416 = vector.broadcast %c15_i32_258 : i32 to vector<1x256xi32>
    %417 = arith.cmpi slt, %23, %416 : vector<1x256xi32>
    %418 = arith.andi %415, %417 : vector<1x256xi1>
    %cst_259 = arith.constant 0.000000e+00 : f32
    %419 = vector.shape_cast %418 : vector<1x256xi1> to vector<1x256xi1>
    %420 = vector.broadcast %419 : vector<1x256xi1> to vector<32x256xi1>
    %421 = vector.broadcast %cst_259 : f32 to vector<32x256xf32>
    %422 = arith.select %420, %413, %421 : vector<32x256xi1>, vector<32x256xf32>
    %423 = arith.addf %409, %422 : vector<32x256xf32>
    %c1_i32_260 = arith.constant 1 : i32
    %424 = tpu.dynamic_rotate %385 by %c1_i32_260 dim 1 : vector<32x256xf32>, i32 -> vector<32x256xf32>
    %c3_261 = arith.constant 3 : index
    %c0_262 = arith.constant 0 : index
    %c0_263 = arith.constant 0 : index
    %425 = vector.load %arg12[%c3_261, %c0_262, %c0_263] : memref<9x32x32xf32, #tpu.memory_space<vmem>>, vector<1x32x32xf32>
    %426 = vector.shape_cast %425 : vector<1x32x32xf32> to vector<32x32xf32>
    %cst_264 = arith.constant dense<0.000000e+00> : vector<32x256xf32>
    %427 = tpu.matmul %426, %424, %cst_264 {dimension_numbers = #tpu.dot_dimension_numbers<[1], [0], [0], [1], [0, 0, 1, 1], [], []>} : vector<32x32xf32>, vector<32x256xf32>, vector<32x256xf32> -> vector<32x256xf32>
    %c1_i32_265 = arith.constant 1 : i32
    %428 = vector.broadcast %c1_i32_265 : i32 to vector<1x256xi32>
    %429 = arith.cmpi sge, %23, %428 : vector<1x256xi32>
    %cst_266 = arith.constant 0.000000e+00 : f32
    %430 = vector.shape_cast %429 : vector<1x256xi1> to vector<1x256xi1>
    %431 = vector.broadcast %430 : vector<1x256xi1> to vector<32x256xi1>
    %432 = vector.broadcast %cst_266 : f32 to vector<32x256xf32>
    %433 = arith.select %431, %427, %432 : vector<32x256xi1>, vector<32x256xf32>
    %434 = arith.addf %423, %433 : vector<32x256xf32>
    %c4_267 = arith.constant 4 : index
    %c0_268 = arith.constant 0 : index
    %c0_269 = arith.constant 0 : index
    %435 = vector.load %arg12[%c4_267, %c0_268, %c0_269] : memref<9x32x32xf32, #tpu.memory_space<vmem>>, vector<1x32x32xf32>
    %436 = vector.shape_cast %435 : vector<1x32x32xf32> to vector<32x32xf32>
    %cst_270 = arith.constant dense<0.000000e+00> : vector<32x256xf32>
    %437 = tpu.matmul %436, %385, %cst_270 {dimension_numbers = #tpu.dot_dimension_numbers<[1], [0], [0], [1], [0, 0, 1, 1], [], []>} : vector<32x32xf32>, vector<32x256xf32>, vector<32x256xf32> -> vector<32x256xf32>
    %438 = arith.addf %434, %437 : vector<32x256xf32>
    %c255_i32_271 = arith.constant 255 : i32
    %439 = tpu.dynamic_rotate %385 by %c255_i32_271 dim 1 : vector<32x256xf32>, i32 -> vector<32x256xf32>
    %c5_272 = arith.constant 5 : index
    %c0_273 = arith.constant 0 : index
    %c0_274 = arith.constant 0 : index
    %440 = vector.load %arg12[%c5_272, %c0_273, %c0_274] : memref<9x32x32xf32, #tpu.memory_space<vmem>>, vector<1x32x32xf32>
    %441 = vector.shape_cast %440 : vector<1x32x32xf32> to vector<32x32xf32>
    %cst_275 = arith.constant dense<0.000000e+00> : vector<32x256xf32>
    %442 = tpu.matmul %441, %439, %cst_275 {dimension_numbers = #tpu.dot_dimension_numbers<[1], [0], [0], [1], [0, 0, 1, 1], [], []>} : vector<32x32xf32>, vector<32x256xf32>, vector<32x256xf32> -> vector<32x256xf32>
    %c15_i32_276 = arith.constant 15 : i32
    %443 = vector.broadcast %c15_i32_276 : i32 to vector<1x256xi32>
    %444 = arith.cmpi slt, %23, %443 : vector<1x256xi32>
    %cst_277 = arith.constant 0.000000e+00 : f32
    %445 = vector.shape_cast %444 : vector<1x256xi1> to vector<1x256xi1>
    %446 = vector.broadcast %445 : vector<1x256xi1> to vector<32x256xi1>
    %447 = vector.broadcast %cst_277 : f32 to vector<32x256xf32>
    %448 = arith.select %446, %442, %447 : vector<32x256xi1>, vector<32x256xf32>
    %449 = arith.addf %438, %448 : vector<32x256xf32>
    %c241_i32_278 = arith.constant 241 : i32
    %450 = tpu.dynamic_rotate %385 by %c241_i32_278 dim 1 : vector<32x256xf32>, i32 -> vector<32x256xf32>
    %c6_279 = arith.constant 6 : index
    %c0_280 = arith.constant 0 : index
    %c0_281 = arith.constant 0 : index
    %451 = vector.load %arg12[%c6_279, %c0_280, %c0_281] : memref<9x32x32xf32, #tpu.memory_space<vmem>>, vector<1x32x32xf32>
    %452 = vector.shape_cast %451 : vector<1x32x32xf32> to vector<32x32xf32>
    %cst_282 = arith.constant dense<0.000000e+00> : vector<32x256xf32>
    %453 = tpu.matmul %452, %450, %cst_282 {dimension_numbers = #tpu.dot_dimension_numbers<[1], [0], [0], [1], [0, 0, 1, 1], [], []>} : vector<32x32xf32>, vector<32x256xf32>, vector<32x256xf32> -> vector<32x256xf32>
    %c15_i32_283 = arith.constant 15 : i32
    %454 = vector.broadcast %c15_i32_283 : i32 to vector<1x256xi32>
    %455 = arith.cmpi slt, %21, %454 : vector<1x256xi32>
    %c1_i32_284 = arith.constant 1 : i32
    %456 = vector.broadcast %c1_i32_284 : i32 to vector<1x256xi32>
    %457 = arith.cmpi sge, %23, %456 : vector<1x256xi32>
    %458 = arith.andi %455, %457 : vector<1x256xi1>
    %cst_285 = arith.constant 0.000000e+00 : f32
    %459 = vector.shape_cast %458 : vector<1x256xi1> to vector<1x256xi1>
    %460 = vector.broadcast %459 : vector<1x256xi1> to vector<32x256xi1>
    %461 = vector.broadcast %cst_285 : f32 to vector<32x256xf32>
    %462 = arith.select %460, %453, %461 : vector<32x256xi1>, vector<32x256xf32>
    %463 = arith.addf %449, %462 : vector<32x256xf32>
    %c240_i32_286 = arith.constant 240 : i32
    %464 = tpu.dynamic_rotate %385 by %c240_i32_286 dim 1 : vector<32x256xf32>, i32 -> vector<32x256xf32>
    %c7_287 = arith.constant 7 : index
    %c0_288 = arith.constant 0 : index
    %c0_289 = arith.constant 0 : index
    %465 = vector.load %arg12[%c7_287, %c0_288, %c0_289] : memref<9x32x32xf32, #tpu.memory_space<vmem>>, vector<1x32x32xf32>
    %466 = vector.shape_cast %465 : vector<1x32x32xf32> to vector<32x32xf32>
    %cst_290 = arith.constant dense<0.000000e+00> : vector<32x256xf32>
    %467 = tpu.matmul %466, %464, %cst_290 {dimension_numbers = #tpu.dot_dimension_numbers<[1], [0], [0], [1], [0, 0, 1, 1], [], []>} : vector<32x32xf32>, vector<32x256xf32>, vector<32x256xf32> -> vector<32x256xf32>
    %c15_i32_291 = arith.constant 15 : i32
    %468 = vector.broadcast %c15_i32_291 : i32 to vector<1x256xi32>
    %469 = arith.cmpi slt, %21, %468 : vector<1x256xi32>
    %cst_292 = arith.constant 0.000000e+00 : f32
    %470 = vector.shape_cast %469 : vector<1x256xi1> to vector<1x256xi1>
    %471 = vector.broadcast %470 : vector<1x256xi1> to vector<32x256xi1>
    %472 = vector.broadcast %cst_292 : f32 to vector<32x256xf32>
    %473 = arith.select %471, %467, %472 : vector<32x256xi1>, vector<32x256xf32>
    %474 = arith.addf %463, %473 : vector<32x256xf32>
    %c239_i32_293 = arith.constant 239 : i32
    %475 = tpu.dynamic_rotate %385 by %c239_i32_293 dim 1 : vector<32x256xf32>, i32 -> vector<32x256xf32>
    %c8_294 = arith.constant 8 : index
    %c0_295 = arith.constant 0 : index
    %c0_296 = arith.constant 0 : index
    %476 = vector.load %arg12[%c8_294, %c0_295, %c0_296] : memref<9x32x32xf32, #tpu.memory_space<vmem>>, vector<1x32x32xf32>
    %477 = vector.shape_cast %476 : vector<1x32x32xf32> to vector<32x32xf32>
    %cst_297 = arith.constant dense<0.000000e+00> : vector<32x256xf32>
    %478 = tpu.matmul %477, %475, %cst_297 {dimension_numbers = #tpu.dot_dimension_numbers<[1], [0], [0], [1], [0, 0, 1, 1], [], []>} : vector<32x32xf32>, vector<32x256xf32>, vector<32x256xf32> -> vector<32x256xf32>
    %c15_i32_298 = arith.constant 15 : i32
    %479 = vector.broadcast %c15_i32_298 : i32 to vector<1x256xi32>
    %480 = arith.cmpi slt, %21, %479 : vector<1x256xi32>
    %c15_i32_299 = arith.constant 15 : i32
    %481 = vector.broadcast %c15_i32_299 : i32 to vector<1x256xi32>
    %482 = arith.cmpi slt, %23, %481 : vector<1x256xi32>
    %483 = arith.andi %480, %482 : vector<1x256xi1>
    %cst_300 = arith.constant 0.000000e+00 : f32
    %484 = vector.shape_cast %483 : vector<1x256xi1> to vector<1x256xi1>
    %485 = vector.broadcast %484 : vector<1x256xi1> to vector<32x256xi1>
    %486 = vector.broadcast %cst_300 : f32 to vector<32x256xf32>
    %487 = arith.select %485, %478, %486 : vector<32x256xi1>, vector<32x256xf32>
    %488 = arith.addf %474, %487 : vector<32x256xf32>
    %c0_301 = arith.constant 0 : index
    %c0_302 = arith.constant 0 : index
    %489 = vector.load %arg13[%c0_301, %c0_302] : memref<32x1xf32, #tpu.memory_space<vmem>>, vector<32x1xf32>
    %490 = vector.broadcast %489 : vector<32x1xf32> to vector<32x256xf32>
    %491 = arith.addf %488, %490 : vector<32x256xf32>
    %cst_303 = arith.constant 0.000000e+00 : f32
    %492 = vector.broadcast %cst_303 : f32 to vector<32x256xf32>
    %493 = arith.maximumf %491, %492 : vector<32x256xf32>
    %c17_i32_304 = arith.constant 17 : i32
    %494 = tpu.dynamic_rotate %493 by %c17_i32_304 dim 1 : vector<32x256xf32>, i32 -> vector<32x256xf32>
    %c0_305 = arith.constant 0 : index
    %c0_306 = arith.constant 0 : index
    %c0_307 = arith.constant 0 : index
    %495 = vector.load %arg14[%c0_305, %c0_306, %c0_307] : memref<9x32x32xf32, #tpu.memory_space<vmem>>, vector<1x32x32xf32>
    %496 = vector.shape_cast %495 : vector<1x32x32xf32> to vector<32x32xf32>
    %cst_308 = arith.constant dense<0.000000e+00> : vector<32x256xf32>
    %497 = tpu.matmul %496, %494, %cst_308 {dimension_numbers = #tpu.dot_dimension_numbers<[1], [0], [0], [1], [0, 0, 1, 1], [], []>} : vector<32x32xf32>, vector<32x256xf32>, vector<32x256xf32> -> vector<32x256xf32>
    %c1_i32_309 = arith.constant 1 : i32
    %498 = vector.broadcast %c1_i32_309 : i32 to vector<1x256xi32>
    %499 = arith.cmpi sge, %21, %498 : vector<1x256xi32>
    %c1_i32_310 = arith.constant 1 : i32
    %500 = vector.broadcast %c1_i32_310 : i32 to vector<1x256xi32>
    %501 = arith.cmpi sge, %23, %500 : vector<1x256xi32>
    %502 = arith.andi %499, %501 : vector<1x256xi1>
    %cst_311 = arith.constant 0.000000e+00 : f32
    %503 = vector.shape_cast %502 : vector<1x256xi1> to vector<1x256xi1>
    %504 = vector.broadcast %503 : vector<1x256xi1> to vector<32x256xi1>
    %505 = vector.broadcast %cst_311 : f32 to vector<32x256xf32>
    %506 = arith.select %504, %497, %505 : vector<32x256xi1>, vector<32x256xf32>
    %c16_i32_312 = arith.constant 16 : i32
    %507 = tpu.dynamic_rotate %493 by %c16_i32_312 dim 1 : vector<32x256xf32>, i32 -> vector<32x256xf32>
    %c1_313 = arith.constant 1 : index
    %c0_314 = arith.constant 0 : index
    %c0_315 = arith.constant 0 : index
    %508 = vector.load %arg14[%c1_313, %c0_314, %c0_315] : memref<9x32x32xf32, #tpu.memory_space<vmem>>, vector<1x32x32xf32>
    %509 = vector.shape_cast %508 : vector<1x32x32xf32> to vector<32x32xf32>
    %cst_316 = arith.constant dense<0.000000e+00> : vector<32x256xf32>
    %510 = tpu.matmul %509, %507, %cst_316 {dimension_numbers = #tpu.dot_dimension_numbers<[1], [0], [0], [1], [0, 0, 1, 1], [], []>} : vector<32x32xf32>, vector<32x256xf32>, vector<32x256xf32> -> vector<32x256xf32>
    %c1_i32_317 = arith.constant 1 : i32
    %511 = vector.broadcast %c1_i32_317 : i32 to vector<1x256xi32>
    %512 = arith.cmpi sge, %21, %511 : vector<1x256xi32>
    %cst_318 = arith.constant 0.000000e+00 : f32
    %513 = vector.shape_cast %512 : vector<1x256xi1> to vector<1x256xi1>
    %514 = vector.broadcast %513 : vector<1x256xi1> to vector<32x256xi1>
    %515 = vector.broadcast %cst_318 : f32 to vector<32x256xf32>
    %516 = arith.select %514, %510, %515 : vector<32x256xi1>, vector<32x256xf32>
    %517 = arith.addf %506, %516 : vector<32x256xf32>
    %c15_i32_319 = arith.constant 15 : i32
    %518 = tpu.dynamic_rotate %493 by %c15_i32_319 dim 1 : vector<32x256xf32>, i32 -> vector<32x256xf32>
    %c2_320 = arith.constant 2 : index
    %c0_321 = arith.constant 0 : index
    %c0_322 = arith.constant 0 : index
    %519 = vector.load %arg14[%c2_320, %c0_321, %c0_322] : memref<9x32x32xf32, #tpu.memory_space<vmem>>, vector<1x32x32xf32>
    %520 = vector.shape_cast %519 : vector<1x32x32xf32> to vector<32x32xf32>
    %cst_323 = arith.constant dense<0.000000e+00> : vector<32x256xf32>
    %521 = tpu.matmul %520, %518, %cst_323 {dimension_numbers = #tpu.dot_dimension_numbers<[1], [0], [0], [1], [0, 0, 1, 1], [], []>} : vector<32x32xf32>, vector<32x256xf32>, vector<32x256xf32> -> vector<32x256xf32>
    %c1_i32_324 = arith.constant 1 : i32
    %522 = vector.broadcast %c1_i32_324 : i32 to vector<1x256xi32>
    %523 = arith.cmpi sge, %21, %522 : vector<1x256xi32>
    %c15_i32_325 = arith.constant 15 : i32
    %524 = vector.broadcast %c15_i32_325 : i32 to vector<1x256xi32>
    %525 = arith.cmpi slt, %23, %524 : vector<1x256xi32>
    %526 = arith.andi %523, %525 : vector<1x256xi1>
    %cst_326 = arith.constant 0.000000e+00 : f32
    %527 = vector.shape_cast %526 : vector<1x256xi1> to vector<1x256xi1>
    %528 = vector.broadcast %527 : vector<1x256xi1> to vector<32x256xi1>
    %529 = vector.broadcast %cst_326 : f32 to vector<32x256xf32>
    %530 = arith.select %528, %521, %529 : vector<32x256xi1>, vector<32x256xf32>
    %531 = arith.addf %517, %530 : vector<32x256xf32>
    %c1_i32_327 = arith.constant 1 : i32
    %532 = tpu.dynamic_rotate %493 by %c1_i32_327 dim 1 : vector<32x256xf32>, i32 -> vector<32x256xf32>
    %c3_328 = arith.constant 3 : index
    %c0_329 = arith.constant 0 : index
    %c0_330 = arith.constant 0 : index
    %533 = vector.load %arg14[%c3_328, %c0_329, %c0_330] : memref<9x32x32xf32, #tpu.memory_space<vmem>>, vector<1x32x32xf32>
    %534 = vector.shape_cast %533 : vector<1x32x32xf32> to vector<32x32xf32>
    %cst_331 = arith.constant dense<0.000000e+00> : vector<32x256xf32>
    %535 = tpu.matmul %534, %532, %cst_331 {dimension_numbers = #tpu.dot_dimension_numbers<[1], [0], [0], [1], [0, 0, 1, 1], [], []>} : vector<32x32xf32>, vector<32x256xf32>, vector<32x256xf32> -> vector<32x256xf32>
    %c1_i32_332 = arith.constant 1 : i32
    %536 = vector.broadcast %c1_i32_332 : i32 to vector<1x256xi32>
    %537 = arith.cmpi sge, %23, %536 : vector<1x256xi32>
    %cst_333 = arith.constant 0.000000e+00 : f32
    %538 = vector.shape_cast %537 : vector<1x256xi1> to vector<1x256xi1>
    %539 = vector.broadcast %538 : vector<1x256xi1> to vector<32x256xi1>
    %540 = vector.broadcast %cst_333 : f32 to vector<32x256xf32>
    %541 = arith.select %539, %535, %540 : vector<32x256xi1>, vector<32x256xf32>
    %542 = arith.addf %531, %541 : vector<32x256xf32>
    %c4_334 = arith.constant 4 : index
    %c0_335 = arith.constant 0 : index
    %c0_336 = arith.constant 0 : index
    %543 = vector.load %arg14[%c4_334, %c0_335, %c0_336] : memref<9x32x32xf32, #tpu.memory_space<vmem>>, vector<1x32x32xf32>
    %544 = vector.shape_cast %543 : vector<1x32x32xf32> to vector<32x32xf32>
    %cst_337 = arith.constant dense<0.000000e+00> : vector<32x256xf32>
    %545 = tpu.matmul %544, %493, %cst_337 {dimension_numbers = #tpu.dot_dimension_numbers<[1], [0], [0], [1], [0, 0, 1, 1], [], []>} : vector<32x32xf32>, vector<32x256xf32>, vector<32x256xf32> -> vector<32x256xf32>
    %546 = arith.addf %542, %545 : vector<32x256xf32>
    %c255_i32_338 = arith.constant 255 : i32
    %547 = tpu.dynamic_rotate %493 by %c255_i32_338 dim 1 : vector<32x256xf32>, i32 -> vector<32x256xf32>
    %c5_339 = arith.constant 5 : index
    %c0_340 = arith.constant 0 : index
    %c0_341 = arith.constant 0 : index
    %548 = vector.load %arg14[%c5_339, %c0_340, %c0_341] : memref<9x32x32xf32, #tpu.memory_space<vmem>>, vector<1x32x32xf32>
    %549 = vector.shape_cast %548 : vector<1x32x32xf32> to vector<32x32xf32>
    %cst_342 = arith.constant dense<0.000000e+00> : vector<32x256xf32>
    %550 = tpu.matmul %549, %547, %cst_342 {dimension_numbers = #tpu.dot_dimension_numbers<[1], [0], [0], [1], [0, 0, 1, 1], [], []>} : vector<32x32xf32>, vector<32x256xf32>, vector<32x256xf32> -> vector<32x256xf32>
    %c15_i32_343 = arith.constant 15 : i32
    %551 = vector.broadcast %c15_i32_343 : i32 to vector<1x256xi32>
    %552 = arith.cmpi slt, %23, %551 : vector<1x256xi32>
    %cst_344 = arith.constant 0.000000e+00 : f32
    %553 = vector.shape_cast %552 : vector<1x256xi1> to vector<1x256xi1>
    %554 = vector.broadcast %553 : vector<1x256xi1> to vector<32x256xi1>
    %555 = vector.broadcast %cst_344 : f32 to vector<32x256xf32>
    %556 = arith.select %554, %550, %555 : vector<32x256xi1>, vector<32x256xf32>
    %557 = arith.addf %546, %556 : vector<32x256xf32>
    %c241_i32_345 = arith.constant 241 : i32
    %558 = tpu.dynamic_rotate %493 by %c241_i32_345 dim 1 : vector<32x256xf32>, i32 -> vector<32x256xf32>
    %c6_346 = arith.constant 6 : index
    %c0_347 = arith.constant 0 : index
    %c0_348 = arith.constant 0 : index
    %559 = vector.load %arg14[%c6_346, %c0_347, %c0_348] : memref<9x32x32xf32, #tpu.memory_space<vmem>>, vector<1x32x32xf32>
    %560 = vector.shape_cast %559 : vector<1x32x32xf32> to vector<32x32xf32>
    %cst_349 = arith.constant dense<0.000000e+00> : vector<32x256xf32>
    %561 = tpu.matmul %560, %558, %cst_349 {dimension_numbers = #tpu.dot_dimension_numbers<[1], [0], [0], [1], [0, 0, 1, 1], [], []>} : vector<32x32xf32>, vector<32x256xf32>, vector<32x256xf32> -> vector<32x256xf32>
    %c15_i32_350 = arith.constant 15 : i32
    %562 = vector.broadcast %c15_i32_350 : i32 to vector<1x256xi32>
    %563 = arith.cmpi slt, %21, %562 : vector<1x256xi32>
    %c1_i32_351 = arith.constant 1 : i32
    %564 = vector.broadcast %c1_i32_351 : i32 to vector<1x256xi32>
    %565 = arith.cmpi sge, %23, %564 : vector<1x256xi32>
    %566 = arith.andi %563, %565 : vector<1x256xi1>
    %cst_352 = arith.constant 0.000000e+00 : f32
    %567 = vector.shape_cast %566 : vector<1x256xi1> to vector<1x256xi1>
    %568 = vector.broadcast %567 : vector<1x256xi1> to vector<32x256xi1>
    %569 = vector.broadcast %cst_352 : f32 to vector<32x256xf32>
    %570 = arith.select %568, %561, %569 : vector<32x256xi1>, vector<32x256xf32>
    %571 = arith.addf %557, %570 : vector<32x256xf32>
    %c240_i32_353 = arith.constant 240 : i32
    %572 = tpu.dynamic_rotate %493 by %c240_i32_353 dim 1 : vector<32x256xf32>, i32 -> vector<32x256xf32>
    %c7_354 = arith.constant 7 : index
    %c0_355 = arith.constant 0 : index
    %c0_356 = arith.constant 0 : index
    %573 = vector.load %arg14[%c7_354, %c0_355, %c0_356] : memref<9x32x32xf32, #tpu.memory_space<vmem>>, vector<1x32x32xf32>
    %574 = vector.shape_cast %573 : vector<1x32x32xf32> to vector<32x32xf32>
    %cst_357 = arith.constant dense<0.000000e+00> : vector<32x256xf32>
    %575 = tpu.matmul %574, %572, %cst_357 {dimension_numbers = #tpu.dot_dimension_numbers<[1], [0], [0], [1], [0, 0, 1, 1], [], []>} : vector<32x32xf32>, vector<32x256xf32>, vector<32x256xf32> -> vector<32x256xf32>
    %c15_i32_358 = arith.constant 15 : i32
    %576 = vector.broadcast %c15_i32_358 : i32 to vector<1x256xi32>
    %577 = arith.cmpi slt, %21, %576 : vector<1x256xi32>
    %cst_359 = arith.constant 0.000000e+00 : f32
    %578 = vector.shape_cast %577 : vector<1x256xi1> to vector<1x256xi1>
    %579 = vector.broadcast %578 : vector<1x256xi1> to vector<32x256xi1>
    %580 = vector.broadcast %cst_359 : f32 to vector<32x256xf32>
    %581 = arith.select %579, %575, %580 : vector<32x256xi1>, vector<32x256xf32>
    %582 = arith.addf %571, %581 : vector<32x256xf32>
    %c239_i32_360 = arith.constant 239 : i32
    %583 = tpu.dynamic_rotate %493 by %c239_i32_360 dim 1 : vector<32x256xf32>, i32 -> vector<32x256xf32>
    %c8_361 = arith.constant 8 : index
    %c0_362 = arith.constant 0 : index
    %c0_363 = arith.constant 0 : index
    %584 = vector.load %arg14[%c8_361, %c0_362, %c0_363] : memref<9x32x32xf32, #tpu.memory_space<vmem>>, vector<1x32x32xf32>
    %585 = vector.shape_cast %584 : vector<1x32x32xf32> to vector<32x32xf32>
    %cst_364 = arith.constant dense<0.000000e+00> : vector<32x256xf32>
    %586 = tpu.matmul %585, %583, %cst_364 {dimension_numbers = #tpu.dot_dimension_numbers<[1], [0], [0], [1], [0, 0, 1, 1], [], []>} : vector<32x32xf32>, vector<32x256xf32>, vector<32x256xf32> -> vector<32x256xf32>
    %c15_i32_365 = arith.constant 15 : i32
    %587 = vector.broadcast %c15_i32_365 : i32 to vector<1x256xi32>
    %588 = arith.cmpi slt, %21, %587 : vector<1x256xi32>
    %c15_i32_366 = arith.constant 15 : i32
    %589 = vector.broadcast %c15_i32_366 : i32 to vector<1x256xi32>
    %590 = arith.cmpi slt, %23, %589 : vector<1x256xi32>
    %591 = arith.andi %588, %590 : vector<1x256xi1>
    %cst_367 = arith.constant 0.000000e+00 : f32
    %592 = vector.shape_cast %591 : vector<1x256xi1> to vector<1x256xi1>
    %593 = vector.broadcast %592 : vector<1x256xi1> to vector<32x256xi1>
    %594 = vector.broadcast %cst_367 : f32 to vector<32x256xf32>
    %595 = arith.select %593, %586, %594 : vector<32x256xi1>, vector<32x256xf32>
    %596 = arith.addf %582, %595 : vector<32x256xf32>
    %c0_368 = arith.constant 0 : index
    %c0_369 = arith.constant 0 : index
    %597 = vector.load %arg15[%c0_368, %c0_369] : memref<32x1xf32, #tpu.memory_space<vmem>>, vector<32x1xf32>
    %598 = vector.broadcast %597 : vector<32x1xf32> to vector<32x256xf32>
    %599 = arith.addf %596, %598 : vector<32x256xf32>
    %600 = arith.addf %599, %385 : vector<32x256xf32>
    %c17_i32_370 = arith.constant 17 : i32
    %601 = tpu.dynamic_rotate %600 by %c17_i32_370 dim 1 : vector<32x256xf32>, i32 -> vector<32x256xf32>
    %c0_371 = arith.constant 0 : index
    %c0_372 = arith.constant 0 : index
    %c0_373 = arith.constant 0 : index
    %602 = vector.load %arg16[%c0_371, %c0_372, %c0_373] : memref<9x2x32xf32, #tpu.memory_space<vmem>>, vector<1x2x32xf32>
    %603 = vector.shape_cast %602 : vector<1x2x32xf32> to vector<2x32xf32>
    %cst_374 = arith.constant dense<0.000000e+00> : vector<2x256xf32>
    %604 = tpu.matmul %603, %601, %cst_374 {dimension_numbers = #tpu.dot_dimension_numbers<[1], [0], [0], [1], [0, 0, 1, 1], [], []>} : vector<2x32xf32>, vector<32x256xf32>, vector<2x256xf32> -> vector<2x256xf32>
    %c1_i32_375 = arith.constant 1 : i32
    %605 = vector.broadcast %c1_i32_375 : i32 to vector<1x256xi32>
    %606 = arith.cmpi sge, %21, %605 : vector<1x256xi32>
    %c1_i32_376 = arith.constant 1 : i32
    %607 = vector.broadcast %c1_i32_376 : i32 to vector<1x256xi32>
    %608 = arith.cmpi sge, %23, %607 : vector<1x256xi32>
    %609 = arith.andi %606, %608 : vector<1x256xi1>
    %cst_377 = arith.constant 0.000000e+00 : f32
    %610 = vector.shape_cast %609 : vector<1x256xi1> to vector<1x256xi1>
    %611 = vector.broadcast %610 : vector<1x256xi1> to vector<2x256xi1>
    %612 = vector.broadcast %cst_377 : f32 to vector<2x256xf32>
    %613 = arith.select %611, %604, %612 : vector<2x256xi1>, vector<2x256xf32>
    %c16_i32_378 = arith.constant 16 : i32
    %614 = tpu.dynamic_rotate %600 by %c16_i32_378 dim 1 : vector<32x256xf32>, i32 -> vector<32x256xf32>
    %c1_379 = arith.constant 1 : index
    %c0_380 = arith.constant 0 : index
    %c0_381 = arith.constant 0 : index
    %615 = vector.load %arg16[%c1_379, %c0_380, %c0_381] : memref<9x2x32xf32, #tpu.memory_space<vmem>>, vector<1x2x32xf32>
    %616 = vector.shape_cast %615 : vector<1x2x32xf32> to vector<2x32xf32>
    %cst_382 = arith.constant dense<0.000000e+00> : vector<2x256xf32>
    %617 = tpu.matmul %616, %614, %cst_382 {dimension_numbers = #tpu.dot_dimension_numbers<[1], [0], [0], [1], [0, 0, 1, 1], [], []>} : vector<2x32xf32>, vector<32x256xf32>, vector<2x256xf32> -> vector<2x256xf32>
    %c1_i32_383 = arith.constant 1 : i32
    %618 = vector.broadcast %c1_i32_383 : i32 to vector<1x256xi32>
    %619 = arith.cmpi sge, %21, %618 : vector<1x256xi32>
    %cst_384 = arith.constant 0.000000e+00 : f32
    %620 = vector.shape_cast %619 : vector<1x256xi1> to vector<1x256xi1>
    %621 = vector.broadcast %620 : vector<1x256xi1> to vector<2x256xi1>
    %622 = vector.broadcast %cst_384 : f32 to vector<2x256xf32>
    %623 = arith.select %621, %617, %622 : vector<2x256xi1>, vector<2x256xf32>
    %624 = arith.addf %613, %623 : vector<2x256xf32>
    %c15_i32_385 = arith.constant 15 : i32
    %625 = tpu.dynamic_rotate %600 by %c15_i32_385 dim 1 : vector<32x256xf32>, i32 -> vector<32x256xf32>
    %c2_386 = arith.constant 2 : index
    %c0_387 = arith.constant 0 : index
    %c0_388 = arith.constant 0 : index
    %626 = vector.load %arg16[%c2_386, %c0_387, %c0_388] : memref<9x2x32xf32, #tpu.memory_space<vmem>>, vector<1x2x32xf32>
    %627 = vector.shape_cast %626 : vector<1x2x32xf32> to vector<2x32xf32>
    %cst_389 = arith.constant dense<0.000000e+00> : vector<2x256xf32>
    %628 = tpu.matmul %627, %625, %cst_389 {dimension_numbers = #tpu.dot_dimension_numbers<[1], [0], [0], [1], [0, 0, 1, 1], [], []>} : vector<2x32xf32>, vector<32x256xf32>, vector<2x256xf32> -> vector<2x256xf32>
    %c1_i32_390 = arith.constant 1 : i32
    %629 = vector.broadcast %c1_i32_390 : i32 to vector<1x256xi32>
    %630 = arith.cmpi sge, %21, %629 : vector<1x256xi32>
    %c15_i32_391 = arith.constant 15 : i32
    %631 = vector.broadcast %c15_i32_391 : i32 to vector<1x256xi32>
    %632 = arith.cmpi slt, %23, %631 : vector<1x256xi32>
    %633 = arith.andi %630, %632 : vector<1x256xi1>
    %cst_392 = arith.constant 0.000000e+00 : f32
    %634 = vector.shape_cast %633 : vector<1x256xi1> to vector<1x256xi1>
    %635 = vector.broadcast %634 : vector<1x256xi1> to vector<2x256xi1>
    %636 = vector.broadcast %cst_392 : f32 to vector<2x256xf32>
    %637 = arith.select %635, %628, %636 : vector<2x256xi1>, vector<2x256xf32>
    %638 = arith.addf %624, %637 : vector<2x256xf32>
    %c1_i32_393 = arith.constant 1 : i32
    %639 = tpu.dynamic_rotate %600 by %c1_i32_393 dim 1 : vector<32x256xf32>, i32 -> vector<32x256xf32>
    %c3_394 = arith.constant 3 : index
    %c0_395 = arith.constant 0 : index
    %c0_396 = arith.constant 0 : index
    %640 = vector.load %arg16[%c3_394, %c0_395, %c0_396] : memref<9x2x32xf32, #tpu.memory_space<vmem>>, vector<1x2x32xf32>
    %641 = vector.shape_cast %640 : vector<1x2x32xf32> to vector<2x32xf32>
    %cst_397 = arith.constant dense<0.000000e+00> : vector<2x256xf32>
    %642 = tpu.matmul %641, %639, %cst_397 {dimension_numbers = #tpu.dot_dimension_numbers<[1], [0], [0], [1], [0, 0, 1, 1], [], []>} : vector<2x32xf32>, vector<32x256xf32>, vector<2x256xf32> -> vector<2x256xf32>
    %c1_i32_398 = arith.constant 1 : i32
    %643 = vector.broadcast %c1_i32_398 : i32 to vector<1x256xi32>
    %644 = arith.cmpi sge, %23, %643 : vector<1x256xi32>
    %cst_399 = arith.constant 0.000000e+00 : f32
    %645 = vector.shape_cast %644 : vector<1x256xi1> to vector<1x256xi1>
    %646 = vector.broadcast %645 : vector<1x256xi1> to vector<2x256xi1>
    %647 = vector.broadcast %cst_399 : f32 to vector<2x256xf32>
    %648 = arith.select %646, %642, %647 : vector<2x256xi1>, vector<2x256xf32>
    %649 = arith.addf %638, %648 : vector<2x256xf32>
    %c4_400 = arith.constant 4 : index
    %c0_401 = arith.constant 0 : index
    %c0_402 = arith.constant 0 : index
    %650 = vector.load %arg16[%c4_400, %c0_401, %c0_402] : memref<9x2x32xf32, #tpu.memory_space<vmem>>, vector<1x2x32xf32>
    %651 = vector.shape_cast %650 : vector<1x2x32xf32> to vector<2x32xf32>
    %cst_403 = arith.constant dense<0.000000e+00> : vector<2x256xf32>
    %652 = tpu.matmul %651, %600, %cst_403 {dimension_numbers = #tpu.dot_dimension_numbers<[1], [0], [0], [1], [0, 0, 1, 1], [], []>} : vector<2x32xf32>, vector<32x256xf32>, vector<2x256xf32> -> vector<2x256xf32>
    %653 = arith.addf %649, %652 : vector<2x256xf32>
    %c255_i32_404 = arith.constant 255 : i32
    %654 = tpu.dynamic_rotate %600 by %c255_i32_404 dim 1 : vector<32x256xf32>, i32 -> vector<32x256xf32>
    %c5_405 = arith.constant 5 : index
    %c0_406 = arith.constant 0 : index
    %c0_407 = arith.constant 0 : index
    %655 = vector.load %arg16[%c5_405, %c0_406, %c0_407] : memref<9x2x32xf32, #tpu.memory_space<vmem>>, vector<1x2x32xf32>
    %656 = vector.shape_cast %655 : vector<1x2x32xf32> to vector<2x32xf32>
    %cst_408 = arith.constant dense<0.000000e+00> : vector<2x256xf32>
    %657 = tpu.matmul %656, %654, %cst_408 {dimension_numbers = #tpu.dot_dimension_numbers<[1], [0], [0], [1], [0, 0, 1, 1], [], []>} : vector<2x32xf32>, vector<32x256xf32>, vector<2x256xf32> -> vector<2x256xf32>
    %c15_i32_409 = arith.constant 15 : i32
    %658 = vector.broadcast %c15_i32_409 : i32 to vector<1x256xi32>
    %659 = arith.cmpi slt, %23, %658 : vector<1x256xi32>
    %cst_410 = arith.constant 0.000000e+00 : f32
    %660 = vector.shape_cast %659 : vector<1x256xi1> to vector<1x256xi1>
    %661 = vector.broadcast %660 : vector<1x256xi1> to vector<2x256xi1>
    %662 = vector.broadcast %cst_410 : f32 to vector<2x256xf32>
    %663 = arith.select %661, %657, %662 : vector<2x256xi1>, vector<2x256xf32>
    %664 = arith.addf %653, %663 : vector<2x256xf32>
    %c241_i32_411 = arith.constant 241 : i32
    %665 = tpu.dynamic_rotate %600 by %c241_i32_411 dim 1 : vector<32x256xf32>, i32 -> vector<32x256xf32>
    %c6_412 = arith.constant 6 : index
    %c0_413 = arith.constant 0 : index
    %c0_414 = arith.constant 0 : index
    %666 = vector.load %arg16[%c6_412, %c0_413, %c0_414] : memref<9x2x32xf32, #tpu.memory_space<vmem>>, vector<1x2x32xf32>
    %667 = vector.shape_cast %666 : vector<1x2x32xf32> to vector<2x32xf32>
    %cst_415 = arith.constant dense<0.000000e+00> : vector<2x256xf32>
    %668 = tpu.matmul %667, %665, %cst_415 {dimension_numbers = #tpu.dot_dimension_numbers<[1], [0], [0], [1], [0, 0, 1, 1], [], []>} : vector<2x32xf32>, vector<32x256xf32>, vector<2x256xf32> -> vector<2x256xf32>
    %c15_i32_416 = arith.constant 15 : i32
    %669 = vector.broadcast %c15_i32_416 : i32 to vector<1x256xi32>
    %670 = arith.cmpi slt, %21, %669 : vector<1x256xi32>
    %c1_i32_417 = arith.constant 1 : i32
    %671 = vector.broadcast %c1_i32_417 : i32 to vector<1x256xi32>
    %672 = arith.cmpi sge, %23, %671 : vector<1x256xi32>
    %673 = arith.andi %670, %672 : vector<1x256xi1>
    %cst_418 = arith.constant 0.000000e+00 : f32
    %674 = vector.shape_cast %673 : vector<1x256xi1> to vector<1x256xi1>
    %675 = vector.broadcast %674 : vector<1x256xi1> to vector<2x256xi1>
    %676 = vector.broadcast %cst_418 : f32 to vector<2x256xf32>
    %677 = arith.select %675, %668, %676 : vector<2x256xi1>, vector<2x256xf32>
    %678 = arith.addf %664, %677 : vector<2x256xf32>
    %c240_i32_419 = arith.constant 240 : i32
    %679 = tpu.dynamic_rotate %600 by %c240_i32_419 dim 1 : vector<32x256xf32>, i32 -> vector<32x256xf32>
    %c7_420 = arith.constant 7 : index
    %c0_421 = arith.constant 0 : index
    %c0_422 = arith.constant 0 : index
    %680 = vector.load %arg16[%c7_420, %c0_421, %c0_422] : memref<9x2x32xf32, #tpu.memory_space<vmem>>, vector<1x2x32xf32>
    %681 = vector.shape_cast %680 : vector<1x2x32xf32> to vector<2x32xf32>
    %cst_423 = arith.constant dense<0.000000e+00> : vector<2x256xf32>
    %682 = tpu.matmul %681, %679, %cst_423 {dimension_numbers = #tpu.dot_dimension_numbers<[1], [0], [0], [1], [0, 0, 1, 1], [], []>} : vector<2x32xf32>, vector<32x256xf32>, vector<2x256xf32> -> vector<2x256xf32>
    %c15_i32_424 = arith.constant 15 : i32
    %683 = vector.broadcast %c15_i32_424 : i32 to vector<1x256xi32>
    %684 = arith.cmpi slt, %21, %683 : vector<1x256xi32>
    %cst_425 = arith.constant 0.000000e+00 : f32
    %685 = vector.shape_cast %684 : vector<1x256xi1> to vector<1x256xi1>
    %686 = vector.broadcast %685 : vector<1x256xi1> to vector<2x256xi1>
    %687 = vector.broadcast %cst_425 : f32 to vector<2x256xf32>
    %688 = arith.select %686, %682, %687 : vector<2x256xi1>, vector<2x256xf32>
    %689 = arith.addf %678, %688 : vector<2x256xf32>
    %c239_i32_426 = arith.constant 239 : i32
    %690 = tpu.dynamic_rotate %600 by %c239_i32_426 dim 1 : vector<32x256xf32>, i32 -> vector<32x256xf32>
    %c8_427 = arith.constant 8 : index
    %c0_428 = arith.constant 0 : index
    %c0_429 = arith.constant 0 : index
    %691 = vector.load %arg16[%c8_427, %c0_428, %c0_429] : memref<9x2x32xf32, #tpu.memory_space<vmem>>, vector<1x2x32xf32>
    %692 = vector.shape_cast %691 : vector<1x2x32xf32> to vector<2x32xf32>
    %cst_430 = arith.constant dense<0.000000e+00> : vector<2x256xf32>
    %693 = tpu.matmul %692, %690, %cst_430 {dimension_numbers = #tpu.dot_dimension_numbers<[1], [0], [0], [1], [0, 0, 1, 1], [], []>} : vector<2x32xf32>, vector<32x256xf32>, vector<2x256xf32> -> vector<2x256xf32>
    %c15_i32_431 = arith.constant 15 : i32
    %694 = vector.broadcast %c15_i32_431 : i32 to vector<1x256xi32>
    %695 = arith.cmpi slt, %21, %694 : vector<1x256xi32>
    %c15_i32_432 = arith.constant 15 : i32
    %696 = vector.broadcast %c15_i32_432 : i32 to vector<1x256xi32>
    %697 = arith.cmpi slt, %23, %696 : vector<1x256xi32>
    %698 = arith.andi %695, %697 : vector<1x256xi1>
    %cst_433 = arith.constant 0.000000e+00 : f32
    %699 = vector.shape_cast %698 : vector<1x256xi1> to vector<1x256xi1>
    %700 = vector.broadcast %699 : vector<1x256xi1> to vector<2x256xi1>
    %701 = vector.broadcast %cst_433 : f32 to vector<2x256xf32>
    %702 = arith.select %700, %693, %701 : vector<2x256xi1>, vector<2x256xf32>
    %703 = arith.addf %689, %702 : vector<2x256xf32>
    %704 = arith.addf %16, %703 : vector<2x256xf32>
    %c0_434 = arith.constant 0 : index
    %c0_435 = arith.constant 0 : index
    %c0_436 = arith.constant 0 : index
    %705 = vector.load %arg17[%c0_434, %c0_435, %c0_436] : memref<1x2x256xf32, #tpu.memory_space<vmem>>, vector<1x2x256xf32>
    %706 = vector.shape_cast %705 : vector<1x2x256xf32> to vector<2x256xf32>
    %707 = vector.shape_cast %704 : vector<2x256xf32> to vector<1x2x256xf32>
    tpu.vector_store %arg17[%c0_434, %c0_435, %c0_436], %707 {strides = array<i32>} : memref<1x2x256xf32, #tpu.memory_space<vmem>>, vector<1x2x256xf32>,
    %c0_437 = arith.constant 0 : index
    %c0_438 = arith.constant 0 : index
    %c0_439 = arith.constant 0 : index
    %708 = vector.load %arg18[%c0_437, %c0_438, %c0_439] : memref<1x32x256xf32, #tpu.memory_space<vmem>>, vector<1x32x256xf32>
    %709 = vector.shape_cast %708 : vector<1x32x256xf32> to vector<32x256xf32>
    %710 = vector.shape_cast %600 : vector<32x256xf32> to vector<1x32x256xf32>
    tpu.vector_store %arg18[%c0_437, %c0_438, %c0_439], %710 {strides = array<i32>} : memref<1x32x256xf32, #tpu.memory_space<vmem>>, vector<1x32x256xf32>,
    return
  }
  func.func @transform_0(%arg0: i32) -> i32 {
    %c0_i32 = arith.constant 0 : i32
    %c0_i32_0 = arith.constant 0 : i32
    return %c0_i32 : i32
  }
  func.func @transform_1(%arg0: i32) -> (i32, i32, i32) {
    %c0_i32 = arith.constant 0 : i32
    %c0_i32_0 = arith.constant 0 : i32
    %c0_i32_1 = arith.constant 0 : i32
    return %arg0, %c0_i32, %c0_i32_0 : i32, i32, i32
  }
  func.func @transform_2(%arg0: i32) -> (i32, i32) {
    %c0_i32 = arith.constant 0 : i32
    %c0_i32_0 = arith.constant 0 : i32
    %c0_i32_1 = arith.constant 0 : i32
    return %c0_i32, %c0_i32_0 : i32, i32
  }
  func.func @transform_3(%arg0: i32) -> (i32, i32, i32) {
    %c0_i32 = arith.constant 0 : i32
    %c0_i32_0 = arith.constant 0 : i32
    %c0_i32_1 = arith.constant 0 : i32
    return %arg0, %c0_i32, %c0_i32_0 : i32, i32, i32
  }
  func.func @transform_4(%arg0: i32) -> (i32, i32, i32) {
    %c0_i32 = arith.constant 0 : i32
    %c0_i32_0 = arith.constant 0 : i32
    %c0_i32_1 = arith.constant 0 : i32
    return %arg0, %c0_i32, %c0_i32_0 : i32, i32, i32
  }
  func.func @transform_5(%arg0: i32) -> (i32, i32, i32) {
    %c0_i32 = arith.constant 0 : i32
    %c0_i32_0 = arith.constant 0 : i32
    %c0_i32_1 = arith.constant 0 : i32
    %c0_i32_2 = arith.constant 0 : i32
    return %c0_i32, %c0_i32_0, %c0_i32_1 : i32, i32, i32
  }
  func.func @transform_6(%arg0: i32) -> (i32, i32, i32) {
    %c0_i32 = arith.constant 0 : i32
    %c0_i32_0 = arith.constant 0 : i32
    %c0_i32_1 = arith.constant 0 : i32
    %c0_i32_2 = arith.constant 0 : i32
    return %c0_i32, %c0_i32_0, %c0_i32_1 : i32, i32, i32
  }
  func.func @transform_7(%arg0: i32) -> (i32, i32, i32) {
    %c0_i32 = arith.constant 0 : i32
    %c0_i32_0 = arith.constant 0 : i32
    %c0_i32_1 = arith.constant 0 : i32
    %c0_i32_2 = arith.constant 0 : i32
    return %c0_i32, %c0_i32_0, %c0_i32_1 : i32, i32, i32
  }
  func.func @transform_8(%arg0: i32) -> (i32, i32) {
    %c0_i32 = arith.constant 0 : i32
    %c0_i32_0 = arith.constant 0 : i32
    %c0_i32_1 = arith.constant 0 : i32
    return %c0_i32, %c0_i32_0 : i32, i32
  }
  func.func @transform_9(%arg0: i32) -> (i32, i32, i32) {
    %c0_i32 = arith.constant 0 : i32
    %c0_i32_0 = arith.constant 0 : i32
    %c0_i32_1 = arith.constant 0 : i32
    %c0_i32_2 = arith.constant 0 : i32
    return %c0_i32, %c0_i32_0, %c0_i32_1 : i32, i32, i32
  }
  func.func @transform_10(%arg0: i32) -> (i32, i32) {
    %c0_i32 = arith.constant 0 : i32
    %c0_i32_0 = arith.constant 0 : i32
    %c0_i32_1 = arith.constant 0 : i32
    return %c0_i32, %c0_i32_0 : i32, i32
  }
  func.func @transform_11(%arg0: i32) -> (i32, i32, i32) {
    %c0_i32 = arith.constant 0 : i32
    %c0_i32_0 = arith.constant 0 : i32
    %c0_i32_1 = arith.constant 0 : i32
    %c0_i32_2 = arith.constant 0 : i32
    return %c0_i32, %c0_i32_0, %c0_i32_1 : i32, i32, i32
  }
  func.func @transform_12(%arg0: i32) -> (i32, i32) {
    %c0_i32 = arith.constant 0 : i32
    %c0_i32_0 = arith.constant 0 : i32
    %c0_i32_1 = arith.constant 0 : i32
    return %c0_i32, %c0_i32_0 : i32, i32
  }
  func.func @transform_13(%arg0: i32) -> (i32, i32, i32) {
    %c0_i32 = arith.constant 0 : i32
    %c0_i32_0 = arith.constant 0 : i32
    %c0_i32_1 = arith.constant 0 : i32
    %c0_i32_2 = arith.constant 0 : i32
    return %c0_i32, %c0_i32_0, %c0_i32_1 : i32, i32, i32
  }
  func.func @transform_14(%arg0: i32) -> (i32, i32) {
    %c0_i32 = arith.constant 0 : i32
    %c0_i32_0 = arith.constant 0 : i32
    %c0_i32_1 = arith.constant 0 : i32
    return %c0_i32, %c0_i32_0 : i32, i32
  }
  func.func @transform_15(%arg0: i32) -> (i32, i32, i32) {
    %c0_i32 = arith.constant 0 : i32
    %c0_i32_0 = arith.constant 0 : i32
    %c0_i32_1 = arith.constant 0 : i32
    %c0_i32_2 = arith.constant 0 : i32
    return %c0_i32, %c0_i32_0, %c0_i32_1 : i32, i32, i32
  }
  func.func @transform_16(%arg0: i32) -> (i32, i32, i32) {
    %c0_i32 = arith.constant 0 : i32
    %c0_i32_0 = arith.constant 0 : i32
    %c0_i32_1 = arith.constant 0 : i32
    return %arg0, %c0_i32, %c0_i32_0 : i32, i32, i32
  }
  func.func @transform_17(%arg0: i32) -> (i32, i32, i32) {
    %c0_i32 = arith.constant 0 : i32
    %c0_i32_0 = arith.constant 0 : i32
    %c0_i32_1 = arith.constant 0 : i32
    return %arg0, %c0_i32, %c0_i32_0 : i32, i32, i32
  }
}

</mosaic_0001>

<llo_original>
// kernel: basic_block_forward.1
$region0: #{basic_block_forward.1}
  #allocation0 [shape = 'u32[]', space=smem, size = 0x4, offset = 0x4, fixed_abs, tag = 'smem constant byte address 0x4 - core index']
  #allocation1 [shape = 'u32[144,128]{1,0:T(1,128)}', space=vmem, size = 0x12000, scoped, tag = 'internal scratch']
  #allocation2 [shape = 'f32[1]{0:T(128)S(6)}', space=smem, size = 0x200, scoped, tag = 'scoped memory for basic_block_forward.1']
  %s0 = inlined_call_operand.<no memory space> [shape: f32[1], index: 0, kind: input, shape index: {}]
  %s1 = inlined_call_operand.vmem [shape: f32[2,1,512], index: 1, kind: input, shape index: {}]
  %s2 = inlined_call_operand.vmem [shape: bf16[512,512], index: 2, kind: input, shape index: {}]
  %s3 = inlined_call_operand.vmem [shape: f32[2,1,512], index: 3, kind: input, shape index: {}]
  %s4 = inlined_call_operand.vmem [shape: f32[2,32,256], index: 4, kind: input, shape index: {}]
  %s5 = inlined_call_operand.vmem [shape: f32[9,32,2], index: 5, kind: input, shape index: {}]
  %s6 = inlined_call_operand.vmem [shape: f32[9,32,32], index: 6, kind: input, shape index: {}]
  %s7 = inlined_call_operand.vmem [shape: f32[9,32,32], index: 7, kind: input, shape index: {}]
  %s8 = inlined_call_operand.vmem [shape: f32[32,1], index: 8, kind: input, shape index: {}]
  %s9 = inlined_call_operand.vmem [shape: f32[9,32,32], index: 9, kind: input, shape index: {}]
  %s10 = inlined_call_operand.vmem [shape: f32[32,1], index: 10, kind: input, shape index: {}]
  %s11 = inlined_call_operand.vmem [shape: f32[9,32,32], index: 11, kind: input, shape index: {}]
  %s12 = inlined_call_operand.vmem [shape: f32[32,1], index: 12, kind: input, shape index: {}]
  %s13 = inlined_call_operand.vmem [shape: f32[9,32,32], index: 13, kind: input, shape index: {}]
  %s14 = inlined_call_operand.vmem [shape: f32[32,1], index: 14, kind: input, shape index: {}]
  %s15 = inlined_call_operand.vmem [shape: f32[9,2,32], index: 15, kind: input, shape index: {}]
  %s16 = inlined_call_operand.vmem [shape: f32[2,2,256], index: 16, kind: output, shape index: {0}]
  %s17 = inlined_call_operand.vmem [shape: f32[2,32,256], index: 17, kind: output, shape index: {1}]
  %18 = xla_tuple %s16, %s17
  %s19 = sld [smem:[#allocation0]]
  $region105: #{basic_block_forward.1} parent=0
    _
  %s21 = ssub.s32 1, %s19
  %s22 = scalar_select 0, %s21, %s19
  %23 = sst [smem:[#allocation2]] %s0
  loop: start=0, step=1, limit=4
  $region2: #{basic_block_forward.1} parent=0 // loop_pre_header
    _
  $region3: #{basic_block_forward.1} parent=0 // loop_header
    %s25 = sphi 0, %s29
    %p26 = scmp.ge.s32.totalorder %s25, 4
    %s33 = sphi 0, %s33
    %s35 = sphi 0, %s33
    %s36 = sphi 0, %s35
    %s50 = sphi 0, %s36
    %s56 = sphi 0, %s58
    %s59 = sphi 0, %s56
    %s60 = sphi 0, %s59
    %s76 = sphi 0, %s60
    %s80 = sphi 0, %s80
    %s82 = sphi 0, %s80
    %s83 = sphi 0, %s82
    %s97 = sphi 0, %s83
    %s103 = sphi 0, %s105
    %s106 = sphi 0, %s103
    %s107 = sphi 0, %s106
    %s123 = sphi 0, %s107
    %s129 = sphi 0, %s131
    %s132 = sphi 0, %s129
    %s133 = sphi 0, %s132
    %s149 = sphi 0, %s133
    %s153 = sphi 0, %s153
    %s155 = sphi 0, %s153
    %s156 = sphi 0, %s155
    %s170 = sphi 0, %s156
    %s174 = sphi 0, %s174
    %s176 = sphi 0, %s174
    %s177 = sphi 0, %s176
    %s191 = sphi 0, %s177
    %s195 = sphi 0, %s195
    %s197 = sphi 0, %s195
    %s198 = sphi 0, %s197
    %s212 = sphi 0, %s198
    %s216 = sphi 0, %s216
    %s218 = sphi 0, %s216
    %s219 = sphi 0, %s218
    %s233 = sphi 0, %s219
    %s237 = sphi 0, %s237
    %s239 = sphi 0, %s237
    %s240 = sphi 0, %s239
    %s254 = sphi 0, %s240
    %s258 = sphi 0, %s258
    %s260 = sphi 0, %s258
    %s261 = sphi 0, %s260
    %s275 = sphi 0, %s261
    %s279 = sphi 0, %s279
    %s281 = sphi 0, %s279
    %s282 = sphi 0, %s281
    %s296 = sphi 0, %s282
    %s300 = sphi 0, %s300
    %s302 = sphi 0, %s300
    %s303 = sphi 0, %s302
    %s317 = sphi 0, %s303
    %s321 = sphi 0, %s321
    %s323 = sphi 0, %s321
    %s324 = sphi 0, %s323
    %s338 = sphi 0, %s324
    %s342 = sphi 0, %s342
    %s344 = sphi 0, %s342
    %s345 = sphi 0, %s344
    %s359 = sphi 0, %s345
    %s363 = sphi 0, %s363
    %s365 = sphi 0, %s363
    %s366 = sphi 0, %s365
    %s380 = sphi 0, %s366
    %s386 = sphi 0, %s388
    %s389 = sphi 0, %s386
    %s390 = sphi 0, %s389
    %s406 = sphi 0, %s390
    %s412 = sphi 0, %s414
    %s415 = sphi 0, %s412
    %s416 = sphi 0, %s415
    %s432 = sphi 0, %s416
  $region4: #{basic_block_forward.1} parent=0 // loop_header_branch
    %28 = sbr.rel (%p26) target = $region8
  $region5: #{basic_block_forward.1} parent=0 // loop_body
    %s30 = ssub.s32 %s25, 1
    %s31 = ssub.s32 %s25, 2
    %s32 = sadd.s32 %s25, 1
    %s34 = sadd.s32 %s33, 1
    %p37 = scmp.eq.s32.totalorder %s25, 1
    %p38 = scmp.ne.s32.totalorder %s33, %s35
    %p39 = scmp.eq.s32.totalorder %s25, 0
    %p40 = por %p38, %p39
    %p41 = scmp.ne.s32.totalorder %s33, %s35
    %p42 = scmp.eq.s32.totalorder %s30, 1
    %p43 = por %p41, %p42
    %p44 = scmp.ne.s32.totalorder %s35, %s36
    %p45 = scmp.eq.s32.totalorder %s30, 0
    %p46 = por %p44, %p45
    %p47 = scmp.ne.s32.totalorder %s35, %s36
    %p48 = scmp.eq.s32.totalorder %s31, 1
    %p49 = por %p47, %p48
    %p51 = scmp.ne.s32.totalorder %s36, %s50
    %p52 = scmp.eq.s32.totalorder %s31, 0
    %p53 = por %p51, %p52
    %s54 = ssub.s32 %s25, %s32
    %p55 = scmp.eq.s32.totalorder %s54, 0
    %s57 = sadd.s32 %s56, 1
    %s58 = scalar_select %p55, %s56, %s57
    %p61 = pneg %p55
    %p62 = scmp.eq.s32.totalorder %s25, 1
    %p63 = por %p61, %p62
    %p64 = scmp.ne.s32.totalorder %s56, %s59
    %p65 = scmp.eq.s32.totalorder %s25, 0
    %p66 = por %p64, %p65
    %p67 = scmp.ne.s32.totalorder %s56, %s59
    %p68 = scmp.eq.s32.totalorder %s30, 1
    %p69 = por %p67, %p68
    %p70 = scmp.ne.s32.totalorder %s59, %s60
    %p71 = scmp.eq.s32.totalorder %s30, 0
    %p72 = por %p70, %p71
    %p73 = scmp.ne.s32.totalorder %s59, %s60
    %p74 = scmp.eq.s32.totalorder %s31, 1
    %p75 = por %p73, %p74
    %p77 = scmp.ne.s32.totalorder %s60, %s76
    %p78 = scmp.eq.s32.totalorder %s31, 0
    %p79 = por %p77, %p78
    %s81 = sadd.s32 %s80, 1
    %p84 = scmp.eq.s32.totalorder %s25, 1
    %p85 = scmp.ne.s32.totalorder %s80, %s82
    %p86 = scmp.eq.s32.totalorder %s25, 0
    %p87 = por %p85, %p86
    %p88 = scmp.ne.s32.totalorder %s80, %s82
    %p89 = scmp.eq.s32.totalorder %s30, 1
    %p90 = por %p88, %p89
    %p91 = scmp.ne.s32.totalorder %s82, %s83
    %p92 = scmp.eq.s32.totalorder %s30, 0
    %p93 = por %p91, %p92
    %p94 = scmp.ne.s32.totalorder %s82, %s83
    %p95 = scmp.eq.s32.totalorder %s31, 1
    %p96 = por %p94, %p95
    %p98 = scmp.ne.s32.totalorder %s83, %s97
    %p99 = scmp.eq.s32.totalorder %s31, 0
    %p100 = por %p98, %p99
    %s101 = ssub.s32 %s25, %s32
    %p102 = scmp.eq.s32.totalorder %s101, 0
    %s104 = sadd.s32 %s103, 1
    %s105 = scalar_select %p102, %s103, %s104
    %p108 = pneg %p102
    %p109 = scmp.eq.s32.totalorder %s25, 1
    %p110 = por %p108, %p109
    %p111 = scmp.ne.s32.totalorder %s103, %s106
    %p112 = scmp.eq.s32.totalorder %s25, 0
    %p113 = por %p111, %p112
    %p114 = scmp.ne.s32.totalorder %s103, %s106
    %p115 = scmp.eq.s32.totalorder %s30, 1
    %p116 = por %p114, %p115
    %p117 = scmp.ne.s32.totalorder %s106, %s107
    %p118 = scmp.eq.s32.totalorder %s30, 0
    %p119 = por %p117, %p118
    %p120 = scmp.ne.s32.totalorder %s106, %s107
    %p121 = scmp.eq.s32.totalorder %s31, 1
    %p122 = por %p120, %p121
    %p124 = scmp.ne.s32.totalorder %s107, %s123
    %p125 = scmp.eq.s32.totalorder %s31, 0
    %p126 = por %p124, %p125
    %s127 = ssub.s32 %s25, %s32
    %p128 = scmp.eq.s32.totalorder %s127, 0
    %s130 = sadd.s32 %s129, 1
    %s131 = scalar_select %p128, %s129, %s130
    %p134 = pneg %p128
    %p135 = scmp.eq.s32.totalorder %s25, 1
    %p136 = por %p134, %p135
    %p137 = scmp.ne.s32.totalorder %s129, %s132
    %p138 = scmp.eq.s32.totalorder %s25, 0
    %p139 = por %p137, %p138
    %p140 = scmp.ne.s32.totalorder %s129, %s132
    %p141 = scmp.eq.s32.totalorder %s30, 1
    %p142 = por %p140, %p141
    %p143 = scmp.ne.s32.totalorder %s132, %s133
    %p144 = scmp.eq.s32.totalorder %s30, 0
    %p145 = por %p143, %p144
    %p146 = scmp.ne.s32.totalorder %s132, %s133
    %p147 = scmp.eq.s32.totalorder %s31, 1
    %p148 = por %p146, %p147
    %p150 = scmp.ne.s32.totalorder %s133, %s149
    %p151 = scmp.eq.s32.totalorder %s31, 0
    %p152 = por %p150, %p151
    %s154 = sadd.s32 %s153, 1
    %p157 = scmp.eq.s32.totalorder %s25, 1
    %p158 = scmp.ne.s32.totalorder %s153, %s155
    %p159 = scmp.eq.s32.totalorder %s25, 0
    %p160 = por %p158, %p159
    %p161 = scmp.ne.s32.totalorder %s153, %s155
    %p162 = scmp.eq.s32.totalorder %s30, 1
    %p163 = por %p161, %p162
    %p164 = scmp.ne.s32.totalorder %s155, %s156
    %p165 = scmp.eq.s32.totalorder %s30, 0
    %p166 = por %p164, %p165
    %p167 = scmp.ne.s32.totalorder %s155, %s156
    %p168 = scmp.eq.s32.totalorder %s31, 1
    %p169 = por %p167, %p168
    %p171 = scmp.ne.s32.totalorder %s156, %s170
    %p172 = scmp.eq.s32.totalorder %s31, 0
    %p173 = por %p171, %p172
    %s175 = sadd.s32 %s174, 1
    %p178 = scmp.eq.s32.totalorder %s25, 1
    %p179 = scmp.ne.s32.totalorder %s174, %s176
    %p180 = scmp.eq.s32.totalorder %s25, 0
    %p181 = por %p179, %p180
    %p182 = scmp.ne.s32.totalorder %s174, %s176
    %p183 = scmp.eq.s32.totalorder %s30, 1
    %p184 = por %p182, %p183
    %p185 = scmp.ne.s32.totalorder %s176, %s177
    %p186 = scmp.eq.s32.totalorder %s30, 0
    %p187 = por %p185, %p186
    %p188 = scmp.ne.s32.totalorder %s176, %s177
    %p189 = scmp.eq.s32.totalorder %s31, 1
    %p190 = por %p188, %p189
    %p192 = scmp.ne.s32.totalorder %s177, %s191
    %p193 = scmp.eq.s32.totalorder %s31, 0
    %p194 = por %p192, %p193
    %s196 = sadd.s32 %s195, 1
    %p199 = scmp.eq.s32.totalorder %s25, 1
    %p200 = scmp.ne.s32.totalorder %s195, %s197
    %p201 = scmp.eq.s32.totalorder %s25, 0
    %p202 = por %p200, %p201
    %p203 = scmp.ne.s32.totalorder %s195, %s197
    %p204 = scmp.eq.s32.totalorder %s30, 1
    %p205 = por %p203, %p204
    %p206 = scmp.ne.s32.totalorder %s197, %s198
    %p207 = scmp.eq.s32.totalorder %s30, 0
    %p208 = por %p206, %p207
    %p209 = scmp.ne.s32.totalorder %s197, %s198
    %p210 = scmp.eq.s32.totalorder %s31, 1
    %p211 = por %p209, %p210
    %p213 = scmp.ne.s32.totalorder %s198, %s212
    %p214 = scmp.eq.s32.totalorder %s31, 0
    %p215 = por %p213, %p214
    %s217 = sadd.s32 %s216, 1
    %p220 = scmp.eq.s32.totalorder %s25, 1
    %p221 = scmp.ne.s32.totalorder %s216, %s218
    %p222 = scmp.eq.s32.totalorder %s25, 0
    %p223 = por %p221, %p222
    %p224 = scmp.ne.s32.totalorder %s216, %s218
    %p225 = scmp.eq.s32.totalorder %s30, 1
    %p226 = por %p224, %p225
    %p227 = scmp.ne.s32.totalorder %s218, %s219
    %p228 = scmp.eq.s32.totalorder %s30, 0
    %p229 = por %p227, %p228
    %p230 = scmp.ne.s32.totalorder %s218, %s219
    %p231 = scmp.eq.s32.totalorder %s31, 1
    %p232 = por %p230, %p231
    %p234 = scmp.ne.s32.totalorder %s219, %s233
    %p235 = scmp.eq.s32.totalorder %s31, 0
    %p236 = por %p234, %p235
    %s238 = sadd.s32 %s237, 1
    %p241 = scmp.eq.s32.totalorder %s25, 1
    %p242 = scmp.ne.s32.totalorder %s237, %s239
    %p243 = scmp.eq.s32.totalorder %s25, 0
    %p244 = por %p242, %p243
    %p245 = scmp.ne.s32.totalorder %s237, %s239
    %p246 = scmp.eq.s32.totalorder %s30, 1
    %p247 = por %p245, %p246
    %p248 = scmp.ne.s32.totalorder %s239, %s240
    %p249 = scmp.eq.s32.totalorder %s30, 0
    %p250 = por %p248, %p249
    %p251 = scmp.ne.s32.totalorder %s239, %s240
    %p252 = scmp.eq.s32.totalorder %s31, 1
    %p253 = por %p251, %p252
    %p255 = scmp.ne.s32.totalorder %s240, %s254
    %p256 = scmp.eq.s32.totalorder %s31, 0
    %p257 = por %p255, %p256
    %s259 = sadd.s32 %s258, 1
    %p262 = scmp.eq.s32.totalorder %s25, 1
    %p263 = scmp.ne.s32.totalorder %s258, %s260
    %p264 = scmp.eq.s32.totalorder %s25, 0
    %p265 = por %p263, %p264
    %p266 = scmp.ne.s32.totalorder %s258, %s260
    %p267 = scmp.eq.s32.totalorder %s30, 1
    %p268 = por %p266, %p267
    %p269 = scmp.ne.s32.totalorder %s260, %s261
    %p270 = scmp.eq.s32.totalorder %s30, 0
    %p271 = por %p269, %p270
    %p272 = scmp.ne.s32.totalorder %s260, %s261
    %p273 = scmp.eq.s32.totalorder %s31, 1
    %p274 = por %p272, %p273
    %p276 = scmp.ne.s32.totalorder %s261, %s275
    %p277 = scmp.eq.s32.totalorder %s31, 0
    %p278 = por %p276, %p277
    %s280 = sadd.s32 %s279, 1
    %p283 = scmp.eq.s32.totalorder %s25, 1
    %p284 = scmp.ne.s32.totalorder %s279, %s281
    %p285 = scmp.eq.s32.totalorder %s25, 0
    %p286 = por %p284, %p285
    %p287 = scmp.ne.s32.totalorder %s279, %s281
    %p288 = scmp.eq.s32.totalorder %s30, 1
    %p289 = por %p287, %p288
    %p290 = scmp.ne.s32.totalorder %s281, %s282
    %p291 = scmp.eq.s32.totalorder %s30, 0
    %p292 = por %p290, %p291
    %p293 = scmp.ne.s32.totalorder %s281, %s282
    %p294 = scmp.eq.s32.totalorder %s31, 1
    %p295 = por %p293, %p294
    %p297 = scmp.ne.s32.totalorder %s282, %s296
    %p298 = scmp.eq.s32.totalorder %s31, 0
    %p299 = por %p297, %p298
    %s301 = sadd.s32 %s300, 1
    %p304 = scmp.eq.s32.totalorder %s25, 1
    %p305 = scmp.ne.s32.totalorder %s300, %s302
    %p306 = scmp.eq.s32.totalorder %s25, 0
    %p307 = por %p305, %p306
    %p308 = scmp.ne.s32.totalorder %s300, %s302
    %p309 = scmp.eq.s32.totalorder %s30, 1
    %p310 = por %p308, %p309
    %p311 = scmp.ne.s32.totalorder %s302, %s303
    %p312 = scmp.eq.s32.totalorder %s30, 0
    %p313 = por %p311, %p312
    %p314 = scmp.ne.s32.totalorder %s302, %s303
    %p315 = scmp.eq.s32.totalorder %s31, 1
    %p316 = por %p314, %p315
    %p318 = scmp.ne.s32.totalorder %s303, %s317
    %p319 = scmp.eq.s32.totalorder %s31, 0
    %p320 = por %p318, %p319
    %s322 = sadd.s32 %s321, 1
    %p325 = scmp.eq.s32.totalorder %s25, 1
    %p326 = scmp.ne.s32.totalorder %s321, %s323
    %p327 = scmp.eq.s32.totalorder %s25, 0
    %p328 = por %p326, %p327
    %p329 = scmp.ne.s32.totalorder %s321, %s323
    %p330 = scmp.eq.s32.totalorder %s30, 1
    %p331 = por %p329, %p330
    %p332 = scmp.ne.s32.totalorder %s323, %s324
    %p333 = scmp.eq.s32.totalorder %s30, 0
    %p334 = por %p332, %p333
    %p335 = scmp.ne.s32.totalorder %s323, %s324
    %p336 = scmp.eq.s32.totalorder %s31, 1
    %p337 = por %p335, %p336
    %p339 = scmp.ne.s32.totalorder %s324, %s338
    %p340 = scmp.eq.s32.totalorder %s31, 0
    %p341 = por %p339, %p340
    %s343 = sadd.s32 %s342, 1
    %p346 = scmp.eq.s32.totalorder %s25, 1
    %p347 = scmp.ne.s32.totalorder %s342, %s344
    %p348 = scmp.eq.s32.totalorder %s25, 0
    %p349 = por %p347, %p348
    %p350 = scmp.ne.s32.totalorder %s342, %s344
    %p351 = scmp.eq.s32.totalorder %s30, 1
    %p352 = por %p350, %p351
    %p353 = scmp.ne.s32.totalorder %s344, %s345
    %p354 = scmp.eq.s32.totalorder %s30, 0
    %p355 = por %p353, %p354
    %p356 = scmp.ne.s32.totalorder %s344, %s345
    %p357 = scmp.eq.s32.totalorder %s31, 1
    %p358 = por %p356, %p357
    %p360 = scmp.ne.s32.totalorder %s345, %s359
    %p361 = scmp.eq.s32.totalorder %s31, 0
    %p362 = por %p360, %p361
    %s364 = sadd.s32 %s363, 1
    %p367 = scmp.eq.s32.totalorder %s25, 1
    %p368 = scmp.ne.s32.totalorder %s363, %s365
    %p369 = scmp.eq.s32.totalorder %s25, 0
    %p370 = por %p368, %p369
    %p371 = scmp.ne.s32.totalorder %s363, %s365
    %p372 = scmp.eq.s32.totalorder %s30, 1
    %p373 = por %p371, %p372
    %p374 = scmp.ne.s32.totalorder %s365, %s366
    %p375 = scmp.eq.s32.totalorder %s30, 0
    %p376 = por %p374, %p375
    %p377 = scmp.ne.s32.totalorder %s365, %s366
    %p378 = scmp.eq.s32.totalorder %s31, 1
    %p379 = por %p377, %p378
    %p381 = scmp.ne.s32.totalorder %s366, %s380
    %p382 = scmp.eq.s32.totalorder %s31, 0
    %p383 = por %p381, %p382
    %s384 = ssub.s32 %s25, %s32
    %p385 = scmp.eq.s32.totalorder %s384, 0
    %s387 = sadd.s32 %s386, 1
    %s388 = scalar_select %p385, %s386, %s387
    %p391 = pneg %p385
    %p392 = scmp.eq.s32.totalorder %s25, 1
    %p393 = por %p391, %p392
    %p394 = scmp.ne.s32.totalorder %s386, %s389
    %p395 = scmp.eq.s32.totalorder %s25, 0
    %p396 = por %p394, %p395
    %p397 = scmp.ne.s32.totalorder %s386, %s389
    %p398 = scmp.eq.s32.totalorder %s30, 1
    %p399 = por %p397, %p398
    %p400 = scmp.ne.s32.totalorder %s389, %s390
    %p401 = scmp.eq.s32.totalorder %s30, 0
    %p402 = por %p400, %p401
    %p403 = scmp.ne.s32.totalorder %s389, %s390
    %p404 = scmp.eq.s32.totalorder %s31, 1
    %p405 = por %p403, %p404
    %p407 = scmp.ne.s32.totalorder %s390, %s406
    %p408 = scmp.eq.s32.totalorder %s31, 0
    %p409 = por %p407, %p408
    %s410 = ssub.s32 %s25, %s32
    %p411 = scmp.eq.s32.totalorder %s410, 0
    %s413 = sadd.s32 %s412, 1
    %s414 = scalar_select %p411, %s412, %s413
    %p417 = pneg %p411
    %p418 = scmp.eq.s32.totalorder %s25, 1
    %p419 = por %p417, %p418
    %p420 = scmp.ne.s32.totalorder %s412, %s415
    %p421 = scmp.eq.s32.totalorder %s25, 0
    %p422 = por %p420, %p421
    %p423 = scmp.ne.s32.totalorder %s412, %s415
    %p424 = scmp.eq.s32.totalorder %s30, 1
    %p425 = por %p423, %p424
    %p426 = scmp.ne.s32.totalorder %s415, %s416
    %p427 = scmp.eq.s32.totalorder %s30, 0
    %p428 = por %p426, %p427
    %p429 = scmp.ne.s32.totalorder %s415, %s416
    %p430 = scmp.eq.s32.totalorder %s31, 1
    %p431 = por %p429, %p430
    %p433 = scmp.ne.s32.totalorder %s416, %s432
    %p434 = scmp.eq.s32.totalorder %s31, 0
    %p435 = por %p433, %p434
    %p436 = scmp.le.s32.totalorder 1, %s25
    %p437 = scmp.lt.s32.totalorder %s25, 3
    %p438 = pnand %p436, %p437
    %p439 = pneg %p438
    // Predicated region
    $region9: #{basic_block_forward.1} parent=5 // pred_check
      _
    $region10: #{basic_block_forward.1} parent=5 // pred_check_branch
      %441 = sbr.rel (%p438) target = $region12
    $region11: #{basic_block_forward.1} parent=5 // pred_region
      %s442 = ssub.s32 %s25, 1
      // Predicated region
      $region13: #{basic_block_forward.1} parent=11 // pred_check
        %p443 = pneg %p46
      $region14: #{basic_block_forward.1} parent=11 // pred_check_branch
        %445 = sbr.rel (%p443) target = $region16
      $region15: #{basic_block_forward.1} parent=11 // pred_region
        _
      $region16: #{basic_block_forward.1} parent=11 // pred_fallthru
        _
      // Predicated region
      $region17: #{basic_block_forward.1} parent=11 // pred_check
        %p446 = pneg %p93
      $region18: #{basic_block_forward.1} parent=11 // pred_check_branch
        %448 = sbr.rel (%p446) target = $region20
      $region19: #{basic_block_forward.1} parent=11 // pred_region
        _
      $region20: #{basic_block_forward.1} parent=11 // pred_fallthru
        _
      // Predicated region
      $region21: #{basic_block_forward.1} parent=11 // pred_check
        %p449 = pneg %p166
      $region22: #{basic_block_forward.1} parent=11 // pred_check_branch
        %451 = sbr.rel (%p449) target = $region24
      $region23: #{basic_block_forward.1} parent=11 // pred_region
        _
      $region24: #{basic_block_forward.1} parent=11 // pred_fallthru
        _
      // Predicated region
      $region25: #{basic_block_forward.1} parent=11 // pred_check
        %p452 = pneg %p187
      $region26: #{basic_block_forward.1} parent=11 // pred_check_branch
        %454 = sbr.rel (%p452) target = $region28
      $region27: #{basic_block_forward.1} parent=11 // pred_region
        _
      $region28: #{basic_block_forward.1} parent=11 // pred_fallthru
        _
      // Predicated region
      $region29: #{basic_block_forward.1} parent=11 // pred_check
        %p455 = pneg %p208
      $region30: #{basic_block_forward.1} parent=11 // pred_check_branch
        %457 = sbr.rel (%p455) target = $region32
      $region31: #{basic_block_forward.1} parent=11 // pred_region
        _
      $region32: #{basic_block_forward.1} parent=11 // pred_fallthru
        _
      // Predicated region
      $region33: #{basic_block_forward.1} parent=11 // pred_check
        %p458 = pneg %p229
      $region34: #{basic_block_forward.1} parent=11 // pred_check_branch
        %460 = sbr.rel (%p458) target = $region36
      $region35: #{basic_block_forward.1} parent=11 // pred_region
        _
      $region36: #{basic_block_forward.1} parent=11 // pred_fallthru
        _
      // Predicated region
      $region37: #{basic_block_forward.1} parent=11 // pred_check
        %p461 = pneg %p250
      $region38: #{basic_block_forward.1} parent=11 // pred_check_branch
        %463 = sbr.rel (%p461) target = $region40
      $region39: #{basic_block_forward.1} parent=11 // pred_region
        _
      $region40: #{basic_block_forward.1} parent=11 // pred_fallthru
        _
      // Predicated region
      $region41: #{basic_block_forward.1} parent=11 // pred_check
        %p464 = pneg %p271
      $region42: #{basic_block_forward.1} parent=11 // pred_check_branch
        %466 = sbr.rel (%p464) target = $region44
      $region43: #{basic_block_forward.1} parent=11 // pred_region
        _
      $region44: #{basic_block_forward.1} parent=11 // pred_fallthru
        _
      // Predicated region
      $region45: #{basic_block_forward.1} parent=11 // pred_check
        %p467 = pneg %p292
      $region46: #{basic_block_forward.1} parent=11 // pred_check_branch
        %469 = sbr.rel (%p467) target = $region48
      $region47: #{basic_block_forward.1} parent=11 // pred_region
        _
      $region48: #{basic_block_forward.1} parent=11 // pred_fallthru
        _
      // Predicated region
      $region49: #{basic_block_forward.1} parent=11 // pred_check
        %p470 = pneg %p313
      $region50: #{basic_block_forward.1} parent=11 // pred_check_branch
        %472 = sbr.rel (%p470) target = $region52
      $region51: #{basic_block_forward.1} parent=11 // pred_region
        _
      $region52: #{basic_block_forward.1} parent=11 // pred_fallthru
        _
      // Predicated region
      $region53: #{basic_block_forward.1} parent=11 // pred_check
        %p473 = pneg %p334
      $region54: #{basic_block_forward.1} parent=11 // pred_check_branch
        %475 = sbr.rel (%p473) target = $region56
      $region55: #{basic_block_forward.1} parent=11 // pred_region
        _
      $region56: #{basic_block_forward.1} parent=11 // pred_fallthru
        _
      // Predicated region
      $region57: #{basic_block_forward.1} parent=11 // pred_check
        %p476 = pneg %p355
      $region58: #{basic_block_forward.1} parent=11 // pred_check_branch
        %478 = sbr.rel (%p476) target = $region60
      $region59: #{basic_block_forward.1} parent=11 // pred_region
        _
      $region60: #{basic_block_forward.1} parent=11 // pred_fallthru
        _
      // Predicated region
      $region61: #{basic_block_forward.1} parent=11 // pred_check
        %p479 = pneg %p376
      $region62: #{basic_block_forward.1} parent=11 // pred_check_branch
        %481 = sbr.rel (%p479) target = $region64
      $region63: #{basic_block_forward.1} parent=11 // pred_region
        _
      $region64: #{basic_block_forward.1} parent=11 // pred_fallthru
        _
    $region12: #{basic_block_forward.1} parent=5 // pred_fallthru
      _
    %p482 = scmp.lt.s32.totalorder %s25, 2
    // Predicated region
    $region65: #{basic_block_forward.1} parent=5 // pred_check
      %p483 = pneg %p482
    $region66: #{basic_block_forward.1} parent=5 // pred_check_branch
      %485 = sbr.rel (%p483) target = $region68
    $region67: #{basic_block_forward.1} parent=5 // pred_region
      // Predicated region
      $region69: #{basic_block_forward.1} parent=67 // pred_check
        %p486 = pneg %p66
      $region70: #{basic_block_forward.1} parent=67 // pred_check_branch
        %488 = sbr.rel (%p486) target = $region72
      $region71: #{basic_block_forward.1} parent=67 // pred_region
        %p489 = scmp.lt.s32.totalorder %s25, 1
        %s490 = scalar_select %p489, %s25, 1
        %s491 = smul.addr %s490, 4
        %s492 = scalar_lea.vmem %s1, %s491
      $region72: #{basic_block_forward.1} parent=67 // pred_fallthru
        _
      // Predicated region
      $region73: #{basic_block_forward.1} parent=67 // pred_check
        %p493 = pneg %p113
      $region74: #{basic_block_forward.1} parent=67 // pred_check_branch
        %495 = sbr.rel (%p493) target = $region76
      $region75: #{basic_block_forward.1} parent=67 // pred_region
        %p496 = scmp.lt.s32.totalorder %s25, 1
        %s497 = scalar_select %p496, %s25, 1
        %s498 = smul.addr %s497, 4
        %s499 = scalar_lea.vmem %s3, %s498
      $region76: #{basic_block_forward.1} parent=67 // pred_fallthru
        _
      // Predicated region
      $region77: #{basic_block_forward.1} parent=67 // pred_check
        %p500 = pneg %p139
      $region78: #{basic_block_forward.1} parent=67 // pred_check_branch
        %502 = sbr.rel (%p500) target = $region80
      $region79: #{basic_block_forward.1} parent=67 // pred_region
        %p503 = scmp.lt.s32.totalorder %s25, 1
        %s504 = scalar_select %p503, %s25, 1
        %s505 = smul.addr %s504, 8
        %s506 = smul.addr %s505, 8
        %s507 = scalar_lea.vmem %s4, %s506
      $region80: #{basic_block_forward.1} parent=67 // pred_fallthru
        _
    $region68: #{basic_block_forward.1} parent=5 // pred_fallthru
      _
    %p508 = scmp.le.s32.totalorder 1, %s25
    %p509 = scmp.lt.s32.totalorder %s25, 3
    %p510 = pnand %p508, %p509
    %p511 = pneg %p510
    // Predicated region
    $region81: #{basic_block_forward.1} parent=5 // pred_check
      _
    $region82: #{basic_block_forward.1} parent=5 // pred_check_branch
      %513 = sbr.rel (%p510) target = $region84
    $region83: #{basic_block_forward.1} parent=5 // pred_region
      %s514 = ssub.s32 %s25, 1
      %p515 = pneg %p46
      %p516 = pneg %p43
      %p517 = scmp.lt.s32.totalorder %s30, 1
      %s518 = scalar_select %p517, %s30, 1
      %s519 = smul.addr %s518, 4
      %s520 = scalar_lea.vmem %s1, %s519
      %p521 = pneg %p72
      %p522 = pneg %p69
      %p523 = pneg %p93
      %p524 = pneg %p90
      %p525 = scmp.lt.s32.totalorder %s30, 1
      %s526 = scalar_select %p525, %s30, 1
      %s527 = smul.addr %s526, 4
      %s528 = scalar_lea.vmem %s3, %s527
      %p529 = pneg %p119
      %p530 = pneg %p116
      %p531 = scmp.lt.s32.totalorder %s30, 1
      %s532 = scalar_select %p531, %s30, 1
      %s533 = smul.addr %s532, 8
      %s534 = smul.addr %s533, 8
      %s535 = scalar_lea.vmem %s4, %s534
      %p536 = pneg %p145
      %p537 = pneg %p142
      %p538 = pneg %p166
      %p539 = pneg %p163
      %p540 = pneg %p187
      %p541 = pneg %p184
      %p542 = pneg %p208
      %p543 = pneg %p205
      %p544 = pneg %p229
      %p545 = pneg %p226
      %p546 = pneg %p250
      %p547 = pneg %p247
      %p548 = pneg %p271
      %p549 = pneg %p268
      %p550 = pneg %p292
      %p551 = pneg %p289
      %p552 = pneg %p313
      %p553 = pneg %p310
      %p554 = pneg %p334
      %p555 = pneg %p331
      %p556 = pneg %p355
      %p557 = pneg %p352
      %p558 = pneg %p376
      %p559 = pneg %p373
      %p560 = pneg %p402
      %p561 = pneg %p399
      %p562 = scmp.lt.s32.totalorder %s30, 1
      %s563 = scalar_select %p562, %s30, 1
      %s564 = smul.addr %s563, 2
      %s565 = smul.addr %s564, 2
      %s566 = scalar_lea.vmem %s16, %s565
      %p567 = pneg %p428
      %p568 = pneg %p425
      %p569 = scmp.lt.s32.totalorder %s30, 1
      %s570 = scalar_select %p569, %s30, 1
      %s571 = smul.addr %s570, 8
      %s572 = smul.addr %s571, 8
      %s573 = scalar_lea.vmem %s17, %s572
      %p574 = scmp.lt.s32.totalorder %s30, 1
      %s575 = scalar_select %p574, %s30, 1
      %s576 = smul.addr %s575, 4
      %s577 = scalar_lea.vmem %s1, %s576
      %p578 = scmp.lt.s32.totalorder %s30, 1
      %s579 = scalar_select %p578, %s30, 1
      %s580 = smul.addr %s579, 4
      %s581 = scalar_lea.vmem %s3, %s580
      %p582 = scmp.lt.s32.totalorder %s30, 1
      %s583 = scalar_select %p582, %s30, 1
      %s584 = smul.addr %s583, 8
      %s585 = smul.addr %s584, 8
      %s586 = scalar_lea.vmem %s4, %s585
      %p587 = scmp.lt.s32.totalorder %s30, 1
      %s588 = scalar_select %p587, %s30, 1
      %s589 = smul.addr %s588, 2
      %s590 = smul.addr %s589, 2
      %s591 = scalar_lea.vmem %s16, %s590
      %p592 = scmp.lt.s32.totalorder %s30, 1
      %s593 = scalar_select %p592, %s30, 1
      %s594 = smul.addr %s593, 8
      %s595 = smul.addr %s594, 8
      %s596 = scalar_lea.vmem %s17, %s595
      %s597 = sld [smem:[#allocation2]]
      %v598 = vld [vmem:[%s577] sm:$0xf]
      %v600 = vlaneseq
      %v601 = vshrl.u32 %v600, 7
      %v602 = vsub.s32 0, %v601
      %v603 = vrot.slane %v598, %v602
      %v604 = vlaneseq
      %v605 = vshrl.u32 %v604, 7
      %v606 = vsub.s32 1, %v605
      %v607 = vrot.slane %v598, %v606
      %v608 = vlaneseq
      %v609 = vshrl.u32 %v608, 7
      %v610 = vsub.s32 2, %v609
      %v611 = vrot.slane %v598, %v610
      %v612 = vlaneseq
      %v613 = vshrl.u32 %v612, 7
      %v614 = vsub.s32 3, %v613
      %v615 = vrot.slane %v598, %v614
      %v620 = vpack.c.bf16 %v603, %v603
      %v621 = vpack.c.bf16 %v607, %v607
      %v622 = vpack.c.bf16 %v611, %v611
      %v623 = vpack.c.bf16 %v615, %v615
      %v624 = vld [vmem:[%s2] sm:$0xff]
      %v625 = vld [vmem:[%s2 + $0x8] sm:$0xff]
      %v626 = vld [vmem:[%s2 + $0x10] sm:$0xff]
      %v627 = vld [vmem:[%s2 + $0x18] sm:$0xff]
      %v628 = vld [vmem:[%s2 + $0x20] sm:$0xff]
      %v629 = vld [vmem:[%s2 + $0x28] sm:$0xff]
      %v630 = vld [vmem:[%s2 + $0x30] sm:$0xff]
      %v631 = vld [vmem:[%s2 + $0x38] sm:$0xff]
      %v632 = vld [vmem:[%s2 + $0x40] sm:$0xff]
      %v633 = vld [vmem:[%s2 + $0x48] sm:$0xff]
      %v634 = vld [vmem:[%s2 + $0x50] sm:$0xff]
      %v635 = vld [vmem:[%s2 + $0x58] sm:$0xff]
      %v636 = vld [vmem:[%s2 + $0x60] sm:$0xff]
      %v637 = vld [vmem:[%s2 + $0x68] sm:$0xff]
      %v638 = vld [vmem:[%s2 + $0x70] sm:$0xff]
      %v639 = vld [vmem:[%s2 + $0x78] sm:$0xff]
      %v640 = vld [vmem:[%s2 + $0x80] sm:$0xff]
      %v641 = vld [vmem:[%s2 + $0x88] sm:$0xff]
      %v642 = vld [vmem:[%s2 + $0x90] sm:$0xff]
      %v643 = vld [vmem:[%s2 + $0x98] sm:$0xff]
      %v644 = vld [vmem:[%s2 + $0xa0] sm:$0xff]
      %v645 = vld [vmem:[%s2 + $0xa8] sm:$0xff]
      %v646 = vld [vmem:[%s2 + $0xb0] sm:$0xff]
      %v647 = vld [vmem:[%s2 + $0xb8] sm:$0xff]
      %v648 = vld [vmem:[%s2 + $0xc0] sm:$0xff]
      %v649 = vld [vmem:[%s2 + $0xc8] sm:$0xff]
      %v650 = vld [vmem:[%s2 + $0xd0] sm:$0xff]
      %v651 = vld [vmem:[%s2 + $0xd8] sm:$0xff]
      %v652 = vld [vmem:[%s2 + $0xe0] sm:$0xff]
      %v653 = vld [vmem:[%s2 + $0xe8] sm:$0xff]
      %v654 = vld [vmem:[%s2 + $0xf0] sm:$0xff]
      %v655 = vld [vmem:[%s2 + $0xf8] sm:$0xff]
      %v656 = vld [vmem:[%s2 + $0x100] sm:$0xff]
      %v657 = vld [vmem:[%s2 + $0x108] sm:$0xff]
      %v658 = vld [vmem:[%s2 + $0x110] sm:$0xff]
      %v659 = vld [vmem:[%s2 + $0x118] sm:$0xff]
      %v660 = vld [vmem:[%s2 + $0x120] sm:$0xff]
      %v661 = vld [vmem:[%s2 + $0x128] sm:$0xff]
      %v662 = vld [vmem:[%s2 + $0x130] sm:$0xff]
      %v663 = vld [vmem:[%s2 + $0x138] sm:$0xff]
      %v664 = vld [vmem:[%s2 + $0x140] sm:$0xff]
      %v665 = vld [vmem:[%s2 + $0x148] sm:$0xff]
      %v666 = vld [vmem:[%s2 + $0x150] sm:$0xff]
      %v667 = vld [vmem:[%s2 + $0x158] sm:$0xff]
      %v668 = vld [vmem:[%s2 + $0x160] sm:$0xff]
      %v669 = vld [vmem:[%s2 + $0x168] sm:$0xff]
      %v670 = vld [vmem:[%s2 + $0x170] sm:$0xff]
      %v671 = vld [vmem:[%s2 + $0x178] sm:$0xff]
      %v672 = vld [vmem:[%s2 + $0x180] sm:$0xff]
      %v673 = vld [vmem:[%s2 + $0x188] sm:$0xff]
      %v674 = vld [vmem:[%s2 + $0x190] sm:$0xff]
      %v675 = vld [vmem:[%s2 + $0x198] sm:$0xff]
      %v676 = vld [vmem:[%s2 + $0x1a0] sm:$0xff]
      %v677 = vld [vmem:[%s2 + $0x1a8] sm:$0xff]
      %v678 = vld [vmem:[%s2 + $0x1b0] sm:$0xff]
      %v679 = vld [vmem:[%s2 + $0x1b8] sm:$0xff]
      %v680 = vld [vmem:[%s2 + $0x1c0] sm:$0xff]
      %v681 = vld [vmem:[%s2 + $0x1c8] sm:$0xff]
      %v682 = vld [vmem:[%s2 + $0x1d0] sm:$0xff]
      %v683 = vld [vmem:[%s2 + $0x1d8] sm:$0xff]
      %v684 = vld [vmem:[%s2 + $0x1e0] sm:$0xff]
      %v685 = vld [vmem:[%s2 + $0x1e8] sm:$0xff]
      %v686 = vld [vmem:[%s2 + $0x1f0] sm:$0xff]
      %v687 = vld [vmem:[%s2 + $0x1f8] sm:$0xff]
      %v688 = vld [vmem:[%s2 + $0x200] sm:$0xff]
      %v689 = vld [vmem:[%s2 + $0x208] sm:$0xff]
      %v690 = vld [vmem:[%s2 + $0x210] sm:$0xff]
      %v691 = vld [vmem:[%s2 + $0x218] sm:$0xff]
      %v692 = vld [vmem:[%s2 + $0x220] sm:$0xff]
      %v693 = vld [vmem:[%s2 + $0x228] sm:$0xff]
      %v694 = vld [vmem:[%s2 + $0x230] sm:$0xff]
      %v695 = vld [vmem:[%s2 + $0x238] sm:$0xff]
      %v696 = vld [vmem:[%s2 + $0x240] sm:$0xff]
      %v697 = vld [vmem:[%s2 + $0x248] sm:$0xff]
      %v698 = vld [vmem:[%s2 + $0x250] sm:$0xff]
      %v699 = vld [vmem:[%s2 + $0x258] sm:$0xff]
      %v700 = vld [vmem:[%s2 + $0x260] sm:$0xff]
      %v701 = vld [vmem:[%s2 + $0x268] sm:$0xff]
      %v702 = vld [vmem:[%s2 + $0x270] sm:$0xff]
      %v703 = vld [vmem:[%s2 + $0x278] sm:$0xff]
      %v704 = vld [vmem:[%s2 + $0x280] sm:$0xff]
      %v705 = vld [vmem:[%s2 + $0x288] sm:$0xff]
      %v706 = vld [vmem:[%s2 + $0x290] sm:$0xff]
      %v707 = vld [vmem:[%s2 + $0x298] sm:$0xff]
      %v708 = vld [vmem:[%s2 + $0x2a0] sm:$0xff]
      %v709 = vld [vmem:[%s2 + $0x2a8] sm:$0xff]
      %v710 = vld [vmem:[%s2 + $0x2b0] sm:$0xff]
      %v711 = vld [vmem:[%s2 + $0x2b8] sm:$0xff]
      %v712 = vld [vmem:[%s2 + $0x2c0] sm:$0xff]
      %v713 = vld [vmem:[%s2 + $0x2c8] sm:$0xff]
      %v714 = vld [vmem:[%s2 + $0x2d0] sm:$0xff]
      %v715 = vld [vmem:[%s2 + $0x2d8] sm:$0xff]
      %v716 = vld [vmem:[%s2 + $0x2e0] sm:$0xff]
      %v717 = vld [vmem:[%s2 + $0x2e8] sm:$0xff]
      %v718 = vld [vmem:[%s2 + $0x2f0] sm:$0xff]
      %v719 = vld [vmem:[%s2 + $0x2f8] sm:$0xff]
      %v720 = vld [vmem:[%s2 + $0x300] sm:$0xff]
      %v721 = vld [vmem:[%s2 + $0x308] sm:$0xff]
      %v722 = vld [vmem:[%s2 + $0x310] sm:$0xff]
      %v723 = vld [vmem:[%s2 + $0x318] sm:$0xff]
      %v724 = vld [vmem:[%s2 + $0x320] sm:$0xff]
      %v725 = vld [vmem:[%s2 + $0x328] sm:$0xff]
      %v726 = vld [vmem:[%s2 + $0x330] sm:$0xff]
      %v727 = vld [vmem:[%s2 + $0x338] sm:$0xff]
      %v728 = vld [vmem:[%s2 + $0x340] sm:$0xff]
      %v729 = vld [vmem:[%s2 + $0x348] sm:$0xff]
      %v730 = vld [vmem:[%s2 + $0x350] sm:$0xff]
      %v731 = vld [vmem:[%s2 + $0x358] sm:$0xff]
      %v732 = vld [vmem:[%s2 + $0x360] sm:$0xff]
      %v733 = vld [vmem:[%s2 + $0x368] sm:$0xff]
      %v734 = vld [vmem:[%s2 + $0x370] sm:$0xff]
      %v735 = vld [vmem:[%s2 + $0x378] sm:$0xff]
      %v736 = vld [vmem:[%s2 + $0x380] sm:$0xff]
      %v737 = vld [vmem:[%s2 + $0x388] sm:$0xff]
      %v738 = vld [vmem:[%s2 + $0x390] sm:$0xff]
      %v739 = vld [vmem:[%s2 + $0x398] sm:$0xff]
      %v740 = vld [vmem:[%s2 + $0x3a0] sm:$0xff]
      %v741 = vld [vmem:[%s2 + $0x3a8] sm:$0xff]
      %v742 = vld [vmem:[%s2 + $0x3b0] sm:$0xff]
      %v743 = vld [vmem:[%s2 + $0x3b8] sm:$0xff]
      %v744 = vld [vmem:[%s2 + $0x3c0] sm:$0xff]
      %v745 = vld [vmem:[%s2 + $0x3c8] sm:$0xff]
      %v746 = vld [vmem:[%s2 + $0x3d0] sm:$0xff]
      %v747 = vld [vmem:[%s2 + $0x3d8] sm:$0xff]
      %v748 = vld [vmem:[%s2 + $0x3e0] sm:$0xff]
      %v749 = vld [vmem:[%s2 + $0x3e8] sm:$0xff]
      %v750 = vld [vmem:[%s2 + $0x3f0] sm:$0xff]
      %v751 = vld [vmem:[%s2 + $0x3f8] sm:$0xff]
      %v880 = vunpack.c.l.b16 %v624
      %v881 = vunpack.c.h.b16 %v624
      %v882 = vunpack.c.l.b16 %v625
      %v883 = vunpack.c.h.b16 %v625
      %v884 = vunpack.c.l.b16 %v626
      %v885 = vunpack.c.h.b16 %v626
      %v886 = vunpack.c.l.b16 %v627
      %v887 = vunpack.c.h.b16 %v627
      %v888 = vunpack.c.l.b16 %v628
      %v889 = vunpack.c.h.b16 %v628
      %v890 = vunpack.c.l.b16 %v629
      %v891 = vunpack.c.h.b16 %v629
      %v892 = vunpack.c.l.b16 %v630
      %v893 = vunpack.c.h.b16 %v630
      %v894 = vunpack.c.l.b16 %v631
      %v895 = vunpack.c.h.b16 %v631
      %v896 = vunpack.c.l.b16 %v632
      %v897 = vunpack.c.h.b16 %v632
      %v898 = vunpack.c.l.b16 %v633
      %v899 = vunpack.c.h.b16 %v633
      %v900 = vunpack.c.l.b16 %v634
      %v901 = vunpack.c.h.b16 %v634
      %v902 = vunpack.c.l.b16 %v635
      %v903 = vunpack.c.h.b16 %v635
      %v904 = vunpack.c.l.b16 %v636
      %v905 = vunpack.c.h.b16 %v636
      %v906 = vunpack.c.l.b16 %v637
      %v907 = vunpack.c.h.b16 %v637
      %v908 = vunpack.c.l.b16 %v638
      %v909 = vunpack.c.h.b16 %v638
      %v910 = vunpack.c.l.b16 %v639
      %v911 = vunpack.c.h.b16 %v639
      %v912 = vunpack.c.l.b16 %v640
      %v913 = vunpack.c.h.b16 %v640
      %v914 = vunpack.c.l.b16 %v641
      %v915 = vunpack.c.h.b16 %v641
      %v916 = vunpack.c.l.b16 %v642
      %v917 = vunpack.c.h.b16 %v642
      %v918 = vunpack.c.l.b16 %v643
      %v919 = vunpack.c.h.b16 %v643
      %v920 = vunpack.c.l.b16 %v644
      %v921 = vunpack.c.h.b16 %v644
      %v922 = vunpack.c.l.b16 %v645
      %v923 = vunpack.c.h.b16 %v645
      %v924 = vunpack.c.l.b16 %v646
      %v925 = vunpack.c.h.b16 %v646
      %v926 = vunpack.c.l.b16 %v647
      %v927 = vunpack.c.h.b16 %v647
      %v928 = vunpack.c.l.b16 %v648
      %v929 = vunpack.c.h.b16 %v648
      %v930 = vunpack.c.l.b16 %v649
      %v931 = vunpack.c.h.b16 %v649
      %v932 = vunpack.c.l.b16 %v650
      %v933 = vunpack.c.h.b16 %v650
      %v934 = vunpack.c.l.b16 %v651
      %v935 = vunpack.c.h.b16 %v651
      %v936 = vunpack.c.l.b16 %v652
      %v937 = vunpack.c.h.b16 %v652
      %v938 = vunpack.c.l.b16 %v653
      %v939 = vunpack.c.h.b16 %v653
      %v940 = vunpack.c.l.b16 %v654
      %v941 = vunpack.c.h.b16 %v654
      %v942 = vunpack.c.l.b16 %v655
      %v943 = vunpack.c.h.b16 %v655
      %v944 = vunpack.c.l.b16 %v656
      %v945 = vunpack.c.h.b16 %v656
      %v946 = vunpack.c.l.b16 %v657
      %v947 = vunpack.c.h.b16 %v657
      %v948 = vunpack.c.l.b16 %v658
      %v949 = vunpack.c.h.b16 %v658
      %v950 = vunpack.c.l.b16 %v659
      %v951 = vunpack.c.h.b16 %v659
      %v952 = vunpack.c.l.b16 %v660
      %v953 = vunpack.c.h.b16 %v660
      %v954 = vunpack.c.l.b16 %v661
      %v955 = vunpack.c.h.b16 %v661
      %v956 = vunpack.c.l.b16 %v662
      %v957 = vunpack.c.h.b16 %v662
      %v958 = vunpack.c.l.b16 %v663
      %v959 = vunpack.c.h.b16 %v663
      %v960 = vunpack.c.l.b16 %v664
      %v961 = vunpack.c.h.b16 %v664
      %v962 = vunpack.c.l.b16 %v665
      %v963 = vunpack.c.h.b16 %v665
      %v964 = vunpack.c.l.b16 %v666
      %v965 = vunpack.c.h.b16 %v666
      %v966 = vunpack.c.l.b16 %v667
      %v967 = vunpack.c.h.b16 %v667
      %v968 = vunpack.c.l.b16 %v668
      %v969 = vunpack.c.h.b16 %v668
      %v970 = vunpack.c.l.b16 %v669
      %v971 = vunpack.c.h.b16 %v669
      %v972 = vunpack.c.l.b16 %v670
      %v973 = vunpack.c.h.b16 %v670
      %v974 = vunpack.c.l.b16 %v671
      %v975 = vunpack.c.h.b16 %v671
      %v976 = vunpack.c.l.b16 %v672
      %v977 = vunpack.c.h.b16 %v672
      %v978 = vunpack.c.l.b16 %v673
      %v979 = vunpack.c.h.b16 %v673
      %v980 = vunpack.c.l.b16 %v674
      %v981 = vunpack.c.h.b16 %v674
      %v982 = vunpack.c.l.b16 %v675
      %v983 = vunpack.c.h.b16 %v675
      %v984 = vunpack.c.l.b16 %v676
      %v985 = vunpack.c.h.b16 %v676
      %v986 = vunpack.c.l.b16 %v677
      %v987 = vunpack.c.h.b16 %v677
      %v988 = vunpack.c.l.b16 %v678
      %v989 = vunpack.c.h.b16 %v678
      %v990 = vunpack.c.l.b16 %v679
      %v991 = vunpack.c.h.b16 %v679
      %v992 = vunpack.c.l.b16 %v680
      %v993 = vunpack.c.h.b16 %v680
      %v994 = vunpack.c.l.b16 %v681
      %v995 = vunpack.c.h.b16 %v681
      %v996 = vunpack.c.l.b16 %v682
      %v997 = vunpack.c.h.b16 %v682
      %v998 = vunpack.c.l.b16 %v683
      %v999 = vunpack.c.h.b16 %v683
      %v1000 = vunpack.c.l.b16 %v684
      %v1001 = vunpack.c.h.b16 %v684
      %v1002 = vunpack.c.l.b16 %v685
      %v1003 = vunpack.c.h.b16 %v685
      %v1004 = vunpack.c.l.b16 %v686
      %v1005 = vunpack.c.h.b16 %v686
      %v1006 = vunpack.c.l.b16 %v687
      %v1007 = vunpack.c.h.b16 %v687
      %v1008 = vunpack.c.l.b16 %v688
      %v1009 = vunpack.c.h.b16 %v688
      %v1010 = vunpack.c.l.b16 %v689
      %v1011 = vunpack.c.h.b16 %v689
      %v1012 = vunpack.c.l.b16 %v690
      %v1013 = vunpack.c.h.b16 %v690
      %v1014 = vunpack.c.l.b16 %v691
      %v1015 = vunpack.c.h.b16 %v691
      %v1016 = vunpack.c.l.b16 %v692
      %v1017 = vunpack.c.h.b16 %v692
      %v1018 = vunpack.c.l.b16 %v693
      %v1019 = vunpack.c.h.b16 %v693
      %v1020 = vunpack.c.l.b16 %v694
      %v1021 = vunpack.c.h.b16 %v694
      %v1022 = vunpack.c.l.b16 %v695
      %v1023 = vunpack.c.h.b16 %v695
      %v1024 = vunpack.c.l.b16 %v696
      %v1025 = vunpack.c.h.b16 %v696
      %v1026 = vunpack.c.l.b16 %v697
      %v1027 = vunpack.c.h.b16 %v697
      %v1028 = vunpack.c.l.b16 %v698
      %v1029 = vunpack.c.h.b16 %v698
      %v1030 = vunpack.c.l.b16 %v699
      %v1031 = vunpack.c.h.b16 %v699
      %v1032 = vunpack.c.l.b16 %v700
      %v1033 = vunpack.c.h.b16 %v700
      %v1034 = vunpack.c.l.b16 %v701
      %v1035 = vunpack.c.h.b16 %v701
      %v1036 = vunpack.c.l.b16 %v702
      %v1037 = vunpack.c.h.b16 %v702
      %v1038 = vunpack.c.l.b16 %v703
      %v1039 = vunpack.c.h.b16 %v703
      %v1040 = vunpack.c.l.b16 %v704
      %v1041 = vunpack.c.h.b16 %v704
      %v1042 = vunpack.c.l.b16 %v705
      %v1043 = vunpack.c.h.b16 %v705
      %v1044 = vunpack.c.l.b16 %v706
      %v1045 = vunpack.c.h.b16 %v706
      %v1046 = vunpack.c.l.b16 %v707
      %v1047 = vunpack.c.h.b16 %v707
      %v1048 = vunpack.c.l.b16 %v708
      %v1049 = vunpack.c.h.b16 %v708
      %v1050 = vunpack.c.l.b16 %v709
      %v1051 = vunpack.c.h.b16 %v709
      %v1052 = vunpack.c.l.b16 %v710
      %v1053 = vunpack.c.h.b16 %v710
      %v1054 = vunpack.c.l.b16 %v711
      %v1055 = vunpack.c.h.b16 %v711
      %v1056 = vunpack.c.l.b16 %v712
      %v1057 = vunpack.c.h.b16 %v712
      %v1058 = vunpack.c.l.b16 %v713
      %v1059 = vunpack.c.h.b16 %v713
      %v1060 = vunpack.c.l.b16 %v714
      %v1061 = vunpack.c.h.b16 %v714
      %v1062 = vunpack.c.l.b16 %v715
      %v1063 = vunpack.c.h.b16 %v715
      %v1064 = vunpack.c.l.b16 %v716
      %v1065 = vunpack.c.h.b16 %v716
      %v1066 = vunpack.c.l.b16 %v717
      %v1067 = vunpack.c.h.b16 %v717
      %v1068 = vunpack.c.l.b16 %v718
      %v1069 = vunpack.c.h.b16 %v718
      %v1070 = vunpack.c.l.b16 %v719
      %v1071 = vunpack.c.h.b16 %v719
      %v1072 = vunpack.c.l.b16 %v720
      %v1073 = vunpack.c.h.b16 %v720
      %v1074 = vunpack.c.l.b16 %v721
      %v1075 = vunpack.c.h.b16 %v721
      %v1076 = vunpack.c.l.b16 %v722
      %v1077 = vunpack.c.h.b16 %v722
      %v1078 = vunpack.c.l.b16 %v723
      %v1079 = vunpack.c.h.b16 %v723
      %v1080 = vunpack.c.l.b16 %v724
      %v1081 = vunpack.c.h.b16 %v724
      %v1082 = vunpack.c.l.b16 %v725
      %v1083 = vunpack.c.h.b16 %v725
      %v1084 = vunpack.c.l.b16 %v726
      %v1085 = vunpack.c.h.b16 %v726
      %v1086 = vunpack.c.l.b16 %v727
      %v1087 = vunpack.c.h.b16 %v727
      %v1088 = vunpack.c.l.b16 %v728
      %v1089 = vunpack.c.h.b16 %v728
      %v1090 = vunpack.c.l.b16 %v729
      %v1091 = vunpack.c.h.b16 %v729
      %v1092 = vunpack.c.l.b16 %v730
      %v1093 = vunpack.c.h.b16 %v730
      %v1094 = vunpack.c.l.b16 %v731
      %v1095 = vunpack.c.h.b16 %v731
      %v1096 = vunpack.c.l.b16 %v732
      %v1097 = vunpack.c.h.b16 %v732
      %v1098 = vunpack.c.l.b16 %v733
      %v1099 = vunpack.c.h.b16 %v733
      %v1100 = vunpack.c.l.b16 %v734
      %v1101 = vunpack.c.h.b16 %v734
      %v1102 = vunpack.c.l.b16 %v735
      %v1103 = vunpack.c.h.b16 %v735
      %v1104 = vunpack.c.l.b16 %v736
      %v1105 = vunpack.c.h.b16 %v736
      %v1106 = vunpack.c.l.b16 %v737
      %v1107 = vunpack.c.h.b16 %v737
      %v1108 = vunpack.c.l.b16 %v738
      %v1109 = vunpack.c.h.b16 %v738
      %v1110 = vunpack.c.l.b16 %v739
      %v1111 = vunpack.c.h.b16 %v739
      %v1112 = vunpack.c.l.b16 %v740
      %v1113 = vunpack.c.h.b16 %v740
      %v1114 = vunpack.c.l.b16 %v741
      %v1115 = vunpack.c.h.b16 %v741
      %v1116 = vunpack.c.l.b16 %v742
      %v1117 = vunpack.c.h.b16 %v742
      %v1118 = vunpack.c.l.b16 %v743
      %v1119 = vunpack.c.h.b16 %v743
      %v1120 = vunpack.c.l.b16 %v744
      %v1121 = vunpack.c.h.b16 %v744
      %v1122 = vunpack.c.l.b16 %v745
      %v1123 = vunpack.c.h.b16 %v745
      %v1124 = vunpack.c.l.b16 %v746
      %v1125 = vunpack.c.h.b16 %v746
      %v1126 = vunpack.c.l.b16 %v747
      %v1127 = vunpack.c.h.b16 %v747
      %v1128 = vunpack.c.l.b16 %v748
      %v1129 = vunpack.c.h.b16 %v748
      %v1130 = vunpack.c.l.b16 %v749
      %v1131 = vunpack.c.h.b16 %v749
      %v1132 = vunpack.c.l.b16 %v750
      %v1133 = vunpack.c.h.b16 %v750
      %v1134 = vunpack.c.l.b16 %v751
      %v1135 = vunpack.c.h.b16 %v751
      %v1136 = vpack.c.b16 %v884, %v880
      %v1137 = vpack.c.b16 %v885, %v881
      %v1138 = vpack.c.b16 %v886, %v882
      %v1139 = vpack.c.b16 %v887, %v883
      %v1140 = vpack.c.b16 %v892, %v888
      %v1141 = vpack.c.b16 %v893, %v889
      %v1142 = vpack.c.b16 %v894, %v890
      %v1143 = vpack.c.b16 %v895, %v891
      %v1144 = vpack.c.b16 %v900, %v896
      %v1145 = vpack.c.b16 %v901, %v897
      %v1146 = vpack.c.b16 %v902, %v898
      %v1147 = vpack.c.b16 %v903, %v899
      %v1148 = vpack.c.b16 %v908, %v904
      %v1149 = vpack.c.b16 %v909, %v905
      %v1150 = vpack.c.b16 %v910, %v906
      %v1151 = vpack.c.b16 %v911, %v907
      %v1152 = vpack.c.b16 %v916, %v912
      %v1153 = vpack.c.b16 %v917, %v913
      %v1154 = vpack.c.b16 %v918, %v914
      %v1155 = vpack.c.b16 %v919, %v915
      %v1156 = vpack.c.b16 %v924, %v920
      %v1157 = vpack.c.b16 %v925, %v921
      %v1158 = vpack.c.b16 %v926, %v922
      %v1159 = vpack.c.b16 %v927, %v923
      %v1160 = vpack.c.b16 %v932, %v928
      %v1161 = vpack.c.b16 %v933, %v929
      %v1162 = vpack.c.b16 %v934, %v930
      %v1163 = vpack.c.b16 %v935, %v931
      %v1164 = vpack.c.b16 %v940, %v936
      %v1165 = vpack.c.b16 %v941, %v937
      %v1166 = vpack.c.b16 %v942, %v938
      %v1167 = vpack.c.b16 %v943, %v939
      %v1168 = vpack.c.b16 %v948, %v944
      %v1169 = vpack.c.b16 %v949, %v945
      %v1170 = vpack.c.b16 %v950, %v946
      %v1171 = vpack.c.b16 %v951, %v947
      %v1172 = vpack.c.b16 %v956, %v952
      %v1173 = vpack.c.b16 %v957, %v953
      %v1174 = vpack.c.b16 %v958, %v954
      %v1175 = vpack.c.b16 %v959, %v955
      %v1176 = vpack.c.b16 %v964, %v960
      %v1177 = vpack.c.b16 %v965, %v961
      %v1178 = vpack.c.b16 %v966, %v962
      %v1179 = vpack.c.b16 %v967, %v963
      %v1180 = vpack.c.b16 %v972, %v968
      %v1181 = vpack.c.b16 %v973, %v969
      %v1182 = vpack.c.b16 %v974, %v970
      %v1183 = vpack.c.b16 %v975, %v971
      %v1184 = vpack.c.b16 %v980, %v976
      %v1185 = vpack.c.b16 %v981, %v977
      %v1186 = vpack.c.b16 %v982, %v978
      %v1187 = vpack.c.b16 %v983, %v979
      %v1188 = vpack.c.b16 %v988, %v984
      %v1189 = vpack.c.b16 %v989, %v985
      %v1190 = vpack.c.b16 %v990, %v986
      %v1191 = vpack.c.b16 %v991, %v987
      %v1192 = vpack.c.b16 %v996, %v992
      %v1193 = vpack.c.b16 %v997, %v993
      %v1194 = vpack.c.b16 %v998, %v994
      %v1195 = vpack.c.b16 %v999, %v995
      %v1196 = vpack.c.b16 %v1004, %v1000
      %v1197 = vpack.c.b16 %v1005, %v1001
      %v1198 = vpack.c.b16 %v1006, %v1002
      %v1199 = vpack.c.b16 %v1007, %v1003
      %v1200 = vpack.c.b16 %v1012, %v1008
      %v1201 = vpack.c.b16 %v1013, %v1009
      %v1202 = vpack.c.b16 %v1014, %v1010
      %v1203 = vpack.c.b16 %v1015, %v1011
      %v1204 = vpack.c.b16 %v1020, %v1016
      %v1205 = vpack.c.b16 %v1021, %v1017
      %v1206 = vpack.c.b16 %v1022, %v1018
      %v1207 = vpack.c.b16 %v1023, %v1019
      %v1208 = vpack.c.b16 %v1028, %v1024
      %v1209 = vpack.c.b16 %v1029, %v1025
      %v1210 = vpack.c.b16 %v1030, %v1026
      %v1211 = vpack.c.b16 %v1031, %v1027
      %v1212 = vpack.c.b16 %v1036, %v1032
      %v1213 = vpack.c.b16 %v1037, %v1033
      %v1214 = vpack.c.b16 %v1038, %v1034
      %v1215 = vpack.c.b16 %v1039, %v1035
      %v1216 = vpack.c.b16 %v1044, %v1040
      %v1217 = vpack.c.b16 %v1045, %v1041
      %v1218 = vpack.c.b16 %v1046, %v1042
      %v1219 = vpack.c.b16 %v1047, %v1043
      %v1220 = vpack.c.b16 %v1052, %v1048
      %v1221 = vpack.c.b16 %v1053, %v1049
      %v1222 = vpack.c.b16 %v1054, %v1050
      %v1223 = vpack.c.b16 %v1055, %v1051
      %v1224 = vpack.c.b16 %v1060, %v1056
      %v1225 = vpack.c.b16 %v1061, %v1057
      %v1226 = vpack.c.b16 %v1062, %v1058
      %v1227 = vpack.c.b16 %v1063, %v1059
      %v1228 = vpack.c.b16 %v1068, %v1064
      %v1229 = vpack.c.b16 %v1069, %v1065
      %v1230 = vpack.c.b16 %v1070, %v1066
      %v1231 = vpack.c.b16 %v1071, %v1067
      %v1232 = vpack.c.b16 %v1076, %v1072
      %v1233 = vpack.c.b16 %v1077, %v1073
      %v1234 = vpack.c.b16 %v1078, %v1074
      %v1235 = vpack.c.b16 %v1079, %v1075
      %v1236 = vpack.c.b16 %v1084, %v1080
      %v1237 = vpack.c.b16 %v1085, %v1081
      %v1238 = vpack.c.b16 %v1086, %v1082
      %v1239 = vpack.c.b16 %v1087, %v1083
      %v1240 = vpack.c.b16 %v1092, %v1088
      %v1241 = vpack.c.b16 %v1093, %v1089
      %v1242 = vpack.c.b16 %v1094, %v1090
      %v1243 = vpack.c.b16 %v1095, %v1091
      %v1244 = vpack.c.b16 %v1100, %v1096
      %v1245 = vpack.c.b16 %v1101, %v1097
      %v1246 = vpack.c.b16 %v1102, %v1098
      %v1247 = vpack.c.b16 %v1103, %v1099
      %v1248 = vpack.c.b16 %v1108, %v1104
      %v1249 = vpack.c.b16 %v1109, %v1105
      %v1250 = vpack.c.b16 %v1110, %v1106
      %v1251 = vpack.c.b16 %v1111, %v1107
      %v1252 = vpack.c.b16 %v1116, %v1112
      %v1253 = vpack.c.b16 %v1117, %v1113
      %v1254 = vpack.c.b16 %v1118, %v1114
      %v1255 = vpack.c.b16 %v1119, %v1115
      %v1256 = vpack.c.b16 %v1124, %v1120
      %v1257 = vpack.c.b16 %v1125, %v1121
      %v1258 = vpack.c.b16 %v1126, %v1122
      %v1259 = vpack.c.b16 %v1127, %v1123
      %v1260 = vpack.c.b16 %v1132, %v1128
      %v1261 = vpack.c.b16 %v1133, %v1129
      %v1262 = vpack.c.b16 %v1134, %v1130
      %v1263 = vpack.c.b16 %v1135, %v1131
      %1392 = vmatprep.subr.bf16.mxu0 %v1137
      %1393 = vmatpush1.bf16.msra.mxu0 %v1136
      %1394 = vmatprep.subr.bf16.mxu0 %v1141
      %1395 = vmatpush1.bf16.msra.mxu0 %v1140
      %1396 = vmatprep.subr.bf16.mxu0 %v1145
      %1397 = vmatpush1.bf16.msra.mxu0 %v1144
      %1398 = vmatprep.subr.bf16.mxu0 %v1149
      %1399 = vmatpush1.bf16.msra.mxu0 %v1148
      %1400 = vmatprep.subr.bf16.mxu0 %v1153
      %1401 = vmatpush1.bf16.msra.mxu0 %v1152
      %1402 = vmatprep.subr.bf16.mxu0 %v1157
      %1403 = vmatpush1.bf16.msra.mxu0 %v1156
      %1404 = vmatprep.subr.bf16.mxu0 %v1161
      %1405 = vmatpush1.bf16.msra.mxu0 %v1160
      %1406 = vmatprep.subr.bf16.mxu0 %v1165
      %1407 = vmatpush1.bf16.msra.mxu0 %v1164
      %1408 = vmatprep.subr.bf16.mxu0 %v1169
      %1409 = vmatpush1.bf16.msra.mxu0 %v1168
      %1410 = vmatprep.subr.bf16.mxu0 %v1173
      %1411 = vmatpush1.bf16.msra.mxu0 %v1172
      %1412 = vmatprep.subr.bf16.mxu0 %v1177
      %1413 = vmatpush1.bf16.msra.mxu0 %v1176
      %1414 = vmatprep.subr.bf16.mxu0 %v1181
      %1415 = vmatpush1.bf16.msra.mxu0 %v1180
      %1416 = vmatprep.subr.bf16.mxu0 %v1185
      %1417 = vmatpush1.bf16.msra.mxu0 %v1184
      %1418 = vmatprep.subr.bf16.mxu0 %v1189
      %1419 = vmatpush1.bf16.msra.mxu0 %v1188
      %1420 = vmatprep.subr.bf16.mxu0 %v1193
      %1421 = vmatpush1.bf16.msra.mxu0 %v1192
      %1422 = vmatprep.subr.bf16.mxu0 %v1197
      %1423 = vmatpush1.bf16.msra.mxu0 %v1196
      %1424 = vmatprep.mubr.bf16.mxu0 %v621
      %1425 = vmatmul.mubr.bf16.gmra.mrb[0].mxu0 %v620
      %v1426 = vpop.f32.mrb[0].mxu0
      %v1427 = vadd.f32 0.0, %v1426
      %v1428 = vpop.f32.mrb[0].mxu0
      %v1429 = vadd.f32 0.0, %v1428
      %v1430 = vpop.f32.mrb[0].mxu0
      %v1431 = vpop.f32.mrb[0].mxu0
      %1432 = vdwg.mxu0
      %1433 = vmatprep.subr.bf16.mxu0 %v1201
      %1434 = vmatpush1.bf16.msra.mxu0 %v1200
      %1435 = vmatprep.subr.bf16.mxu0 %v1205
      %1436 = vmatpush1.bf16.msra.mxu0 %v1204
      %1437 = vmatprep.subr.bf16.mxu0 %v1209
      %1438 = vmatpush1.bf16.msra.mxu0 %v1208
      %1439 = vmatprep.subr.bf16.mxu0 %v1213
      %1440 = vmatpush1.bf16.msra.mxu0 %v1212
      %1441 = vmatprep.subr.bf16.mxu0 %v1217
      %1442 = vmatpush1.bf16.msra.mxu0 %v1216
      %1443 = vmatprep.subr.bf16.mxu0 %v1221
      %1444 = vmatpush1.bf16.msra.mxu0 %v1220
      %1445 = vmatprep.subr.bf16.mxu0 %v1225
      %1446 = vmatpush1.bf16.msra.mxu0 %v1224
      %1447 = vmatprep.subr.bf16.mxu0 %v1229
      %1448 = vmatpush1.bf16.msra.mxu0 %v1228
      %1449 = vmatprep.subr.bf16.mxu0 %v1233
      %1450 = vmatpush1.bf16.msra.mxu0 %v1232
      %1451 = vmatprep.subr.bf16.mxu0 %v1237
      %1452 = vmatpush1.bf16.msra.mxu0 %v1236
      %1453 = vmatprep.subr.bf16.mxu0 %v1241
      %1454 = vmatpush1.bf16.msra.mxu0 %v1240
      %1455 = vmatprep.subr.bf16.mxu0 %v1245
      %1456 = vmatpush1.bf16.msra.mxu0 %v1244
      %1457 = vmatprep.subr.bf16.mxu0 %v1249
      %1458 = vmatpush1.bf16.msra.mxu0 %v1248
      %1459 = vmatprep.subr.bf16.mxu0 %v1253
      %1460 = vmatpush1.bf16.msra.mxu0 %v1252
      %1461 = vmatprep.subr.bf16.mxu0 %v1257
      %1462 = vmatpush1.bf16.msra.mxu0 %v1256
      %1463 = vmatprep.subr.bf16.mxu0 %v1261
      %1464 = vmatpush1.bf16.msra.mxu0 %v1260
      %1465 = vmatprep.mubr.bf16.mxu0 %v623
      %1466 = vmatmul.mubr.bf16.gmra.mrb[0].mxu0 %v622
      %v1467 = vpop.f32.mrb[0].mxu0
      %v1468 = vadd.f32 %v1427, %v1467
      %v1469 = vpop.f32.mrb[0].mxu0
      %v1470 = vadd.f32 %v1429, %v1469
      %v1471 = vpop.f32.mrb[0].mxu0
      %v1472 = vpop.f32.mrb[0].mxu0
      %1473 = vdwg.mxu0
      %1474 = vmatprep.subr.bf16.mxu0 %v1139
      %1475 = vmatpush1.bf16.msra.mxu0 %v1138
      %1476 = vmatprep.subr.bf16.mxu0 %v1143
      %1477 = vmatpush1.bf16.msra.mxu0 %v1142
      %1478 = vmatprep.subr.bf16.mxu0 %v1147
      %1479 = vmatpush1.bf16.msra.mxu0 %v1146
      %1480 = vmatprep.subr.bf16.mxu0 %v1151
      %1481 = vmatpush1.bf16.msra.mxu0 %v1150
      %1482 = vmatprep.subr.bf16.mxu0 %v1155
      %1483 = vmatpush1.bf16.msra.mxu0 %v1154
      %1484 = vmatprep.subr.bf16.mxu0 %v1159
      %1485 = vmatpush1.bf16.msra.mxu0 %v1158
      %1486 = vmatprep.subr.bf16.mxu0 %v1163
      %1487 = vmatpush1.bf16.msra.mxu0 %v1162
      %1488 = vmatprep.subr.bf16.mxu0 %v1167
      %1489 = vmatpush1.bf16.msra.mxu0 %v1166
      %1490 = vmatprep.subr.bf16.mxu0 %v1171
      %1491 = vmatpush1.bf16.msra.mxu0 %v1170
      %1492 = vmatprep.subr.bf16.mxu0 %v1175
      %1493 = vmatpush1.bf16.msra.mxu0 %v1174
      %1494 = vmatprep.subr.bf16.mxu0 %v1179
      %1495 = vmatpush1.bf16.msra.mxu0 %v1178
      %1496 = vmatprep.subr.bf16.mxu0 %v1183
      %1497 = vmatpush1.bf16.msra.mxu0 %v1182
      %1498 = vmatprep.subr.bf16.mxu0 %v1187
      %1499 = vmatpush1.bf16.msra.mxu0 %v1186
      %1500 = vmatprep.subr.bf16.mxu0 %v1191
      %1501 = vmatpush1.bf16.msra.mxu0 %v1190
      %1502 = vmatprep.subr.bf16.mxu0 %v1195
      %1503 = vmatpush1.bf16.msra.mxu0 %v1194
      %1504 = vmatprep.subr.bf16.mxu0 %v1199
      %1505 = vmatpush1.bf16.msra.mxu0 %v1198
      %1506 = vmatprep.mubr.bf16.mxu0 %v621
      %1507 = vmatmul.mubr.bf16.gmra.mrb[0].mxu0 %v620
      %v1508 = vpop.f32.mrb[0].mxu0
      %v1509 = vadd.f32 0.0, %v1508
      %v1510 = vpop.f32.mrb[0].mxu0
      %v1511 = vadd.f32 0.0, %v1510
      %v1512 = vpop.f32.mrb[0].mxu0
      %v1513 = vpop.f32.mrb[0].mxu0
      %1514 = vdwg.mxu0
      %1515 = vmatprep.subr.bf16.mxu0 %v1203
      %1516 = vmatpush1.bf16.msra.mxu0 %v1202
      %1517 = vmatprep.subr.bf16.mxu0 %v1207
      %1518 = vmatpush1.bf16.msra.mxu0 %v1206
      %1519 = vmatprep.subr.bf16.mxu0 %v1211
      %1520 = vmatpush1.bf16.msra.mxu0 %v1210
      %1521 = vmatprep.subr.bf16.mxu0 %v1215
      %1522 = vmatpush1.bf16.msra.mxu0 %v1214
      %1523 = vmatprep.subr.bf16.mxu0 %v1219
      %1524 = vmatpush1.bf16.msra.mxu0 %v1218
      %1525 = vmatprep.subr.bf16.mxu0 %v1223
      %1526 = vmatpush1.bf16.msra.mxu0 %v1222
      %1527 = vmatprep.subr.bf16.mxu0 %v1227
      %1528 = vmatpush1.bf16.msra.mxu0 %v1226
      %1529 = vmatprep.subr.bf16.mxu0 %v1231
      %1530 = vmatpush1.bf16.msra.mxu0 %v1230
      %1531 = vmatprep.subr.bf16.mxu0 %v1235
      %1532 = vmatpush1.bf16.msra.mxu0 %v1234
      %1533 = vmatprep.subr.bf16.mxu0 %v1239
      %1534 = vmatpush1.bf16.msra.mxu0 %v1238
      %1535 = vmatprep.subr.bf16.mxu0 %v1243
      %1536 = vmatpush1.bf16.msra.mxu0 %v1242
      %1537 = vmatprep.subr.bf16.mxu0 %v1247
      %1538 = vmatpush1.bf16.msra.mxu0 %v1246
      %1539 = vmatprep.subr.bf16.mxu0 %v1251
      %1540 = vmatpush1.bf16.msra.mxu0 %v1250
      %1541 = vmatprep.subr.bf16.mxu0 %v1255
      %1542 = vmatpush1.bf16.msra.mxu0 %v1254
      %1543 = vmatprep.subr.bf16.mxu0 %v1259
      %1544 = vmatpush1.bf16.msra.mxu0 %v1258
      %1545 = vmatprep.subr.bf16.mxu0 %v1263
      %1546 = vmatpush1.bf16.msra.mxu0 %v1262
      %1547 = vmatprep.mubr.bf16.mxu0 %v623
      %1548 = vmatmul.mubr.bf16.gmra.mrb[0].mxu0 %v622
      %v1549 = vpop.f32.mrb[0].mxu0
      %v1550 = vadd.f32 %v1509, %v1549
      %v1551 = vpop.f32.mrb[0].mxu0
      %v1552 = vadd.f32 %v1511, %v1551
      %v1553 = vpop.f32.mrb[0].mxu0
      %v1554 = vpop.f32.mrb[0].mxu0
      %1555 = vdwg.mxu0
      %v1556 = vstv %s597
      %v1557 = vmul.f32 %v1556, %v1468
      %v1558 = vmul.f32 %v1556, %v1470
      %v1559 = vmul.f32 %v1556, %v1550
      %v1560 = vmul.f32 %v1556, %v1552
      %v1565 = vcombine.low %v1557, %v1558
      %v1566 = vcombine.low %v1559, %v1560
      %v1568 = vunpack.c.l.s4 1966171168
      %v1569 = vunpack.c.0.s8 %v1568
      %v1570 = vlaneseq
      %v1571 = vshrl.u32 %v1570, 7
      %v1572 = vsub.s32 %v1569, %v1571
      %v1573 = vrot.slane %v1565, %v1572
      %v1575 = vunpack.c.l.s4 1966171168
      %v1576 = vunpack.c.0.s8 %v1575
      %v1577 = vlaneseq
      %v1578 = vshrl.u32 %v1577, 7
      %v1579 = vsub.s32 %v1576, %v1578
      %v1580 = vrot.slane %v1566, %v1579
      %v1581 = vcombine.low %v1573, %v1580
      %v1583 = vunpack.c.l.s4 1966171168
      %v1584 = vunpack.c.0.s8 %v1583
      %v1585 = vlaneseq
      %v1586 = vshrl.u32 %v1585, 7
      %v1587 = vsub.s32 %v1584, %v1586
      %v1588 = vrot.slane %v1581, %v1587
      %v1590 = vsub.f32 %v598, %v1588
      %v1591 = vld [vmem:[%s581] sm:$0xf]
      %v1592 = vmul.f32 %v1556, %v1591
      %v1593 = vadd.f32 %v1590, %v1592
      %v1595 = vlaneseq
      %v1596 = vshrl.u32 %v1595, 7
      %v1597 = vsub.s32 0, %v1596
      %v1598 = vrot.slane %v1593, %v1597
      %v1599 = vlaneseq
      %v1600 = vshrl.u32 %v1599, 7
      %v1601 = vsub.s32 1, %v1600
      %v1602 = vrot.slane %v1593, %v1601
      %v1605 = vlaneseq
      %v1606 = vshrl.u32 %v1605, 7
      %v1607 = vsub.s32 2, %v1606
      %v1608 = vrot.slane %v1593, %v1607
      %v1609 = vlaneseq
      %v1610 = vshrl.u32 %v1609, 7
      %v1611 = vsub.s32 3, %v1610
      %v1612 = vrot.slane %v1593, %v1611
      %vm1615 = vcmask 1040384
      %v1616 = vsel %vm1615, %v1598, %v1608
      %v1617 = vsel %vm1615, %v1602, %v1612
      %v1618 = vld [vmem:[%s586] sm:$0xff]
      %v1619 = vld [vmem:[%s586 + $0x8] sm:$0xff]
      %v1620 = vld [vmem:[%s586 + $0x10] sm:$0xff]
      %v1621 = vld [vmem:[%s586 + $0x18] sm:$0xff]
      %v1622 = vld [vmem:[%s586 + $0x20] sm:$0xff]
      %v1623 = vld [vmem:[%s586 + $0x28] sm:$0xff]
      %v1624 = vld [vmem:[%s586 + $0x30] sm:$0xff]
      %v1625 = vld [vmem:[%s586 + $0x38] sm:$0xff]
      %v1626 = vlaneseq
      %v1627 = vand.u32 %v1626, 127
      %v1628 = vadd.s32 %v1627, 128
      %v1629 = vshra.s32 %v1627, 4
      %v1630 = vshra.s32 %v1628, 4
      %v1631 = vand.u32 %v1627, 15
      %v1632 = vand.u32 %v1628, 15
      %1633 = vrot.lane.b32.xlu0 %v1616, 17
      %v1634 = vpop.permute.xlu0 %1633
      %1635 = vrot.lane.b32.xlu0 %v1617, 17
      %v1636 = vpop.permute.xlu0 %1635
      %vm1637 = vcmp.lt.s32.totalorder %v1627, 17
      %v1638 = vsel %vm1637, %v1634, %v1636
      %v1639 = vsel %vm1637, %v1636, %v1634
      %v1640 = vld [vmem:[%s5] sm:$0xff]
      %v1641 = vld [vmem:[%s5 + $0x8] sm:$0xff]
      %v1642 = vld [vmem:[%s5 + $0x10] sm:$0xff]
      %v1643 = vld [vmem:[%s5 + $0x18] sm:$0xff]
      %1644 = vrot.lane.b32.xlu0 %v1618, 17
      %v1645 = vpop.permute.xlu0 %1644
      %1646 = vrot.lane.b32.xlu0 %v1620, 17
      %v1647 = vpop.permute.xlu0 %1646
      %1648 = vrot.lane.b32.xlu0 %v1622, 17
      %v1649 = vpop.permute.xlu0 %1648
      %1650 = vrot.lane.b32.xlu0 %v1624, 17
      %v1651 = vpop.permute.xlu0 %1650
      %1652 = vrot.lane.b32.xlu0 %v1619, 17
      %v1653 = vpop.permute.xlu0 %1652
      %1654 = vrot.lane.b32.xlu0 %v1621, 17
      %v1655 = vpop.permute.xlu0 %1654
      %1656 = vrot.lane.b32.xlu0 %v1623, 17
      %v1657 = vpop.permute.xlu0 %1656
      %1658 = vrot.lane.b32.xlu0 %v1625, 17
      %v1659 = vpop.permute.xlu0 %1658
      %v1660 = vsel %vm1637, %v1645, %v1653
      %v1661 = vsel %vm1637, %v1647, %v1655
      %v1662 = vsel %vm1637, %v1649, %v1657
      %v1663 = vsel %vm1637, %v1651, %v1659
      %v1664 = vsel %vm1637, %v1653, %v1645
      %v1665 = vsel %vm1637, %v1655, %v1647
      %v1666 = vsel %vm1637, %v1657, %v1649
      %v1667 = vsel %vm1637, %v1659, %v1651
      %v1668 = vld [vmem:[%s6] sm:$0xff]
      %v1669 = vld [vmem:[%s6 + $0x8] sm:$0xff]
      %v1670 = vld [vmem:[%s6 + $0x10] sm:$0xff]
      %v1671 = vld [vmem:[%s6 + $0x18] sm:$0xff]
      %vm1672 = vcmask 261120
      %v1674 = vsel %vm1672, %v1668, 0
      %v1677 = vsel %vm1672, %v1669, 0
      %v1680 = vsel %vm1672, %v1670, 0
      %v1683 = vsel %vm1672, %v1671, 0
      %1685 = vmatprep.subr.mxu0 %v1660
      %1686 = vmatpush1.msra.mxu0 %v1664
      %1687 = vmatprep.subr.mxu0 %v1661
      %1688 = vmatpush1.msra.mxu0 %v1665
      %1689 = vmatprep.subr.mxu0 %v1662
      %1690 = vmatpush1.msra.mxu0 %v1666
      %1691 = vmatprep.subr.mxu0 %v1663
      %1692 = vmatpush1.msra.mxu0 %v1667
      %1693 = vmatprep.subr.mxu0 0.0
      %1694 = vmatpush1.msra.mxu0 0.0
      %1695 = vmatprep.subr.mxu0 0.0
      %1696 = vmatpush1.msra.mxu0 0.0
      %1697 = vmatprep.subr.mxu0 0.0
      %1698 = vmatpush1.msra.mxu0 0.0
      %1699 = vmatprep.subr.mxu0 0.0
      %1700 = vmatpush1.msra.mxu0 0.0
      %1701 = vmatprep.subr.mxu0 0.0
      %1702 = vmatpush1.msra.mxu0 0.0
      %1703 = vmatprep.subr.mxu0 0.0
      %1704 = vmatpush1.msra.mxu0 0.0
      %1705 = vmatprep.subr.mxu0 0.0
      %1706 = vmatpush1.msra.mxu0 0.0
      %1707 = vmatprep.subr.mxu0 0.0
      %1708 = vmatpush1.msra.mxu0 0.0
      %1709 = vmatprep.subr.mxu0 0.0
      %1710 = vmatpush1.msra.mxu0 0.0
      %1711 = vmatprep.subr.mxu0 0.0
      %1712 = vmatpush1.msra.mxu0 0.0
      %1713 = vmatprep.subr.mxu0 0.0
      %1714 = vmatpush1.msra.mxu0 0.0
      %1715 = vmatprep.subr.mxu0 0.0
      %1716 = vmatpush1.msra.mxu0 0.0
      %1717 = vmatprep.subr.mxu0 0.0
      %1718 = vmatpush1.msra.mxu0 0.0
      %1719 = vmatprep.subr.mxu0 0.0
      %1720 = vmatpush1.msra.mxu0 0.0
      %1721 = vmatprep.subr.mxu0 0.0
      %1722 = vmatpush1.msra.mxu0 0.0
      %1723 = vmatprep.subr.mxu0 0.0
      %1724 = vmatpush1.msra.mxu0 0.0
      %1725 = vmatprep.subr.mxu0 0.0
      %1726 = vmatpush1.msra.mxu0 0.0
      %1727 = vmatprep.subr.mxu0 0.0
      %1728 = vmatpush1.msra.mxu0 0.0
      %1729 = vmatprep.subr.mxu0 0.0
      %1730 = vmatpush1.msra.mxu0 0.0
      %1731 = vmatprep.subr.mxu0 0.0
      %1732 = vmatpush1.msra.mxu0 0.0
      %1733 = vmatprep.subr.mxu0 0.0
      %1734 = vmatpush1.msra.mxu0 0.0
      %1735 = vmatprep.subr.mxu0 0.0
      %1736 = vmatpush1.msra.mxu0 0.0
      %1737 = vmatprep.subr.mxu0 0.0
      %1738 = vmatpush1.msra.mxu0 0.0
      %1739 = vmatprep.subr.mxu0 0.0
      %1740 = vmatpush1.msra.mxu0 0.0
      %1741 = vmatprep.subr.mxu0 0.0
      %1742 = vmatpush1.msra.mxu0 0.0
      %1743 = vmatprep.subr.mxu0 0.0
      %1744 = vmatpush1.msra.mxu0 0.0
      %1745 = vmatprep.subr.mxu0 0.0
      %1746 = vmatpush1.msra.mxu0 0.0
      %1747 = vmatprep.subr.mxu0 0.0
      %1748 = vmatpush1.msra.mxu0 0.0
      %1749 = vmatprep.mubr.f32.mxu0 0.0
      %1750 = vmatmul.mubr.f32.gmra.mrb[0].mxu0 %v1674
      %v1751 = vpop.f32.mrb[0].mxu0
      %v1752 = vadd.f32 0.0, %v1751
      %v1753 = vpop.f32.mrb[0].mxu0
      %v1754 = vadd.f32 0.0, %v1753
      %1755 = vmatprep.mubr.f32.mxu0 0.0
      %1756 = vmatmul.mubr.f32.gmra.mrb[0].mxu0 %v1677
      %v1757 = vpop.f32.mrb[0].mxu0
      %v1758 = vadd.f32 0.0, %v1757
      %v1759 = vpop.f32.mrb[0].mxu0
      %v1760 = vadd.f32 0.0, %v1759
      %1761 = vmatprep.mubr.f32.mxu0 0.0
      %1762 = vmatmul.mubr.f32.gmra.mrb[0].mxu0 %v1680
      %v1763 = vpop.f32.mrb[0].mxu0
      %v1764 = vadd.f32 0.0, %v1763
      %v1765 = vpop.f32.mrb[0].mxu0
      %v1766 = vadd.f32 0.0, %v1765
      %1767 = vmatprep.mubr.f32.mxu0 0.0
      %1768 = vmatmul.mubr.f32.gmra.mrb[0].mxu0 %v1683
      %v1769 = vpop.f32.mrb[0].mxu0
      %v1770 = vadd.f32 0.0, %v1769
      %v1771 = vpop.f32.mrb[0].mxu0
      %v1772 = vadd.f32 0.0, %v1771
      %1773 = vdwg.mxu0
      %vm1774 = vcmask 15360
      %v1776 = vsel %vm1774, %v1640, 0
      %v1779 = vsel %vm1774, %v1641, 0
      %v1782 = vsel %vm1774, %v1642, 0
      %v1785 = vsel %vm1774, %v1643, 0
      %vm1787 = vcmask 1041408
      %v1789 = vsel %vm1787, %v1639, 0
      %v1792 = vsel %vm1787, %v1638, 0
      %1794 = vmatprep.subr.mxu0 %v1792
      %1795 = vmatpush1.msra.mxu0 %v1789
      %1796 = vmatprep.subr.mxu0 0.0
      %1797 = vmatpush1.msra.mxu0 0.0
      %1798 = vmatprep.subr.mxu0 0.0
      %1799 = vmatpush1.msra.mxu0 0.0
      %1800 = vmatprep.subr.mxu0 0.0
      %1801 = vmatpush1.msra.mxu0 0.0
      %1802 = vmatprep.subr.mxu0 0.0
      %1803 = vmatpush1.msra.mxu0 0.0
      %1804 = vmatprep.subr.mxu0 0.0
      %1805 = vmatpush1.msra.mxu0 0.0
      %1806 = vmatprep.subr.mxu0 0.0
      %1807 = vmatpush1.msra.mxu0 0.0
      %1808 = vmatprep.subr.mxu0 0.0
      %1809 = vmatpush1.msra.mxu0 0.0
      %1810 = vmatprep.subr.mxu0 0.0
      %1811 = vmatpush1.msra.mxu0 0.0
      %1812 = vmatprep.subr.mxu0 0.0
      %1813 = vmatpush1.msra.mxu0 0.0
      %1814 = vmatprep.subr.mxu0 0.0
      %1815 = vmatpush1.msra.mxu0 0.0
      %1816 = vmatprep.subr.mxu0 0.0
      %1817 = vmatpush1.msra.mxu0 0.0
      %1818 = vmatprep.subr.mxu0 0.0
      %1819 = vmatpush1.msra.mxu0 0.0
      %1820 = vmatprep.subr.mxu0 0.0
      %1821 = vmatpush1.msra.mxu0 0.0
      %1822 = vmatprep.subr.mxu0 0.0
      %1823 = vmatpush1.msra.mxu0 0.0
      %1824 = vmatprep.subr.mxu0 0.0
      %1825 = vmatpush1.msra.mxu0 0.0
      %1826 = vmatprep.subr.mxu0 0.0
      %1827 = vmatpush1.msra.mxu0 0.0
      %1828 = vmatprep.subr.mxu0 0.0
      %1829 = vmatpush1.msra.mxu0 0.0
      %1830 = vmatprep.subr.mxu0 0.0
      %1831 = vmatpush1.msra.mxu0 0.0
      %1832 = vmatprep.subr.mxu0 0.0
      %1833 = vmatpush1.msra.mxu0 0.0
      %1834 = vmatprep.subr.mxu0 0.0
      %1835 = vmatpush1.msra.mxu0 0.0
      %1836 = vmatprep.subr.mxu0 0.0
      %1837 = vmatpush1.msra.mxu0 0.0
      %1838 = vmatprep.subr.mxu0 0.0
      %1839 = vmatpush1.msra.mxu0 0.0
      %1840 = vmatprep.subr.mxu0 0.0
      %1841 = vmatpush1.msra.mxu0 0.0
      %1842 = vmatprep.subr.mxu0 0.0
      %1843 = vmatpush1.msra.mxu0 0.0
      %1844 = vmatprep.subr.mxu0 0.0
      %1845 = vmatpush1.msra.mxu0 0.0
      %1846 = vmatprep.subr.mxu0 0.0
      %1847 = vmatpush1.msra.mxu0 0.0
      %1848 = vmatprep.subr.mxu0 0.0
      %1849 = vmatpush1.msra.mxu0 0.0
      %1850 = vmatprep.subr.mxu0 0.0
      %1851 = vmatpush1.msra.mxu0 0.0
      %1852 = vmatprep.subr.mxu0 0.0
      %1853 = vmatpush1.msra.mxu0 0.0
      %1854 = vmatprep.subr.mxu0 0.0
      %1855 = vmatpush1.msra.mxu0 0.0
      %1856 = vmatprep.subr.mxu0 0.0
      %1857 = vmatpush1.msra.mxu0 0.0
      %1858 = vmatprep.mubr.f32.mxu0 0.0
      %1859 = vmatmul.mubr.f32.gmra.mrb[0].mxu0 %v1776
      %v1860 = vpop.f32.mrb[0].mxu0
      %v1861 = vadd.f32 %v1752, %v1860
      %v1862 = vpop.f32.mrb[0].mxu0
      %v1863 = vadd.f32 %v1754, %v1862
      %1864 = vmatprep.mubr.f32.mxu0 0.0
      %1865 = vmatmul.mubr.f32.gmra.mrb[0].mxu0 %v1779
      %v1866 = vpop.f32.mrb[0].mxu0
      %v1867 = vadd.f32 %v1758, %v1866
      %v1868 = vpop.f32.mrb[0].mxu0
      %v1869 = vadd.f32 %v1760, %v1868
      %1870 = vmatprep.mubr.f32.mxu0 0.0
      %1871 = vmatmul.mubr.f32.gmra.mrb[0].mxu0 %v1782
      %v1872 = vpop.f32.mrb[0].mxu0
      %v1873 = vadd.f32 %v1764, %v1872
      %v1874 = vpop.f32.mrb[0].mxu0
      %v1875 = vadd.f32 %v1766, %v1874
      %1876 = vmatprep.mubr.f32.mxu0 0.0
      %1877 = vmatmul.mubr.f32.gmra.mrb[0].mxu0 %v1785
      %v1878 = vpop.f32.mrb[0].mxu0
      %v1879 = vadd.f32 %v1770, %v1878
      %v1880 = vpop.f32.mrb[0].mxu0
      %v1881 = vadd.f32 %v1772, %v1880
      %1882 = vdwg.mxu0
      %vm1883 = vcmp.ge.s32.totalorder %v1629, 1
      %vm1884 = vcmp.ge.s32.totalorder %v1630, 1
      %vm1885 = vcmp.ge.s32.totalorder %v1631, 1
      %vm1886 = vcmp.ge.s32.totalorder %v1632, 1
      %vm1887 = vmand %vm1883, %vm1885
      %vm1888 = vmand %vm1884, %vm1886
      %v1889 = vsel %vm1887, 1, 0
      %v1890 = vsel %vm1888, 1, 0
      %vm1891 = vcmp.eq.s32.totalorder %v1889, 1
      %vm1892 = vcmp.eq.s32.totalorder %v1890, 1
      %v1893 = vsel %vm1891, %v1861, 0.0
      %v1894 = vsel %vm1892, %v1863, 0.0
      %v1895 = vsel %vm1891, %v1867, 0.0
      %v1896 = vsel %vm1892, %v1869, 0.0
      %v1897 = vsel %vm1891, %v1873, 0.0
      %v1898 = vsel %vm1892, %v1875, 0.0
      %v1899 = vsel %vm1891, %v1879, 0.0
      %v1900 = vsel %vm1892, %v1881, 0.0
      %1901 = vrot.lane.b32.xlu0 %v1616, 16
      %v1902 = vpop.permute.xlu0 %1901
      %1903 = vrot.lane.b32.xlu0 %v1617, 16
      %v1904 = vpop.permute.xlu0 %1903
      %vm1905 = vcmp.lt.s32.totalorder %v1627, 16
      %v1906 = vsel %vm1905, %v1902, %v1904
      %v1907 = vsel %vm1905, %v1904, %v1902
      %s1908 = scalar_lea.vmem %s5, 32
      %v1909 = vld [vmem:[%s1908] sm:$0xff]
      %v1910 = vld [vmem:[%s1908 + $0x8] sm:$0xff]
      %v1911 = vld [vmem:[%s1908 + $0x10] sm:$0xff]
      %v1912 = vld [vmem:[%s1908 + $0x18] sm:$0xff]
      %1913 = vrot.lane.b32.xlu0 %v1618, 16
      %v1914 = vpop.permute.xlu0 %1913
      %1915 = vrot.lane.b32.xlu0 %v1620, 16
      %v1916 = vpop.permute.xlu0 %1915
      %1917 = vrot.lane.b32.xlu0 %v1622, 16
      %v1918 = vpop.permute.xlu0 %1917
      %1919 = vrot.lane.b32.xlu0 %v1624, 16
      %v1920 = vpop.permute.xlu0 %1919
      %1921 = vrot.lane.b32.xlu0 %v1619, 16
      %v1922 = vpop.permute.xlu0 %1921
      %1923 = vrot.lane.b32.xlu0 %v1621, 16
      %v1924 = vpop.permute.xlu0 %1923
      %1925 = vrot.lane.b32.xlu0 %v1623, 16
      %v1926 = vpop.permute.xlu0 %1925
      %1927 = vrot.lane.b32.xlu0 %v1625, 16
      %v1928 = vpop.permute.xlu0 %1927
      %v1929 = vsel %vm1905, %v1914, %v1922
      %v1930 = vsel %vm1905, %v1916, %v1924
      %v1931 = vsel %vm1905, %v1918, %v1926
      %v1932 = vsel %vm1905, %v1920, %v1928
      %v1933 = vsel %vm1905, %v1922, %v1914
      %v1934 = vsel %vm1905, %v1924, %v1916
      %v1935 = vsel %vm1905, %v1926, %v1918
      %v1936 = vsel %vm1905, %v1928, %v1920
      %s1937 = scalar_lea.vmem %s6, 32
      %v1938 = vld [vmem:[%s1937] sm:$0xff]
      %v1939 = vld [vmem:[%s1937 + $0x8] sm:$0xff]
      %v1940 = vld [vmem:[%s1937 + $0x10] sm:$0xff]
      %v1941 = vld [vmem:[%s1937 + $0x18] sm:$0xff]
      %v1943 = vsel %vm1672, %v1938, 0
      %v1946 = vsel %vm1672, %v1939, 0
      %v1949 = vsel %vm1672, %v1940, 0
      %v1952 = vsel %vm1672, %v1941, 0
      %1954 = vmatprep.subr.mxu0 %v1929
      %1955 = vmatpush1.msra.mxu0 %v1933
      %1956 = vmatprep.subr.mxu0 %v1930
      %1957 = vmatpush1.msra.mxu0 %v1934
      %1958 = vmatprep.subr.mxu0 %v1931
      %1959 = vmatpush1.msra.mxu0 %v1935
      %1960 = vmatprep.subr.mxu0 %v1932
      %1961 = vmatpush1.msra.mxu0 %v1936
      %1962 = vmatprep.subr.mxu0 0.0
      %1963 = vmatpush1.msra.mxu0 0.0
      %1964 = vmatprep.subr.mxu0 0.0
      %1965 = vmatpush1.msra.mxu0 0.0
      %1966 = vmatprep.subr.mxu0 0.0
      %1967 = vmatpush1.msra.mxu0 0.0
      %1968 = vmatprep.subr.mxu0 0.0
      %1969 = vmatpush1.msra.mxu0 0.0
      %1970 = vmatprep.subr.mxu0 0.0
      %1971 = vmatpush1.msra.mxu0 0.0
      %1972 = vmatprep.subr.mxu0 0.0
      %1973 = vmatpush1.msra.mxu0 0.0
      %1974 = vmatprep.subr.mxu0 0.0
      %1975 = vmatpush1.msra.mxu0 0.0
      %1976 = vmatprep.subr.mxu0 0.0
      %1977 = vmatpush1.msra.mxu0 0.0
      %1978 = vmatprep.subr.mxu0 0.0
      %1979 = vmatpush1.msra.mxu0 0.0
      %1980 = vmatprep.subr.mxu0 0.0
      %1981 = vmatpush1.msra.mxu0 0.0
      %1982 = vmatprep.subr.mxu0 0.0
      %1983 = vmatpush1.msra.mxu0 0.0
      %1984 = vmatprep.subr.mxu0 0.0
      %1985 = vmatpush1.msra.mxu0 0.0
      %1986 = vmatprep.subr.mxu0 0.0
      %1987 = vmatpush1.msra.mxu0 0.0
      %1988 = vmatprep.subr.mxu0 0.0
      %1989 = vmatpush1.msra.mxu0 0.0
      %1990 = vmatprep.subr.mxu0 0.0
      %1991 = vmatpush1.msra.mxu0 0.0
      %1992 = vmatprep.subr.mxu0 0.0
      %1993 = vmatpush1.msra.mxu0 0.0
      %1994 = vmatprep.subr.mxu0 0.0
      %1995 = vmatpush1.msra.mxu0 0.0
      %1996 = vmatprep.subr.mxu0 0.0
      %1997 = vmatpush1.msra.mxu0 0.0
      %1998 = vmatprep.subr.mxu0 0.0
      %1999 = vmatpush1.msra.mxu0 0.0
      %2000 = vmatprep.subr.mxu0 0.0
      %2001 = vmatpush1.msra.mxu0 0.0
      %2002 = vmatprep.subr.mxu0 0.0
      %2003 = vmatpush1.msra.mxu0 0.0
      %2004 = vmatprep.subr.mxu0 0.0
      %2005 = vmatpush1.msra.mxu0 0.0
      %2006 = vmatprep.subr.mxu0 0.0
      %2007 = vmatpush1.msra.mxu0 0.0
      %2008 = vmatprep.subr.mxu0 0.0
      %2009 = vmatpush1.msra.mxu0 0.0
      %2010 = vmatprep.subr.mxu0 0.0
      %2011 = vmatpush1.msra.mxu0 0.0
      %2012 = vmatprep.subr.mxu0 0.0
      %2013 = vmatpush1.msra.mxu0 0.0
      %2014 = vmatprep.subr.mxu0 0.0
      %2015 = vmatpush1.msra.mxu0 0.0
      %2016 = vmatprep.subr.mxu0 0.0
      %2017 = vmatpush1.msra.mxu0 0.0
      %2018 = vmatprep.mubr.f32.mxu0 0.0
      %2019 = vmatmul.mubr.f32.gmra.mrb[0].mxu0 %v1943
      %v2020 = vpop.f32.mrb[0].mxu0
      %v2021 = vadd.f32 0.0, %v2020
      %v2022 = vpop.f32.mrb[0].mxu0
      %v2023 = vadd.f32 0.0, %v2022
      %2024 = vmatprep.mubr.f32.mxu0 0.0
      %2025 = vmatmul.mubr.f32.gmra.mrb[0].mxu0 %v1946
      %v2026 = vpop.f32.mrb[0].mxu0
      %v2027 = vadd.f32 0.0, %v2026
      %v2028 = vpop.f32.mrb[0].mxu0
      %v2029 = vadd.f32 0.0, %v2028
      %2030 = vmatprep.mubr.f32.mxu0 0.0
      %2031 = vmatmul.mubr.f32.gmra.mrb[0].mxu0 %v1949
      %v2032 = vpop.f32.mrb[0].mxu0
      %v2033 = vadd.f32 0.0, %v2032
      %v2034 = vpop.f32.mrb[0].mxu0
      %v2035 = vadd.f32 0.0, %v2034
      %2036 = vmatprep.mubr.f32.mxu0 0.0
      %2037 = vmatmul.mubr.f32.gmra.mrb[0].mxu0 %v1952
      %v2038 = vpop.f32.mrb[0].mxu0
      %v2039 = vadd.f32 0.0, %v2038
      %v2040 = vpop.f32.mrb[0].mxu0
      %v2041 = vadd.f32 0.0, %v2040
      %2042 = vdwg.mxu0
      %v2044 = vsel %vm1774, %v1909, 0
      %v2047 = vsel %vm1774, %v1910, 0
      %v2050 = vsel %vm1774, %v1911, 0
      %v2053 = vsel %vm1774, %v1912, 0
      %v2056 = vsel %vm1787, %v1907, 0
      %v2059 = vsel %vm1787, %v1906, 0
      %2061 = vmatprep.subr.mxu0 %v2059
      %2062 = vmatpush1.msra.mxu0 %v2056
      %2063 = vmatprep.subr.mxu0 0.0
      %2064 = vmatpush1.msra.mxu0 0.0
      %2065 = vmatprep.subr.mxu0 0.0
      %2066 = vmatpush1.msra.mxu0 0.0
      %2067 = vmatprep.subr.mxu0 0.0
      %2068 = vmatpush1.msra.mxu0 0.0
      %2069 = vmatprep.subr.mxu0 0.0
      %2070 = vmatpush1.msra.mxu0 0.0
      %2071 = vmatprep.subr.mxu0 0.0
      %2072 = vmatpush1.msra.mxu0 0.0
      %2073 = vmatprep.subr.mxu0 0.0
      %2074 = vmatpush1.msra.mxu0 0.0
      %2075 = vmatprep.subr.mxu0 0.0
      %2076 = vmatpush1.msra.mxu0 0.0
      %2077 = vmatprep.subr.mxu0 0.0
      %2078 = vmatpush1.msra.mxu0 0.0
      %2079 = vmatprep.subr.mxu0 0.0
      %2080 = vmatpush1.msra.mxu0 0.0
      %2081 = vmatprep.subr.mxu0 0.0
      %2082 = vmatpush1.msra.mxu0 0.0
      %2083 = vmatprep.subr.mxu0 0.0
      %2084 = vmatpush1.msra.mxu0 0.0
      %2085 = vmatprep.subr.mxu0 0.0
      %2086 = vmatpush1.msra.mxu0 0.0
      %2087 = vmatprep.subr.mxu0 0.0
      %2088 = vmatpush1.msra.mxu0 0.0
      %2089 = vmatprep.subr.mxu0 0.0
      %2090 = vmatpush1.msra.mxu0 0.0
      %2091 = vmatprep.subr.mxu0 0.0
      %2092 = vmatpush1.msra.mxu0 0.0
      %2093 = vmatprep.subr.mxu0 0.0
      %2094 = vmatpush1.msra.mxu0 0.0
      %2095 = vmatprep.subr.mxu0 0.0
      %2096 = vmatpush1.msra.mxu0 0.0
      %2097 = vmatprep.subr.mxu0 0.0
      %2098 = vmatpush1.msra.mxu0 0.0
      %2099 = vmatprep.subr.mxu0 0.0
      %2100 = vmatpush1.msra.mxu0 0.0
      %2101 = vmatprep.subr.mxu0 0.0
      %2102 = vmatpush1.msra.mxu0 0.0
      %2103 = vmatprep.subr.mxu0 0.0
      %2104 = vmatpush1.msra.mxu0 0.0
      %2105 = vmatprep.subr.mxu0 0.0
      %2106 = vmatpush1.msra.mxu0 0.0
      %2107 = vmatprep.subr.mxu0 0.0
      %2108 = vmatpush1.msra.mxu0 0.0
      %2109 = vmatprep.subr.mxu0 0.0
      %2110 = vmatpush1.msra.mxu0 0.0
      %2111 = vmatprep.subr.mxu0 0.0
      %2112 = vmatpush1.msra.mxu0 0.0
      %2113 = vmatprep.subr.mxu0 0.0
      %2114 = vmatpush1.msra.mxu0 0.0
      %2115 = vmatprep.subr.mxu0 0.0
      %2116 = vmatpush1.msra.mxu0 0.0
      %2117 = vmatprep.subr.mxu0 0.0
      %2118 = vmatpush1.msra.mxu0 0.0
      %2119 = vmatprep.subr.mxu0 0.0
      %2120 = vmatpush1.msra.mxu0 0.0
      %2121 = vmatprep.subr.mxu0 0.0
      %2122 = vmatpush1.msra.mxu0 0.0
      %2123 = vmatprep.subr.mxu0 0.0
      %2124 = vmatpush1.msra.mxu0 0.0
      %2125 = vmatprep.mubr.f32.mxu0 0.0
      %2126 = vmatmul.mubr.f32.gmra.mrb[0].mxu0 %v2044
      %v2127 = vpop.f32.mrb[0].mxu0
      %v2128 = vadd.f32 %v2021, %v2127
      %v2129 = vpop.f32.mrb[0].mxu0
      %v2130 = vadd.f32 %v2023, %v2129
      %2131 = vmatprep.mubr.f32.mxu0 0.0
      %2132 = vmatmul.mubr.f32.gmra.mrb[0].mxu0 %v2047
      %v2133 = vpop.f32.mrb[0].mxu0
      %v2134 = vadd.f32 %v2027, %v2133
      %v2135 = vpop.f32.mrb[0].mxu0
      %v2136 = vadd.f32 %v2029, %v2135
      %2137 = vmatprep.mubr.f32.mxu0 0.0
      %2138 = vmatmul.mubr.f32.gmra.mrb[0].mxu0 %v2050
      %v2139 = vpop.f32.mrb[0].mxu0
      %v2140 = vadd.f32 %v2033, %v2139
      %v2141 = vpop.f32.mrb[0].mxu0
      %v2142 = vadd.f32 %v2035, %v2141
      %2143 = vmatprep.mubr.f32.mxu0 0.0
      %2144 = vmatmul.mubr.f32.gmra.mrb[0].mxu0 %v2053
      %v2145 = vpop.f32.mrb[0].mxu0
      %v2146 = vadd.f32 %v2039, %v2145
      %v2147 = vpop.f32.mrb[0].mxu0
      %v2148 = vadd.f32 %v2041, %v2147
      %2149 = vdwg.mxu0
      %v2150 = vsel %vm1883, 1, 0
      %v2151 = vsel %vm1884, 1, 0
      %vm2152 = vcmp.eq.s32.totalorder %v2150, 1
      %vm2153 = vcmp.eq.s32.totalorder %v2151, 1
      %v2154 = vsel %vm2152, %v2128, 0.0
      %v2155 = vsel %vm2153, %v2130, 0.0
      %v2156 = vsel %vm2152, %v2134, 0.0
      %v2157 = vsel %vm2153, %v2136, 0.0
      %v2158 = vsel %vm2152, %v2140, 0.0
      %v2159 = vsel %vm2153, %v2142, 0.0
      %v2160 = vsel %vm2152, %v2146, 0.0
      %v2161 = vsel %vm2153, %v2148, 0.0
      %v2162 = vadd.f32 %v1893, %v2154
      %v2163 = vadd.f32 %v1894, %v2155
      %v2164 = vadd.f32 %v1895, %v2156
      %v2165 = vadd.f32 %v1896, %v2157
      %v2166 = vadd.f32 %v1897, %v2158
      %v2167 = vadd.f32 %v1898, %v2159
      %v2168 = vadd.f32 %v1899, %v2160
      %v2169 = vadd.f32 %v1900, %v2161
      %2170 = vrot.lane.b32.xlu0 %v1616, 15
      %v2171 = vpop.permute.xlu0 %2170
      %2172 = vrot.lane.b32.xlu0 %v1617, 15
      %v2173 = vpop.permute.xlu0 %2172
      %vm2174 = vcmp.lt.s32.totalorder %v1627, 15
      %v2175 = vsel %vm2174, %v2171, %v2173
      %v2176 = vsel %vm2174, %v2173, %v2171
      %s2177 = scalar_lea.vmem %s5, 64
      %v2178 = vld [vmem:[%s2177] sm:$0xff]
      %v2179 = vld [vmem:[%s2177 + $0x8] sm:$0xff]
      %v2180 = vld [vmem:[%s2177 + $0x10] sm:$0xff]
      %v2181 = vld [vmem:[%s2177 + $0x18] sm:$0xff]
      %2182 = vrot.lane.b32.xlu0 %v1618, 15
      %v2183 = vpop.permute.xlu0 %2182
      %2184 = vrot.lane.b32.xlu0 %v1620, 15
      %v2185 = vpop.permute.xlu0 %2184
      %2186 = vrot.lane.b32.xlu0 %v1622, 15
      %v2187 = vpop.permute.xlu0 %2186
      %2188 = vrot.lane.b32.xlu0 %v1624, 15
      %v2189 = vpop.permute.xlu0 %2188
      %2190 = vrot.lane.b32.xlu0 %v1619, 15
      %v2191 = vpop.permute.xlu0 %2190
      %2192 = vrot.lane.b32.xlu0 %v1621, 15
      %v2193 = vpop.permute.xlu0 %2192
      %2194 = vrot.lane.b32.xlu0 %v1623, 15
      %v2195 = vpop.permute.xlu0 %2194
      %2196 = vrot.lane.b32.xlu0 %v1625, 15
      %v2197 = vpop.permute.xlu0 %2196
      %v2198 = vsel %vm2174, %v2183, %v2191
      %v2199 = vsel %vm2174, %v2185, %v2193
      %v2200 = vsel %vm2174, %v2187, %v2195
      %v2201 = vsel %vm2174, %v2189, %v2197
      %v2202 = vsel %vm2174, %v2191, %v2183
      %v2203 = vsel %vm2174, %v2193, %v2185
      %v2204 = vsel %vm2174, %v2195, %v2187
      %v2205 = vsel %vm2174, %v2197, %v2189
      %s2206 = scalar_lea.vmem %s6, 64
      %v2207 = vld [vmem:[%s2206] sm:$0xff]
      %v2208 = vld [vmem:[%s2206 + $0x8] sm:$0xff]
      %v2209 = vld [vmem:[%s2206 + $0x10] sm:$0xff]
      %v2210 = vld [vmem:[%s2206 + $0x18] sm:$0xff]
      %v2212 = vsel %vm1672, %v2207, 0
      %v2215 = vsel %vm1672, %v2208, 0
      %v2218 = vsel %vm1672, %v2209, 0
      %v2221 = vsel %vm1672, %v2210, 0
      %2223 = vmatprep.subr.mxu0 %v2198
      %2224 = vmatpush1.msra.mxu0 %v2202
      %2225 = vmatprep.subr.mxu0 %v2199
      %2226 = vmatpush1.msra.mxu0 %v2203
      %2227 = vmatprep.subr.mxu0 %v2200
      %2228 = vmatpush1.msra.mxu0 %v2204
      %2229 = vmatprep.subr.mxu0 %v2201
      %2230 = vmatpush1.msra.mxu0 %v2205
      %2231 = vmatprep.subr.mxu0 0.0
      %2232 = vmatpush1.msra.mxu0 0.0
      %2233 = vmatprep.subr.mxu0 0.0
      %2234 = vmatpush1.msra.mxu0 0.0
      %2235 = vmatprep.subr.mxu0 0.0
      %2236 = vmatpush1.msra.mxu0 0.0
      %2237 = vmatprep.subr.mxu0 0.0
      %2238 = vmatpush1.msra.mxu0 0.0
      %2239 = vmatprep.subr.mxu0 0.0
      %2240 = vmatpush1.msra.mxu0 0.0
      %2241 = vmatprep.subr.mxu0 0.0
      %2242 = vmatpush1.msra.mxu0 0.0
      %2243 = vmatprep.subr.mxu0 0.0
      %2244 = vmatpush1.msra.mxu0 0.0
      %2245 = vmatprep.subr.mxu0 0.0
      %2246 = vmatpush1.msra.mxu0 0.0
      %2247 = vmatprep.subr.mxu0 0.0
      %2248 = vmatpush1.msra.mxu0 0.0
      %2249 = vmatprep.subr.mxu0 0.0
      %2250 = vmatpush1.msra.mxu0 0.0
      %2251 = vmatprep.subr.mxu0 0.0
      %2252 = vmatpush1.msra.mxu0 0.0
      %2253 = vmatprep.subr.mxu0 0.0
      %2254 = vmatpush1.msra.mxu0 0.0
      %2255 = vmatprep.subr.mxu0 0.0
      %2256 = vmatpush1.msra.mxu0 0.0
      %2257 = vmatprep.subr.mxu0 0.0
      %2258 = vmatpush1.msra.mxu0 0.0
      %2259 = vmatprep.subr.mxu0 0.0
      %2260 = vmatpush1.msra.mxu0 0.0
      %2261 = vmatprep.subr.mxu0 0.0
      %2262 = vmatpush1.msra.mxu0 0.0
      %2263 = vmatprep.subr.mxu0 0.0
      %2264 = vmatpush1.msra.mxu0 0.0
      %2265 = vmatprep.subr.mxu0 0.0
      %2266 = vmatpush1.msra.mxu0 0.0
      %2267 = vmatprep.subr.mxu0 0.0
      %2268 = vmatpush1.msra.mxu0 0.0
      %2269 = vmatprep.subr.mxu0 0.0
      %2270 = vmatpush1.msra.mxu0 0.0
      %2271 = vmatprep.subr.mxu0 0.0
      %2272 = vmatpush1.msra.mxu0 0.0
      %2273 = vmatprep.subr.mxu0 0.0
      %2274 = vmatpush1.msra.mxu0 0.0
      %2275 = vmatprep.subr.mxu0 0.0
      %2276 = vmatpush1.msra.mxu0 0.0
      %2277 = vmatprep.subr.mxu0 0.0
      %2278 = vmatpush1.msra.mxu0 0.0
      %2279 = vmatprep.subr.mxu0 0.0
      %2280 = vmatpush1.msra.mxu0 0.0
      %2281 = vmatprep.subr.mxu0 0.0
      %2282 = vmatpush1.msra.mxu0 0.0
      %2283 = vmatprep.subr.mxu0 0.0
      %2284 = vmatpush1.msra.mxu0 0.0
      %2285 = vmatprep.subr.mxu0 0.0
      %2286 = vmatpush1.msra.mxu0 0.0
      %2287 = vmatprep.mubr.f32.mxu0 0.0
      %2288 = vmatmul.mubr.f32.gmra.mrb[0].mxu0 %v2212
      %v2289 = vpop.f32.mrb[0].mxu0
      %v2290 = vadd.f32 0.0, %v2289
      %v2291 = vpop.f32.mrb[0].mxu0
      %v2292 = vadd.f32 0.0, %v2291
      %2293 = vmatprep.mubr.f32.mxu0 0.0
      %2294 = vmatmul.mubr.f32.gmra.mrb[0].mxu0 %v2215
      %v2295 = vpop.f32.mrb[0].mxu0
      %v2296 = vadd.f32 0.0, %v2295
      %v2297 = vpop.f32.mrb[0].mxu0
      %v2298 = vadd.f32 0.0, %v2297
      %2299 = vmatprep.mubr.f32.mxu0 0.0
      %2300 = vmatmul.mubr.f32.gmra.mrb[0].mxu0 %v2218
      %v2301 = vpop.f32.mrb[0].mxu0
      %v2302 = vadd.f32 0.0, %v2301
      %v2303 = vpop.f32.mrb[0].mxu0
      %v2304 = vadd.f32 0.0, %v2303
      %2305 = vmatprep.mubr.f32.mxu0 0.0
      %2306 = vmatmul.mubr.f32.gmra.mrb[0].mxu0 %v2221
      %v2307 = vpop.f32.mrb[0].mxu0
      %v2308 = vadd.f32 0.0, %v2307
      %v2309 = vpop.f32.mrb[0].mxu0
      %v2310 = vadd.f32 0.0, %v2309
      %2311 = vdwg.mxu0
      %v2313 = vsel %vm1774, %v2178, 0
      %v2316 = vsel %vm1774, %v2179, 0
      %v2319 = vsel %vm1774, %v2180, 0
      %v2322 = vsel %vm1774, %v2181, 0
      %v2325 = vsel %vm1787, %v2176, 0
      %v2328 = vsel %vm1787, %v2175, 0
      %2330 = vmatprep.subr.mxu0 %v2328
      %2331 = vmatpush1.msra.mxu0 %v2325
      %2332 = vmatprep.subr.mxu0 0.0
      %2333 = vmatpush1.msra.mxu0 0.0
      %2334 = vmatprep.subr.mxu0 0.0
      %2335 = vmatpush1.msra.mxu0 0.0
      %2336 = vmatprep.subr.mxu0 0.0
      %2337 = vmatpush1.msra.mxu0 0.0
      %2338 = vmatprep.subr.mxu0 0.0
      %2339 = vmatpush1.msra.mxu0 0.0
      %2340 = vmatprep.subr.mxu0 0.0
      %2341 = vmatpush1.msra.mxu0 0.0
      %2342 = vmatprep.subr.mxu0 0.0
      %2343 = vmatpush1.msra.mxu0 0.0
      %2344 = vmatprep.subr.mxu0 0.0
      %2345 = vmatpush1.msra.mxu0 0.0
      %2346 = vmatprep.subr.mxu0 0.0
      %2347 = vmatpush1.msra.mxu0 0.0
      %2348 = vmatprep.subr.mxu0 0.0
      %2349 = vmatpush1.msra.mxu0 0.0
      %2350 = vmatprep.subr.mxu0 0.0
      %2351 = vmatpush1.msra.mxu0 0.0
      %2352 = vmatprep.subr.mxu0 0.0
      %2353 = vmatpush1.msra.mxu0 0.0
      %2354 = vmatprep.subr.mxu0 0.0
      %2355 = vmatpush1.msra.mxu0 0.0
      %2356 = vmatprep.subr.mxu0 0.0
      %2357 = vmatpush1.msra.mxu0 0.0
      %2358 = vmatprep.subr.mxu0 0.0
      %2359 = vmatpush1.msra.mxu0 0.0
      %2360 = vmatprep.subr.mxu0 0.0
      %2361 = vmatpush1.msra.mxu0 0.0
      %2362 = vmatprep.subr.mxu0 0.0
      %2363 = vmatpush1.msra.mxu0 0.0
      %2364 = vmatprep.subr.mxu0 0.0
      %2365 = vmatpush1.msra.mxu0 0.0
      %2366 = vmatprep.subr.mxu0 0.0
      %2367 = vmatpush1.msra.mxu0 0.0
      %2368 = vmatprep.subr.mxu0 0.0
      %2369 = vmatpush1.msra.mxu0 0.0
      %2370 = vmatprep.subr.mxu0 0.0
      %2371 = vmatpush1.msra.mxu0 0.0
      %2372 = vmatprep.subr.mxu0 0.0
      %2373 = vmatpush1.msra.mxu0 0.0
      %2374 = vmatprep.subr.mxu0 0.0
      %2375 = vmatpush1.msra.mxu0 0.0
      %2376 = vmatprep.subr.mxu0 0.0
      %2377 = vmatpush1.msra.mxu0 0.0
      %2378 = vmatprep.subr.mxu0 0.0
      %2379 = vmatpush1.msra.mxu0 0.0
      %2380 = vmatprep.subr.mxu0 0.0
      %2381 = vmatpush1.msra.mxu0 0.0
      %2382 = vmatprep.subr.mxu0 0.0
      %2383 = vmatpush1.msra.mxu0 0.0
      %2384 = vmatprep.subr.mxu0 0.0
      %2385 = vmatpush1.msra.mxu0 0.0
      %2386 = vmatprep.subr.mxu0 0.0
      %2387 = vmatpush1.msra.mxu0 0.0
      %2388 = vmatprep.subr.mxu0 0.0
      %2389 = vmatpush1.msra.mxu0 0.0
      %2390 = vmatprep.subr.mxu0 0.0
      %2391 = vmatpush1.msra.mxu0 0.0
      %2392 = vmatprep.subr.mxu0 0.0
      %2393 = vmatpush1.msra.mxu0 0.0
      %2394 = vmatprep.mubr.f32.mxu0 0.0
      %2395 = vmatmul.mubr.f32.gmra.mrb[0].mxu0 %v2313
      %v2396 = vpop.f32.mrb[0].mxu0
      %v2397 = vadd.f32 %v2290, %v2396
      %v2398 = vpop.f32.mrb[0].mxu0
      %v2399 = vadd.f32 %v2292, %v2398
      %2400 = vmatprep.mubr.f32.mxu0 0.0
      %2401 = vmatmul.mubr.f32.gmra.mrb[0].mxu0 %v2316
      %v2402 = vpop.f32.mrb[0].mxu0
      %v2403 = vadd.f32 %v2296, %v2402
      %v2404 = vpop.f32.mrb[0].mxu0
      %v2405 = vadd.f32 %v2298, %v2404
      %2406 = vmatprep.mubr.f32.mxu0 0.0
      %2407 = vmatmul.mubr.f32.gmra.mrb[0].mxu0 %v2319
      %v2408 = vpop.f32.mrb[0].mxu0
      %v2409 = vadd.f32 %v2302, %v2408
      %v2410 = vpop.f32.mrb[0].mxu0
      %v2411 = vadd.f32 %v2304, %v2410
      %2412 = vmatprep.mubr.f32.mxu0 0.0
      %2413 = vmatmul.mubr.f32.gmra.mrb[0].mxu0 %v2322
      %v2414 = vpop.f32.mrb[0].mxu0
      %v2415 = vadd.f32 %v2308, %v2414
      %v2416 = vpop.f32.mrb[0].mxu0
      %v2417 = vadd.f32 %v2310, %v2416
      %2418 = vdwg.mxu0
      %vm2419 = vcmp.lt.s32.totalorder %v1631, 15
      %vm2420 = vcmp.lt.s32.totalorder %v1632, 15
      %vm2421 = vmand %vm1883, %vm2419
      %vm2422 = vmand %vm1884, %vm2420
      %v2423 = vsel %vm2421, 1, 0
      %v2424 = vsel %vm2422, 1, 0
      %vm2425 = vcmp.eq.s32.totalorder %v2423, 1
      %vm2426 = vcmp.eq.s32.totalorder %v2424, 1
      %v2427 = vsel %vm2425, %v2397, 0.0
      %v2428 = vsel %vm2426, %v2399, 0.0
      %v2429 = vsel %vm2425, %v2403, 0.0
      %v2430 = vsel %vm2426, %v2405, 0.0
      %v2431 = vsel %vm2425, %v2409, 0.0
      %v2432 = vsel %vm2426, %v2411, 0.0
      %v2433 = vsel %vm2425, %v2415, 0.0
      %v2434 = vsel %vm2426, %v2417, 0.0
      %v2435 = vadd.f32 %v2162, %v2427
      %v2436 = vadd.f32 %v2163, %v2428
      %v2437 = vadd.f32 %v2164, %v2429
      %v2438 = vadd.f32 %v2165, %v2430
      %v2439 = vadd.f32 %v2166, %v2431
      %v2440 = vadd.f32 %v2167, %v2432
      %v2441 = vadd.f32 %v2168, %v2433
      %v2442 = vadd.f32 %v2169, %v2434
      %2443 = vrot.lane.b32.xlu0 %v1616, 1
      %v2444 = vpop.permute.xlu0 %2443
      %2445 = vrot.lane.b32.xlu0 %v1617, 1
      %v2446 = vpop.permute.xlu0 %2445
      %vm2447 = vcmp.lt.s32.totalorder %v1627, 1
      %v2448 = vsel %vm2447, %v2444, %v2446
      %v2449 = vsel %vm2447, %v2446, %v2444
      %s2450 = scalar_lea.vmem %s5, 96
      %v2451 = vld [vmem:[%s2450] sm:$0xff]
      %v2452 = vld [vmem:[%s2450 + $0x8] sm:$0xff]
      %v2453 = vld [vmem:[%s2450 + $0x10] sm:$0xff]
      %v2454 = vld [vmem:[%s2450 + $0x18] sm:$0xff]
      %2455 = vrot.lane.b32.xlu0 %v1618, 1
      %v2456 = vpop.permute.xlu0 %2455
      %2457 = vrot.lane.b32.xlu0 %v1620, 1
      %v2458 = vpop.permute.xlu0 %2457
      %2459 = vrot.lane.b32.xlu0 %v1622, 1
      %v2460 = vpop.permute.xlu0 %2459
      %2461 = vrot.lane.b32.xlu0 %v1624, 1
      %v2462 = vpop.permute.xlu0 %2461
      %2463 = vrot.lane.b32.xlu0 %v1619, 1
      %v2464 = vpop.permute.xlu0 %2463
      %2465 = vrot.lane.b32.xlu0 %v1621, 1
      %v2466 = vpop.permute.xlu0 %2465
      %2467 = vrot.lane.b32.xlu0 %v1623, 1
      %v2468 = vpop.permute.xlu0 %2467
      %2469 = vrot.lane.b32.xlu0 %v1625, 1
      %v2470 = vpop.permute.xlu0 %2469
      %v2471 = vsel %vm2447, %v2456, %v2464
      %v2472 = vsel %vm2447, %v2458, %v2466
      %v2473 = vsel %vm2447, %v2460, %v2468
      %v2474 = vsel %vm2447, %v2462, %v2470
      %v2475 = vsel %vm2447, %v2464, %v2456
      %v2476 = vsel %vm2447, %v2466, %v2458
      %v2477 = vsel %vm2447, %v2468, %v2460
      %v2478 = vsel %vm2447, %v2470, %v2462
      %s2479 = scalar_lea.vmem %s6, 96
      %v2480 = vld [vmem:[%s2479] sm:$0xff]
      %v2481 = vld [vmem:[%s2479 + $0x8] sm:$0xff]
      %v2482 = vld [vmem:[%s2479 + $0x10] sm:$0xff]
      %v2483 = vld [vmem:[%s2479 + $0x18] sm:$0xff]
      %v2485 = vsel %vm1672, %v2480, 0
      %v2488 = vsel %vm1672, %v2481, 0
      %v2491 = vsel %vm1672, %v2482, 0
      %v2494 = vsel %vm1672, %v2483, 0
      %2496 = vmatprep.subr.mxu0 %v2471
      %2497 = vmatpush1.msra.mxu0 %v2475
      %2498 = vmatprep.subr.mxu0 %v2472
      %2499 = vmatpush1.msra.mxu0 %v2476
      %2500 = vmatprep.subr.mxu0 %v2473
      %2501 = vmatpush1.msra.mxu0 %v2477
      %2502 = vmatprep.subr.mxu0 %v2474
      %2503 = vmatpush1.msra.mxu0 %v2478
      %2504 = vmatprep.subr.mxu0 0.0
      %2505 = vmatpush1.msra.mxu0 0.0
      %2506 = vmatprep.subr.mxu0 0.0
      %2507 = vmatpush1.msra.mxu0 0.0
      %2508 = vmatprep.subr.mxu0 0.0
      %2509 = vmatpush1.msra.mxu0 0.0
      %2510 = vmatprep.subr.mxu0 0.0
      %2511 = vmatpush1.msra.mxu0 0.0
      %2512 = vmatprep.subr.mxu0 0.0
      %2513 = vmatpush1.msra.mxu0 0.0
      %2514 = vmatprep.subr.mxu0 0.0
      %2515 = vmatpush1.msra.mxu0 0.0
      %2516 = vmatprep.subr.mxu0 0.0
      %2517 = vmatpush1.msra.mxu0 0.0
      %2518 = vmatprep.subr.mxu0 0.0
      %2519 = vmatpush1.msra.mxu0 0.0
      %2520 = vmatprep.subr.mxu0 0.0
      %2521 = vmatpush1.msra.mxu0 0.0
      %2522 = vmatprep.subr.mxu0 0.0
      %2523 = vmatpush1.msra.mxu0 0.0
      %2524 = vmatprep.subr.mxu0 0.0
      %2525 = vmatpush1.msra.mxu0 0.0
      %2526 = vmatprep.subr.mxu0 0.0
      %2527 = vmatpush1.msra.mxu0 0.0
      %2528 = vmatprep.subr.mxu0 0.0
      %2529 = vmatpush1.msra.mxu0 0.0
      %2530 = vmatprep.subr.mxu0 0.0
      %2531 = vmatpush1.msra.mxu0 0.0
      %2532 = vmatprep.subr.mxu0 0.0
      %2533 = vmatpush1.msra.mxu0 0.0
      %2534 = vmatprep.subr.mxu0 0.0
      %2535 = vmatpush1.msra.mxu0 0.0
      %2536 = vmatprep.subr.mxu0 0.0
      %2537 = vmatpush1.msra.mxu0 0.0
      %2538 = vmatprep.subr.mxu0 0.0
      %2539 = vmatpush1.msra.mxu0 0.0
      %2540 = vmatprep.subr.mxu0 0.0
      %2541 = vmatpush1.msra.mxu0 0.0
      %2542 = vmatprep.subr.mxu0 0.0
      %2543 = vmatpush1.msra.mxu0 0.0
      %2544 = vmatprep.subr.mxu0 0.0
      %2545 = vmatpush1.msra.mxu0 0.0
      %2546 = vmatprep.subr.mxu0 0.0
      %2547 = vmatpush1.msra.mxu0 0.0
      %2548 = vmatprep.subr.mxu0 0.0
      %2549 = vmatpush1.msra.mxu0 0.0
      %2550 = vmatprep.subr.mxu0 0.0
      %2551 = vmatpush1.msra.mxu0 0.0
      %2552 = vmatprep.subr.mxu0 0.0
      %2553 = vmatpush1.msra.mxu0 0.0
      %2554 = vmatprep.subr.mxu0 0.0
      %2555 = vmatpush1.msra.mxu0 0.0
      %2556 = vmatprep.subr.mxu0 0.0
      %2557 = vmatpush1.msra.mxu0 0.0
      %2558 = vmatprep.subr.mxu0 0.0
      %2559 = vmatpush1.msra.mxu0 0.0
      %2560 = vmatprep.mubr.f32.mxu0 0.0
      %2561 = vmatmul.mubr.f32.gmra.mrb[0].mxu0 %v2485
      %v2562 = vpop.f32.mrb[0].mxu0
      %v2563 = vadd.f32 0.0, %v2562
      %v2564 = vpop.f32.mrb[0].mxu0
      %v2565 = vadd.f32 0.0, %v2564
      %2566 = vmatprep.mubr.f32.mxu0 0.0
      %2567 = vmatmul.mubr.f32.gmra.mrb[0].mxu0 %v2488
      %v2568 = vpop.f32.mrb[0].mxu0
      %v2569 = vadd.f32 0.0, %v2568
      %v2570 = vpop.f32.mrb[0].mxu0
      %v2571 = vadd.f32 0.0, %v2570
      %2572 = vmatprep.mubr.f32.mxu0 0.0
      %2573 = vmatmul.mubr.f32.gmra.mrb[0].mxu0 %v2491
      %v2574 = vpop.f32.mrb[0].mxu0
      %v2575 = vadd.f32 0.0, %v2574
      %v2576 = vpop.f32.mrb[0].mxu0
      %v2577 = vadd.f32 0.0, %v2576
      %2578 = vmatprep.mubr.f32.mxu0 0.0
      %2579 = vmatmul.mubr.f32.gmra.mrb[0].mxu0 %v2494
      %v2580 = vpop.f32.mrb[0].mxu0
      %v2581 = vadd.f32 0.0, %v2580
      %v2582 = vpop.f32.mrb[0].mxu0
      %v2583 = vadd.f32 0.0, %v2582
      %2584 = vdwg.mxu0
      %v2586 = vsel %vm1774, %v2451, 0
      %v2589 = vsel %vm1774, %v2452, 0
      %v2592 = vsel %vm1774, %v2453, 0
      %v2595 = vsel %vm1774, %v2454, 0
      %v2598 = vsel %vm1787, %v2449, 0
      %v2601 = vsel %vm1787, %v2448, 0
      %2603 = vmatprep.subr.mxu0 %v2601
      %2604 = vmatpush1.msra.mxu0 %v2598
      %2605 = vmatprep.subr.mxu0 0.0
      %2606 = vmatpush1.msra.mxu0 0.0
      %2607 = vmatprep.subr.mxu0 0.0
      %2608 = vmatpush1.msra.mxu0 0.0
      %2609 = vmatprep.subr.mxu0 0.0
      %2610 = vmatpush1.msra.mxu0 0.0
      %2611 = vmatprep.subr.mxu0 0.0
      %2612 = vmatpush1.msra.mxu0 0.0
      %2613 = vmatprep.subr.mxu0 0.0
      %2614 = vmatpush1.msra.mxu0 0.0
      %2615 = vmatprep.subr.mxu0 0.0
      %2616 = vmatpush1.msra.mxu0 0.0
      %2617 = vmatprep.subr.mxu0 0.0
      %2618 = vmatpush1.msra.mxu0 0.0
      %2619 = vmatprep.subr.mxu0 0.0
      %2620 = vmatpush1.msra.mxu0 0.0
      %2621 = vmatprep.subr.mxu0 0.0
      %2622 = vmatpush1.msra.mxu0 0.0
      %2623 = vmatprep.subr.mxu0 0.0
      %2624 = vmatpush1.msra.mxu0 0.0
      %2625 = vmatprep.subr.mxu0 0.0
      %2626 = vmatpush1.msra.mxu0 0.0
      %2627 = vmatprep.subr.mxu0 0.0
      %2628 = vmatpush1.msra.mxu0 0.0
      %2629 = vmatprep.subr.mxu0 0.0
      %2630 = vmatpush1.msra.mxu0 0.0
      %2631 = vmatprep.subr.mxu0 0.0
      %2632 = vmatpush1.msra.mxu0 0.0
      %2633 = vmatprep.subr.mxu0 0.0
      %2634 = vmatpush1.msra.mxu0 0.0
      %2635 = vmatprep.subr.mxu0 0.0
      %2636 = vmatpush1.msra.mxu0 0.0
      %2637 = vmatprep.subr.mxu0 0.0
      %2638 = vmatpush1.msra.mxu0 0.0
      %2639 = vmatprep.subr.mxu0 0.0
      %2640 = vmatpush1.msra.mxu0 0.0
      %2641 = vmatprep.subr.mxu0 0.0
      %2642 = vmatpush1.msra.mxu0 0.0
      %2643 = vmatprep.subr.mxu0 0.0
      %2644 = vmatpush1.msra.mxu0 0.0
      %2645 = vmatprep.subr.mxu0 0.0
      %2646 = vmatpush1.msra.mxu0 0.0
      %2647 = vmatprep.subr.mxu0 0.0
      %2648 = vmatpush1.msra.mxu0 0.0
      %2649 = vmatprep.subr.mxu0 0.0
      %2650 = vmatpush1.msra.mxu0 0.0
      %2651 = vmatprep.subr.mxu0 0.0
      %2652 = vmatpush1.msra.mxu0 0.0
      %2653 = vmatprep.subr.mxu0 0.0
      %2654 = vmatpush1.msra.mxu0 0.0
      %2655 = vmatprep.subr.mxu0 0.0
      %2656 = vmatpush1.msra.mxu0 0.0
      %2657 = vmatprep.subr.mxu0 0.0
      %2658 = vmatpush1.msra.mxu0 0.0
      %2659 = vmatprep.subr.mxu0 0.0
      %2660 = vmatpush1.msra.mxu0 0.0
      %2661 = vmatprep.subr.mxu0 0.0
      %2662 = vmatpush1.msra.mxu0 0.0
      %2663 = vmatprep.subr.mxu0 0.0
      %2664 = vmatpush1.msra.mxu0 0.0
      %2665 = vmatprep.subr.mxu0 0.0
      %2666 = vmatpush1.msra.mxu0 0.0
      %2667 = vmatprep.mubr.f32.mxu0 0.0
      %2668 = vmatmul.mubr.f32.gmra.mrb[0].mxu0 %v2586
      %v2669 = vpop.f32.mrb[0].mxu0
      %v2670 = vadd.f32 %v2563, %v2669
      %v2671 = vpop.f32.mrb[0].mxu0
      %v2672 = vadd.f32 %v2565, %v2671
      %2673 = vmatprep.mubr.f32.mxu0 0.0
      %2674 = vmatmul.mubr.f32.gmra.mrb[0].mxu0 %v2589
      %v2675 = vpop.f32.mrb[0].mxu0
      %v2676 = vadd.f32 %v2569, %v2675
      %v2677 = vpop.f32.mrb[0].mxu0
      %v2678 = vadd.f32 %v2571, %v2677
      %2679 = vmatprep.mubr.f32.mxu0 0.0
      %2680 = vmatmul.mubr.f32.gmra.mrb[0].mxu0 %v2592
      %v2681 = vpop.f32.mrb[0].mxu0
      %v2682 = vadd.f32 %v2575, %v2681
      %v2683 = vpop.f32.mrb[0].mxu0
      %v2684 = vadd.f32 %v2577, %v2683
      %2685 = vmatprep.mubr.f32.mxu0 0.0
      %2686 = vmatmul.mubr.f32.gmra.mrb[0].mxu0 %v2595
      %v2687 = vpop.f32.mrb[0].mxu0
      %v2688 = vadd.f32 %v2581, %v2687
      %v2689 = vpop.f32.mrb[0].mxu0
      %v2690 = vadd.f32 %v2583, %v2689
      %2691 = vdwg.mxu0
      %v2692 = vsel %vm1885, 1, 0
      %v2693 = vsel %vm1886, 1, 0
      %vm2694 = vcmp.eq.s32.totalorder %v2692, 1
      %vm2695 = vcmp.eq.s32.totalorder %v2693, 1
      %v2696 = vsel %vm2694, %v2670, 0.0
      %v2697 = vsel %vm2695, %v2672, 0.0
      %v2698 = vsel %vm2694, %v2676, 0.0
      %v2699 = vsel %vm2695, %v2678, 0.0
      %v2700 = vsel %vm2694, %v2682, 0.0
      %v2701 = vsel %vm2695, %v2684, 0.0
      %v2702 = vsel %vm2694, %v2688, 0.0
      %v2703 = vsel %vm2695, %v2690, 0.0
      %v2704 = vadd.f32 %v2435, %v2696
      %v2705 = vadd.f32 %v2436, %v2697
      %v2706 = vadd.f32 %v2437, %v2698
      %v2707 = vadd.f32 %v2438, %v2699
      %v2708 = vadd.f32 %v2439, %v2700
      %v2709 = vadd.f32 %v2440, %v2701
      %v2710 = vadd.f32 %v2441, %v2702
      %v2711 = vadd.f32 %v2442, %v2703
      %s2712 = scalar_lea.vmem %s5, 128
      %v2713 = vld [vmem:[%s2712] sm:$0xff]
      %v2714 = vld [vmem:[%s2712 + $0x8] sm:$0xff]
      %v2715 = vld [vmem:[%s2712 + $0x10] sm:$0xff]
      %v2716 = vld [vmem:[%s2712 + $0x18] sm:$0xff]
      %s2717 = scalar_lea.vmem %s6, 128
      %v2718 = vld [vmem:[%s2717] sm:$0xff]
      %v2719 = vld [vmem:[%s2717 + $0x8] sm:$0xff]
      %v2720 = vld [vmem:[%s2717 + $0x10] sm:$0xff]
      %v2721 = vld [vmem:[%s2717 + $0x18] sm:$0xff]
      %v2723 = vsel %vm1672, %v2718, 0
      %v2726 = vsel %vm1672, %v2719, 0
      %v2729 = vsel %vm1672, %v2720, 0
      %v2732 = vsel %vm1672, %v2721, 0
      %2734 = vmatprep.subr.mxu0 %v1619
      %2735 = vmatpush1.msra.mxu0 %v1618
      %2736 = vmatprep.subr.mxu0 %v1621
      %2737 = vmatpush1.msra.mxu0 %v1620
      %2738 = vmatprep.subr.mxu0 %v1623
      %2739 = vmatpush1.msra.mxu0 %v1622
      %2740 = vmatprep.subr.mxu0 %v1625
      %2741 = vmatpush1.msra.mxu0 %v1624
      %2742 = vmatprep.subr.mxu0 0.0
      %2743 = vmatpush1.msra.mxu0 0.0
      %2744 = vmatprep.subr.mxu0 0.0
      %2745 = vmatpush1.msra.mxu0 0.0
      %2746 = vmatprep.subr.mxu0 0.0
      %2747 = vmatpush1.msra.mxu0 0.0
      %2748 = vmatprep.subr.mxu0 0.0
      %2749 = vmatpush1.msra.mxu0 0.0
      %2750 = vmatprep.subr.mxu0 0.0
      %2751 = vmatpush1.msra.mxu0 0.0
      %2752 = vmatprep.subr.mxu0 0.0
      %2753 = vmatpush1.msra.mxu0 0.0
      %2754 = vmatprep.subr.mxu0 0.0
      %2755 = vmatpush1.msra.mxu0 0.0
      %2756 = vmatprep.subr.mxu0 0.0
      %2757 = vmatpush1.msra.mxu0 0.0
      %2758 = vmatprep.subr.mxu0 0.0
      %2759 = vmatpush1.msra.mxu0 0.0
      %2760 = vmatprep.subr.mxu0 0.0
      %2761 = vmatpush1.msra.mxu0 0.0
      %2762 = vmatprep.subr.mxu0 0.0
      %2763 = vmatpush1.msra.mxu0 0.0
      %2764 = vmatprep.subr.mxu0 0.0
      %2765 = vmatpush1.msra.mxu0 0.0
      %2766 = vmatprep.subr.mxu0 0.0
      %2767 = vmatpush1.msra.mxu0 0.0
      %2768 = vmatprep.subr.mxu0 0.0
      %2769 = vmatpush1.msra.mxu0 0.0
      %2770 = vmatprep.subr.mxu0 0.0
      %2771 = vmatpush1.msra.mxu0 0.0
      %2772 = vmatprep.subr.mxu0 0.0
      %2773 = vmatpush1.msra.mxu0 0.0
      %2774 = vmatprep.subr.mxu0 0.0
      %2775 = vmatpush1.msra.mxu0 0.0
      %2776 = vmatprep.subr.mxu0 0.0
      %2777 = vmatpush1.msra.mxu0 0.0
      %2778 = vmatprep.subr.mxu0 0.0
      %2779 = vmatpush1.msra.mxu0 0.0
      %2780 = vmatprep.subr.mxu0 0.0
      %2781 = vmatpush1.msra.mxu0 0.0
      %2782 = vmatprep.subr.mxu0 0.0
      %2783 = vmatpush1.msra.mxu0 0.0
      %2784 = vmatprep.subr.mxu0 0.0
      %2785 = vmatpush1.msra.mxu0 0.0
      %2786 = vmatprep.subr.mxu0 0.0
      %2787 = vmatpush1.msra.mxu0 0.0
      %2788 = vmatprep.subr.mxu0 0.0
      %2789 = vmatpush1.msra.mxu0 0.0
      %2790 = vmatprep.subr.mxu0 0.0
      %2791 = vmatpush1.msra.mxu0 0.0
      %2792 = vmatprep.subr.mxu0 0.0
      %2793 = vmatpush1.msra.mxu0 0.0
      %2794 = vmatprep.subr.mxu0 0.0
      %2795 = vmatpush1.msra.mxu0 0.0
      %2796 = vmatprep.subr.mxu0 0.0
      %2797 = vmatpush1.msra.mxu0 0.0
      %2798 = vmatprep.mubr.f32.mxu0 0.0
      %2799 = vmatmul.mubr.f32.gmra.mrb[0].mxu0 %v2723
      %v2800 = vpop.f32.mrb[0].mxu0
      %v2801 = vadd.f32 0.0, %v2800
      %v2802 = vpop.f32.mrb[0].mxu0
      %v2803 = vadd.f32 0.0, %v2802
      %2804 = vmatprep.mubr.f32.mxu0 0.0
      %2805 = vmatmul.mubr.f32.gmra.mrb[0].mxu0 %v2726
      %v2806 = vpop.f32.mrb[0].mxu0
      %v2807 = vadd.f32 0.0, %v2806
      %v2808 = vpop.f32.mrb[0].mxu0
      %v2809 = vadd.f32 0.0, %v2808
      %2810 = vmatprep.mubr.f32.mxu0 0.0
      %2811 = vmatmul.mubr.f32.gmra.mrb[0].mxu0 %v2729
      %v2812 = vpop.f32.mrb[0].mxu0
      %v2813 = vadd.f32 0.0, %v2812
      %v2814 = vpop.f32.mrb[0].mxu0
      %v2815 = vadd.f32 0.0, %v2814
      %2816 = vmatprep.mubr.f32.mxu0 0.0
      %2817 = vmatmul.mubr.f32.gmra.mrb[0].mxu0 %v2732
      %v2818 = vpop.f32.mrb[0].mxu0
      %v2819 = vadd.f32 0.0, %v2818
      %v2820 = vpop.f32.mrb[0].mxu0
      %v2821 = vadd.f32 0.0, %v2820
      %2822 = vdwg.mxu0
      %v2824 = vsel %vm1774, %v2713, 0
      %v2827 = vsel %vm1774, %v2714, 0
      %v2830 = vsel %vm1774, %v2715, 0
      %v2833 = vsel %vm1774, %v2716, 0
      %v2836 = vsel %vm1787, %v1616, 0
      %v2839 = vsel %vm1787, %v1617, 0
      %2841 = vmatprep.subr.mxu0 %v2839
      %2842 = vmatpush1.msra.mxu0 %v2836
      %2843 = vmatprep.subr.mxu0 0.0
      %2844 = vmatpush1.msra.mxu0 0.0
      %2845 = vmatprep.subr.mxu0 0.0
      %2846 = vmatpush1.msra.mxu0 0.0
      %2847 = vmatprep.subr.mxu0 0.0
      %2848 = vmatpush1.msra.mxu0 0.0
      %2849 = vmatprep.subr.mxu0 0.0
      %2850 = vmatpush1.msra.mxu0 0.0
      %2851 = vmatprep.subr.mxu0 0.0
      %2852 = vmatpush1.msra.mxu0 0.0
      %2853 = vmatprep.subr.mxu0 0.0
      %2854 = vmatpush1.msra.mxu0 0.0
      %2855 = vmatprep.subr.mxu0 0.0
      %2856 = vmatpush1.msra.mxu0 0.0
      %2857 = vmatprep.subr.mxu0 0.0
      %2858 = vmatpush1.msra.mxu0 0.0
      %2859 = vmatprep.subr.mxu0 0.0
      %2860 = vmatpush1.msra.mxu0 0.0
      %2861 = vmatprep.subr.mxu0 0.0
      %2862 = vmatpush1.msra.mxu0 0.0
      %2863 = vmatprep.subr.mxu0 0.0
      %2864 = vmatpush1.msra.mxu0 0.0
      %2865 = vmatprep.subr.mxu0 0.0
      %2866 = vmatpush1.msra.mxu0 0.0
      %2867 = vmatprep.subr.mxu0 0.0
      %2868 = vmatpush1.msra.mxu0 0.0
      %2869 = vmatprep.subr.mxu0 0.0
      %2870 = vmatpush1.msra.mxu0 0.0
      %2871 = vmatprep.subr.mxu0 0.0
      %2872 = vmatpush1.msra.mxu0 0.0
      %2873 = vmatprep.subr.mxu0 0.0
      %2874 = vmatpush1.msra.mxu0 0.0
      %2875 = vmatprep.subr.mxu0 0.0
      %2876 = vmatpush1.msra.mxu0 0.0
      %2877 = vmatprep.subr.mxu0 0.0
      %2878 = vmatpush1.msra.mxu0 0.0
      %2879 = vmatprep.subr.mxu0 0.0
      %2880 = vmatpush1.msra.mxu0 0.0
      %2881 = vmatprep.subr.mxu0 0.0
      %2882 = vmatpush1.msra.mxu0 0.0
      %2883 = vmatprep.subr.mxu0 0.0
      %2884 = vmatpush1.msra.mxu0 0.0
      %2885 = vmatprep.subr.mxu0 0.0
      %2886 = vmatpush1.msra.mxu0 0.0
      %2887 = vmatprep.subr.mxu0 0.0
      %2888 = vmatpush1.msra.mxu0 0.0
      %2889 = vmatprep.subr.mxu0 0.0
      %2890 = vmatpush1.msra.mxu0 0.0
      %2891 = vmatprep.subr.mxu0 0.0
      %2892 = vmatpush1.msra.mxu0 0.0
      %2893 = vmatprep.subr.mxu0 0.0
      %2894 = vmatpush1.msra.mxu0 0.0
      %2895 = vmatprep.subr.mxu0 0.0
      %2896 = vmatpush1.msra.mxu0 0.0
      %2897 = vmatprep.subr.mxu0 0.0
      %2898 = vmatpush1.msra.mxu0 0.0
      %2899 = vmatprep.subr.mxu0 0.0
      %2900 = vmatpush1.msra.mxu0 0.0
      %2901 = vmatprep.subr.mxu0 0.0
      %2902 = vmatpush1.msra.mxu0 0.0
      %2903 = vmatprep.subr.mxu0 0.0
      %2904 = vmatpush1.msra.mxu0 0.0
      %2905 = vmatprep.mubr.f32.mxu0 0.0
      %2906 = vmatmul.mubr.f32.gmra.mrb[0].mxu0 %v2824
      %v2907 = vpop.f32.mrb[0].mxu0
      %v2908 = vadd.f32 %v2801, %v2907
      %v2909 = vpop.f32.mrb[0].mxu0
      %v2910 = vadd.f32 %v2803, %v2909
      %2911 = vmatprep.mubr.f32.mxu0 0.0
      %2912 = vmatmul.mubr.f32.gmra.mrb[0].mxu0 %v2827
      %v2913 = vpop.f32.mrb[0].mxu0
      %v2914 = vadd.f32 %v2807, %v2913
      %v2915 = vpop.f32.mrb[0].mxu0
      %v2916 = vadd.f32 %v2809, %v2915
      %2917 = vmatprep.mubr.f32.mxu0 0.0
      %2918 = vmatmul.mubr.f32.gmra.mrb[0].mxu0 %v2830
      %v2919 = vpop.f32.mrb[0].mxu0
      %v2920 = vadd.f32 %v2813, %v2919
      %v2921 = vpop.f32.mrb[0].mxu0
      %v2922 = vadd.f32 %v2815, %v2921
      %2923 = vmatprep.mubr.f32.mxu0 0.0
      %2924 = vmatmul.mubr.f32.gmra.mrb[0].mxu0 %v2833
      %v2925 = vpop.f32.mrb[0].mxu0
      %v2926 = vadd.f32 %v2819, %v2925
      %v2927 = vpop.f32.mrb[0].mxu0
      %v2928 = vadd.f32 %v2821, %v2927
      %2929 = vdwg.mxu0
      %v2930 = vadd.f32 %v2704, %v2908
      %v2931 = vadd.f32 %v2705, %v2910
      %v2932 = vadd.f32 %v2706, %v2914
      %v2933 = vadd.f32 %v2707, %v2916
      %v2934 = vadd.f32 %v2708, %v2920
      %v2935 = vadd.f32 %v2709, %v2922
      %v2936 = vadd.f32 %v2710, %v2926
      %v2937 = vadd.f32 %v2711, %v2928
      %2938 = vrot.lane.b32.xlu0 %v1616, 127
      %v2939 = vpop.permute.xlu0 %2938
      %2940 = vrot.lane.b32.xlu0 %v1617, 127
      %v2941 = vpop.permute.xlu0 %2940
      %vm2942 = vcmp.lt.s32.totalorder %v1627, 127
      %v2943 = vsel %vm2942, %v2939, %v2941
      %v2944 = vsel %vm2942, %v2941, %v2939
      %s2945 = scalar_lea.vmem %s5, 160
      %v2946 = vld [vmem:[%s2945] sm:$0xff]
      %v2947 = vld [vmem:[%s2945 + $0x8] sm:$0xff]
      %v2948 = vld [vmem:[%s2945 + $0x10] sm:$0xff]
      %v2949 = vld [vmem:[%s2945 + $0x18] sm:$0xff]
      %2950 = vrot.lane.b32.xlu0 %v1618, 127
      %v2951 = vpop.permute.xlu0 %2950
      %2952 = vrot.lane.b32.xlu0 %v1620, 127
      %v2953 = vpop.permute.xlu0 %2952
      %2954 = vrot.lane.b32.xlu0 %v1622, 127
      %v2955 = vpop.permute.xlu0 %2954
      %2956 = vrot.lane.b32.xlu0 %v1624, 127
      %v2957 = vpop.permute.xlu0 %2956
      %2958 = vrot.lane.b32.xlu0 %v1619, 127
      %v2959 = vpop.permute.xlu0 %2958
      %2960 = vrot.lane.b32.xlu0 %v1621, 127
      %v2961 = vpop.permute.xlu0 %2960
      %2962 = vrot.lane.b32.xlu0 %v1623, 127
      %v2963 = vpop.permute.xlu0 %2962
      %2964 = vrot.lane.b32.xlu0 %v1625, 127
      %v2965 = vpop.permute.xlu0 %2964
      %v2966 = vsel %vm2942, %v2951, %v2959
      %v2967 = vsel %vm2942, %v2953, %v2961
      %v2968 = vsel %vm2942, %v2955, %v2963
      %v2969 = vsel %vm2942, %v2957, %v2965
      %v2970 = vsel %vm2942, %v2959, %v2951
      %v2971 = vsel %vm2942, %v2961, %v2953
      %v2972 = vsel %vm2942, %v2963, %v2955
      %v2973 = vsel %vm2942, %v2965, %v2957
      %s2974 = scalar_lea.vmem %s6, 160
      %v2975 = vld [vmem:[%s2974] sm:$0xff]
      %v2976 = vld [vmem:[%s2974 + $0x8] sm:$0xff]
      %v2977 = vld [vmem:[%s2974 + $0x10] sm:$0xff]
      %v2978 = vld [vmem:[%s2974 + $0x18] sm:$0xff]
      %v2980 = vsel %vm1672, %v2975, 0
      %v2983 = vsel %vm1672, %v2976, 0
      %v2986 = vsel %vm1672, %v2977, 0
      %v2989 = vsel %vm1672, %v2978, 0
      %2991 = vmatprep.subr.mxu0 %v2970
      %2992 = vmatpush1.msra.mxu0 %v2966
      %2993 = vmatprep.subr.mxu0 %v2971
      %2994 = vmatpush1.msra.mxu0 %v2967
      %2995 = vmatprep.subr.mxu0 %v2972
      %2996 = vmatpush1.msra.mxu0 %v2968
      %2997 = vmatprep.subr.mxu0 %v2973
      %2998 = vmatpush1.msra.mxu0 %v2969
      %2999 = vmatprep.subr.mxu0 0.0
      %3000 = vmatpush1.msra.mxu0 0.0
      %3001 = vmatprep.subr.mxu0 0.0
      %3002 = vmatpush1.msra.mxu0 0.0
      %3003 = vmatprep.subr.mxu0 0.0
      %3004 = vmatpush1.msra.mxu0 0.0
      %3005 = vmatprep.subr.mxu0 0.0
      %3006 = vmatpush1.msra.mxu0 0.0
      %3007 = vmatprep.subr.mxu0 0.0
      %3008 = vmatpush1.msra.mxu0 0.0
      %3009 = vmatprep.subr.mxu0 0.0
      %3010 = vmatpush1.msra.mxu0 0.0
      %3011 = vmatprep.subr.mxu0 0.0
      %3012 = vmatpush1.msra.mxu0 0.0
      %3013 = vmatprep.subr.mxu0 0.0
      %3014 = vmatpush1.msra.mxu0 0.0
      %3015 = vmatprep.subr.mxu0 0.0
      %3016 = vmatpush1.msra.mxu0 0.0
      %3017 = vmatprep.subr.mxu0 0.0
      %3018 = vmatpush1.msra.mxu0 0.0
      %3019 = vmatprep.subr.mxu0 0.0
      %3020 = vmatpush1.msra.mxu0 0.0
      %3021 = vmatprep.subr.mxu0 0.0
      %3022 = vmatpush1.msra.mxu0 0.0
      %3023 = vmatprep.subr.mxu0 0.0
      %3024 = vmatpush1.msra.mxu0 0.0
      %3025 = vmatprep.subr.mxu0 0.0
      %3026 = vmatpush1.msra.mxu0 0.0
      %3027 = vmatprep.subr.mxu0 0.0
      %3028 = vmatpush1.msra.mxu0 0.0
      %3029 = vmatprep.subr.mxu0 0.0
      %3030 = vmatpush1.msra.mxu0 0.0
      %3031 = vmatprep.subr.mxu0 0.0
      %3032 = vmatpush1.msra.mxu0 0.0
      %3033 = vmatprep.subr.mxu0 0.0
      %3034 = vmatpush1.msra.mxu0 0.0
      %3035 = vmatprep.subr.mxu0 0.0
      %3036 = vmatpush1.msra.mxu0 0.0
      %3037 = vmatprep.subr.mxu0 0.0
      %3038 = vmatpush1.msra.mxu0 0.0
      %3039 = vmatprep.subr.mxu0 0.0
      %3040 = vmatpush1.msra.mxu0 0.0
      %3041 = vmatprep.subr.mxu0 0.0
      %3042 = vmatpush1.msra.mxu0 0.0
      %3043 = vmatprep.subr.mxu0 0.0
      %3044 = vmatpush1.msra.mxu0 0.0
      %3045 = vmatprep.subr.mxu0 0.0
      %3046 = vmatpush1.msra.mxu0 0.0
      %3047 = vmatprep.subr.mxu0 0.0
      %3048 = vmatpush1.msra.mxu0 0.0
      %3049 = vmatprep.subr.mxu0 0.0
      %3050 = vmatpush1.msra.mxu0 0.0
      %3051 = vmatprep.subr.mxu0 0.0
      %3052 = vmatpush1.msra.mxu0 0.0
      %3053 = vmatprep.subr.mxu0 0.0
      %3054 = vmatpush1.msra.mxu0 0.0
      %3055 = vmatprep.mubr.f32.mxu0 0.0
      %3056 = vmatmul.mubr.f32.gmra.mrb[0].mxu0 %v2980
      %v3057 = vpop.f32.mrb[0].mxu0
      %v3058 = vadd.f32 0.0, %v3057
      %v3059 = vpop.f32.mrb[0].mxu0
      %v3060 = vadd.f32 0.0, %v3059
      %3061 = vmatprep.mubr.f32.mxu0 0.0
      %3062 = vmatmul.mubr.f32.gmra.mrb[0].mxu0 %v2983
      %v3063 = vpop.f32.mrb[0].mxu0
      %v3064 = vadd.f32 0.0, %v3063
      %v3065 = vpop.f32.mrb[0].mxu0
      %v3066 = vadd.f32 0.0, %v3065
      %3067 = vmatprep.mubr.f32.mxu0 0.0
      %3068 = vmatmul.mubr.f32.gmra.mrb[0].mxu0 %v2986
      %v3069 = vpop.f32.mrb[0].mxu0
      %v3070 = vadd.f32 0.0, %v3069
      %v3071 = vpop.f32.mrb[0].mxu0
      %v3072 = vadd.f32 0.0, %v3071
      %3073 = vmatprep.mubr.f32.mxu0 0.0
      %3074 = vmatmul.mubr.f32.gmra.mrb[0].mxu0 %v2989
      %v3075 = vpop.f32.mrb[0].mxu0
      %v3076 = vadd.f32 0.0, %v3075
      %v3077 = vpop.f32.mrb[0].mxu0
      %v3078 = vadd.f32 0.0, %v3077
      %3079 = vdwg.mxu0
      %v3081 = vsel %vm1774, %v2946, 0
      %v3084 = vsel %vm1774, %v2947, 0
      %v3087 = vsel %vm1774, %v2948, 0
      %v3090 = vsel %vm1774, %v2949, 0
      %v3093 = vsel %vm1787, %v2943, 0
      %v3096 = vsel %vm1787, %v2944, 0
      %3098 = vmatprep.subr.mxu0 %v3096
      %3099 = vmatpush1.msra.mxu0 %v3093
      %3100 = vmatprep.subr.mxu0 0.0
      %3101 = vmatpush1.msra.mxu0 0.0
      %3102 = vmatprep.subr.mxu0 0.0
      %3103 = vmatpush1.msra.mxu0 0.0
      %3104 = vmatprep.subr.mxu0 0.0
      %3105 = vmatpush1.msra.mxu0 0.0
      %3106 = vmatprep.subr.mxu0 0.0
      %3107 = vmatpush1.msra.mxu0 0.0
      %3108 = vmatprep.subr.mxu0 0.0
      %3109 = vmatpush1.msra.mxu0 0.0
      %3110 = vmatprep.subr.mxu0 0.0
      %3111 = vmatpush1.msra.mxu0 0.0
      %3112 = vmatprep.subr.mxu0 0.0
      %3113 = vmatpush1.msra.mxu0 0.0
      %3114 = vmatprep.subr.mxu0 0.0
      %3115 = vmatpush1.msra.mxu0 0.0
      %3116 = vmatprep.subr.mxu0 0.0
      %3117 = vmatpush1.msra.mxu0 0.0
      %3118 = vmatprep.subr.mxu0 0.0
      %3119 = vmatpush1.msra.mxu0 0.0
      %3120 = vmatprep.subr.mxu0 0.0
      %3121 = vmatpush1.msra.mxu0 0.0
      %3122 = vmatprep.subr.mxu0 0.0
      %3123 = vmatpush1.msra.mxu0 0.0
      %3124 = vmatprep.subr.mxu0 0.0
      %3125 = vmatpush1.msra.mxu0 0.0
      %3126 = vmatprep.subr.mxu0 0.0
      %3127 = vmatpush1.msra.mxu0 0.0
      %3128 = vmatprep.subr.mxu0 0.0
      %3129 = vmatpush1.msra.mxu0 0.0
      %3130 = vmatprep.subr.mxu0 0.0
      %3131 = vmatpush1.msra.mxu0 0.0
      %3132 = vmatprep.subr.mxu0 0.0
      %3133 = vmatpush1.msra.mxu0 0.0
      %3134 = vmatprep.subr.mxu0 0.0
      %3135 = vmatpush1.msra.mxu0 0.0
      %3136 = vmatprep.subr.mxu0 0.0
      %3137 = vmatpush1.msra.mxu0 0.0
      %3138 = vmatprep.subr.mxu0 0.0
      %3139 = vmatpush1.msra.mxu0 0.0
      %3140 = vmatprep.subr.mxu0 0.0
      %3141 = vmatpush1.msra.mxu0 0.0
      %3142 = vmatprep.subr.mxu0 0.0
      %3143 = vmatpush1.msra.mxu0 0.0
      %3144 = vmatprep.subr.mxu0 0.0
      %3145 = vmatpush1.msra.mxu0 0.0
      %3146 = vmatprep.subr.mxu0 0.0
      %3147 = vmatpush1.msra.mxu0 0.0
      %3148 = vmatprep.subr.mxu0 0.0
      %3149 = vmatpush1.msra.mxu0 0.0
      %3150 = vmatprep.subr.mxu0 0.0
      %3151 = vmatpush1.msra.mxu0 0.0
      %3152 = vmatprep.subr.mxu0 0.0
      %3153 = vmatpush1.msra.mxu0 0.0
      %3154 = vmatprep.subr.mxu0 0.0
      %3155 = vmatpush1.msra.mxu0 0.0
      %3156 = vmatprep.subr.mxu0 0.0
      %3157 = vmatpush1.msra.mxu0 0.0
      %3158 = vmatprep.subr.mxu0 0.0
      %3159 = vmatpush1.msra.mxu0 0.0
      %3160 = vmatprep.subr.mxu0 0.0
      %3161 = vmatpush1.msra.mxu0 0.0
      %3162 = vmatprep.mubr.f32.mxu0 0.0
      %3163 = vmatmul.mubr.f32.gmra.mrb[0].mxu0 %v3081
      %v3164 = vpop.f32.mrb[0].mxu0
      %v3165 = vadd.f32 %v3058, %v3164
      %v3166 = vpop.f32.mrb[0].mxu0
      %v3167 = vadd.f32 %v3060, %v3166
      %3168 = vmatprep.mubr.f32.mxu0 0.0
      %3169 = vmatmul.mubr.f32.gmra.mrb[0].mxu0 %v3084
      %v3170 = vpop.f32.mrb[0].mxu0
      %v3171 = vadd.f32 %v3064, %v3170
      %v3172 = vpop.f32.mrb[0].mxu0
      %v3173 = vadd.f32 %v3066, %v3172
      %3174 = vmatprep.mubr.f32.mxu0 0.0
      %3175 = vmatmul.mubr.f32.gmra.mrb[0].mxu0 %v3087
      %v3176 = vpop.f32.mrb[0].mxu0
      %v3177 = vadd.f32 %v3070, %v3176
      %v3178 = vpop.f32.mrb[0].mxu0
      %v3179 = vadd.f32 %v3072, %v3178
      %3180 = vmatprep.mubr.f32.mxu0 0.0
      %3181 = vmatmul.mubr.f32.gmra.mrb[0].mxu0 %v3090
      %v3182 = vpop.f32.mrb[0].mxu0
      %v3183 = vadd.f32 %v3076, %v3182
      %v3184 = vpop.f32.mrb[0].mxu0
      %v3185 = vadd.f32 %v3078, %v3184
      %3186 = vdwg.mxu0
      %v3187 = vsel %vm2419, 1, 0
      %v3188 = vsel %vm2420, 1, 0
      %vm3189 = vcmp.eq.s32.totalorder %v3187, 1
      %vm3190 = vcmp.eq.s32.totalorder %v3188, 1
      %v3191 = vsel %vm3189, %v3165, 0.0
      %v3192 = vsel %vm3190, %v3167, 0.0
      %v3193 = vsel %vm3189, %v3171, 0.0
      %v3194 = vsel %vm3190, %v3173, 0.0
      %v3195 = vsel %vm3189, %v3177, 0.0
      %v3196 = vsel %vm3190, %v3179, 0.0
      %v3197 = vsel %vm3189, %v3183, 0.0
      %v3198 = vsel %vm3190, %v3185, 0.0
      %v3199 = vadd.f32 %v2930, %v3191
      %v3200 = vadd.f32 %v2931, %v3192
      %v3201 = vadd.f32 %v2932, %v3193
      %v3202 = vadd.f32 %v2933, %v3194
      %v3203 = vadd.f32 %v2934, %v3195
      %v3204 = vadd.f32 %v2935, %v3196
      %v3205 = vadd.f32 %v2936, %v3197
      %v3206 = vadd.f32 %v2937, %v3198
      %3207 = vrot.lane.b32.xlu0 %v1616, 113
      %v3208 = vpop.permute.xlu0 %3207
      %3209 = vrot.lane.b32.xlu0 %v1617, 113
      %v3210 = vpop.permute.xlu0 %3209
      %vm3211 = vcmp.lt.s32.totalorder %v1627, 113
      %v3212 = vsel %vm3211, %v3208, %v3210
      %v3213 = vsel %vm3211, %v3210, %v3208
      %s3214 = scalar_lea.vmem %s5, 192
      %v3215 = vld [vmem:[%s3214] sm:$0xff]
      %v3216 = vld [vmem:[%s3214 + $0x8] sm:$0xff]
      %v3217 = vld [vmem:[%s3214 + $0x10] sm:$0xff]
      %v3218 = vld [vmem:[%s3214 + $0x18] sm:$0xff]
      %3219 = vrot.lane.b32.xlu0 %v1618, 113
      %v3220 = vpop.permute.xlu0 %3219
      %3221 = vrot.lane.b32.xlu0 %v1620, 113
      %v3222 = vpop.permute.xlu0 %3221
      %3223 = vrot.lane.b32.xlu0 %v1622, 113
      %v3224 = vpop.permute.xlu0 %3223
      %3225 = vrot.lane.b32.xlu0 %v1624, 113
      %v3226 = vpop.permute.xlu0 %3225
      %3227 = vrot.lane.b32.xlu0 %v1619, 113
      %v3228 = vpop.permute.xlu0 %3227
      %3229 = vrot.lane.b32.xlu0 %v1621, 113
      %v3230 = vpop.permute.xlu0 %3229
      %3231 = vrot.lane.b32.xlu0 %v1623, 113
      %v3232 = vpop.permute.xlu0 %3231
      %3233 = vrot.lane.b32.xlu0 %v1625, 113
      %v3234 = vpop.permute.xlu0 %3233
      %v3235 = vsel %vm3211, %v3220, %v3228
      %v3236 = vsel %vm3211, %v3222, %v3230
      %v3237 = vsel %vm3211, %v3224, %v3232
      %v3238 = vsel %vm3211, %v3226, %v3234
      %v3239 = vsel %vm3211, %v3228, %v3220
      %v3240 = vsel %vm3211, %v3230, %v3222
      %v3241 = vsel %vm3211, %v3232, %v3224
      %v3242 = vsel %vm3211, %v3234, %v3226
      %s3243 = scalar_lea.vmem %s6, 192
      %v3244 = vld [vmem:[%s3243] sm:$0xff]
      %v3245 = vld [vmem:[%s3243 + $0x8] sm:$0xff]
      %v3246 = vld [vmem:[%s3243 + $0x10] sm:$0xff]
      %v3247 = vld [vmem:[%s3243 + $0x18] sm:$0xff]
      %v3249 = vsel %vm1672, %v3244, 0
      %v3252 = vsel %vm1672, %v3245, 0
      %v3255 = vsel %vm1672, %v3246, 0
      %v3258 = vsel %vm1672, %v3247, 0
      %3260 = vmatprep.subr.mxu0 %v3239
      %3261 = vmatpush1.msra.mxu0 %v3235
      %3262 = vmatprep.subr.mxu0 %v3240
      %3263 = vmatpush1.msra.mxu0 %v3236
      %3264 = vmatprep.subr.mxu0 %v3241
      %3265 = vmatpush1.msra.mxu0 %v3237
      %3266 = vmatprep.subr.mxu0 %v3242
      %3267 = vmatpush1.msra.mxu0 %v3238
      %3268 = vmatprep.subr.mxu0 0.0
      %3269 = vmatpush1.msra.mxu0 0.0
      %3270 = vmatprep.subr.mxu0 0.0
      %3271 = vmatpush1.msra.mxu0 0.0
      %3272 = vmatprep.subr.mxu0 0.0
      %3273 = vmatpush1.msra.mxu0 0.0
      %3274 = vmatprep.subr.mxu0 0.0
      %3275 = vmatpush1.msra.mxu0 0.0
      %3276 = vmatprep.subr.mxu0 0.0
      %3277 = vmatpush1.msra.mxu0 0.0
      %3278 = vmatprep.subr.mxu0 0.0
      %3279 = vmatpush1.msra.mxu0 0.0
      %3280 = vmatprep.subr.mxu0 0.0
      %3281 = vmatpush1.msra.mxu0 0.0
      %3282 = vmatprep.subr.mxu0 0.0
      %3283 = vmatpush1.msra.mxu0 0.0
      %3284 = vmatprep.subr.mxu0 0.0
      %3285 = vmatpush1.msra.mxu0 0.0
      %3286 = vmatprep.subr.mxu0 0.0
      %3287 = vmatpush1.msra.mxu0 0.0
      %3288 = vmatprep.subr.mxu0 0.0
      %3289 = vmatpush1.msra.mxu0 0.0
      %3290 = vmatprep.subr.mxu0 0.0
      %3291 = vmatpush1.msra.mxu0 0.0
      %3292 = vmatprep.subr.mxu0 0.0
      %3293 = vmatpush1.msra.mxu0 0.0
      %3294 = vmatprep.subr.mxu0 0.0
      %3295 = vmatpush1.msra.mxu0 0.0
      %3296 = vmatprep.subr.mxu0 0.0
      %3297 = vmatpush1.msra.mxu0 0.0
      %3298 = vmatprep.subr.mxu0 0.0
      %3299 = vmatpush1.msra.mxu0 0.0
      %3300 = vmatprep.subr.mxu0 0.0
      %3301 = vmatpush1.msra.mxu0 0.0
      %3302 = vmatprep.subr.mxu0 0.0
      %3303 = vmatpush1.msra.mxu0 0.0
      %3304 = vmatprep.subr.mxu0 0.0
      %3305 = vmatpush1.msra.mxu0 0.0
      %3306 = vmatprep.subr.mxu0 0.0
      %3307 = vmatpush1.msra.mxu0 0.0
      %3308 = vmatprep.subr.mxu0 0.0
      %3309 = vmatpush1.msra.mxu0 0.0
      %3310 = vmatprep.subr.mxu0 0.0
      %3311 = vmatpush1.msra.mxu0 0.0
      %3312 = vmatprep.subr.mxu0 0.0
      %3313 = vmatpush1.msra.mxu0 0.0
      %3314 = vmatprep.subr.mxu0 0.0
      %3315 = vmatpush1.msra.mxu0 0.0
      %3316 = vmatprep.subr.mxu0 0.0
      %3317 = vmatpush1.msra.mxu0 0.0
      %3318 = vmatprep.subr.mxu0 0.0
      %3319 = vmatpush1.msra.mxu0 0.0
      %3320 = vmatprep.subr.mxu0 0.0
      %3321 = vmatpush1.msra.mxu0 0.0
      %3322 = vmatprep.subr.mxu0 0.0
      %3323 = vmatpush1.msra.mxu0 0.0
      %3324 = vmatprep.mubr.f32.mxu0 0.0
      %3325 = vmatmul.mubr.f32.gmra.mrb[0].mxu0 %v3249
      %v3326 = vpop.f32.mrb[0].mxu0
      %v3327 = vadd.f32 0.0, %v3326
      %v3328 = vpop.f32.mrb[0].mxu0
      %v3329 = vadd.f32 0.0, %v3328
      %3330 = vmatprep.mubr.f32.mxu0 0.0
      %3331 = vmatmul.mubr.f32.gmra.mrb[0].mxu0 %v3252
      %v3332 = vpop.f32.mrb[0].mxu0
      %v3333 = vadd.f32 0.0, %v3332
      %v3334 = vpop.f32.mrb[0].mxu0
      %v3335 = vadd.f32 0.0, %v3334
      %3336 = vmatprep.mubr.f32.mxu0 0.0
      %3337 = vmatmul.mubr.f32.gmra.mrb[0].mxu0 %v3255
      %v3338 = vpop.f32.mrb[0].mxu0
      %v3339 = vadd.f32 0.0, %v3338
      %v3340 = vpop.f32.mrb[0].mxu0
      %v3341 = vadd.f32 0.0, %v3340
      %3342 = vmatprep.mubr.f32.mxu0 0.0
      %3343 = vmatmul.mubr.f32.gmra.mrb[0].mxu0 %v3258
      %v3344 = vpop.f32.mrb[0].mxu0
      %v3345 = vadd.f32 0.0, %v3344
      %v3346 = vpop.f32.mrb[0].mxu0
      %v3347 = vadd.f32 0.0, %v3346
      %3348 = vdwg.mxu0
      %v3350 = vsel %vm1774, %v3215, 0
      %v3353 = vsel %vm1774, %v3216, 0
      %v3356 = vsel %vm1774, %v3217, 0
      %v3359 = vsel %vm1774, %v3218, 0
      %v3362 = vsel %vm1787, %v3212, 0
      %v3365 = vsel %vm1787, %v3213, 0
      %3367 = vmatprep.subr.mxu0 %v3365
      %3368 = vmatpush1.msra.mxu0 %v3362
      %3369 = vmatprep.subr.mxu0 0.0
      %3370 = vmatpush1.msra.mxu0 0.0
      %3371 = vmatprep.subr.mxu0 0.0
      %3372 = vmatpush1.msra.mxu0 0.0
      %3373 = vmatprep.subr.mxu0 0.0
      %3374 = vmatpush1.msra.mxu0 0.0
      %3375 = vmatprep.subr.mxu0 0.0
      %3376 = vmatpush1.msra.mxu0 0.0
      %3377 = vmatprep.subr.mxu0 0.0
      %3378 = vmatpush1.msra.mxu0 0.0
      %3379 = vmatprep.subr.mxu0 0.0
      %3380 = vmatpush1.msra.mxu0 0.0
      %3381 = vmatprep.subr.mxu0 0.0
      %3382 = vmatpush1.msra.mxu0 0.0
      %3383 = vmatprep.subr.mxu0 0.0
      %3384 = vmatpush1.msra.mxu0 0.0
      %3385 = vmatprep.subr.mxu0 0.0
      %3386 = vmatpush1.msra.mxu0 0.0
      %3387 = vmatprep.subr.mxu0 0.0
      %3388 = vmatpush1.msra.mxu0 0.0
      %3389 = vmatprep.subr.mxu0 0.0
      %3390 = vmatpush1.msra.mxu0 0.0
      %3391 = vmatprep.subr.mxu0 0.0
      %3392 = vmatpush1.msra.mxu0 0.0
      %3393 = vmatprep.subr.mxu0 0.0
      %3394 = vmatpush1.msra.mxu0 0.0
      %3395 = vmatprep.subr.mxu0 0.0
      %3396 = vmatpush1.msra.mxu0 0.0
      %3397 = vmatprep.subr.mxu0 0.0
      %3398 = vmatpush1.msra.mxu0 0.0
      %3399 = vmatprep.subr.mxu0 0.0
      %3400 = vmatpush1.msra.mxu0 0.0
      %3401 = vmatprep.subr.mxu0 0.0
      %3402 = vmatpush1.msra.mxu0 0.0
      %3403 = vmatprep.subr.mxu0 0.0
      %3404 = vmatpush1.msra.mxu0 0.0
      %3405 = vmatprep.subr.mxu0 0.0
      %3406 = vmatpush1.msra.mxu0 0.0
      %3407 = vmatprep.subr.mxu0 0.0
      %3408 = vmatpush1.msra.mxu0 0.0
      %3409 = vmatprep.subr.mxu0 0.0
      %3410 = vmatpush1.msra.mxu0 0.0
      %3411 = vmatprep.subr.mxu0 0.0
      %3412 = vmatpush1.msra.mxu0 0.0
      %3413 = vmatprep.subr.mxu0 0.0
      %3414 = vmatpush1.msra.mxu0 0.0
      %3415 = vmatprep.subr.mxu0 0.0
      %3416 = vmatpush1.msra.mxu0 0.0
      %3417 = vmatprep.subr.mxu0 0.0
      %3418 = vmatpush1.msra.mxu0 0.0
      %3419 = vmatprep.subr.mxu0 0.0
      %3420 = vmatpush1.msra.mxu0 0.0
      %3421 = vmatprep.subr.mxu0 0.0
      %3422 = vmatpush1.msra.mxu0 0.0
      %3423 = vmatprep.subr.mxu0 0.0
      %3424 = vmatpush1.msra.mxu0 0.0
      %3425 = vmatprep.subr.mxu0 0.0
      %3426 = vmatpush1.msra.mxu0 0.0
      %3427 = vmatprep.subr.mxu0 0.0
      %3428 = vmatpush1.msra.mxu0 0.0
      %3429 = vmatprep.subr.mxu0 0.0
      %3430 = vmatpush1.msra.mxu0 0.0
      %3431 = vmatprep.mubr.f32.mxu0 0.0
      %3432 = vmatmul.mubr.f32.gmra.mrb[0].mxu0 %v3350
      %v3433 = vpop.f32.mrb[0].mxu0
      %v3434 = vadd.f32 %v3327, %v3433
      %v3435 = vpop.f32.mrb[0].mxu0
      %v3436 = vadd.f32 %v3329, %v3435
      %3437 = vmatprep.mubr.f32.mxu0 0.0
      %3438 = vmatmul.mubr.f32.gmra.mrb[0].mxu0 %v3353
      %v3439 = vpop.f32.mrb[0].mxu0
      %v3440 = vadd.f32 %v3333, %v3439
      %v3441 = vpop.f32.mrb[0].mxu0
      %v3442 = vadd.f32 %v3335, %v3441
      %3443 = vmatprep.mubr.f32.mxu0 0.0
      %3444 = vmatmul.mubr.f32.gmra.mrb[0].mxu0 %v3356
      %v3445 = vpop.f32.mrb[0].mxu0
      %v3446 = vadd.f32 %v3339, %v3445
      %v3447 = vpop.f32.mrb[0].mxu0
      %v3448 = vadd.f32 %v3341, %v3447
      %3449 = vmatprep.mubr.f32.mxu0 0.0
      %3450 = vmatmul.mubr.f32.gmra.mrb[0].mxu0 %v3359
      %v3451 = vpop.f32.mrb[0].mxu0
      %v3452 = vadd.f32 %v3345, %v3451
      %v3453 = vpop.f32.mrb[0].mxu0
      %v3454 = vadd.f32 %v3347, %v3453
      %3455 = vdwg.mxu0
      %vm3456 = vcmp.lt.s32.totalorder %v1629, 15
      %vm3457 = vcmp.lt.s32.totalorder %v1630, 15
      %vm3458 = vmand %vm3456, %vm1885
      %vm3459 = vmand %vm3457, %vm1886
      %v3460 = vsel %vm3458, 1, 0
      %v3461 = vsel %vm3459, 1, 0
      %vm3462 = vcmp.eq.s32.totalorder %v3460, 1
      %vm3463 = vcmp.eq.s32.totalorder %v3461, 1
      %v3464 = vsel %vm3462, %v3434, 0.0
      %v3465 = vsel %vm3463, %v3436, 0.0
      %v3466 = vsel %vm3462, %v3440, 0.0
      %v3467 = vsel %vm3463, %v3442, 0.0
      %v3468 = vsel %vm3462, %v3446, 0.0
      %v3469 = vsel %vm3463, %v3448, 0.0
      %v3470 = vsel %vm3462, %v3452, 0.0
      %v3471 = vsel %vm3463, %v3454, 0.0
      %v3472 = vadd.f32 %v3199, %v3464
      %v3473 = vadd.f32 %v3200, %v3465
      %v3474 = vadd.f32 %v3201, %v3466
      %v3475 = vadd.f32 %v3202, %v3467
      %v3476 = vadd.f32 %v3203, %v3468
      %v3477 = vadd.f32 %v3204, %v3469
      %v3478 = vadd.f32 %v3205, %v3470
      %v3479 = vadd.f32 %v3206, %v3471
      %3480 = vrot.lane.b32.xlu0 %v1616, 112
      %v3481 = vpop.permute.xlu0 %3480
      %3482 = vrot.lane.b32.xlu0 %v1617, 112
      %v3483 = vpop.permute.xlu0 %3482
      %vm3484 = vcmp.lt.s32.totalorder %v1627, 112
      %v3485 = vsel %vm3484, %v3481, %v3483
      %v3486 = vsel %vm3484, %v3483, %v3481
      %s3487 = scalar_lea.vmem %s5, 224
      %v3488 = vld [vmem:[%s3487] sm:$0xff]
      %v3489 = vld [vmem:[%s3487 + $0x8] sm:$0xff]
      %v3490 = vld [vmem:[%s3487 + $0x10] sm:$0xff]
      %v3491 = vld [vmem:[%s3487 + $0x18] sm:$0xff]
      %3492 = vrot.lane.b32.xlu0 %v1618, 112
      %v3493 = vpop.permute.xlu0 %3492
      %3494 = vrot.lane.b32.xlu0 %v1620, 112
      %v3495 = vpop.permute.xlu0 %3494
      %3496 = vrot.lane.b32.xlu0 %v1622, 112
      %v3497 = vpop.permute.xlu0 %3496
      %3498 = vrot.lane.b32.xlu0 %v1624, 112
      %v3499 = vpop.permute.xlu0 %3498
      %3500 = vrot.lane.b32.xlu0 %v1619, 112
      %v3501 = vpop.permute.xlu0 %3500
      %3502 = vrot.lane.b32.xlu0 %v1621, 112
      %v3503 = vpop.permute.xlu0 %3502
      %3504 = vrot.lane.b32.xlu0 %v1623, 112
      %v3505 = vpop.permute.xlu0 %3504
      %3506 = vrot.lane.b32.xlu0 %v1625, 112
      %v3507 = vpop.permute.xlu0 %3506
      %v3508 = vsel %vm3484, %v3493, %v3501
      %v3509 = vsel %vm3484, %v3495, %v3503
      %v3510 = vsel %vm3484, %v3497, %v3505
      %v3511 = vsel %vm3484, %v3499, %v3507
      %v3512 = vsel %vm3484, %v3501, %v3493
      %v3513 = vsel %vm3484, %v3503, %v3495
      %v3514 = vsel %vm3484, %v3505, %v3497
      %v3515 = vsel %vm3484, %v3507, %v3499
      %s3516 = scalar_lea.vmem %s6, 224
      %v3517 = vld [vmem:[%s3516] sm:$0xff]
      %v3518 = vld [vmem:[%s3516 + $0x8] sm:$0xff]
      %v3519 = vld [vmem:[%s3516 + $0x10] sm:$0xff]
      %v3520 = vld [vmem:[%s3516 + $0x18] sm:$0xff]
      %v3522 = vsel %vm1672, %v3517, 0
      %v3525 = vsel %vm1672, %v3518, 0
      %v3528 = vsel %vm1672, %v3519, 0
      %v3531 = vsel %vm1672, %v3520, 0
      %3533 = vmatprep.subr.mxu0 %v3512
      %3534 = vmatpush1.msra.mxu0 %v3508
      %3535 = vmatprep.subr.mxu0 %v3513
      %3536 = vmatpush1.msra.mxu0 %v3509
      %3537 = vmatprep.subr.mxu0 %v3514
      %3538 = vmatpush1.msra.mxu0 %v3510
      %3539 = vmatprep.subr.mxu0 %v3515
      %3540 = vmatpush1.msra.mxu0 %v3511
      %3541 = vmatprep.subr.mxu0 0.0
      %3542 = vmatpush1.msra.mxu0 0.0
      %3543 = vmatprep.subr.mxu0 0.0
      %3544 = vmatpush1.msra.mxu0 0.0
      %3545 = vmatprep.subr.mxu0 0.0
      %3546 = vmatpush1.msra.mxu0 0.0
      %3547 = vmatprep.subr.mxu0 0.0
      %3548 = vmatpush1.msra.mxu0 0.0
      %3549 = vmatprep.subr.mxu0 0.0
      %3550 = vmatpush1.msra.mxu0 0.0
      %3551 = vmatprep.subr.mxu0 0.0
      %3552 = vmatpush1.msra.mxu0 0.0
      %3553 = vmatprep.subr.mxu0 0.0
      %3554 = vmatpush1.msra.mxu0 0.0
      %3555 = vmatprep.subr.mxu0 0.0
      %3556 = vmatpush1.msra.mxu0 0.0
      %3557 = vmatprep.subr.mxu0 0.0
      %3558 = vmatpush1.msra.mxu0 0.0
      %3559 = vmatprep.subr.mxu0 0.0
      %3560 = vmatpush1.msra.mxu0 0.0
      %3561 = vmatprep.subr.mxu0 0.0
      %3562 = vmatpush1.msra.mxu0 0.0
      %3563 = vmatprep.subr.mxu0 0.0
      %3564 = vmatpush1.msra.mxu0 0.0
      %3565 = vmatprep.subr.mxu0 0.0
      %3566 = vmatpush1.msra.mxu0 0.0
      %3567 = vmatprep.subr.mxu0 0.0
      %3568 = vmatpush1.msra.mxu0 0.0
      %3569 = vmatprep.subr.mxu0 0.0
      %3570 = vmatpush1.msra.mxu0 0.0
      %3571 = vmatprep.subr.mxu0 0.0
      %3572 = vmatpush1.msra.mxu0 0.0
      %3573 = vmatprep.subr.mxu0 0.0
      %3574 = vmatpush1.msra.mxu0 0.0
      %3575 = vmatprep.subr.mxu0 0.0
      %3576 = vmatpush1.msra.mxu0 0.0
      %3577 = vmatprep.subr.mxu0 0.0
      %3578 = vmatpush1.msra.mxu0 0.0
      %3579 = vmatprep.subr.mxu0 0.0
      %3580 = vmatpush1.msra.mxu0 0.0
      %3581 = vmatprep.subr.mxu0 0.0
      %3582 = vmatpush1.msra.mxu0 0.0
      %3583 = vmatprep.subr.mxu0 0.0
      %3584 = vmatpush1.msra.mxu0 0.0
      %3585 = vmatprep.subr.mxu0 0.0
      %3586 = vmatpush1.msra.mxu0 0.0
      %3587 = vmatprep.subr.mxu0 0.0
      %3588 = vmatpush1.msra.mxu0 0.0
      %3589 = vmatprep.subr.mxu0 0.0
      %3590 = vmatpush1.msra.mxu0 0.0
      %3591 = vmatprep.subr.mxu0 0.0
      %3592 = vmatpush1.msra.mxu0 0.0
      %3593 = vmatprep.subr.mxu0 0.0
      %3594 = vmatpush1.msra.mxu0 0.0
      %3595 = vmatprep.subr.mxu0 0.0
      %3596 = vmatpush1.msra.mxu0 0.0
      %3597 = vmatprep.mubr.f32.mxu0 0.0
      %3598 = vmatmul.mubr.f32.gmra.mrb[0].mxu0 %v3522
      %v3599 = vpop.f32.mrb[0].mxu0
      %v3600 = vadd.f32 0.0, %v3599
      %v3601 = vpop.f32.mrb[0].mxu0
      %v3602 = vadd.f32 0.0, %v3601
      %3603 = vmatprep.mubr.f32.mxu0 0.0
      %3604 = vmatmul.mubr.f32.gmra.mrb[0].mxu0 %v3525
      %v3605 = vpop.f32.mrb[0].mxu0
      %v3606 = vadd.f32 0.0, %v3605
      %v3607 = vpop.f32.mrb[0].mxu0
      %v3608 = vadd.f32 0.0, %v3607
      %3609 = vmatprep.mubr.f32.mxu0 0.0
      %3610 = vmatmul.mubr.f32.gmra.mrb[0].mxu0 %v3528
      %v3611 = vpop.f32.mrb[0].mxu0
      %v3612 = vadd.f32 0.0, %v3611
      %v3613 = vpop.f32.mrb[0].mxu0
      %v3614 = vadd.f32 0.0, %v3613
      %3615 = vmatprep.mubr.f32.mxu0 0.0
      %3616 = vmatmul.mubr.f32.gmra.mrb[0].mxu0 %v3531
      %v3617 = vpop.f32.mrb[0].mxu0
      %v3618 = vadd.f32 0.0, %v3617
      %v3619 = vpop.f32.mrb[0].mxu0
      %v3620 = vadd.f32 0.0, %v3619
      %3621 = vdwg.mxu0
      %v3623 = vsel %vm1774, %v3488, 0
      %v3626 = vsel %vm1774, %v3489, 0
      %v3629 = vsel %vm1774, %v3490, 0
      %v3632 = vsel %vm1774, %v3491, 0
      %v3635 = vsel %vm1787, %v3485, 0
      %v3638 = vsel %vm1787, %v3486, 0
      %3640 = vmatprep.subr.mxu0 %v3638
      %3641 = vmatpush1.msra.mxu0 %v3635
      %3642 = vmatprep.subr.mxu0 0.0
      %3643 = vmatpush1.msra.mxu0 0.0
      %3644 = vmatprep.subr.mxu0 0.0
      %3645 = vmatpush1.msra.mxu0 0.0
      %3646 = vmatprep.subr.mxu0 0.0
      %3647 = vmatpush1.msra.mxu0 0.0
      %3648 = vmatprep.subr.mxu0 0.0
      %3649 = vmatpush1.msra.mxu0 0.0
      %3650 = vmatprep.subr.mxu0 0.0
      %3651 = vmatpush1.msra.mxu0 0.0
      %3652 = vmatprep.subr.mxu0 0.0
      %3653 = vmatpush1.msra.mxu0 0.0
      %3654 = vmatprep.subr.mxu0 0.0
      %3655 = vmatpush1.msra.mxu0 0.0
      %3656 = vmatprep.subr.mxu0 0.0
      %3657 = vmatpush1.msra.mxu0 0.0
      %3658 = vmatprep.subr.mxu0 0.0
      %3659 = vmatpush1.msra.mxu0 0.0
      %3660 = vmatprep.subr.mxu0 0.0
      %3661 = vmatpush1.msra.mxu0 0.0
      %3662 = vmatprep.subr.mxu0 0.0
      %3663 = vmatpush1.msra.mxu0 0.0
      %3664 = vmatprep.subr.mxu0 0.0
      %3665 = vmatpush1.msra.mxu0 0.0
      %3666 = vmatprep.subr.mxu0 0.0
      %3667 = vmatpush1.msra.mxu0 0.0
      %3668 = vmatprep.subr.mxu0 0.0
      %3669 = vmatpush1.msra.mxu0 0.0
      %3670 = vmatprep.subr.mxu0 0.0
      %3671 = vmatpush1.msra.mxu0 0.0
      %3672 = vmatprep.subr.mxu0 0.0
      %3673 = vmatpush1.msra.mxu0 0.0
      %3674 = vmatprep.subr.mxu0 0.0
      %3675 = vmatpush1.msra.mxu0 0.0
      %3676 = vmatprep.subr.mxu0 0.0
      %3677 = vmatpush1.msra.mxu0 0.0
      %3678 = vmatprep.subr.mxu0 0.0
      %3679 = vmatpush1.msra.mxu0 0.0
      %3680 = vmatprep.subr.mxu0 0.0
      %3681 = vmatpush1.msra.mxu0 0.0
      %3682 = vmatprep.subr.mxu0 0.0
      %3683 = vmatpush1.msra.mxu0 0.0
      %3684 = vmatprep.subr.mxu0 0.0
      %3685 = vmatpush1.msra.mxu0 0.0
      %3686 = vmatprep.subr.mxu0 0.0
      %3687 = vmatpush1.msra.mxu0 0.0
      %3688 = vmatprep.subr.mxu0 0.0
      %3689 = vmatpush1.msra.mxu0 0.0
      %3690 = vmatprep.subr.mxu0 0.0
      %3691 = vmatpush1.msra.mxu0 0.0
      %3692 = vmatprep.subr.mxu0 0.0
      %3693 = vmatpush1.msra.mxu0 0.0
      %3694 = vmatprep.subr.mxu0 0.0
      %3695 = vmatpush1.msra.mxu0 0.0
      %3696 = vmatprep.subr.mxu0 0.0
      %3697 = vmatpush1.msra.mxu0 0.0
      %3698 = vmatprep.subr.mxu0 0.0
      %3699 = vmatpush1.msra.mxu0 0.0
      %3700 = vmatprep.subr.mxu0 0.0
      %3701 = vmatpush1.msra.mxu0 0.0
      %3702 = vmatprep.subr.mxu0 0.0
      %3703 = vmatpush1.msra.mxu0 0.0
      %3704 = vmatprep.mubr.f32.mxu0 0.0
      %3705 = vmatmul.mubr.f32.gmra.mrb[0].mxu0 %v3623
      %v3706 = vpop.f32.mrb[0].mxu0
      %v3707 = vadd.f32 %v3600, %v3706
      %v3708 = vpop.f32.mrb[0].mxu0
      %v3709 = vadd.f32 %v3602, %v3708
      %3710 = vmatprep.mubr.f32.mxu0 0.0
      %3711 = vmatmul.mubr.f32.gmra.mrb[0].mxu0 %v3626
      %v3712 = vpop.f32.mrb[0].mxu0
      %v3713 = vadd.f32 %v3606, %v3712
      %v3714 = vpop.f32.mrb[0].mxu0
      %v3715 = vadd.f32 %v3608, %v3714
      %3716 = vmatprep.mubr.f32.mxu0 0.0
      %3717 = vmatmul.mubr.f32.gmra.mrb[0].mxu0 %v3629
      %v3718 = vpop.f32.mrb[0].mxu0
      %v3719 = vadd.f32 %v3612, %v3718
      %v3720 = vpop.f32.mrb[0].mxu0
      %v3721 = vadd.f32 %v3614, %v3720
      %3722 = vmatprep.mubr.f32.mxu0 0.0
      %3723 = vmatmul.mubr.f32.gmra.mrb[0].mxu0 %v3632
      %v3724 = vpop.f32.mrb[0].mxu0
      %v3725 = vadd.f32 %v3618, %v3724
      %v3726 = vpop.f32.mrb[0].mxu0
      %v3727 = vadd.f32 %v3620, %v3726
      %3728 = vdwg.mxu0
      %v3729 = vsel %vm3456, 1, 0
      %v3730 = vsel %vm3457, 1, 0
      %vm3731 = vcmp.eq.s32.totalorder %v3729, 1
      %vm3732 = vcmp.eq.s32.totalorder %v3730, 1
      %v3733 = vsel %vm3731, %v3707, 0.0
      %v3734 = vsel %vm3732, %v3709, 0.0
      %v3735 = vsel %vm3731, %v3713, 0.0
      %v3736 = vsel %vm3732, %v3715, 0.0
      %v3737 = vsel %vm3731, %v3719, 0.0
      %v3738 = vsel %vm3732, %v3721, 0.0
      %v3739 = vsel %vm3731, %v3725, 0.0
      %v3740 = vsel %vm3732, %v3727, 0.0
      %v3741 = vadd.f32 %v3472, %v3733
      %v3742 = vadd.f32 %v3473, %v3734
      %v3743 = vadd.f32 %v3474, %v3735
      %v3744 = vadd.f32 %v3475, %v3736
      %v3745 = vadd.f32 %v3476, %v3737
      %v3746 = vadd.f32 %v3477, %v3738
      %v3747 = vadd.f32 %v3478, %v3739
      %v3748 = vadd.f32 %v3479, %v3740
      %3749 = vrot.lane.b32.xlu0 %v1616, 111
      %v3750 = vpop.permute.xlu0 %3749
      %3751 = vrot.lane.b32.xlu0 %v1617, 111
      %v3752 = vpop.permute.xlu0 %3751
      %vm3753 = vcmp.lt.s32.totalorder %v1627, 111
      %v3754 = vsel %vm3753, %v3750, %v3752
      %v3755 = vsel %vm3753, %v3752, %v3750
      %s3756 = scalar_lea.vmem %s5, 256
      %v3757 = vld [vmem:[%s3756] sm:$0xff]
      %v3758 = vld [vmem:[%s3756 + $0x8] sm:$0xff]
      %v3759 = vld [vmem:[%s3756 + $0x10] sm:$0xff]
      %v3760 = vld [vmem:[%s3756 + $0x18] sm:$0xff]
      %3761 = vrot.lane.b32.xlu0 %v1618, 111
      %v3762 = vpop.permute.xlu0 %3761
      %3763 = vrot.lane.b32.xlu0 %v1620, 111
      %v3764 = vpop.permute.xlu0 %3763
      %3765 = vrot.lane.b32.xlu0 %v1622, 111
      %v3766 = vpop.permute.xlu0 %3765
      %3767 = vrot.lane.b32.xlu0 %v1624, 111
      %v3768 = vpop.permute.xlu0 %3767
      %3769 = vrot.lane.b32.xlu0 %v1619, 111
      %v3770 = vpop.permute.xlu0 %3769
      %3771 = vrot.lane.b32.xlu0 %v1621, 111
      %v3772 = vpop.permute.xlu0 %3771
      %3773 = vrot.lane.b32.xlu0 %v1623, 111
      %v3774 = vpop.permute.xlu0 %3773
      %3775 = vrot.lane.b32.xlu0 %v1625, 111
      %v3776 = vpop.permute.xlu0 %3775
      %v3777 = vsel %vm3753, %v3762, %v3770
      %v3778 = vsel %vm3753, %v3764, %v3772
      %v3779 = vsel %vm3753, %v3766, %v3774
      %v3780 = vsel %vm3753, %v3768, %v3776
      %v3781 = vsel %vm3753, %v3770, %v3762
      %v3782 = vsel %vm3753, %v3772, %v3764
      %v3783 = vsel %vm3753, %v3774, %v3766
      %v3784 = vsel %vm3753, %v3776, %v3768
      %s3785 = scalar_lea.vmem %s6, 256
      %v3786 = vld [vmem:[%s3785] sm:$0xff]
      %v3787 = vld [vmem:[%s3785 + $0x8] sm:$0xff]
      %v3788 = vld [vmem:[%s3785 + $0x10] sm:$0xff]
      %v3789 = vld [vmem:[%s3785 + $0x18] sm:$0xff]
      %v3791 = vsel %vm1672, %v3786, 0
      %v3794 = vsel %vm1672, %v3787, 0
      %v3797 = vsel %vm1672, %v3788, 0
      %v3800 = vsel %vm1672, %v3789, 0
      %3802 = vmatprep.subr.mxu0 %v3781
      %3803 = vmatpush1.msra.mxu0 %v3777
      %3804 = vmatprep.subr.mxu0 %v3782
      %3805 = vmatpush1.msra.mxu0 %v3778
      %3806 = vmatprep.subr.mxu0 %v3783
      %3807 = vmatpush1.msra.mxu0 %v3779
      %3808 = vmatprep.subr.mxu0 %v3784
      %3809 = vmatpush1.msra.mxu0 %v3780
      %3810 = vmatprep.subr.mxu0 0.0
      %3811 = vmatpush1.msra.mxu0 0.0
      %3812 = vmatprep.subr.mxu0 0.0
      %3813 = vmatpush1.msra.mxu0 0.0
      %3814 = vmatprep.subr.mxu0 0.0
      %3815 = vmatpush1.msra.mxu0 0.0
      %3816 = vmatprep.subr.mxu0 0.0
      %3817 = vmatpush1.msra.mxu0 0.0
      %3818 = vmatprep.subr.mxu0 0.0
      %3819 = vmatpush1.msra.mxu0 0.0
      %3820 = vmatprep.subr.mxu0 0.0
      %3821 = vmatpush1.msra.mxu0 0.0
      %3822 = vmatprep.subr.mxu0 0.0
      %3823 = vmatpush1.msra.mxu0 0.0
      %3824 = vmatprep.subr.mxu0 0.0
      %3825 = vmatpush1.msra.mxu0 0.0
      %3826 = vmatprep.subr.mxu0 0.0
      %3827 = vmatpush1.msra.mxu0 0.0
      %3828 = vmatprep.subr.mxu0 0.0
      %3829 = vmatpush1.msra.mxu0 0.0
      %3830 = vmatprep.subr.mxu0 0.0
      %3831 = vmatpush1.msra.mxu0 0.0
      %3832 = vmatprep.subr.mxu0 0.0
      %3833 = vmatpush1.msra.mxu0 0.0
      %3834 = vmatprep.subr.mxu0 0.0
      %3835 = vmatpush1.msra.mxu0 0.0
      %3836 = vmatprep.subr.mxu0 0.0
      %3837 = vmatpush1.msra.mxu0 0.0
      %3838 = vmatprep.subr.mxu0 0.0
      %3839 = vmatpush1.msra.mxu0 0.0
      %3840 = vmatprep.subr.mxu0 0.0
      %3841 = vmatpush1.msra.mxu0 0.0
      %3842 = vmatprep.subr.mxu0 0.0
      %3843 = vmatpush1.msra.mxu0 0.0
      %3844 = vmatprep.subr.mxu0 0.0
      %3845 = vmatpush1.msra.mxu0 0.0
      %3846 = vmatprep.subr.mxu0 0.0
      %3847 = vmatpush1.msra.mxu0 0.0
      %3848 = vmatprep.subr.mxu0 0.0
      %3849 = vmatpush1.msra.mxu0 0.0
      %3850 = vmatprep.subr.mxu0 0.0
      %3851 = vmatpush1.msra.mxu0 0.0
      %3852 = vmatprep.subr.mxu0 0.0
      %3853 = vmatpush1.msra.mxu0 0.0
      %3854 = vmatprep.subr.mxu0 0.0
      %3855 = vmatpush1.msra.mxu0 0.0
      %3856 = vmatprep.subr.mxu0 0.0
      %3857 = vmatpush1.msra.mxu0 0.0
      %3858 = vmatprep.subr.mxu0 0.0
      %3859 = vmatpush1.msra.mxu0 0.0
      %3860 = vmatprep.subr.mxu0 0.0
      %3861 = vmatpush1.msra.mxu0 0.0
      %3862 = vmatprep.subr.mxu0 0.0
      %3863 = vmatpush1.msra.mxu0 0.0
      %3864 = vmatprep.subr.mxu0 0.0
      %3865 = vmatpush1.msra.mxu0 0.0
      %3866 = vmatprep.mubr.f32.mxu0 0.0
      %3867 = vmatmul.mubr.f32.gmra.mrb[0].mxu0 %v3791
      %v3868 = vpop.f32.mrb[0].mxu0
      %v3869 = vadd.f32 0.0, %v3868
      %v3870 = vpop.f32.mrb[0].mxu0
      %v3871 = vadd.f32 0.0, %v3870
      %3872 = vmatprep.mubr.f32.mxu0 0.0
      %3873 = vmatmul.mubr.f32.gmra.mrb[0].mxu0 %v3794
      %v3874 = vpop.f32.mrb[0].mxu0
      %v3875 = vadd.f32 0.0, %v3874
      %v3876 = vpop.f32.mrb[0].mxu0
      %v3877 = vadd.f32 0.0, %v3876
      %3878 = vmatprep.mubr.f32.mxu0 0.0
      %3879 = vmatmul.mubr.f32.gmra.mrb[0].mxu0 %v3797
      %v3880 = vpop.f32.mrb[0].mxu0
      %v3881 = vadd.f32 0.0, %v3880
      %v3882 = vpop.f32.mrb[0].mxu0
      %v3883 = vadd.f32 0.0, %v3882
      %3884 = vmatprep.mubr.f32.mxu0 0.0
      %3885 = vmatmul.mubr.f32.gmra.mrb[0].mxu0 %v3800
      %v3886 = vpop.f32.mrb[0].mxu0
      %v3887 = vadd.f32 0.0, %v3886
      %v3888 = vpop.f32.mrb[0].mxu0
      %v3889 = vadd.f32 0.0, %v3888
      %3890 = vdwg.mxu0
      %v3892 = vsel %vm1774, %v3757, 0
      %v3895 = vsel %vm1774, %v3758, 0
      %v3898 = vsel %vm1774, %v3759, 0
      %v3901 = vsel %vm1774, %v3760, 0
      %v3904 = vsel %vm1787, %v3754, 0
      %v3907 = vsel %vm1787, %v3755, 0
      %3909 = vmatprep.subr.mxu0 %v3907
      %3910 = vmatpush1.msra.mxu0 %v3904
      %3911 = vmatprep.subr.mxu0 0.0
      %3912 = vmatpush1.msra.mxu0 0.0
      %3913 = vmatprep.subr.mxu0 0.0
      %3914 = vmatpush1.msra.mxu0 0.0
      %3915 = vmatprep.subr.mxu0 0.0
      %3916 = vmatpush1.msra.mxu0 0.0
      %3917 = vmatprep.subr.mxu0 0.0
      %3918 = vmatpush1.msra.mxu0 0.0
      %3919 = vmatprep.subr.mxu0 0.0
      %3920 = vmatpush1.msra.mxu0 0.0
      %3921 = vmatprep.subr.mxu0 0.0
      %3922 = vmatpush1.msra.mxu0 0.0
      %3923 = vmatprep.subr.mxu0 0.0
      %3924 = vmatpush1.msra.mxu0 0.0
      %3925 = vmatprep.subr.mxu0 0.0
      %3926 = vmatpush1.msra.mxu0 0.0
      %3927 = vmatprep.subr.mxu0 0.0
      %3928 = vmatpush1.msra.mxu0 0.0
      %3929 = vmatprep.subr.mxu0 0.0
      %3930 = vmatpush1.msra.mxu0 0.0
      %3931 = vmatprep.subr.mxu0 0.0
      %3932 = vmatpush1.msra.mxu0 0.0
      %3933 = vmatprep.subr.mxu0 0.0
      %3934 = vmatpush1.msra.mxu0 0.0
      %3935 = vmatprep.subr.mxu0 0.0
      %3936 = vmatpush1.msra.mxu0 0.0
      %3937 = vmatprep.subr.mxu0 0.0
      %3938 = vmatpush1.msra.mxu0 0.0
      %3939 = vmatprep.subr.mxu0 0.0
      %3940 = vmatpush1.msra.mxu0 0.0
      %3941 = vmatprep.subr.mxu0 0.0
      %3942 = vmatpush1.msra.mxu0 0.0
      %3943 = vmatprep.subr.mxu0 0.0
      %3944 = vmatpush1.msra.mxu0 0.0
      %3945 = vmatprep.subr.mxu0 0.0
      %3946 = vmatpush1.msra.mxu0 0.0
      %3947 = vmatprep.subr.mxu0 0.0
      %3948 = vmatpush1.msra.mxu0 0.0
      %3949 = vmatprep.subr.mxu0 0.0
      %3950 = vmatpush1.msra.mxu0 0.0
      %3951 = vmatprep.subr.mxu0 0.0
      %3952 = vmatpush1.msra.mxu0 0.0
      %3953 = vmatprep.subr.mxu0 0.0
      %3954 = vmatpush1.msra.mxu0 0.0
      %3955 = vmatprep.subr.mxu0 0.0
      %3956 = vmatpush1.msra.mxu0 0.0
      %3957 = vmatprep.subr.mxu0 0.0
      %3958 = vmatpush1.msra.mxu0 0.0
      %3959 = vmatprep.subr.mxu0 0.0
      %3960 = vmatpush1.msra.mxu0 0.0
      %3961 = vmatprep.subr.mxu0 0.0
      %3962 = vmatpush1.msra.mxu0 0.0
      %3963 = vmatprep.subr.mxu0 0.0
      %3964 = vmatpush1.msra.mxu0 0.0
      %3965 = vmatprep.subr.mxu0 0.0
      %3966 = vmatpush1.msra.mxu0 0.0
      %3967 = vmatprep.subr.mxu0 0.0
      %3968 = vmatpush1.msra.mxu0 0.0
      %3969 = vmatprep.subr.mxu0 0.0
      %3970 = vmatpush1.msra.mxu0 0.0
      %3971 = vmatprep.subr.mxu0 0.0
      %3972 = vmatpush1.msra.mxu0 0.0
      %3973 = vmatprep.mubr.f32.mxu0 0.0
      %3974 = vmatmul.mubr.f32.gmra.mrb[0].mxu0 %v3892
      %v3975 = vpop.f32.mrb[0].mxu0
      %v3976 = vadd.f32 %v3869, %v3975
      %v3977 = vpop.f32.mrb[0].mxu0
      %v3978 = vadd.f32 %v3871, %v3977
      %3979 = vmatprep.mubr.f32.mxu0 0.0
      %3980 = vmatmul.mubr.f32.gmra.mrb[0].mxu0 %v3895
      %v3981 = vpop.f32.mrb[0].mxu0
      %v3982 = vadd.f32 %v3875, %v3981
      %v3983 = vpop.f32.mrb[0].mxu0
      %v3984 = vadd.f32 %v3877, %v3983
      %3985 = vmatprep.mubr.f32.mxu0 0.0
      %3986 = vmatmul.mubr.f32.gmra.mrb[0].mxu0 %v3898
      %v3987 = vpop.f32.mrb[0].mxu0
      %v3988 = vadd.f32 %v3881, %v3987
      %v3989 = vpop.f32.mrb[0].mxu0
      %v3990 = vadd.f32 %v3883, %v3989
      %3991 = vmatprep.mubr.f32.mxu0 0.0
      %3992 = vmatmul.mubr.f32.gmra.mrb[0].mxu0 %v3901
      %v3993 = vpop.f32.mrb[0].mxu0
      %v3994 = vadd.f32 %v3887, %v3993
      %v3995 = vpop.f32.mrb[0].mxu0
      %v3996 = vadd.f32 %v3889, %v3995
      %3997 = vdwg.mxu0
      %vm3998 = vmand %vm3456, %vm2419
      %vm3999 = vmand %vm3457, %vm2420
      %v4000 = vsel %vm3998, 1, 0
      %v4001 = vsel %vm3999, 1, 0
      %vm4002 = vcmp.eq.s32.totalorder %v4000, 1
      %vm4003 = vcmp.eq.s32.totalorder %v4001, 1
      %v4004 = vsel %vm4002, %v3976, 0.0
      %v4005 = vsel %vm4003, %v3978, 0.0
      %v4006 = vsel %vm4002, %v3982, 0.0
      %v4007 = vsel %vm4003, %v3984, 0.0
      %v4008 = vsel %vm4002, %v3988, 0.0
      %v4009 = vsel %vm4003, %v3990, 0.0
      %v4010 = vsel %vm4002, %v3994, 0.0
      %v4011 = vsel %vm4003, %v3996, 0.0
      %v4012 = vadd.f32 %v3741, %v4004
      %v4013 = vadd.f32 %v3742, %v4005
      %v4014 = vadd.f32 %v3743, %v4006
      %v4015 = vadd.f32 %v3744, %v4007
      %v4016 = vadd.f32 %v3745, %v4008
      %v4017 = vadd.f32 %v3746, %v4009
      %v4018 = vadd.f32 %v3747, %v4010
      %v4019 = vadd.f32 %v3748, %v4011
      %4020 = vrot.lane.b32.xlu0 %v4012, 17
      %v4021 = vpop.permute.xlu0 %4020
      %4022 = vrot.lane.b32.xlu0 %v4014, 17
      %v4023 = vpop.permute.xlu0 %4022
      %4024 = vrot.lane.b32.xlu0 %v4016, 17
      %v4025 = vpop.permute.xlu0 %4024
      %4026 = vrot.lane.b32.xlu0 %v4018, 17
      %v4027 = vpop.permute.xlu0 %4026
      %4028 = vrot.lane.b32.xlu0 %v4013, 17
      %v4029 = vpop.permute.xlu0 %4028
      %4030 = vrot.lane.b32.xlu0 %v4015, 17
      %v4031 = vpop.permute.xlu0 %4030
      %4032 = vrot.lane.b32.xlu0 %v4017, 17
      %v4033 = vpop.permute.xlu0 %4032
      %4034 = vrot.lane.b32.xlu0 %v4019, 17
      %v4035 = vpop.permute.xlu0 %4034
      %v4036 = vsel %vm1637, %v4021, %v4029
      %v4037 = vsel %vm1637, %v4023, %v4031
      %v4038 = vsel %vm1637, %v4025, %v4033
      %v4039 = vsel %vm1637, %v4027, %v4035
      %v4040 = vsel %vm1637, %v4029, %v4021
      %v4041 = vsel %vm1637, %v4031, %v4023
      %v4042 = vsel %vm1637, %v4033, %v4025
      %v4043 = vsel %vm1637, %v4035, %v4027
      %v4044 = vld [vmem:[%s7] sm:$0xff]
      %v4045 = vld [vmem:[%s7 + $0x8] sm:$0xff]
      %v4046 = vld [vmem:[%s7 + $0x10] sm:$0xff]
      %v4047 = vld [vmem:[%s7 + $0x18] sm:$0xff]
      %v4049 = vsel %vm1672, %v4044, 0
      %v4052 = vsel %vm1672, %v4045, 0
      %v4055 = vsel %vm1672, %v4046, 0
      %v4058 = vsel %vm1672, %v4047, 0
      %4060 = vmatprep.subr.mxu0 %v4036
      %4061 = vmatpush1.msra.mxu0 %v4040
      %4062 = vmatprep.subr.mxu0 %v4037
      %4063 = vmatpush1.msra.mxu0 %v4041
      %4064 = vmatprep.subr.mxu0 %v4038
      %4065 = vmatpush1.msra.mxu0 %v4042
      %4066 = vmatprep.subr.mxu0 %v4039
      %4067 = vmatpush1.msra.mxu0 %v4043
      %4068 = vmatprep.subr.mxu0 0.0
      %4069 = vmatpush1.msra.mxu0 0.0
      %4070 = vmatprep.subr.mxu0 0.0
      %4071 = vmatpush1.msra.mxu0 0.0
      %4072 = vmatprep.subr.mxu0 0.0
      %4073 = vmatpush1.msra.mxu0 0.0
      %4074 = vmatprep.subr.mxu0 0.0
      %4075 = vmatpush1.msra.mxu0 0.0
      %4076 = vmatprep.subr.mxu0 0.0
      %4077 = vmatpush1.msra.mxu0 0.0
      %4078 = vmatprep.subr.mxu0 0.0
      %4079 = vmatpush1.msra.mxu0 0.0
      %4080 = vmatprep.subr.mxu0 0.0
      %4081 = vmatpush1.msra.mxu0 0.0
      %4082 = vmatprep.subr.mxu0 0.0
      %4083 = vmatpush1.msra.mxu0 0.0
      %4084 = vmatprep.subr.mxu0 0.0
      %4085 = vmatpush1.msra.mxu0 0.0
      %4086 = vmatprep.subr.mxu0 0.0
      %4087 = vmatpush1.msra.mxu0 0.0
      %4088 = vmatprep.subr.mxu0 0.0
      %4089 = vmatpush1.msra.mxu0 0.0
      %4090 = vmatprep.subr.mxu0 0.0
      %4091 = vmatpush1.msra.mxu0 0.0
      %4092 = vmatprep.subr.mxu0 0.0
      %4093 = vmatpush1.msra.mxu0 0.0
      %4094 = vmatprep.subr.mxu0 0.0
      %4095 = vmatpush1.msra.mxu0 0.0
      %4096 = vmatprep.subr.mxu0 0.0
      %4097 = vmatpush1.msra.mxu0 0.0
      %4098 = vmatprep.subr.mxu0 0.0
      %4099 = vmatpush1.msra.mxu0 0.0
      %4100 = vmatprep.subr.mxu0 0.0
      %4101 = vmatpush1.msra.mxu0 0.0
      %4102 = vmatprep.subr.mxu0 0.0
      %4103 = vmatpush1.msra.mxu0 0.0
      %4104 = vmatprep.subr.mxu0 0.0
      %4105 = vmatpush1.msra.mxu0 0.0
      %4106 = vmatprep.subr.mxu0 0.0
      %4107 = vmatpush1.msra.mxu0 0.0
      %4108 = vmatprep.subr.mxu0 0.0
      %4109 = vmatpush1.msra.mxu0 0.0
      %4110 = vmatprep.subr.mxu0 0.0
      %4111 = vmatpush1.msra.mxu0 0.0
      %4112 = vmatprep.subr.mxu0 0.0
      %4113 = vmatpush1.msra.mxu0 0.0
      %4114 = vmatprep.subr.mxu0 0.0
      %4115 = vmatpush1.msra.mxu0 0.0
      %4116 = vmatprep.subr.mxu0 0.0
      %4117 = vmatpush1.msra.mxu0 0.0
      %4118 = vmatprep.subr.mxu0 0.0
      %4119 = vmatpush1.msra.mxu0 0.0
      %4120 = vmatprep.subr.mxu0 0.0
      %4121 = vmatpush1.msra.mxu0 0.0
      %4122 = vmatprep.subr.mxu0 0.0
      %4123 = vmatpush1.msra.mxu0 0.0
      %4124 = vmatprep.mubr.f32.mxu0 0.0
      %4125 = vmatmul.mubr.f32.gmra.mrb[0].mxu0 %v4049
      %v4126 = vpop.f32.mrb[0].mxu0
      %v4127 = vadd.f32 0.0, %v4126
      %v4128 = vpop.f32.mrb[0].mxu0
      %v4129 = vadd.f32 0.0, %v4128
      %4130 = vmatprep.mubr.f32.mxu0 0.0
      %4131 = vmatmul.mubr.f32.gmra.mrb[0].mxu0 %v4052
      %v4132 = vpop.f32.mrb[0].mxu0
      %v4133 = vadd.f32 0.0, %v4132
      %v4134 = vpop.f32.mrb[0].mxu0
      %v4135 = vadd.f32 0.0, %v4134
      %4136 = vmatprep.mubr.f32.mxu0 0.0
      %4137 = vmatmul.mubr.f32.gmra.mrb[0].mxu0 %v4055
      %v4138 = vpop.f32.mrb[0].mxu0
      %v4139 = vadd.f32 0.0, %v4138
      %v4140 = vpop.f32.mrb[0].mxu0
      %v4141 = vadd.f32 0.0, %v4140
      %4142 = vmatprep.mubr.f32.mxu0 0.0
      %4143 = vmatmul.mubr.f32.gmra.mrb[0].mxu0 %v4058
      %v4144 = vpop.f32.mrb[0].mxu0
      %v4145 = vadd.f32 0.0, %v4144
      %v4146 = vpop.f32.mrb[0].mxu0
      %v4147 = vadd.f32 0.0, %v4146
      %4148 = vdwg.mxu0
      %v4149 = vsel %vm1891, %v4127, 0.0
      %v4150 = vsel %vm1892, %v4129, 0.0
      %v4151 = vsel %vm1891, %v4133, 0.0
      %v4152 = vsel %vm1892, %v4135, 0.0
      %v4153 = vsel %vm1891, %v4139, 0.0
      %v4154 = vsel %vm1892, %v4141, 0.0
      %v4155 = vsel %vm1891, %v4145, 0.0
      %v4156 = vsel %vm1892, %v4147, 0.0
      %4157 = vrot.lane.b32.xlu0 %v4012, 16
      %v4158 = vpop.permute.xlu0 %4157
      %4159 = vrot.lane.b32.xlu0 %v4014, 16
      %v4160 = vpop.permute.xlu0 %4159
      %4161 = vrot.lane.b32.xlu0 %v4016, 16
      %v4162 = vpop.permute.xlu0 %4161
      %4163 = vrot.lane.b32.xlu0 %v4018, 16
      %v4164 = vpop.permute.xlu0 %4163
      %4165 = vrot.lane.b32.xlu0 %v4013, 16
      %v4166 = vpop.permute.xlu0 %4165
      %4167 = vrot.lane.b32.xlu0 %v4015, 16
      %v4168 = vpop.permute.xlu0 %4167
      %4169 = vrot.lane.b32.xlu0 %v4017, 16
      %v4170 = vpop.permute.xlu0 %4169
      %4171 = vrot.lane.b32.xlu0 %v4019, 16
      %v4172 = vpop.permute.xlu0 %4171
      %v4173 = vsel %vm1905, %v4158, %v4166
      %v4174 = vsel %vm1905, %v4160, %v4168
      %v4175 = vsel %vm1905, %v4162, %v4170
      %v4176 = vsel %vm1905, %v4164, %v4172
      %v4177 = vsel %vm1905, %v4166, %v4158
      %v4178 = vsel %vm1905, %v4168, %v4160
      %v4179 = vsel %vm1905, %v4170, %v4162
      %v4180 = vsel %vm1905, %v4172, %v4164
      %s4181 = scalar_lea.vmem %s7, 32
      %v4182 = vld [vmem:[%s4181] sm:$0xff]
      %v4183 = vld [vmem:[%s4181 + $0x8] sm:$0xff]
      %v4184 = vld [vmem:[%s4181 + $0x10] sm:$0xff]
      %v4185 = vld [vmem:[%s4181 + $0x18] sm:$0xff]
      %v4187 = vsel %vm1672, %v4182, 0
      %v4190 = vsel %vm1672, %v4183, 0
      %v4193 = vsel %vm1672, %v4184, 0
      %v4196 = vsel %vm1672, %v4185, 0
      %4198 = vmatprep.subr.mxu0 %v4173
      %4199 = vmatpush1.msra.mxu0 %v4177
      %4200 = vmatprep.subr.mxu0 %v4174
      %4201 = vmatpush1.msra.mxu0 %v4178
      %4202 = vmatprep.subr.mxu0 %v4175
      %4203 = vmatpush1.msra.mxu0 %v4179
      %4204 = vmatprep.subr.mxu0 %v4176
      %4205 = vmatpush1.msra.mxu0 %v4180
      %4206 = vmatprep.subr.mxu0 0.0
      %4207 = vmatpush1.msra.mxu0 0.0
      %4208 = vmatprep.subr.mxu0 0.0
      %4209 = vmatpush1.msra.mxu0 0.0
      %4210 = vmatprep.subr.mxu0 0.0
      %4211 = vmatpush1.msra.mxu0 0.0
      %4212 = vmatprep.subr.mxu0 0.0
      %4213 = vmatpush1.msra.mxu0 0.0
      %4214 = vmatprep.subr.mxu0 0.0
      %4215 = vmatpush1.msra.mxu0 0.0
      %4216 = vmatprep.subr.mxu0 0.0
      %4217 = vmatpush1.msra.mxu0 0.0
      %4218 = vmatprep.subr.mxu0 0.0
      %4219 = vmatpush1.msra.mxu0 0.0
      %4220 = vmatprep.subr.mxu0 0.0
      %4221 = vmatpush1.msra.mxu0 0.0
      %4222 = vmatprep.subr.mxu0 0.0
      %4223 = vmatpush1.msra.mxu0 0.0
      %4224 = vmatprep.subr.mxu0 0.0
      %4225 = vmatpush1.msra.mxu0 0.0
      %4226 = vmatprep.subr.mxu0 0.0
      %4227 = vmatpush1.msra.mxu0 0.0
      %4228 = vmatprep.subr.mxu0 0.0
      %4229 = vmatpush1.msra.mxu0 0.0
      %4230 = vmatprep.subr.mxu0 0.0
      %4231 = vmatpush1.msra.mxu0 0.0
      %4232 = vmatprep.subr.mxu0 0.0
      %4233 = vmatpush1.msra.mxu0 0.0
      %4234 = vmatprep.subr.mxu0 0.0
      %4235 = vmatpush1.msra.mxu0 0.0
      %4236 = vmatprep.subr.mxu0 0.0
      %4237 = vmatpush1.msra.mxu0 0.0
      %4238 = vmatprep.subr.mxu0 0.0
      %4239 = vmatpush1.msra.mxu0 0.0
      %4240 = vmatprep.subr.mxu0 0.0
      %4241 = vmatpush1.msra.mxu0 0.0
      %4242 = vmatprep.subr.mxu0 0.0
      %4243 = vmatpush1.msra.mxu0 0.0
      %4244 = vmatprep.subr.mxu0 0.0
      %4245 = vmatpush1.msra.mxu0 0.0
      %4246 = vmatprep.subr.mxu0 0.0
      %4247 = vmatpush1.msra.mxu0 0.0
      %4248 = vmatprep.subr.mxu0 0.0
      %4249 = vmatpush1.msra.mxu0 0.0
      %4250 = vmatprep.subr.mxu0 0.0
      %4251 = vmatpush1.msra.mxu0 0.0
      %4252 = vmatprep.subr.mxu0 0.0
      %4253 = vmatpush1.msra.mxu0 0.0
      %4254 = vmatprep.subr.mxu0 0.0
      %4255 = vmatpush1.msra.mxu0 0.0
      %4256 = vmatprep.subr.mxu0 0.0
      %4257 = vmatpush1.msra.mxu0 0.0
      %4258 = vmatprep.subr.mxu0 0.0
      %4259 = vmatpush1.msra.mxu0 0.0
      %4260 = vmatprep.subr.mxu0 0.0
      %4261 = vmatpush1.msra.mxu0 0.0
      %4262 = vmatprep.mubr.f32.mxu0 0.0
      %4263 = vmatmul.mubr.f32.gmra.mrb[0].mxu0 %v4187
      %v4264 = vpop.f32.mrb[0].mxu0
      %v4265 = vadd.f32 0.0, %v4264
      %v4266 = vpop.f32.mrb[0].mxu0
      %v4267 = vadd.f32 0.0, %v4266
      %4268 = vmatprep.mubr.f32.mxu0 0.0
      %4269 = vmatmul.mubr.f32.gmra.mrb[0].mxu0 %v4190
      %v4270 = vpop.f32.mrb[0].mxu0
      %v4271 = vadd.f32 0.0, %v4270
      %v4272 = vpop.f32.mrb[0].mxu0
      %v4273 = vadd.f32 0.0, %v4272
      %4274 = vmatprep.mubr.f32.mxu0 0.0
      %4275 = vmatmul.mubr.f32.gmra.mrb[0].mxu0 %v4193
      %v4276 = vpop.f32.mrb[0].mxu0
      %v4277 = vadd.f32 0.0, %v4276
      %v4278 = vpop.f32.mrb[0].mxu0
      %v4279 = vadd.f32 0.0, %v4278
      %4280 = vmatprep.mubr.f32.mxu0 0.0
      %4281 = vmatmul.mubr.f32.gmra.mrb[0].mxu0 %v4196
      %v4282 = vpop.f32.mrb[0].mxu0
      %v4283 = vadd.f32 0.0, %v4282
      %v4284 = vpop.f32.mrb[0].mxu0
      %v4285 = vadd.f32 0.0, %v4284
      %4286 = vdwg.mxu0
      %v4287 = vsel %vm2152, %v4265, 0.0
      %v4288 = vsel %vm2153, %v4267, 0.0
      %v4289 = vsel %vm2152, %v4271, 0.0
      %v4290 = vsel %vm2153, %v4273, 0.0
      %v4291 = vsel %vm2152, %v4277, 0.0
      %v4292 = vsel %vm2153, %v4279, 0.0
      %v4293 = vsel %vm2152, %v4283, 0.0
      %v4294 = vsel %vm2153, %v4285, 0.0
      %v4295 = vadd.f32 %v4149, %v4287
      %v4296 = vadd.f32 %v4150, %v4288
      %v4297 = vadd.f32 %v4151, %v4289
      %v4298 = vadd.f32 %v4152, %v4290
      %v4299 = vadd.f32 %v4153, %v4291
      %v4300 = vadd.f32 %v4154, %v4292
      %v4301 = vadd.f32 %v4155, %v4293
      %v4302 = vadd.f32 %v4156, %v4294
      %4303 = vrot.lane.b32.xlu0 %v4012, 15
      %v4304 = vpop.permute.xlu0 %4303
      %4305 = vrot.lane.b32.xlu0 %v4014, 15
      %v4306 = vpop.permute.xlu0 %4305
      %4307 = vrot.lane.b32.xlu0 %v4016, 15
      %v4308 = vpop.permute.xlu0 %4307
      %4309 = vrot.lane.b32.xlu0 %v4018, 15
      %v4310 = vpop.permute.xlu0 %4309
      %4311 = vrot.lane.b32.xlu0 %v4013, 15
      %v4312 = vpop.permute.xlu0 %4311
      %4313 = vrot.lane.b32.xlu0 %v4015, 15
      %v4314 = vpop.permute.xlu0 %4313
      %4315 = vrot.lane.b32.xlu0 %v4017, 15
      %v4316 = vpop.permute.xlu0 %4315
      %4317 = vrot.lane.b32.xlu0 %v4019, 15
      %v4318 = vpop.permute.xlu0 %4317
      %v4319 = vsel %vm2174, %v4304, %v4312
      %v4320 = vsel %vm2174, %v4306, %v4314
      %v4321 = vsel %vm2174, %v4308, %v4316
      %v4322 = vsel %vm2174, %v4310, %v4318
      %v4323 = vsel %vm2174, %v4312, %v4304
      %v4324 = vsel %vm2174, %v4314, %v4306
      %v4325 = vsel %vm2174, %v4316, %v4308
      %v4326 = vsel %vm2174, %v4318, %v4310
      %s4327 = scalar_lea.vmem %s7, 64
      %v4328 = vld [vmem:[%s4327] sm:$0xff]
      %v4329 = vld [vmem:[%s4327 + $0x8] sm:$0xff]
      %v4330 = vld [vmem:[%s4327 + $0x10] sm:$0xff]
      %v4331 = vld [vmem:[%s4327 + $0x18] sm:$0xff]
      %v4333 = vsel %vm1672, %v4328, 0
      %v4336 = vsel %vm1672, %v4329, 0
      %v4339 = vsel %vm1672, %v4330, 0
      %v4342 = vsel %vm1672, %v4331, 0
      %4344 = vmatprep.subr.mxu0 %v4319
      %4345 = vmatpush1.msra.mxu0 %v4323
      %4346 = vmatprep.subr.mxu0 %v4320
      %4347 = vmatpush1.msra.mxu0 %v4324
      %4348 = vmatprep.subr.mxu0 %v4321
      %4349 = vmatpush1.msra.mxu0 %v4325
      %4350 = vmatprep.subr.mxu0 %v4322
      %4351 = vmatpush1.msra.mxu0 %v4326
      %4352 = vmatprep.subr.mxu0 0.0
      %4353 = vmatpush1.msra.mxu0 0.0
      %4354 = vmatprep.subr.mxu0 0.0
      %4355 = vmatpush1.msra.mxu0 0.0
      %4356 = vmatprep.subr.mxu0 0.0
      %4357 = vmatpush1.msra.mxu0 0.0
      %4358 = vmatprep.subr.mxu0 0.0
      %4359 = vmatpush1.msra.mxu0 0.0
      %4360 = vmatprep.subr.mxu0 0.0
      %4361 = vmatpush1.msra.mxu0 0.0
      %4362 = vmatprep.subr.mxu0 0.0
      %4363 = vmatpush1.msra.mxu0 0.0
      %4364 = vmatprep.subr.mxu0 0.0
      %4365 = vmatpush1.msra.mxu0 0.0
      %4366 = vmatprep.subr.mxu0 0.0
      %4367 = vmatpush1.msra.mxu0 0.0
      %4368 = vmatprep.subr.mxu0 0.0
      %4369 = vmatpush1.msra.mxu0 0.0
      %4370 = vmatprep.subr.mxu0 0.0
      %4371 = vmatpush1.msra.mxu0 0.0
      %4372 = vmatprep.subr.mxu0 0.0
      %4373 = vmatpush1.msra.mxu0 0.0
      %4374 = vmatprep.subr.mxu0 0.0
      %4375 = vmatpush1.msra.mxu0 0.0
      %4376 = vmatprep.subr.mxu0 0.0
      %4377 = vmatpush1.msra.mxu0 0.0
      %4378 = vmatprep.subr.mxu0 0.0
      %4379 = vmatpush1.msra.mxu0 0.0
      %4380 = vmatprep.subr.mxu0 0.0
      %4381 = vmatpush1.msra.mxu0 0.0
      %4382 = vmatprep.subr.mxu0 0.0
      %4383 = vmatpush1.msra.mxu0 0.0
      %4384 = vmatprep.subr.mxu0 0.0
      %4385 = vmatpush1.msra.mxu0 0.0
      %4386 = vmatprep.subr.mxu0 0.0
      %4387 = vmatpush1.msra.mxu0 0.0
      %4388 = vmatprep.subr.mxu0 0.0
      %4389 = vmatpush1.msra.mxu0 0.0
      %4390 = vmatprep.subr.mxu0 0.0
      %4391 = vmatpush1.msra.mxu0 0.0
      %4392 = vmatprep.subr.mxu0 0.0
      %4393 = vmatpush1.msra.mxu0 0.0
      %4394 = vmatprep.subr.mxu0 0.0
      %4395 = vmatpush1.msra.mxu0 0.0
      %4396 = vmatprep.subr.mxu0 0.0
      %4397 = vmatpush1.msra.mxu0 0.0
      %4398 = vmatprep.subr.mxu0 0.0
      %4399 = vmatpush1.msra.mxu0 0.0
      %4400 = vmatprep.subr.mxu0 0.0
      %4401 = vmatpush1.msra.mxu0 0.0
      %4402 = vmatprep.subr.mxu0 0.0
      %4403 = vmatpush1.msra.mxu0 0.0
      %4404 = vmatprep.subr.mxu0 0.0
      %4405 = vmatpush1.msra.mxu0 0.0
      %4406 = vmatprep.subr.mxu0 0.0
      %4407 = vmatpush1.msra.mxu0 0.0
      %4408 = vmatprep.mubr.f32.mxu0 0.0
      %4409 = vmatmul.mubr.f32.gmra.mrb[0].mxu0 %v4333
      %v4410 = vpop.f32.mrb[0].mxu0
      %v4411 = vadd.f32 0.0, %v4410
      %v4412 = vpop.f32.mrb[0].mxu0
      %v4413 = vadd.f32 0.0, %v4412
      %4414 = vmatprep.mubr.f32.mxu0 0.0
      %4415 = vmatmul.mubr.f32.gmra.mrb[0].mxu0 %v4336
      %v4416 = vpop.f32.mrb[0].mxu0
      %v4417 = vadd.f32 0.0, %v4416
      %v4418 = vpop.f32.mrb[0].mxu0
      %v4419 = vadd.f32 0.0, %v4418
      %4420 = vmatprep.mubr.f32.mxu0 0.0
      %4421 = vmatmul.mubr.f32.gmra.mrb[0].mxu0 %v4339
      %v4422 = vpop.f32.mrb[0].mxu0
      %v4423 = vadd.f32 0.0, %v4422
      %v4424 = vpop.f32.mrb[0].mxu0
      %v4425 = vadd.f32 0.0, %v4424
      %4426 = vmatprep.mubr.f32.mxu0 0.0
      %4427 = vmatmul.mubr.f32.gmra.mrb[0].mxu0 %v4342
      %v4428 = vpop.f32.mrb[0].mxu0
      %v4429 = vadd.f32 0.0, %v4428
      %v4430 = vpop.f32.mrb[0].mxu0
      %v4431 = vadd.f32 0.0, %v4430
      %4432 = vdwg.mxu0
      %v4433 = vsel %vm2425, %v4411, 0.0
      %v4434 = vsel %vm2426, %v4413, 0.0
      %v4435 = vsel %vm2425, %v4417, 0.0
      %v4436 = vsel %vm2426, %v4419, 0.0
      %v4437 = vsel %vm2425, %v4423, 0.0
      %v4438 = vsel %vm2426, %v4425, 0.0
      %v4439 = vsel %vm2425, %v4429, 0.0
      %v4440 = vsel %vm2426, %v4431, 0.0
      %v4441 = vadd.f32 %v4295, %v4433
      %v4442 = vadd.f32 %v4296, %v4434
      %v4443 = vadd.f32 %v4297, %v4435
      %v4444 = vadd.f32 %v4298, %v4436
      %v4445 = vadd.f32 %v4299, %v4437
      %v4446 = vadd.f32 %v4300, %v4438
      %v4447 = vadd.f32 %v4301, %v4439
      %v4448 = vadd.f32 %v4302, %v4440
      %4449 = vrot.lane.b32.xlu0 %v4012, 1
      %v4450 = vpop.permute.xlu0 %4449
      %4451 = vrot.lane.b32.xlu0 %v4014, 1
      %v4452 = vpop.permute.xlu0 %4451
      %4453 = vrot.lane.b32.xlu0 %v4016, 1
      %v4454 = vpop.permute.xlu0 %4453
      %4455 = vrot.lane.b32.xlu0 %v4018, 1
      %v4456 = vpop.permute.xlu0 %4455
      %4457 = vrot.lane.b32.xlu0 %v4013, 1
      %v4458 = vpop.permute.xlu0 %4457
      %4459 = vrot.lane.b32.xlu0 %v4015, 1
      %v4460 = vpop.permute.xlu0 %4459
      %4461 = vrot.lane.b32.xlu0 %v4017, 1
      %v4462 = vpop.permute.xlu0 %4461
      %4463 = vrot.lane.b32.xlu0 %v4019, 1
      %v4464 = vpop.permute.xlu0 %4463
      %v4465 = vsel %vm2447, %v4450, %v4458
      %v4466 = vsel %vm2447, %v4452, %v4460
      %v4467 = vsel %vm2447, %v4454, %v4462
      %v4468 = vsel %vm2447, %v4456, %v4464
      %v4469 = vsel %vm2447, %v4458, %v4450
      %v4470 = vsel %vm2447, %v4460, %v4452
      %v4471 = vsel %vm2447, %v4462, %v4454
      %v4472 = vsel %vm2447, %v4464, %v4456
      %s4473 = scalar_lea.vmem %s7, 96
      %v4474 = vld [vmem:[%s4473] sm:$0xff]
      %v4475 = vld [vmem:[%s4473 + $0x8] sm:$0xff]
      %v4476 = vld [vmem:[%s4473 + $0x10] sm:$0xff]
      %v4477 = vld [vmem:[%s4473 + $0x18] sm:$0xff]
      %v4479 = vsel %vm1672, %v4474, 0
      %v4482 = vsel %vm1672, %v4475, 0
      %v4485 = vsel %vm1672, %v4476, 0
      %v4488 = vsel %vm1672, %v4477, 0
      %4490 = vmatprep.subr.mxu0 %v4465
      %4491 = vmatpush1.msra.mxu0 %v4469
      %4492 = vmatprep.subr.mxu0 %v4466
      %4493 = vmatpush1.msra.mxu0 %v4470
      %4494 = vmatprep.subr.mxu0 %v4467
      %4495 = vmatpush1.msra.mxu0 %v4471
      %4496 = vmatprep.subr.mxu0 %v4468
      %4497 = vmatpush1.msra.mxu0 %v4472
      %4498 = vmatprep.subr.mxu0 0.0
      %4499 = vmatpush1.msra.mxu0 0.0
      %4500 = vmatprep.subr.mxu0 0.0
      %4501 = vmatpush1.msra.mxu0 0.0
      %4502 = vmatprep.subr.mxu0 0.0
      %4503 = vmatpush1.msra.mxu0 0.0
      %4504 = vmatprep.subr.mxu0 0.0
      %4505 = vmatpush1.msra.mxu0 0.0
      %4506 = vmatprep.subr.mxu0 0.0
      %4507 = vmatpush1.msra.mxu0 0.0
      %4508 = vmatprep.subr.mxu0 0.0
      %4509 = vmatpush1.msra.mxu0 0.0
      %4510 = vmatprep.subr.mxu0 0.0
      %4511 = vmatpush1.msra.mxu0 0.0
      %4512 = vmatprep.subr.mxu0 0.0
      %4513 = vmatpush1.msra.mxu0 0.0
      %4514 = vmatprep.subr.mxu0 0.0
      %4515 = vmatpush1.msra.mxu0 0.0
      %4516 = vmatprep.subr.mxu0 0.0
      %4517 = vmatpush1.msra.mxu0 0.0
      %4518 = vmatprep.subr.mxu0 0.0
      %4519 = vmatpush1.msra.mxu0 0.0
      %4520 = vmatprep.subr.mxu0 0.0
      %4521 = vmatpush1.msra.mxu0 0.0
      %4522 = vmatprep.subr.mxu0 0.0
      %4523 = vmatpush1.msra.mxu0 0.0
      %4524 = vmatprep.subr.mxu0 0.0
      %4525 = vmatpush1.msra.mxu0 0.0
      %4526 = vmatprep.subr.mxu0 0.0
      %4527 = vmatpush1.msra.mxu0 0.0
      %4528 = vmatprep.subr.mxu0 0.0
      %4529 = vmatpush1.msra.mxu0 0.0
      %4530 = vmatprep.subr.mxu0 0.0
      %4531 = vmatpush1.msra.mxu0 0.0
      %4532 = vmatprep.subr.mxu0 0.0
      %4533 = vmatpush1.msra.mxu0 0.0
      %4534 = vmatprep.subr.mxu0 0.0
      %4535 = vmatpush1.msra.mxu0 0.0
      %4536 = vmatprep.subr.mxu0 0.0
      %4537 = vmatpush1.msra.mxu0 0.0
      %4538 = vmatprep.subr.mxu0 0.0
      %4539 = vmatpush1.msra.mxu0 0.0
      %4540 = vmatprep.subr.mxu0 0.0
      %4541 = vmatpush1.msra.mxu0 0.0
      %4542 = vmatprep.subr.mxu0 0.0
      %4543 = vmatpush1.msra.mxu0 0.0
      %4544 = vmatprep.subr.mxu0 0.0
      %4545 = vmatpush1.msra.mxu0 0.0
      %4546 = vmatprep.subr.mxu0 0.0
      %4547 = vmatpush1.msra.mxu0 0.0
      %4548 = vmatprep.subr.mxu0 0.0
      %4549 = vmatpush1.msra.mxu0 0.0
      %4550 = vmatprep.subr.mxu0 0.0
      %4551 = vmatpush1.msra.mxu0 0.0
      %4552 = vmatprep.subr.mxu0 0.0
      %4553 = vmatpush1.msra.mxu0 0.0
      %4554 = vmatprep.mubr.f32.mxu0 0.0
      %4555 = vmatmul.mubr.f32.gmra.mrb[0].mxu0 %v4479
      %v4556 = vpop.f32.mrb[0].mxu0
      %v4557 = vadd.f32 0.0, %v4556
      %v4558 = vpop.f32.mrb[0].mxu0
      %v4559 = vadd.f32 0.0, %v4558
      %4560 = vmatprep.mubr.f32.mxu0 0.0
      %4561 = vmatmul.mubr.f32.gmra.mrb[0].mxu0 %v4482
      %v4562 = vpop.f32.mrb[0].mxu0
      %v4563 = vadd.f32 0.0, %v4562
      %v4564 = vpop.f32.mrb[0].mxu0
      %v4565 = vadd.f32 0.0, %v4564
      %4566 = vmatprep.mubr.f32.mxu0 0.0
      %4567 = vmatmul.mubr.f32.gmra.mrb[0].mxu0 %v4485
      %v4568 = vpop.f32.mrb[0].mxu0
      %v4569 = vadd.f32 0.0, %v4568
      %v4570 = vpop.f32.mrb[0].mxu0
      %v4571 = vadd.f32 0.0, %v4570
      %4572 = vmatprep.mubr.f32.mxu0 0.0
      %4573 = vmatmul.mubr.f32.gmra.mrb[0].mxu0 %v4488
      %v4574 = vpop.f32.mrb[0].mxu0
      %v4575 = vadd.f32 0.0, %v4574
      %v4576 = vpop.f32.mrb[0].mxu0
      %v4577 = vadd.f32 0.0, %v4576
      %4578 = vdwg.mxu0
      %v4579 = vsel %vm2694, %v4557, 0.0
      %v4580 = vsel %vm2695, %v4559, 0.0
      %v4581 = vsel %vm2694, %v4563, 0.0
      %v4582 = vsel %vm2695, %v4565, 0.0
      %v4583 = vsel %vm2694, %v4569, 0.0
      %v4584 = vsel %vm2695, %v4571, 0.0
      %v4585 = vsel %vm2694, %v4575, 0.0
      %v4586 = vsel %vm2695, %v4577, 0.0
      %v4587 = vadd.f32 %v4441, %v4579
      %v4588 = vadd.f32 %v4442, %v4580
      %v4589 = vadd.f32 %v4443, %v4581
      %v4590 = vadd.f32 %v4444, %v4582
      %v4591 = vadd.f32 %v4445, %v4583
      %v4592 = vadd.f32 %v4446, %v4584
      %v4593 = vadd.f32 %v4447, %v4585
      %v4594 = vadd.f32 %v4448, %v4586
      %s4595 = scalar_lea.vmem %s7, 128
      %v4596 = vld [vmem:[%s4595] sm:$0xff]
      %v4597 = vld [vmem:[%s4595 + $0x8] sm:$0xff]
      %v4598 = vld [vmem:[%s4595 + $0x10] sm:$0xff]
      %v4599 = vld [vmem:[%s4595 + $0x18] sm:$0xff]
      %v4601 = vsel %vm1672, %v4596, 0
      %v4604 = vsel %vm1672, %v4597, 0
      %v4607 = vsel %vm1672, %v4598, 0
      %v4610 = vsel %vm1672, %v4599, 0
      %4612 = vmatprep.subr.mxu0 %v4013
      %4613 = vmatpush1.msra.mxu0 %v4012
      %4614 = vmatprep.subr.mxu0 %v4015
      %4615 = vmatpush1.msra.mxu0 %v4014
      %4616 = vmatprep.subr.mxu0 %v4017
      %4617 = vmatpush1.msra.mxu0 %v4016
      %4618 = vmatprep.subr.mxu0 %v4019
      %4619 = vmatpush1.msra.mxu0 %v4018
      %4620 = vmatprep.subr.mxu0 0.0
      %4621 = vmatpush1.msra.mxu0 0.0
      %4622 = vmatprep.subr.mxu0 0.0
      %4623 = vmatpush1.msra.mxu0 0.0
      %4624 = vmatprep.subr.mxu0 0.0
      %4625 = vmatpush1.msra.mxu0 0.0
      %4626 = vmatprep.subr.mxu0 0.0
      %4627 = vmatpush1.msra.mxu0 0.0
      %4628 = vmatprep.subr.mxu0 0.0
      %4629 = vmatpush1.msra.mxu0 0.0
      %4630 = vmatprep.subr.mxu0 0.0
      %4631 = vmatpush1.msra.mxu0 0.0
      %4632 = vmatprep.subr.mxu0 0.0
      %4633 = vmatpush1.msra.mxu0 0.0
      %4634 = vmatprep.subr.mxu0 0.0
      %4635 = vmatpush1.msra.mxu0 0.0
      %4636 = vmatprep.subr.mxu0 0.0
      %4637 = vmatpush1.msra.mxu0 0.0
      %4638 = vmatprep.subr.mxu0 0.0
      %4639 = vmatpush1.msra.mxu0 0.0
      %4640 = vmatprep.subr.mxu0 0.0
      %4641 = vmatpush1.msra.mxu0 0.0
      %4642 = vmatprep.subr.mxu0 0.0
      %4643 = vmatpush1.msra.mxu0 0.0
      %4644 = vmatprep.subr.mxu0 0.0
      %4645 = vmatpush1.msra.mxu0 0.0
      %4646 = vmatprep.subr.mxu0 0.0
      %4647 = vmatpush1.msra.mxu0 0.0
      %4648 = vmatprep.subr.mxu0 0.0
      %4649 = vmatpush1.msra.mxu0 0.0
      %4650 = vmatprep.subr.mxu0 0.0
      %4651 = vmatpush1.msra.mxu0 0.0
      %4652 = vmatprep.subr.mxu0 0.0
      %4653 = vmatpush1.msra.mxu0 0.0
      %4654 = vmatprep.subr.mxu0 0.0
      %4655 = vmatpush1.msra.mxu0 0.0
      %4656 = vmatprep.subr.mxu0 0.0
      %4657 = vmatpush1.msra.mxu0 0.0
      %4658 = vmatprep.subr.mxu0 0.0
      %4659 = vmatpush1.msra.mxu0 0.0
      %4660 = vmatprep.subr.mxu0 0.0
      %4661 = vmatpush1.msra.mxu0 0.0
      %4662 = vmatprep.subr.mxu0 0.0
      %4663 = vmatpush1.msra.mxu0 0.0
      %4664 = vmatprep.subr.mxu0 0.0
      %4665 = vmatpush1.msra.mxu0 0.0
      %4666 = vmatprep.subr.mxu0 0.0
      %4667 = vmatpush1.msra.mxu0 0.0
      %4668 = vmatprep.subr.mxu0 0.0
      %4669 = vmatpush1.msra.mxu0 0.0
      %4670 = vmatprep.subr.mxu0 0.0
      %4671 = vmatpush1.msra.mxu0 0.0
      %4672 = vmatprep.subr.mxu0 0.0
      %4673 = vmatpush1.msra.mxu0 0.0
      %4674 = vmatprep.subr.mxu0 0.0
      %4675 = vmatpush1.msra.mxu0 0.0
      %4676 = vmatprep.mubr.f32.mxu0 0.0
      %4677 = vmatmul.mubr.f32.gmra.mrb[0].mxu0 %v4601
      %v4678 = vpop.f32.mrb[0].mxu0
      %v4679 = vadd.f32 0.0, %v4678
      %v4680 = vpop.f32.mrb[0].mxu0
      %v4681 = vadd.f32 0.0, %v4680
      %4682 = vmatprep.mubr.f32.mxu0 0.0
      %4683 = vmatmul.mubr.f32.gmra.mrb[0].mxu0 %v4604
      %v4684 = vpop.f32.mrb[0].mxu0
      %v4685 = vadd.f32 0.0, %v4684
      %v4686 = vpop.f32.mrb[0].mxu0
      %v4687 = vadd.f32 0.0, %v4686
      %4688 = vmatprep.mubr.f32.mxu0 0.0
      %4689 = vmatmul.mubr.f32.gmra.mrb[0].mxu0 %v4607
      %v4690 = vpop.f32.mrb[0].mxu0
      %v4691 = vadd.f32 0.0, %v4690
      %v4692 = vpop.f32.mrb[0].mxu0
      %v4693 = vadd.f32 0.0, %v4692
      %4694 = vmatprep.mubr.f32.mxu0 0.0
      %4695 = vmatmul.mubr.f32.gmra.mrb[0].mxu0 %v4610
      %v4696 = vpop.f32.mrb[0].mxu0
      %v4697 = vadd.f32 0.0, %v4696
      %v4698 = vpop.f32.mrb[0].mxu0
      %v4699 = vadd.f32 0.0, %v4698
      %4700 = vdwg.mxu0
      %v4701 = vadd.f32 %v4587, %v4679
      %v4702 = vadd.f32 %v4588, %v4681
      %v4703 = vadd.f32 %v4589, %v4685
      %v4704 = vadd.f32 %v4590, %v4687
      %v4705 = vadd.f32 %v4591, %v4691
      %v4706 = vadd.f32 %v4592, %v4693
      %v4707 = vadd.f32 %v4593, %v4697
      %v4708 = vadd.f32 %v4594, %v4699
      %4709 = vrot.lane.b32.xlu0 %v4012, 127
      %v4710 = vpop.permute.xlu0 %4709
      %4711 = vrot.lane.b32.xlu0 %v4014, 127
      %v4712 = vpop.permute.xlu0 %4711
      %4713 = vrot.lane.b32.xlu0 %v4016, 127
      %v4714 = vpop.permute.xlu0 %4713
      %4715 = vrot.lane.b32.xlu0 %v4018, 127
      %v4716 = vpop.permute.xlu0 %4715
      %4717 = vrot.lane.b32.xlu0 %v4013, 127
      %v4718 = vpop.permute.xlu0 %4717
      %4719 = vrot.lane.b32.xlu0 %v4015, 127
      %v4720 = vpop.permute.xlu0 %4719
      %4721 = vrot.lane.b32.xlu0 %v4017, 127
      %v4722 = vpop.permute.xlu0 %4721
      %4723 = vrot.lane.b32.xlu0 %v4019, 127
      %v4724 = vpop.permute.xlu0 %4723
      %v4725 = vsel %vm2942, %v4710, %v4718
      %v4726 = vsel %vm2942, %v4712, %v4720
      %v4727 = vsel %vm2942, %v4714, %v4722
      %v4728 = vsel %vm2942, %v4716, %v4724
      %v4729 = vsel %vm2942, %v4718, %v4710
      %v4730 = vsel %vm2942, %v4720, %v4712
      %v4731 = vsel %vm2942, %v4722, %v4714
      %v4732 = vsel %vm2942, %v4724, %v4716
      %s4733 = scalar_lea.vmem %s7, 160
      %v4734 = vld [vmem:[%s4733] sm:$0xff]
      %v4735 = vld [vmem:[%s4733 + $0x8] sm:$0xff]
      %v4736 = vld [vmem:[%s4733 + $0x10] sm:$0xff]
      %v4737 = vld [vmem:[%s4733 + $0x18] sm:$0xff]
      %v4739 = vsel %vm1672, %v4734, 0
      %v4742 = vsel %vm1672, %v4735, 0
      %v4745 = vsel %vm1672, %v4736, 0
      %v4748 = vsel %vm1672, %v4737, 0
      %4750 = vmatprep.subr.mxu0 %v4729
      %4751 = vmatpush1.msra.mxu0 %v4725
      %4752 = vmatprep.subr.mxu0 %v4730
      %4753 = vmatpush1.msra.mxu0 %v4726
      %4754 = vmatprep.subr.mxu0 %v4731
      %4755 = vmatpush1.msra.mxu0 %v4727
      %4756 = vmatprep.subr.mxu0 %v4732
      %4757 = vmatpush1.msra.mxu0 %v4728
      %4758 = vmatprep.subr.mxu0 0.0
      %4759 = vmatpush1.msra.mxu0 0.0
      %4760 = vmatprep.subr.mxu0 0.0
      %4761 = vmatpush1.msra.mxu0 0.0
      %4762 = vmatprep.subr.mxu0 0.0
      %4763 = vmatpush1.msra.mxu0 0.0
      %4764 = vmatprep.subr.mxu0 0.0
      %4765 = vmatpush1.msra.mxu0 0.0
      %4766 = vmatprep.subr.mxu0 0.0
      %4767 = vmatpush1.msra.mxu0 0.0
      %4768 = vmatprep.subr.mxu0 0.0
      %4769 = vmatpush1.msra.mxu0 0.0
      %4770 = vmatprep.subr.mxu0 0.0
      %4771 = vmatpush1.msra.mxu0 0.0
      %4772 = vmatprep.subr.mxu0 0.0
      %4773 = vmatpush1.msra.mxu0 0.0
      %4774 = vmatprep.subr.mxu0 0.0
      %4775 = vmatpush1.msra.mxu0 0.0
      %4776 = vmatprep.subr.mxu0 0.0
      %4777 = vmatpush1.msra.mxu0 0.0
      %4778 = vmatprep.subr.mxu0 0.0
      %4779 = vmatpush1.msra.mxu0 0.0
      %4780 = vmatprep.subr.mxu0 0.0
      %4781 = vmatpush1.msra.mxu0 0.0
      %4782 = vmatprep.subr.mxu0 0.0
      %4783 = vmatpush1.msra.mxu0 0.0
      %4784 = vmatprep.subr.mxu0 0.0
      %4785 = vmatpush1.msra.mxu0 0.0
      %4786 = vmatprep.subr.mxu0 0.0
      %4787 = vmatpush1.msra.mxu0 0.0
      %4788 = vmatprep.subr.mxu0 0.0
      %4789 = vmatpush1.msra.mxu0 0.0
      %4790 = vmatprep.subr.mxu0 0.0
      %4791 = vmatpush1.msra.mxu0 0.0
      %4792 = vmatprep.subr.mxu0 0.0
      %4793 = vmatpush1.msra.mxu0 0.0
      %4794 = vmatprep.subr.mxu0 0.0
      %4795 = vmatpush1.msra.mxu0 0.0
      %4796 = vmatprep.subr.mxu0 0.0
      %4797 = vmatpush1.msra.mxu0 0.0
      %4798 = vmatprep.subr.mxu0 0.0
      %4799 = vmatpush1.msra.mxu0 0.0
      %4800 = vmatprep.subr.mxu0 0.0
      %4801 = vmatpush1.msra.mxu0 0.0
      %4802 = vmatprep.subr.mxu0 0.0
      %4803 = vmatpush1.msra.mxu0 0.0
      %4804 = vmatprep.subr.mxu0 0.0
      %4805 = vmatpush1.msra.mxu0 0.0
      %4806 = vmatprep.subr.mxu0 0.0
      %4807 = vmatpush1.msra.mxu0 0.0
      %4808 = vmatprep.subr.mxu0 0.0
      %4809 = vmatpush1.msra.mxu0 0.0
      %4810 = vmatprep.subr.mxu0 0.0
      %4811 = vmatpush1.msra.mxu0 0.0
      %4812 = vmatprep.subr.mxu0 0.0
      %4813 = vmatpush1.msra.mxu0 0.0
      %4814 = vmatprep.mubr.f32.mxu0 0.0
      %4815 = vmatmul.mubr.f32.gmra.mrb[0].mxu0 %v4739
      %v4816 = vpop.f32.mrb[0].mxu0
      %v4817 = vadd.f32 0.0, %v4816
      %v4818 = vpop.f32.mrb[0].mxu0
      %v4819 = vadd.f32 0.0, %v4818
      %4820 = vmatprep.mubr.f32.mxu0 0.0
      %4821 = vmatmul.mubr.f32.gmra.mrb[0].mxu0 %v4742
      %v4822 = vpop.f32.mrb[0].mxu0
      %v4823 = vadd.f32 0.0, %v4822
      %v4824 = vpop.f32.mrb[0].mxu0
      %v4825 = vadd.f32 0.0, %v4824
      %4826 = vmatprep.mubr.f32.mxu0 0.0
      %4827 = vmatmul.mubr.f32.gmra.mrb[0].mxu0 %v4745
      %v4828 = vpop.f32.mrb[0].mxu0
      %v4829 = vadd.f32 0.0, %v4828
      %v4830 = vpop.f32.mrb[0].mxu0
      %v4831 = vadd.f32 0.0, %v4830
      %4832 = vmatprep.mubr.f32.mxu0 0.0
      %4833 = vmatmul.mubr.f32.gmra.mrb[0].mxu0 %v4748
      %v4834 = vpop.f32.mrb[0].mxu0
      %v4835 = vadd.f32 0.0, %v4834
      %v4836 = vpop.f32.mrb[0].mxu0
      %v4837 = vadd.f32 0.0, %v4836
      %4838 = vdwg.mxu0
      %v4839 = vsel %vm3189, %v4817, 0.0
      %v4840 = vsel %vm3190, %v4819, 0.0
      %v4841 = vsel %vm3189, %v4823, 0.0
      %v4842 = vsel %vm3190, %v4825, 0.0
      %v4843 = vsel %vm3189, %v4829, 0.0
      %v4844 = vsel %vm3190, %v4831, 0.0
      %v4845 = vsel %vm3189, %v4835, 0.0
      %v4846 = vsel %vm3190, %v4837, 0.0
      %v4847 = vadd.f32 %v4701, %v4839
      %v4848 = vadd.f32 %v4702, %v4840
      %v4849 = vadd.f32 %v4703, %v4841
      %v4850 = vadd.f32 %v4704, %v4842
      %v4851 = vadd.f32 %v4705, %v4843
      %v4852 = vadd.f32 %v4706, %v4844
      %v4853 = vadd.f32 %v4707, %v4845
      %v4854 = vadd.f32 %v4708, %v4846
      %4855 = vrot.lane.b32.xlu0 %v4012, 113
      %v4856 = vpop.permute.xlu0 %4855
      %4857 = vrot.lane.b32.xlu0 %v4014, 113
      %v4858 = vpop.permute.xlu0 %4857
      %4859 = vrot.lane.b32.xlu0 %v4016, 113
      %v4860 = vpop.permute.xlu0 %4859
      %4861 = vrot.lane.b32.xlu0 %v4018, 113
      %v4862 = vpop.permute.xlu0 %4861
      %4863 = vrot.lane.b32.xlu0 %v4013, 113
      %v4864 = vpop.permute.xlu0 %4863
      %4865 = vrot.lane.b32.xlu0 %v4015, 113
      %v4866 = vpop.permute.xlu0 %4865
      %4867 = vrot.lane.b32.xlu0 %v4017, 113
      %v4868 = vpop.permute.xlu0 %4867
      %4869 = vrot.lane.b32.xlu0 %v4019, 113
      %v4870 = vpop.permute.xlu0 %4869
      %v4871 = vsel %vm3211, %v4856, %v4864
      %v4872 = vsel %vm3211, %v4858, %v4866
      %v4873 = vsel %vm3211, %v4860, %v4868
      %v4874 = vsel %vm3211, %v4862, %v4870
      %v4875 = vsel %vm3211, %v4864, %v4856
      %v4876 = vsel %vm3211, %v4866, %v4858
      %v4877 = vsel %vm3211, %v4868, %v4860
      %v4878 = vsel %vm3211, %v4870, %v4862
      %s4879 = scalar_lea.vmem %s7, 192
      %v4880 = vld [vmem:[%s4879] sm:$0xff]
      %v4881 = vld [vmem:[%s4879 + $0x8] sm:$0xff]
      %v4882 = vld [vmem:[%s4879 + $0x10] sm:$0xff]
      %v4883 = vld [vmem:[%s4879 + $0x18] sm:$0xff]
      %v4885 = vsel %vm1672, %v4880, 0
      %v4888 = vsel %vm1672, %v4881, 0
      %v4891 = vsel %vm1672, %v4882, 0
      %v4894 = vsel %vm1672, %v4883, 0
      %4896 = vmatprep.subr.mxu0 %v4875
      %4897 = vmatpush1.msra.mxu0 %v4871
      %4898 = vmatprep.subr.mxu0 %v4876
      %4899 = vmatpush1.msra.mxu0 %v4872
      %4900 = vmatprep.subr.mxu0 %v4877
      %4901 = vmatpush1.msra.mxu0 %v4873
      %4902 = vmatprep.subr.mxu0 %v4878
      %4903 = vmatpush1.msra.mxu0 %v4874
      %4904 = vmatprep.subr.mxu0 0.0
      %4905 = vmatpush1.msra.mxu0 0.0
      %4906 = vmatprep.subr.mxu0 0.0
      %4907 = vmatpush1.msra.mxu0 0.0
      %4908 = vmatprep.subr.mxu0 0.0
      %4909 = vmatpush1.msra.mxu0 0.0
      %4910 = vmatprep.subr.mxu0 0.0
      %4911 = vmatpush1.msra.mxu0 0.0
      %4912 = vmatprep.subr.mxu0 0.0
      %4913 = vmatpush1.msra.mxu0 0.0
      %4914 = vmatprep.subr.mxu0 0.0
      %4915 = vmatpush1.msra.mxu0 0.0
      %4916 = vmatprep.subr.mxu0 0.0
      %4917 = vmatpush1.msra.mxu0 0.0
      %4918 = vmatprep.subr.mxu0 0.0
      %4919 = vmatpush1.msra.mxu0 0.0
      %4920 = vmatprep.subr.mxu0 0.0
      %4921 = vmatpush1.msra.mxu0 0.0
      %4922 = vmatprep.subr.mxu0 0.0
      %4923 = vmatpush1.msra.mxu0 0.0
      %4924 = vmatprep.subr.mxu0 0.0
      %4925 = vmatpush1.msra.mxu0 0.0
      %4926 = vmatprep.subr.mxu0 0.0
      %4927 = vmatpush1.msra.mxu0 0.0
      %4928 = vmatprep.subr.mxu0 0.0
      %4929 = vmatpush1.msra.mxu0 0.0
      %4930 = vmatprep.subr.mxu0 0.0
      %4931 = vmatpush1.msra.mxu0 0.0
      %4932 = vmatprep.subr.mxu0 0.0
      %4933 = vmatpush1.msra.mxu0 0.0
      %4934 = vmatprep.subr.mxu0 0.0
      %4935 = vmatpush1.msra.mxu0 0.0
      %4936 = vmatprep.subr.mxu0 0.0
      %4937 = vmatpush1.msra.mxu0 0.0
      %4938 = vmatprep.subr.mxu0 0.0
      %4939 = vmatpush1.msra.mxu0 0.0
      %4940 = vmatprep.subr.mxu0 0.0
      %4941 = vmatpush1.msra.mxu0 0.0
      %4942 = vmatprep.subr.mxu0 0.0
      %4943 = vmatpush1.msra.mxu0 0.0
      %4944 = vmatprep.subr.mxu0 0.0
      %4945 = vmatpush1.msra.mxu0 0.0
      %4946 = vmatprep.subr.mxu0 0.0
      %4947 = vmatpush1.msra.mxu0 0.0
      %4948 = vmatprep.subr.mxu0 0.0
      %4949 = vmatpush1.msra.mxu0 0.0
      %4950 = vmatprep.subr.mxu0 0.0
      %4951 = vmatpush1.msra.mxu0 0.0
      %4952 = vmatprep.subr.mxu0 0.0
      %4953 = vmatpush1.msra.mxu0 0.0
      %4954 = vmatprep.subr.mxu0 0.0
      %4955 = vmatpush1.msra.mxu0 0.0
      %4956 = vmatprep.subr.mxu0 0.0
      %4957 = vmatpush1.msra.mxu0 0.0
      %4958 = vmatprep.subr.mxu0 0.0
      %4959 = vmatpush1.msra.mxu0 0.0
      %4960 = vmatprep.mubr.f32.mxu0 0.0
      %4961 = vmatmul.mubr.f32.gmra.mrb[0].mxu0 %v4885
      %v4962 = vpop.f32.mrb[0].mxu0
      %v4963 = vadd.f32 0.0, %v4962
      %v4964 = vpop.f32.mrb[0].mxu0
      %v4965 = vadd.f32 0.0, %v4964
      %4966 = vmatprep.mubr.f32.mxu0 0.0
      %4967 = vmatmul.mubr.f32.gmra.mrb[0].mxu0 %v4888
      %v4968 = vpop.f32.mrb[0].mxu0
      %v4969 = vadd.f32 0.0, %v4968
      %v4970 = vpop.f32.mrb[0].mxu0
      %v4971 = vadd.f32 0.0, %v4970
      %4972 = vmatprep.mubr.f32.mxu0 0.0
      %4973 = vmatmul.mubr.f32.gmra.mrb[0].mxu0 %v4891
      %v4974 = vpop.f32.mrb[0].mxu0
      %v4975 = vadd.f32 0.0, %v4974
      %v4976 = vpop.f32.mrb[0].mxu0
      %v4977 = vadd.f32 0.0, %v4976
      %4978 = vmatprep.mubr.f32.mxu0 0.0
      %4979 = vmatmul.mubr.f32.gmra.mrb[0].mxu0 %v4894
      %v4980 = vpop.f32.mrb[0].mxu0
      %v4981 = vadd.f32 0.0, %v4980
      %v4982 = vpop.f32.mrb[0].mxu0
      %v4983 = vadd.f32 0.0, %v4982
      %4984 = vdwg.mxu0
      %v4985 = vsel %vm3462, %v4963, 0.0
      %v4986 = vsel %vm3463, %v4965, 0.0
      %v4987 = vsel %vm3462, %v4969, 0.0
      %v4988 = vsel %vm3463, %v4971, 0.0
      %v4989 = vsel %vm3462, %v4975, 0.0
      %v4990 = vsel %vm3463, %v4977, 0.0
      %v4991 = vsel %vm3462, %v4981, 0.0
      %v4992 = vsel %vm3463, %v4983, 0.0
      %v4993 = vadd.f32 %v4847, %v4985
      %v4994 = vadd.f32 %v4848, %v4986
      %v4995 = vadd.f32 %v4849, %v4987
      %v4996 = vadd.f32 %v4850, %v4988
      %v4997 = vadd.f32 %v4851, %v4989
      %v4998 = vadd.f32 %v4852, %v4990
      %v4999 = vadd.f32 %v4853, %v4991
      %v5000 = vadd.f32 %v4854, %v4992
      %5001 = vrot.lane.b32.xlu0 %v4012, 112
      %v5002 = vpop.permute.xlu0 %5001
      %5003 = vrot.lane.b32.xlu0 %v4014, 112
      %v5004 = vpop.permute.xlu0 %5003
      %5005 = vrot.lane.b32.xlu0 %v4016, 112
      %v5006 = vpop.permute.xlu0 %5005
      %5007 = vrot.lane.b32.xlu0 %v4018, 112
      %v5008 = vpop.permute.xlu0 %5007
      %5009 = vrot.lane.b32.xlu0 %v4013, 112
      %v5010 = vpop.permute.xlu0 %5009
      %5011 = vrot.lane.b32.xlu0 %v4015, 112
      %v5012 = vpop.permute.xlu0 %5011
      %5013 = vrot.lane.b32.xlu0 %v4017, 112
      %v5014 = vpop.permute.xlu0 %5013
      %5015 = vrot.lane.b32.xlu0 %v4019, 112
      %v5016 = vpop.permute.xlu0 %5015
      %v5017 = vsel %vm3484, %v5002, %v5010
      %v5018 = vsel %vm3484, %v5004, %v5012
      %v5019 = vsel %vm3484, %v5006, %v5014
      %v5020 = vsel %vm3484, %v5008, %v5016
      %v5021 = vsel %vm3484, %v5010, %v5002
      %v5022 = vsel %vm3484, %v5012, %v5004
      %v5023 = vsel %vm3484, %v5014, %v5006
      %v5024 = vsel %vm3484, %v5016, %v5008
      %s5025 = scalar_lea.vmem %s7, 224
      %v5026 = vld [vmem:[%s5025] sm:$0xff]
      %v5027 = vld [vmem:[%s5025 + $0x8] sm:$0xff]
      %v5028 = vld [vmem:[%s5025 + $0x10] sm:$0xff]
      %v5029 = vld [vmem:[%s5025 + $0x18] sm:$0xff]
      %v5031 = vsel %vm1672, %v5026, 0
      %v5034 = vsel %vm1672, %v5027, 0
      %v5037 = vsel %vm1672, %v5028, 0
      %v5040 = vsel %vm1672, %v5029, 0
      %5042 = vmatprep.subr.mxu0 %v5021
      %5043 = vmatpush1.msra.mxu0 %v5017
      %5044 = vmatprep.subr.mxu0 %v5022
      %5045 = vmatpush1.msra.mxu0 %v5018
      %5046 = vmatprep.subr.mxu0 %v5023
      %5047 = vmatpush1.msra.mxu0 %v5019
      %5048 = vmatprep.subr.mxu0 %v5024
      %5049 = vmatpush1.msra.mxu0 %v5020
      %5050 = vmatprep.subr.mxu0 0.0
      %5051 = vmatpush1.msra.mxu0 0.0
      %5052 = vmatprep.subr.mxu0 0.0
      %5053 = vmatpush1.msra.mxu0 0.0
      %5054 = vmatprep.subr.mxu0 0.0
      %5055 = vmatpush1.msra.mxu0 0.0
      %5056 = vmatprep.subr.mxu0 0.0
      %5057 = vmatpush1.msra.mxu0 0.0
      %5058 = vmatprep.subr.mxu0 0.0
      %5059 = vmatpush1.msra.mxu0 0.0
      %5060 = vmatprep.subr.mxu0 0.0
      %5061 = vmatpush1.msra.mxu0 0.0
      %5062 = vmatprep.subr.mxu0 0.0
      %5063 = vmatpush1.msra.mxu0 0.0
      %5064 = vmatprep.subr.mxu0 0.0
      %5065 = vmatpush1.msra.mxu0 0.0
      %5066 = vmatprep.subr.mxu0 0.0
      %5067 = vmatpush1.msra.mxu0 0.0
      %5068 = vmatprep.subr.mxu0 0.0
      %5069 = vmatpush1.msra.mxu0 0.0
      %5070 = vmatprep.subr.mxu0 0.0
      %5071 = vmatpush1.msra.mxu0 0.0
      %5072 = vmatprep.subr.mxu0 0.0
      %5073 = vmatpush1.msra.mxu0 0.0
      %5074 = vmatprep.subr.mxu0 0.0
      %5075 = vmatpush1.msra.mxu0 0.0
      %5076 = vmatprep.subr.mxu0 0.0
      %5077 = vmatpush1.msra.mxu0 0.0
      %5078 = vmatprep.subr.mxu0 0.0
      %5079 = vmatpush1.msra.mxu0 0.0
      %5080 = vmatprep.subr.mxu0 0.0
      %5081 = vmatpush1.msra.mxu0 0.0
      %5082 = vmatprep.subr.mxu0 0.0
      %5083 = vmatpush1.msra.mxu0 0.0
      %5084 = vmatprep.subr.mxu0 0.0
      %5085 = vmatpush1.msra.mxu0 0.0
      %5086 = vmatprep.subr.mxu0 0.0
      %5087 = vmatpush1.msra.mxu0 0.0
      %5088 = vmatprep.subr.mxu0 0.0
      %5089 = vmatpush1.msra.mxu0 0.0
      %5090 = vmatprep.subr.mxu0 0.0
      %5091 = vmatpush1.msra.mxu0 0.0
      %5092 = vmatprep.subr.mxu0 0.0
      %5093 = vmatpush1.msra.mxu0 0.0
      %5094 = vmatprep.subr.mxu0 0.0
      %5095 = vmatpush1.msra.mxu0 0.0
      %5096 = vmatprep.subr.mxu0 0.0
      %5097 = vmatpush1.msra.mxu0 0.0
      %5098 = vmatprep.subr.mxu0 0.0
      %5099 = vmatpush1.msra.mxu0 0.0
      %5100 = vmatprep.subr.mxu0 0.0
      %5101 = vmatpush1.msra.mxu0 0.0
      %5102 = vmatprep.subr.mxu0 0.0
      %5103 = vmatpush1.msra.mxu0 0.0
      %5104 = vmatprep.subr.mxu0 0.0
      %5105 = vmatpush1.msra.mxu0 0.0
      %5106 = vmatprep.mubr.f32.mxu0 0.0
      %5107 = vmatmul.mubr.f32.gmra.mrb[0].mxu0 %v5031
      %v5108 = vpop.f32.mrb[0].mxu0
      %v5109 = vadd.f32 0.0, %v5108
      %v5110 = vpop.f32.mrb[0].mxu0
      %v5111 = vadd.f32 0.0, %v5110
      %5112 = vmatprep.mubr.f32.mxu0 0.0
      %5113 = vmatmul.mubr.f32.gmra.mrb[0].mxu0 %v5034
      %v5114 = vpop.f32.mrb[0].mxu0
      %v5115 = vadd.f32 0.0, %v5114
      %v5116 = vpop.f32.mrb[0].mxu0
      %v5117 = vadd.f32 0.0, %v5116
      %5118 = vmatprep.mubr.f32.mxu0 0.0
      %5119 = vmatmul.mubr.f32.gmra.mrb[0].mxu0 %v5037
      %v5120 = vpop.f32.mrb[0].mxu0
      %v5121 = vadd.f32 0.0, %v5120
      %v5122 = vpop.f32.mrb[0].mxu0
      %v5123 = vadd.f32 0.0, %v5122
      %5124 = vmatprep.mubr.f32.mxu0 0.0
      %5125 = vmatmul.mubr.f32.gmra.mrb[0].mxu0 %v5040
      %v5126 = vpop.f32.mrb[0].mxu0
      %v5127 = vadd.f32 0.0, %v5126
      %v5128 = vpop.f32.mrb[0].mxu0
      %v5129 = vadd.f32 0.0, %v5128
      %5130 = vdwg.mxu0
      %v5131 = vsel %vm3731, %v5109, 0.0
      %v5132 = vsel %vm3732, %v5111, 0.0
      %v5133 = vsel %vm3731, %v5115, 0.0
      %v5134 = vsel %vm3732, %v5117, 0.0
      %v5135 = vsel %vm3731, %v5121, 0.0
      %v5136 = vsel %vm3732, %v5123, 0.0
      %v5137 = vsel %vm3731, %v5127, 0.0
      %v5138 = vsel %vm3732, %v5129, 0.0
      %v5139 = vadd.f32 %v4993, %v5131
      %v5140 = vadd.f32 %v4994, %v5132
      %v5141 = vadd.f32 %v4995, %v5133
      %v5142 = vadd.f32 %v4996, %v5134
      %v5143 = vadd.f32 %v4997, %v5135
      %v5144 = vadd.f32 %v4998, %v5136
      %v5145 = vadd.f32 %v4999, %v5137
      %v5146 = vadd.f32 %v5000, %v5138
      %5147 = vrot.lane.b32.xlu0 %v4012, 111
      %v5148 = vpop.permute.xlu0 %5147
      %5149 = vrot.lane.b32.xlu0 %v4014, 111
      %v5150 = vpop.permute.xlu0 %5149
      %5151 = vrot.lane.b32.xlu0 %v4016, 111
      %v5152 = vpop.permute.xlu0 %5151
      %5153 = vrot.lane.b32.xlu0 %v4018, 111
      %v5154 = vpop.permute.xlu0 %5153
      %5155 = vrot.lane.b32.xlu0 %v4013, 111
      %v5156 = vpop.permute.xlu0 %5155
      %5157 = vrot.lane.b32.xlu0 %v4015, 111
      %v5158 = vpop.permute.xlu0 %5157
      %5159 = vrot.lane.b32.xlu0 %v4017, 111
      %v5160 = vpop.permute.xlu0 %5159
      %5161 = vrot.lane.b32.xlu0 %v4019, 111
      %v5162 = vpop.permute.xlu0 %5161
      %v5163 = vsel %vm3753, %v5148, %v5156
      %v5164 = vsel %vm3753, %v5150, %v5158
      %v5165 = vsel %vm3753, %v5152, %v5160
      %v5166 = vsel %vm3753, %v5154, %v5162
      %v5167 = vsel %vm3753, %v5156, %v5148
      %v5168 = vsel %vm3753, %v5158, %v5150
      %v5169 = vsel %vm3753, %v5160, %v5152
      %v5170 = vsel %vm3753, %v5162, %v5154
      %s5171 = scalar_lea.vmem %s7, 256
      %v5172 = vld [vmem:[%s5171] sm:$0xff]
      %v5173 = vld [vmem:[%s5171 + $0x8] sm:$0xff]
      %v5174 = vld [vmem:[%s5171 + $0x10] sm:$0xff]
      %v5175 = vld [vmem:[%s5171 + $0x18] sm:$0xff]
      %v5177 = vsel %vm1672, %v5172, 0
      %v5180 = vsel %vm1672, %v5173, 0
      %v5183 = vsel %vm1672, %v5174, 0
      %v5186 = vsel %vm1672, %v5175, 0
      %5188 = vmatprep.subr.mxu0 %v5167
      %5189 = vmatpush1.msra.mxu0 %v5163
      %5190 = vmatprep.subr.mxu0 %v5168
      %5191 = vmatpush1.msra.mxu0 %v5164
      %5192 = vmatprep.subr.mxu0 %v5169
      %5193 = vmatpush1.msra.mxu0 %v5165
      %5194 = vmatprep.subr.mxu0 %v5170
      %5195 = vmatpush1.msra.mxu0 %v5166
      %5196 = vmatprep.subr.mxu0 0.0
      %5197 = vmatpush1.msra.mxu0 0.0
      %5198 = vmatprep.subr.mxu0 0.0
      %5199 = vmatpush1.msra.mxu0 0.0
      %5200 = vmatprep.subr.mxu0 0.0
      %5201 = vmatpush1.msra.mxu0 0.0
      %5202 = vmatprep.subr.mxu0 0.0
      %5203 = vmatpush1.msra.mxu0 0.0
      %5204 = vmatprep.subr.mxu0 0.0
      %5205 = vmatpush1.msra.mxu0 0.0
      %5206 = vmatprep.subr.mxu0 0.0
      %5207 = vmatpush1.msra.mxu0 0.0
      %5208 = vmatprep.subr.mxu0 0.0
      %5209 = vmatpush1.msra.mxu0 0.0
      %5210 = vmatprep.subr.mxu0 0.0
      %5211 = vmatpush1.msra.mxu0 0.0
      %5212 = vmatprep.subr.mxu0 0.0
      %5213 = vmatpush1.msra.mxu0 0.0
      %5214 = vmatprep.subr.mxu0 0.0
      %5215 = vmatpush1.msra.mxu0 0.0
      %5216 = vmatprep.subr.mxu0 0.0
      %5217 = vmatpush1.msra.mxu0 0.0
      %5218 = vmatprep.subr.mxu0 0.0
      %5219 = vmatpush1.msra.mxu0 0.0
      %5220 = vmatprep.subr.mxu0 0.0
      %5221 = vmatpush1.msra.mxu0 0.0
      %5222 = vmatprep.subr.mxu0 0.0
      %5223 = vmatpush1.msra.mxu0 0.0
      %5224 = vmatprep.subr.mxu0 0.0
      %5225 = vmatpush1.msra.mxu0 0.0
      %5226 = vmatprep.subr.mxu0 0.0
      %5227 = vmatpush1.msra.mxu0 0.0
      %5228 = vmatprep.subr.mxu0 0.0
      %5229 = vmatpush1.msra.mxu0 0.0
      %5230 = vmatprep.subr.mxu0 0.0
      %5231 = vmatpush1.msra.mxu0 0.0
      %5232 = vmatprep.subr.mxu0 0.0
      %5233 = vmatpush1.msra.mxu0 0.0
      %5234 = vmatprep.subr.mxu0 0.0
      %5235 = vmatpush1.msra.mxu0 0.0
      %5236 = vmatprep.subr.mxu0 0.0
      %5237 = vmatpush1.msra.mxu0 0.0
      %5238 = vmatprep.subr.mxu0 0.0
      %5239 = vmatpush1.msra.mxu0 0.0
      %5240 = vmatprep.subr.mxu0 0.0
      %5241 = vmatpush1.msra.mxu0 0.0
      %5242 = vmatprep.subr.mxu0 0.0
      %5243 = vmatpush1.msra.mxu0 0.0
      %5244 = vmatprep.subr.mxu0 0.0
      %5245 = vmatpush1.msra.mxu0 0.0
      %5246 = vmatprep.subr.mxu0 0.0
      %5247 = vmatpush1.msra.mxu0 0.0
      %5248 = vmatprep.subr.mxu0 0.0
      %5249 = vmatpush1.msra.mxu0 0.0
      %5250 = vmatprep.subr.mxu0 0.0
      %5251 = vmatpush1.msra.mxu0 0.0
      %5252 = vmatprep.mubr.f32.mxu0 0.0
      %5253 = vmatmul.mubr.f32.gmra.mrb[0].mxu0 %v5177
      %v5254 = vpop.f32.mrb[0].mxu0
      %v5255 = vadd.f32 0.0, %v5254
      %v5256 = vpop.f32.mrb[0].mxu0
      %v5257 = vadd.f32 0.0, %v5256
      %5258 = vmatprep.mubr.f32.mxu0 0.0
      %5259 = vmatmul.mubr.f32.gmra.mrb[0].mxu0 %v5180
      %v5260 = vpop.f32.mrb[0].mxu0
      %v5261 = vadd.f32 0.0, %v5260
      %v5262 = vpop.f32.mrb[0].mxu0
      %v5263 = vadd.f32 0.0, %v5262
      %5264 = vmatprep.mubr.f32.mxu0 0.0
      %5265 = vmatmul.mubr.f32.gmra.mrb[0].mxu0 %v5183
      %v5266 = vpop.f32.mrb[0].mxu0
      %v5267 = vadd.f32 0.0, %v5266
      %v5268 = vpop.f32.mrb[0].mxu0
      %v5269 = vadd.f32 0.0, %v5268
      %5270 = vmatprep.mubr.f32.mxu0 0.0
      %5271 = vmatmul.mubr.f32.gmra.mrb[0].mxu0 %v5186
      %v5272 = vpop.f32.mrb[0].mxu0
      %v5273 = vadd.f32 0.0, %v5272
      %v5274 = vpop.f32.mrb[0].mxu0
      %v5275 = vadd.f32 0.0, %v5274
      %5276 = vdwg.mxu0
      %v5277 = vsel %vm4002, %v5255, 0.0
      %v5278 = vsel %vm4003, %v5257, 0.0
      %v5279 = vsel %vm4002, %v5261, 0.0
      %v5280 = vsel %vm4003, %v5263, 0.0
      %v5281 = vsel %vm4002, %v5267, 0.0
      %v5282 = vsel %vm4003, %v5269, 0.0
      %v5283 = vsel %vm4002, %v5273, 0.0
      %v5284 = vsel %vm4003, %v5275, 0.0
      %v5285 = vadd.f32 %v5139, %v5277
      %v5286 = vadd.f32 %v5140, %v5278
      %v5287 = vadd.f32 %v5141, %v5279
      %v5288 = vadd.f32 %v5142, %v5280
      %v5289 = vadd.f32 %v5143, %v5281
      %v5290 = vadd.f32 %v5144, %v5282
      %v5291 = vadd.f32 %v5145, %v5283
      %v5292 = vadd.f32 %v5146, %v5284
      %v5293 = vld [vmem:[%s8] sm:$0xff]
      %v5294 = vld [vmem:[%s8 + $0x8] sm:$0xff]
      %v5295 = vld [vmem:[%s8 + $0x10] sm:$0xff]
      %v5296 = vld [vmem:[%s8 + $0x18] sm:$0xff]
      %5298 = vset.pattern.permute.xlu0 0
      %5299 = vperm.xlu0 %5298, %v5293
      %v5300 = vpop.permute.xlu0 %5299
      %5303 = vset.pattern.permute.xlu0 0
      %5304 = vperm.xlu0 %5303, %v5294
      %v5305 = vpop.permute.xlu0 %5304
      %5308 = vset.pattern.permute.xlu0 0
      %5309 = vperm.xlu0 %5308, %v5295
      %v5310 = vpop.permute.xlu0 %5309
      %5313 = vset.pattern.permute.xlu0 0
      %5314 = vperm.xlu0 %5313, %v5296
      %v5315 = vpop.permute.xlu0 %5314
      %v5317 = vadd.f32 %v5285, %v5300
      %v5318 = vadd.f32 %v5286, %v5300
      %v5319 = vadd.f32 %v5287, %v5305
      %v5320 = vadd.f32 %v5288, %v5305
      %v5321 = vadd.f32 %v5289, %v5310
      %v5322 = vadd.f32 %v5290, %v5310
      %v5323 = vadd.f32 %v5291, %v5315
      %v5324 = vadd.f32 %v5292, %v5315
      %v5325 = vmax.f32 %v5317, 0.0
      %v5326 = vmax.f32 %v5318, 0.0
      %v5327 = vmax.f32 %v5319, 0.0
      %v5328 = vmax.f32 %v5320, 0.0
      %v5329 = vmax.f32 %v5321, 0.0
      %v5330 = vmax.f32 %v5322, 0.0
      %v5331 = vmax.f32 %v5323, 0.0
      %v5332 = vmax.f32 %v5324, 0.0
      %5333 = vrot.lane.b32.xlu0 %v5325, 17
      %v5334 = vpop.permute.xlu0 %5333
      %5335 = vrot.lane.b32.xlu0 %v5327, 17
      %v5336 = vpop.permute.xlu0 %5335
      %5337 = vrot.lane.b32.xlu0 %v5329, 17
      %v5338 = vpop.permute.xlu0 %5337
      %5339 = vrot.lane.b32.xlu0 %v5331, 17
      %v5340 = vpop.permute.xlu0 %5339
      %5341 = vrot.lane.b32.xlu0 %v5326, 17
      %v5342 = vpop.permute.xlu0 %5341
      %5343 = vrot.lane.b32.xlu0 %v5328, 17
      %v5344 = vpop.permute.xlu0 %5343
      %5345 = vrot.lane.b32.xlu0 %v5330, 17
      %v5346 = vpop.permute.xlu0 %5345
      %5347 = vrot.lane.b32.xlu0 %v5332, 17
      %v5348 = vpop.permute.xlu0 %5347
      %v5349 = vsel %vm1637, %v5334, %v5342
      %v5350 = vsel %vm1637, %v5336, %v5344
      %v5351 = vsel %vm1637, %v5338, %v5346
      %v5352 = vsel %vm1637, %v5340, %v5348
      %v5353 = vsel %vm1637, %v5342, %v5334
      %v5354 = vsel %vm1637, %v5344, %v5336
      %v5355 = vsel %vm1637, %v5346, %v5338
      %v5356 = vsel %vm1637, %v5348, %v5340
      %v5357 = vld [vmem:[%s9] sm:$0xff]
      %v5358 = vld [vmem:[%s9 + $0x8] sm:$0xff]
      %v5359 = vld [vmem:[%s9 + $0x10] sm:$0xff]
      %v5360 = vld [vmem:[%s9 + $0x18] sm:$0xff]
      %v5362 = vsel %vm1672, %v5357, 0
      %v5365 = vsel %vm1672, %v5358, 0
      %v5368 = vsel %vm1672, %v5359, 0
      %v5371 = vsel %vm1672, %v5360, 0
      %5373 = vmatprep.subr.mxu0 %v5349
      %5374 = vmatpush1.msra.mxu0 %v5353
      %5375 = vmatprep.subr.mxu0 %v5350
      %5376 = vmatpush1.msra.mxu0 %v5354
      %5377 = vmatprep.subr.mxu0 %v5351
      %5378 = vmatpush1.msra.mxu0 %v5355
      %5379 = vmatprep.subr.mxu0 %v5352
      %5380 = vmatpush1.msra.mxu0 %v5356
      %5381 = vmatprep.subr.mxu0 0.0
      %5382 = vmatpush1.msra.mxu0 0.0
      %5383 = vmatprep.subr.mxu0 0.0
      %5384 = vmatpush1.msra.mxu0 0.0
      %5385 = vmatprep.subr.mxu0 0.0
      %5386 = vmatpush1.msra.mxu0 0.0
      %5387 = vmatprep.subr.mxu0 0.0
      %5388 = vmatpush1.msra.mxu0 0.0
      %5389 = vmatprep.subr.mxu0 0.0
      %5390 = vmatpush1.msra.mxu0 0.0
      %5391 = vmatprep.subr.mxu0 0.0
      %5392 = vmatpush1.msra.mxu0 0.0
      %5393 = vmatprep.subr.mxu0 0.0
      %5394 = vmatpush1.msra.mxu0 0.0
      %5395 = vmatprep.subr.mxu0 0.0
      %5396 = vmatpush1.msra.mxu0 0.0
      %5397 = vmatprep.subr.mxu0 0.0
      %5398 = vmatpush1.msra.mxu0 0.0
      %5399 = vmatprep.subr.mxu0 0.0
      %5400 = vmatpush1.msra.mxu0 0.0
      %5401 = vmatprep.subr.mxu0 0.0
      %5402 = vmatpush1.msra.mxu0 0.0
      %5403 = vmatprep.subr.mxu0 0.0
      %5404 = vmatpush1.msra.mxu0 0.0
      %5405 = vmatprep.subr.mxu0 0.0
      %5406 = vmatpush1.msra.mxu0 0.0
      %5407 = vmatprep.subr.mxu0 0.0
      %5408 = vmatpush1.msra.mxu0 0.0
      %5409 = vmatprep.subr.mxu0 0.0
      %5410 = vmatpush1.msra.mxu0 0.0
      %5411 = vmatprep.subr.mxu0 0.0
      %5412 = vmatpush1.msra.mxu0 0.0
      %5413 = vmatprep.subr.mxu0 0.0
      %5414 = vmatpush1.msra.mxu0 0.0
      %5415 = vmatprep.subr.mxu0 0.0
      %5416 = vmatpush1.msra.mxu0 0.0
      %5417 = vmatprep.subr.mxu0 0.0
      %5418 = vmatpush1.msra.mxu0 0.0
      %5419 = vmatprep.subr.mxu0 0.0
      %5420 = vmatpush1.msra.mxu0 0.0
      %5421 = vmatprep.subr.mxu0 0.0
      %5422 = vmatpush1.msra.mxu0 0.0
      %5423 = vmatprep.subr.mxu0 0.0
      %5424 = vmatpush1.msra.mxu0 0.0
      %5425 = vmatprep.subr.mxu0 0.0
      %5426 = vmatpush1.msra.mxu0 0.0
      %5427 = vmatprep.subr.mxu0 0.0
      %5428 = vmatpush1.msra.mxu0 0.0
      %5429 = vmatprep.subr.mxu0 0.0
      %5430 = vmatpush1.msra.mxu0 0.0
      %5431 = vmatprep.subr.mxu0 0.0
      %5432 = vmatpush1.msra.mxu0 0.0
      %5433 = vmatprep.subr.mxu0 0.0
      %5434 = vmatpush1.msra.mxu0 0.0
      %5435 = vmatprep.subr.mxu0 0.0
      %5436 = vmatpush1.msra.mxu0 0.0
      %5437 = vmatprep.mubr.f32.mxu0 0.0
      %5438 = vmatmul.mubr.f32.gmra.mrb[0].mxu0 %v5362
      %v5439 = vpop.f32.mrb[0].mxu0
      %v5440 = vadd.f32 0.0, %v5439
      %v5441 = vpop.f32.mrb[0].mxu0
      %v5442 = vadd.f32 0.0, %v5441
      %5443 = vmatprep.mubr.f32.mxu0 0.0
      %5444 = vmatmul.mubr.f32.gmra.mrb[0].mxu0 %v5365
      %v5445 = vpop.f32.mrb[0].mxu0
      %v5446 = vadd.f32 0.0, %v5445
      %v5447 = vpop.f32.mrb[0].mxu0
      %v5448 = vadd.f32 0.0, %v5447
      %5449 = vmatprep.mubr.f32.mxu0 0.0
      %5450 = vmatmul.mubr.f32.gmra.mrb[0].mxu0 %v5368
      %v5451 = vpop.f32.mrb[0].mxu0
      %v5452 = vadd.f32 0.0, %v5451
      %v5453 = vpop.f32.mrb[0].mxu0
      %v5454 = vadd.f32 0.0, %v5453
      %5455 = vmatprep.mubr.f32.mxu0 0.0
      %5456 = vmatmul.mubr.f32.gmra.mrb[0].mxu0 %v5371
      %v5457 = vpop.f32.mrb[0].mxu0
      %v5458 = vadd.f32 0.0, %v5457
      %v5459 = vpop.f32.mrb[0].mxu0
      %v5460 = vadd.f32 0.0, %v5459
      %5461 = vdwg.mxu0
      %v5462 = vsel %vm1891, %v5440, 0.0
      %v5463 = vsel %vm1892, %v5442, 0.0
      %v5464 = vsel %vm1891, %v5446, 0.0
      %v5465 = vsel %vm1892, %v5448, 0.0
      %v5466 = vsel %vm1891, %v5452, 0.0
      %v5467 = vsel %vm1892, %v5454, 0.0
      %v5468 = vsel %vm1891, %v5458, 0.0
      %v5469 = vsel %vm1892, %v5460, 0.0
      %5470 = vrot.lane.b32.xlu0 %v5325, 16
      %v5471 = vpop.permute.xlu0 %5470
      %5472 = vrot.lane.b32.xlu0 %v5327, 16
      %v5473 = vpop.permute.xlu0 %5472
      %5474 = vrot.lane.b32.xlu0 %v5329, 16
      %v5475 = vpop.permute.xlu0 %5474
      %5476 = vrot.lane.b32.xlu0 %v5331, 16
      %v5477 = vpop.permute.xlu0 %5476
      %5478 = vrot.lane.b32.xlu0 %v5326, 16
      %v5479 = vpop.permute.xlu0 %5478
      %5480 = vrot.lane.b32.xlu0 %v5328, 16
      %v5481 = vpop.permute.xlu0 %5480
      %5482 = vrot.lane.b32.xlu0 %v5330, 16
      %v5483 = vpop.permute.xlu0 %5482
      %5484 = vrot.lane.b32.xlu0 %v5332, 16
      %v5485 = vpop.permute.xlu0 %5484
      %v5486 = vsel %vm1905, %v5471, %v5479
      %v5487 = vsel %vm1905, %v5473, %v5481
      %v5488 = vsel %vm1905, %v5475, %v5483
      %v5489 = vsel %vm1905, %v5477, %v5485
      %v5490 = vsel %vm1905, %v5479, %v5471
      %v5491 = vsel %vm1905, %v5481, %v5473
      %v5492 = vsel %vm1905, %v5483, %v5475
      %v5493 = vsel %vm1905, %v5485, %v5477
      %s5494 = scalar_lea.vmem %s9, 32
      %v5495 = vld [vmem:[%s5494] sm:$0xff]
      %v5496 = vld [vmem:[%s5494 + $0x8] sm:$0xff]
      %v5497 = vld [vmem:[%s5494 + $0x10] sm:$0xff]
      %v5498 = vld [vmem:[%s5494 + $0x18] sm:$0xff]
      %v5500 = vsel %vm1672, %v5495, 0
      %v5503 = vsel %vm1672, %v5496, 0
      %v5506 = vsel %vm1672, %v5497, 0
      %v5509 = vsel %vm1672, %v5498, 0
      %5511 = vmatprep.subr.mxu0 %v5486
      %5512 = vmatpush1.msra.mxu0 %v5490
      %5513 = vmatprep.subr.mxu0 %v5487
      %5514 = vmatpush1.msra.mxu0 %v5491
      %5515 = vmatprep.subr.mxu0 %v5488
      %5516 = vmatpush1.msra.mxu0 %v5492
      %5517 = vmatprep.subr.mxu0 %v5489
      %5518 = vmatpush1.msra.mxu0 %v5493
      %5519 = vmatprep.subr.mxu0 0.0
      %5520 = vmatpush1.msra.mxu0 0.0
      %5521 = vmatprep.subr.mxu0 0.0
      %5522 = vmatpush1.msra.mxu0 0.0
      %5523 = vmatprep.subr.mxu0 0.0
      %5524 = vmatpush1.msra.mxu0 0.0
      %5525 = vmatprep.subr.mxu0 0.0
      %5526 = vmatpush1.msra.mxu0 0.0
      %5527 = vmatprep.subr.mxu0 0.0
      %5528 = vmatpush1.msra.mxu0 0.0
      %5529 = vmatprep.subr.mxu0 0.0
      %5530 = vmatpush1.msra.mxu0 0.0
      %5531 = vmatprep.subr.mxu0 0.0
      %5532 = vmatpush1.msra.mxu0 0.0
      %5533 = vmatprep.subr.mxu0 0.0
      %5534 = vmatpush1.msra.mxu0 0.0
      %5535 = vmatprep.subr.mxu0 0.0
      %5536 = vmatpush1.msra.mxu0 0.0
      %5537 = vmatprep.subr.mxu0 0.0
      %5538 = vmatpush1.msra.mxu0 0.0
      %5539 = vmatprep.subr.mxu0 0.0
      %5540 = vmatpush1.msra.mxu0 0.0
      %5541 = vmatprep.subr.mxu0 0.0
      %5542 = vmatpush1.msra.mxu0 0.0
      %5543 = vmatprep.subr.mxu0 0.0
      %5544 = vmatpush1.msra.mxu0 0.0
      %5545 = vmatprep.subr.mxu0 0.0
      %5546 = vmatpush1.msra.mxu0 0.0
      %5547 = vmatprep.subr.mxu0 0.0
      %5548 = vmatpush1.msra.mxu0 0.0
      %5549 = vmatprep.subr.mxu0 0.0
      %5550 = vmatpush1.msra.mxu0 0.0
      %5551 = vmatprep.subr.mxu0 0.0
      %5552 = vmatpush1.msra.mxu0 0.0
      %5553 = vmatprep.subr.mxu0 0.0
      %5554 = vmatpush1.msra.mxu0 0.0
      %5555 = vmatprep.subr.mxu0 0.0
      %5556 = vmatpush1.msra.mxu0 0.0
      %5557 = vmatprep.subr.mxu0 0.0
      %5558 = vmatpush1.msra.mxu0 0.0
      %5559 = vmatprep.subr.mxu0 0.0
      %5560 = vmatpush1.msra.mxu0 0.0
      %5561 = vmatprep.subr.mxu0 0.0
      %5562 = vmatpush1.msra.mxu0 0.0
      %5563 = vmatprep.subr.mxu0 0.0
      %5564 = vmatpush1.msra.mxu0 0.0
      %5565 = vmatprep.subr.mxu0 0.0
      %5566 = vmatpush1.msra.mxu0 0.0
      %5567 = vmatprep.subr.mxu0 0.0
      %5568 = vmatpush1.msra.mxu0 0.0
      %5569 = vmatprep.subr.mxu0 0.0
      %5570 = vmatpush1.msra.mxu0 0.0
      %5571 = vmatprep.subr.mxu0 0.0
      %5572 = vmatpush1.msra.mxu0 0.0
      %5573 = vmatprep.subr.mxu0 0.0
      %5574 = vmatpush1.msra.mxu0 0.0
      %5575 = vmatprep.mubr.f32.mxu0 0.0
      %5576 = vmatmul.mubr.f32.gmra.mrb[0].mxu0 %v5500
      %v5577 = vpop.f32.mrb[0].mxu0
      %v5578 = vadd.f32 0.0, %v5577
      %v5579 = vpop.f32.mrb[0].mxu0
      %v5580 = vadd.f32 0.0, %v5579
      %5581 = vmatprep.mubr.f32.mxu0 0.0
      %5582 = vmatmul.mubr.f32.gmra.mrb[0].mxu0 %v5503
      %v5583 = vpop.f32.mrb[0].mxu0
      %v5584 = vadd.f32 0.0, %v5583
      %v5585 = vpop.f32.mrb[0].mxu0
      %v5586 = vadd.f32 0.0, %v5585
      %5587 = vmatprep.mubr.f32.mxu0 0.0
      %5588 = vmatmul.mubr.f32.gmra.mrb[0].mxu0 %v5506
      %v5589 = vpop.f32.mrb[0].mxu0
      %v5590 = vadd.f32 0.0, %v5589
      %v5591 = vpop.f32.mrb[0].mxu0
      %v5592 = vadd.f32 0.0, %v5591
      %5593 = vmatprep.mubr.f32.mxu0 0.0
      %5594 = vmatmul.mubr.f32.gmra.mrb[0].mxu0 %v5509
      %v5595 = vpop.f32.mrb[0].mxu0
      %v5596 = vadd.f32 0.0, %v5595
      %v5597 = vpop.f32.mrb[0].mxu0
      %v5598 = vadd.f32 0.0, %v5597
      %5599 = vdwg.mxu0
      %v5600 = vsel %vm2152, %v5578, 0.0
      %v5601 = vsel %vm2153, %v5580, 0.0
      %v5602 = vsel %vm2152, %v5584, 0.0
      %v5603 = vsel %vm2153, %v5586, 0.0
      %v5604 = vsel %vm2152, %v5590, 0.0
      %v5605 = vsel %vm2153, %v5592, 0.0
      %v5606 = vsel %vm2152, %v5596, 0.0
      %v5607 = vsel %vm2153, %v5598, 0.0
      %v5608 = vadd.f32 %v5462, %v5600
      %v5609 = vadd.f32 %v5463, %v5601
      %v5610 = vadd.f32 %v5464, %v5602
      %v5611 = vadd.f32 %v5465, %v5603
      %v5612 = vadd.f32 %v5466, %v5604
      %v5613 = vadd.f32 %v5467, %v5605
      %v5614 = vadd.f32 %v5468, %v5606
      %v5615 = vadd.f32 %v5469, %v5607
      %5616 = vrot.lane.b32.xlu0 %v5325, 15
      %v5617 = vpop.permute.xlu0 %5616
      %5618 = vrot.lane.b32.xlu0 %v5327, 15
      %v5619 = vpop.permute.xlu0 %5618
      %5620 = vrot.lane.b32.xlu0 %v5329, 15
      %v5621 = vpop.permute.xlu0 %5620
      %5622 = vrot.lane.b32.xlu0 %v5331, 15
      %v5623 = vpop.permute.xlu0 %5622
      %5624 = vrot.lane.b32.xlu0 %v5326, 15
      %v5625 = vpop.permute.xlu0 %5624
      %5626 = vrot.lane.b32.xlu0 %v5328, 15
      %v5627 = vpop.permute.xlu0 %5626
      %5628 = vrot.lane.b32.xlu0 %v5330, 15
      %v5629 = vpop.permute.xlu0 %5628
      %5630 = vrot.lane.b32.xlu0 %v5332, 15
      %v5631 = vpop.permute.xlu0 %5630
      %v5632 = vsel %vm2174, %v5617, %v5625
      %v5633 = vsel %vm2174, %v5619, %v5627
      %v5634 = vsel %vm2174, %v5621, %v5629
      %v5635 = vsel %vm2174, %v5623, %v5631
      %v5636 = vsel %vm2174, %v5625, %v5617
      %v5637 = vsel %vm2174, %v5627, %v5619
      %v5638 = vsel %vm2174, %v5629, %v5621
      %v5639 = vsel %vm2174, %v5631, %v5623
      %s5640 = scalar_lea.vmem %s9, 64
      %v5641 = vld [vmem:[%s5640] sm:$0xff]
      %v5642 = vld [vmem:[%s5640 + $0x8] sm:$0xff]
      %v5643 = vld [vmem:[%s5640 + $0x10] sm:$0xff]
      %v5644 = vld [vmem:[%s5640 + $0x18] sm:$0xff]
      %v5646 = vsel %vm1672, %v5641, 0
      %v5649 = vsel %vm1672, %v5642, 0
      %v5652 = vsel %vm1672, %v5643, 0
      %v5655 = vsel %vm1672, %v5644, 0
      %5657 = vmatprep.subr.mxu0 %v5632
      %5658 = vmatpush1.msra.mxu0 %v5636
      %5659 = vmatprep.subr.mxu0 %v5633
      %5660 = vmatpush1.msra.mxu0 %v5637
      %5661 = vmatprep.subr.mxu0 %v5634
      %5662 = vmatpush1.msra.mxu0 %v5638
      %5663 = vmatprep.subr.mxu0 %v5635
      %5664 = vmatpush1.msra.mxu0 %v5639
      %5665 = vmatprep.subr.mxu0 0.0
      %5666 = vmatpush1.msra.mxu0 0.0
      %5667 = vmatprep.subr.mxu0 0.0
      %5668 = vmatpush1.msra.mxu0 0.0
      %5669 = vmatprep.subr.mxu0 0.0
      %5670 = vmatpush1.msra.mxu0 0.0
      %5671 = vmatprep.subr.mxu0 0.0
      %5672 = vmatpush1.msra.mxu0 0.0
      %5673 = vmatprep.subr.mxu0 0.0
      %5674 = vmatpush1.msra.mxu0 0.0
      %5675 = vmatprep.subr.mxu0 0.0
      %5676 = vmatpush1.msra.mxu0 0.0
      %5677 = vmatprep.subr.mxu0 0.0
      %5678 = vmatpush1.msra.mxu0 0.0
      %5679 = vmatprep.subr.mxu0 0.0
      %5680 = vmatpush1.msra.mxu0 0.0
      %5681 = vmatprep.subr.mxu0 0.0
      %5682 = vmatpush1.msra.mxu0 0.0
      %5683 = vmatprep.subr.mxu0 0.0
      %5684 = vmatpush1.msra.mxu0 0.0
      %5685 = vmatprep.subr.mxu0 0.0
      %5686 = vmatpush1.msra.mxu0 0.0
      %5687 = vmatprep.subr.mxu0 0.0
      %5688 = vmatpush1.msra.mxu0 0.0
      %5689 = vmatprep.subr.mxu0 0.0
      %5690 = vmatpush1.msra.mxu0 0.0
      %5691 = vmatprep.subr.mxu0 0.0
      %5692 = vmatpush1.msra.mxu0 0.0
      %5693 = vmatprep.subr.mxu0 0.0
      %5694 = vmatpush1.msra.mxu0 0.0
      %5695 = vmatprep.subr.mxu0 0.0
      %5696 = vmatpush1.msra.mxu0 0.0
      %5697 = vmatprep.subr.mxu0 0.0
      %5698 = vmatpush1.msra.mxu0 0.0
      %5699 = vmatprep.subr.mxu0 0.0
      %5700 = vmatpush1.msra.mxu0 0.0
      %5701 = vmatprep.subr.mxu0 0.0
      %5702 = vmatpush1.msra.mxu0 0.0
      %5703 = vmatprep.subr.mxu0 0.0
      %5704 = vmatpush1.msra.mxu0 0.0
      %5705 = vmatprep.subr.mxu0 0.0
      %5706 = vmatpush1.msra.mxu0 0.0
      %5707 = vmatprep.subr.mxu0 0.0
      %5708 = vmatpush1.msra.mxu0 0.0
      %5709 = vmatprep.subr.mxu0 0.0
      %5710 = vmatpush1.msra.mxu0 0.0
      %5711 = vmatprep.subr.mxu0 0.0
      %5712 = vmatpush1.msra.mxu0 0.0
      %5713 = vmatprep.subr.mxu0 0.0
      %5714 = vmatpush1.msra.mxu0 0.0
      %5715 = vmatprep.subr.mxu0 0.0
      %5716 = vmatpush1.msra.mxu0 0.0
      %5717 = vmatprep.subr.mxu0 0.0
      %5718 = vmatpush1.msra.mxu0 0.0
      %5719 = vmatprep.subr.mxu0 0.0
      %5720 = vmatpush1.msra.mxu0 0.0
      %5721 = vmatprep.mubr.f32.mxu0 0.0
      %5722 = vmatmul.mubr.f32.gmra.mrb[0].mxu0 %v5646
      %v5723 = vpop.f32.mrb[0].mxu0
      %v5724 = vadd.f32 0.0, %v5723
      %v5725 = vpop.f32.mrb[0].mxu0
      %v5726 = vadd.f32 0.0, %v5725
      %5727 = vmatprep.mubr.f32.mxu0 0.0
      %5728 = vmatmul.mubr.f32.gmra.mrb[0].mxu0 %v5649
      %v5729 = vpop.f32.mrb[0].mxu0
      %v5730 = vadd.f32 0.0, %v5729
      %v5731 = vpop.f32.mrb[0].mxu0
      %v5732 = vadd.f32 0.0, %v5731
      %5733 = vmatprep.mubr.f32.mxu0 0.0
      %5734 = vmatmul.mubr.f32.gmra.mrb[0].mxu0 %v5652
      %v5735 = vpop.f32.mrb[0].mxu0
      %v5736 = vadd.f32 0.0, %v5735
      %v5737 = vpop.f32.mrb[0].mxu0
      %v5738 = vadd.f32 0.0, %v5737
      %5739 = vmatprep.mubr.f32.mxu0 0.0
      %5740 = vmatmul.mubr.f32.gmra.mrb[0].mxu0 %v5655
      %v5741 = vpop.f32.mrb[0].mxu0
      %v5742 = vadd.f32 0.0, %v5741
      %v5743 = vpop.f32.mrb[0].mxu0
      %v5744 = vadd.f32 0.0, %v5743
      %5745 = vdwg.mxu0
      %v5746 = vsel %vm2425, %v5724, 0.0
      %v5747 = vsel %vm2426, %v5726, 0.0
      %v5748 = vsel %vm2425, %v5730, 0.0
      %v5749 = vsel %vm2426, %v5732, 0.0
      %v5750 = vsel %vm2425, %v5736, 0.0
      %v5751 = vsel %vm2426, %v5738, 0.0
      %v5752 = vsel %vm2425, %v5742, 0.0
      %v5753 = vsel %vm2426, %v5744, 0.0
      %v5754 = vadd.f32 %v5608, %v5746
      %v5755 = vadd.f32 %v5609, %v5747
      %v5756 = vadd.f32 %v5610, %v5748
      %v5757 = vadd.f32 %v5611, %v5749
      %v5758 = vadd.f32 %v5612, %v5750
      %v5759 = vadd.f32 %v5613, %v5751
      %v5760 = vadd.f32 %v5614, %v5752
      %v5761 = vadd.f32 %v5615, %v5753
      %5762 = vrot.lane.b32.xlu0 %v5325, 1
      %v5763 = vpop.permute.xlu0 %5762
      %5764 = vrot.lane.b32.xlu0 %v5327, 1
      %v5765 = vpop.permute.xlu0 %5764
      %5766 = vrot.lane.b32.xlu0 %v5329, 1
      %v5767 = vpop.permute.xlu0 %5766
      %5768 = vrot.lane.b32.xlu0 %v5331, 1
      %v5769 = vpop.permute.xlu0 %5768
      %5770 = vrot.lane.b32.xlu0 %v5326, 1
      %v5771 = vpop.permute.xlu0 %5770
      %5772 = vrot.lane.b32.xlu0 %v5328, 1
      %v5773 = vpop.permute.xlu0 %5772
      %5774 = vrot.lane.b32.xlu0 %v5330, 1
      %v5775 = vpop.permute.xlu0 %5774
      %5776 = vrot.lane.b32.xlu0 %v5332, 1
      %v5777 = vpop.permute.xlu0 %5776
      %v5778 = vsel %vm2447, %v5763, %v5771
      %v5779 = vsel %vm2447, %v5765, %v5773
      %v5780 = vsel %vm2447, %v5767, %v5775
      %v5781 = vsel %vm2447, %v5769, %v5777
      %v5782 = vsel %vm2447, %v5771, %v5763
      %v5783 = vsel %vm2447, %v5773, %v5765
      %v5784 = vsel %vm2447, %v5775, %v5767
      %v5785 = vsel %vm2447, %v5777, %v5769
      %s5786 = scalar_lea.vmem %s9, 96
      %v5787 = vld [vmem:[%s5786] sm:$0xff]
      %v5788 = vld [vmem:[%s5786 + $0x8] sm:$0xff]
      %v5789 = vld [vmem:[%s5786 + $0x10] sm:$0xff]
      %v5790 = vld [vmem:[%s5786 + $0x18] sm:$0xff]
      %v5792 = vsel %vm1672, %v5787, 0
      %v5795 = vsel %vm1672, %v5788, 0
      %v5798 = vsel %vm1672, %v5789, 0
      %v5801 = vsel %vm1672, %v5790, 0
      %5803 = vmatprep.subr.mxu0 %v5778
      %5804 = vmatpush1.msra.mxu0 %v5782
      %5805 = vmatprep.subr.mxu0 %v5779
      %5806 = vmatpush1.msra.mxu0 %v5783
      %5807 = vmatprep.subr.mxu0 %v5780
      %5808 = vmatpush1.msra.mxu0 %v5784
      %5809 = vmatprep.subr.mxu0 %v5781
      %5810 = vmatpush1.msra.mxu0 %v5785
      %5811 = vmatprep.subr.mxu0 0.0
      %5812 = vmatpush1.msra.mxu0 0.0
      %5813 = vmatprep.subr.mxu0 0.0
      %5814 = vmatpush1.msra.mxu0 0.0
      %5815 = vmatprep.subr.mxu0 0.0
      %5816 = vmatpush1.msra.mxu0 0.0
      %5817 = vmatprep.subr.mxu0 0.0
      %5818 = vmatpush1.msra.mxu0 0.0
      %5819 = vmatprep.subr.mxu0 0.0
      %5820 = vmatpush1.msra.mxu0 0.0
      %5821 = vmatprep.subr.mxu0 0.0
      %5822 = vmatpush1.msra.mxu0 0.0
      %5823 = vmatprep.subr.mxu0 0.0
      %5824 = vmatpush1.msra.mxu0 0.0
      %5825 = vmatprep.subr.mxu0 0.0
      %5826 = vmatpush1.msra.mxu0 0.0
      %5827 = vmatprep.subr.mxu0 0.0
      %5828 = vmatpush1.msra.mxu0 0.0
      %5829 = vmatprep.subr.mxu0 0.0
      %5830 = vmatpush1.msra.mxu0 0.0
      %5831 = vmatprep.subr.mxu0 0.0
      %5832 = vmatpush1.msra.mxu0 0.0
      %5833 = vmatprep.subr.mxu0 0.0
      %5834 = vmatpush1.msra.mxu0 0.0
      %5835 = vmatprep.subr.mxu0 0.0
      %5836 = vmatpush1.msra.mxu0 0.0
      %5837 = vmatprep.subr.mxu0 0.0
      %5838 = vmatpush1.msra.mxu0 0.0
      %5839 = vmatprep.subr.mxu0 0.0
      %5840 = vmatpush1.msra.mxu0 0.0
      %5841 = vmatprep.subr.mxu0 0.0
      %5842 = vmatpush1.msra.mxu0 0.0
      %5843 = vmatprep.subr.mxu0 0.0
      %5844 = vmatpush1.msra.mxu0 0.0
      %5845 = vmatprep.subr.mxu0 0.0
      %5846 = vmatpush1.msra.mxu0 0.0
      %5847 = vmatprep.subr.mxu0 0.0
      %5848 = vmatpush1.msra.mxu0 0.0
      %5849 = vmatprep.subr.mxu0 0.0
      %5850 = vmatpush1.msra.mxu0 0.0
      %5851 = vmatprep.subr.mxu0 0.0
      %5852 = vmatpush1.msra.mxu0 0.0
      %5853 = vmatprep.subr.mxu0 0.0
      %5854 = vmatpush1.msra.mxu0 0.0
      %5855 = vmatprep.subr.mxu0 0.0
      %5856 = vmatpush1.msra.mxu0 0.0
      %5857 = vmatprep.subr.mxu0 0.0
      %5858 = vmatpush1.msra.mxu0 0.0
      %5859 = vmatprep.subr.mxu0 0.0
      %5860 = vmatpush1.msra.mxu0 0.0
      %5861 = vmatprep.subr.mxu0 0.0
      %5862 = vmatpush1.msra.mxu0 0.0
      %5863 = vmatprep.subr.mxu0 0.0
      %5864 = vmatpush1.msra.mxu0 0.0
      %5865 = vmatprep.subr.mxu0 0.0
      %5866 = vmatpush1.msra.mxu0 0.0
      %5867 = vmatprep.mubr.f32.mxu0 0.0
      %5868 = vmatmul.mubr.f32.gmra.mrb[0].mxu0 %v5792
      %v5869 = vpop.f32.mrb[0].mxu0
      %v5870 = vadd.f32 0.0, %v5869
      %v5871 = vpop.f32.mrb[0].mxu0
      %v5872 = vadd.f32 0.0, %v5871
      %5873 = vmatprep.mubr.f32.mxu0 0.0
      %5874 = vmatmul.mubr.f32.gmra.mrb[0].mxu0 %v5795
      %v5875 = vpop.f32.mrb[0].mxu0
      %v5876 = vadd.f32 0.0, %v5875
      %v5877 = vpop.f32.mrb[0].mxu0
      %v5878 = vadd.f32 0.0, %v5877
      %5879 = vmatprep.mubr.f32.mxu0 0.0
      %5880 = vmatmul.mubr.f32.gmra.mrb[0].mxu0 %v5798
      %v5881 = vpop.f32.mrb[0].mxu0
      %v5882 = vadd.f32 0.0, %v5881
      %v5883 = vpop.f32.mrb[0].mxu0
      %v5884 = vadd.f32 0.0, %v5883
      %5885 = vmatprep.mubr.f32.mxu0 0.0
      %5886 = vmatmul.mubr.f32.gmra.mrb[0].mxu0 %v5801
      %v5887 = vpop.f32.mrb[0].mxu0
      %v5888 = vadd.f32 0.0, %v5887
      %v5889 = vpop.f32.mrb[0].mxu0
      %v5890 = vadd.f32 0.0, %v5889
      %5891 = vdwg.mxu0
      %v5892 = vsel %vm2694, %v5870, 0.0
      %v5893 = vsel %vm2695, %v5872, 0.0
      %v5894 = vsel %vm2694, %v5876, 0.0
      %v5895 = vsel %vm2695, %v5878, 0.0
      %v5896 = vsel %vm2694, %v5882, 0.0
      %v5897 = vsel %vm2695, %v5884, 0.0
      %v5898 = vsel %vm2694, %v5888, 0.0
      %v5899 = vsel %vm2695, %v5890, 0.0
      %v5900 = vadd.f32 %v5754, %v5892
      %v5901 = vadd.f32 %v5755, %v5893
      %v5902 = vadd.f32 %v5756, %v5894
      %v5903 = vadd.f32 %v5757, %v5895
      %v5904 = vadd.f32 %v5758, %v5896
      %v5905 = vadd.f32 %v5759, %v5897
      %v5906 = vadd.f32 %v5760, %v5898
      %v5907 = vadd.f32 %v5761, %v5899
      %s5908 = scalar_lea.vmem %s9, 128
      %v5909 = vld [vmem:[%s5908] sm:$0xff]
      %v5910 = vld [vmem:[%s5908 + $0x8] sm:$0xff]
      %v5911 = vld [vmem:[%s5908 + $0x10] sm:$0xff]
      %v5912 = vld [vmem:[%s5908 + $0x18] sm:$0xff]
      %v5914 = vsel %vm1672, %v5909, 0
      %v5917 = vsel %vm1672, %v5910, 0
      %v5920 = vsel %vm1672, %v5911, 0
      %v5923 = vsel %vm1672, %v5912, 0
      %5925 = vmatprep.subr.mxu0 %v5326
      %5926 = vmatpush1.msra.mxu0 %v5325
      %5927 = vmatprep.subr.mxu0 %v5328
      %5928 = vmatpush1.msra.mxu0 %v5327
      %5929 = vmatprep.subr.mxu0 %v5330
      %5930 = vmatpush1.msra.mxu0 %v5329
      %5931 = vmatprep.subr.mxu0 %v5332
      %5932 = vmatpush1.msra.mxu0 %v5331
      %5933 = vmatprep.subr.mxu0 0.0
      %5934 = vmatpush1.msra.mxu0 0.0
      %5935 = vmatprep.subr.mxu0 0.0
      %5936 = vmatpush1.msra.mxu0 0.0
      %5937 = vmatprep.subr.mxu0 0.0
      %5938 = vmatpush1.msra.mxu0 0.0
      %5939 = vmatprep.subr.mxu0 0.0
      %5940 = vmatpush1.msra.mxu0 0.0
      %5941 = vmatprep.subr.mxu0 0.0
      %5942 = vmatpush1.msra.mxu0 0.0
      %5943 = vmatprep.subr.mxu0 0.0
      %5944 = vmatpush1.msra.mxu0 0.0
      %5945 = vmatprep.subr.mxu0 0.0
      %5946 = vmatpush1.msra.mxu0 0.0
      %5947 = vmatprep.subr.mxu0 0.0
      %5948 = vmatpush1.msra.mxu0 0.0
      %5949 = vmatprep.subr.mxu0 0.0
      %5950 = vmatpush1.msra.mxu0 0.0
      %5951 = vmatprep.subr.mxu0 0.0
      %5952 = vmatpush1.msra.mxu0 0.0
      %5953 = vmatprep.subr.mxu0 0.0
      %5954 = vmatpush1.msra.mxu0 0.0
      %5955 = vmatprep.subr.mxu0 0.0
      %5956 = vmatpush1.msra.mxu0 0.0
      %5957 = vmatprep.subr.mxu0 0.0
      %5958 = vmatpush1.msra.mxu0 0.0
      %5959 = vmatprep.subr.mxu0 0.0
      %5960 = vmatpush1.msra.mxu0 0.0
      %5961 = vmatprep.subr.mxu0 0.0
      %5962 = vmatpush1.msra.mxu0 0.0
      %5963 = vmatprep.subr.mxu0 0.0
      %5964 = vmatpush1.msra.mxu0 0.0
      %5965 = vmatprep.subr.mxu0 0.0
      %5966 = vmatpush1.msra.mxu0 0.0
      %5967 = vmatprep.subr.mxu0 0.0
      %5968 = vmatpush1.msra.mxu0 0.0
      %5969 = vmatprep.subr.mxu0 0.0
      %5970 = vmatpush1.msra.mxu0 0.0
      %5971 = vmatprep.subr.mxu0 0.0
      %5972 = vmatpush1.msra.mxu0 0.0
      %5973 = vmatprep.subr.mxu0 0.0
      %5974 = vmatpush1.msra.mxu0 0.0
      %5975 = vmatprep.subr.mxu0 0.0
      %5976 = vmatpush1.msra.mxu0 0.0
      %5977 = vmatprep.subr.mxu0 0.0
      %5978 = vmatpush1.msra.mxu0 0.0
      %5979 = vmatprep.subr.mxu0 0.0
      %5980 = vmatpush1.msra.mxu0 0.0
      %5981 = vmatprep.subr.mxu0 0.0
      %5982 = vmatpush1.msra.mxu0 0.0
      %5983 = vmatprep.subr.mxu0 0.0
      %5984 = vmatpush1.msra.mxu0 0.0
      %5985 = vmatprep.subr.mxu0 0.0
      %5986 = vmatpush1.msra.mxu0 0.0
      %5987 = vmatprep.subr.mxu0 0.0
      %5988 = vmatpush1.msra.mxu0 0.0
      %5989 = vmatprep.mubr.f32.mxu0 0.0
      %5990 = vmatmul.mubr.f32.gmra.mrb[0].mxu0 %v5914
      %v5991 = vpop.f32.mrb[0].mxu0
      %v5992 = vadd.f32 0.0, %v5991
      %v5993 = vpop.f32.mrb[0].mxu0
      %v5994 = vadd.f32 0.0, %v5993
      %5995 = vmatprep.mubr.f32.mxu0 0.0
      %5996 = vmatmul.mubr.f32.gmra.mrb[0].mxu0 %v5917
      %v5997 = vpop.f32.mrb[0].mxu0
      %v5998 = vadd.f32 0.0, %v5997
      %v5999 = vpop.f32.mrb[0].mxu0
      %v6000 = vadd.f32 0.0, %v5999
      %6001 = vmatprep.mubr.f32.mxu0 0.0
      %6002 = vmatmul.mubr.f32.gmra.mrb[0].mxu0 %v5920
      %v6003 = vpop.f32.mrb[0].mxu0
      %v6004 = vadd.f32 0.0, %v6003
      %v6005 = vpop.f32.mrb[0].mxu0
      %v6006 = vadd.f32 0.0, %v6005
      %6007 = vmatprep.mubr.f32.mxu0 0.0
      %6008 = vmatmul.mubr.f32.gmra.mrb[0].mxu0 %v5923
      %v6009 = vpop.f32.mrb[0].mxu0
      %v6010 = vadd.f32 0.0, %v6009
      %v6011 = vpop.f32.mrb[0].mxu0
      %v6012 = vadd.f32 0.0, %v6011
      %6013 = vdwg.mxu0
      %v6014 = vadd.f32 %v5900, %v5992
      %v6015 = vadd.f32 %v5901, %v5994
      %v6016 = vadd.f32 %v5902, %v5998
      %v6017 = vadd.f32 %v5903, %v6000
      %v6018 = vadd.f32 %v5904, %v6004
      %v6019 = vadd.f32 %v5905, %v6006
      %v6020 = vadd.f32 %v5906, %v6010
      %v6021 = vadd.f32 %v5907, %v6012
      %6022 = vrot.lane.b32.xlu0 %v5325, 127
      %v6023 = vpop.permute.xlu0 %6022
      %6024 = vrot.lane.b32.xlu0 %v5327, 127
      %v6025 = vpop.permute.xlu0 %6024
      %6026 = vrot.lane.b32.xlu0 %v5329, 127
      %v6027 = vpop.permute.xlu0 %6026
      %6028 = vrot.lane.b32.xlu0 %v5331, 127
      %v6029 = vpop.permute.xlu0 %6028
      %6030 = vrot.lane.b32.xlu0 %v5326, 127
      %v6031 = vpop.permute.xlu0 %6030
      %6032 = vrot.lane.b32.xlu0 %v5328, 127
      %v6033 = vpop.permute.xlu0 %6032
      %6034 = vrot.lane.b32.xlu0 %v5330, 127
      %v6035 = vpop.permute.xlu0 %6034
      %6036 = vrot.lane.b32.xlu0 %v5332, 127
      %v6037 = vpop.permute.xlu0 %6036
      %v6038 = vsel %vm2942, %v6023, %v6031
      %v6039 = vsel %vm2942, %v6025, %v6033
      %v6040 = vsel %vm2942, %v6027, %v6035
      %v6041 = vsel %vm2942, %v6029, %v6037
      %v6042 = vsel %vm2942, %v6031, %v6023
      %v6043 = vsel %vm2942, %v6033, %v6025
      %v6044 = vsel %vm2942, %v6035, %v6027
      %v6045 = vsel %vm2942, %v6037, %v6029
      %s6046 = scalar_lea.vmem %s9, 160
      %v6047 = vld [vmem:[%s6046] sm:$0xff]
      %v6048 = vld [vmem:[%s6046 + $0x8] sm:$0xff]
      %v6049 = vld [vmem:[%s6046 + $0x10] sm:$0xff]
      %v6050 = vld [vmem:[%s6046 + $0x18] sm:$0xff]
      %v6052 = vsel %vm1672, %v6047, 0
      %v6055 = vsel %vm1672, %v6048, 0
      %v6058 = vsel %vm1672, %v6049, 0
      %v6061 = vsel %vm1672, %v6050, 0
      %6063 = vmatprep.subr.mxu0 %v6042
      %6064 = vmatpush1.msra.mxu0 %v6038
      %6065 = vmatprep.subr.mxu0 %v6043
      %6066 = vmatpush1.msra.mxu0 %v6039
      %6067 = vmatprep.subr.mxu0 %v6044
      %6068 = vmatpush1.msra.mxu0 %v6040
      %6069 = vmatprep.subr.mxu0 %v6045
      %6070 = vmatpush1.msra.mxu0 %v6041
      %6071 = vmatprep.subr.mxu0 0.0
      %6072 = vmatpush1.msra.mxu0 0.0
      %6073 = vmatprep.subr.mxu0 0.0
      %6074 = vmatpush1.msra.mxu0 0.0
      %6075 = vmatprep.subr.mxu0 0.0
      %6076 = vmatpush1.msra.mxu0 0.0
      %6077 = vmatprep.subr.mxu0 0.0
      %6078 = vmatpush1.msra.mxu0 0.0
      %6079 = vmatprep.subr.mxu0 0.0
      %6080 = vmatpush1.msra.mxu0 0.0
      %6081 = vmatprep.subr.mxu0 0.0
      %6082 = vmatpush1.msra.mxu0 0.0
      %6083 = vmatprep.subr.mxu0 0.0
      %6084 = vmatpush1.msra.mxu0 0.0
      %6085 = vmatprep.subr.mxu0 0.0
      %6086 = vmatpush1.msra.mxu0 0.0
      %6087 = vmatprep.subr.mxu0 0.0
      %6088 = vmatpush1.msra.mxu0 0.0
      %6089 = vmatprep.subr.mxu0 0.0
      %6090 = vmatpush1.msra.mxu0 0.0
      %6091 = vmatprep.subr.mxu0 0.0
      %6092 = vmatpush1.msra.mxu0 0.0
      %6093 = vmatprep.subr.mxu0 0.0
      %6094 = vmatpush1.msra.mxu0 0.0
      %6095 = vmatprep.subr.mxu0 0.0
      %6096 = vmatpush1.msra.mxu0 0.0
      %6097 = vmatprep.subr.mxu0 0.0
      %6098 = vmatpush1.msra.mxu0 0.0
      %6099 = vmatprep.subr.mxu0 0.0
      %6100 = vmatpush1.msra.mxu0 0.0
      %6101 = vmatprep.subr.mxu0 0.0
      %6102 = vmatpush1.msra.mxu0 0.0
      %6103 = vmatprep.subr.mxu0 0.0
      %6104 = vmatpush1.msra.mxu0 0.0
      %6105 = vmatprep.subr.mxu0 0.0
      %6106 = vmatpush1.msra.mxu0 0.0
      %6107 = vmatprep.subr.mxu0 0.0
      %6108 = vmatpush1.msra.mxu0 0.0
      %6109 = vmatprep.subr.mxu0 0.0
      %6110 = vmatpush1.msra.mxu0 0.0
      %6111 = vmatprep.subr.mxu0 0.0
      %6112 = vmatpush1.msra.mxu0 0.0
      %6113 = vmatprep.subr.mxu0 0.0
      %6114 = vmatpush1.msra.mxu0 0.0
      %6115 = vmatprep.subr.mxu0 0.0
      %6116 = vmatpush1.msra.mxu0 0.0
      %6117 = vmatprep.subr.mxu0 0.0
      %6118 = vmatpush1.msra.mxu0 0.0
      %6119 = vmatprep.subr.mxu0 0.0
      %6120 = vmatpush1.msra.mxu0 0.0
      %6121 = vmatprep.subr.mxu0 0.0
      %6122 = vmatpush1.msra.mxu0 0.0
      %6123 = vmatprep.subr.mxu0 0.0
      %6124 = vmatpush1.msra.mxu0 0.0
      %6125 = vmatprep.subr.mxu0 0.0
      %6126 = vmatpush1.msra.mxu0 0.0
      %6127 = vmatprep.mubr.f32.mxu0 0.0
      %6128 = vmatmul.mubr.f32.gmra.mrb[0].mxu0 %v6052
      %v6129 = vpop.f32.mrb[0].mxu0
      %v6130 = vadd.f32 0.0, %v6129
      %v6131 = vpop.f32.mrb[0].mxu0
      %v6132 = vadd.f32 0.0, %v6131
      %6133 = vmatprep.mubr.f32.mxu0 0.0
      %6134 = vmatmul.mubr.f32.gmra.mrb[0].mxu0 %v6055
      %v6135 = vpop.f32.mrb[0].mxu0
      %v6136 = vadd.f32 0.0, %v6135
      %v6137 = vpop.f32.mrb[0].mxu0
      %v6138 = vadd.f32 0.0, %v6137
      %6139 = vmatprep.mubr.f32.mxu0 0.0
      %6140 = vmatmul.mubr.f32.gmra.mrb[0].mxu0 %v6058
      %v6141 = vpop.f32.mrb[0].mxu0
      %v6142 = vadd.f32 0.0, %v6141
      %v6143 = vpop.f32.mrb[0].mxu0
      %v6144 = vadd.f32 0.0, %v6143
      %6145 = vmatprep.mubr.f32.mxu0 0.0
      %6146 = vmatmul.mubr.f32.gmra.mrb[0].mxu0 %v6061
      %v6147 = vpop.f32.mrb[0].mxu0
      %v6148 = vadd.f32 0.0, %v6147
      %v6149 = vpop.f32.mrb[0].mxu0
      %v6150 = vadd.f32 0.0, %v6149
      %6151 = vdwg.mxu0
      %v6152 = vsel %vm3189, %v6130, 0.0
      %v6153 = vsel %vm3190, %v6132, 0.0
      %v6154 = vsel %vm3189, %v6136, 0.0
      %v6155 = vsel %vm3190, %v6138, 0.0
      %v6156 = vsel %vm3189, %v6142, 0.0
      %v6157 = vsel %vm3190, %v6144, 0.0
      %v6158 = vsel %vm3189, %v6148, 0.0
      %v6159 = vsel %vm3190, %v6150, 0.0
      %v6160 = vadd.f32 %v6014, %v6152
      %v6161 = vadd.f32 %v6015, %v6153
      %v6162 = vadd.f32 %v6016, %v6154
      %v6163 = vadd.f32 %v6017, %v6155
      %v6164 = vadd.f32 %v6018, %v6156
      %v6165 = vadd.f32 %v6019, %v6157
      %v6166 = vadd.f32 %v6020, %v6158
      %v6167 = vadd.f32 %v6021, %v6159
      %6168 = vrot.lane.b32.xlu0 %v5325, 113
      %v6169 = vpop.permute.xlu0 %6168
      %6170 = vrot.lane.b32.xlu0 %v5327, 113
      %v6171 = vpop.permute.xlu0 %6170
      %6172 = vrot.lane.b32.xlu0 %v5329, 113
      %v6173 = vpop.permute.xlu0 %6172
      %6174 = vrot.lane.b32.xlu0 %v5331, 113
      %v6175 = vpop.permute.xlu0 %6174
      %6176 = vrot.lane.b32.xlu0 %v5326, 113
      %v6177 = vpop.permute.xlu0 %6176
      %6178 = vrot.lane.b32.xlu0 %v5328, 113
      %v6179 = vpop.permute.xlu0 %6178
      %6180 = vrot.lane.b32.xlu0 %v5330, 113
      %v6181 = vpop.permute.xlu0 %6180
      %6182 = vrot.lane.b32.xlu0 %v5332, 113
      %v6183 = vpop.permute.xlu0 %6182
      %v6184 = vsel %vm3211, %v6169, %v6177
      %v6185 = vsel %vm3211, %v6171, %v6179
      %v6186 = vsel %vm3211, %v6173, %v6181
      %v6187 = vsel %vm3211, %v6175, %v6183
      %v6188 = vsel %vm3211, %v6177, %v6169
      %v6189 = vsel %vm3211, %v6179, %v6171
      %v6190 = vsel %vm3211, %v6181, %v6173
      %v6191 = vsel %vm3211, %v6183, %v6175
      %s6192 = scalar_lea.vmem %s9, 192
      %v6193 = vld [vmem:[%s6192] sm:$0xff]
      %v6194 = vld [vmem:[%s6192 + $0x8] sm:$0xff]
      %v6195 = vld [vmem:[%s6192 + $0x10] sm:$0xff]
      %v6196 = vld [vmem:[%s6192 + $0x18] sm:$0xff]
      %v6198 = vsel %vm1672, %v6193, 0
      %v6201 = vsel %vm1672, %v6194, 0
      %v6204 = vsel %vm1672, %v6195, 0
      %v6207 = vsel %vm1672, %v6196, 0
      %6209 = vmatprep.subr.mxu0 %v6188
      %6210 = vmatpush1.msra.mxu0 %v6184
      %6211 = vmatprep.subr.mxu0 %v6189
      %6212 = vmatpush1.msra.mxu0 %v6185
      %6213 = vmatprep.subr.mxu0 %v6190
      %6214 = vmatpush1.msra.mxu0 %v6186
      %6215 = vmatprep.subr.mxu0 %v6191
      %6216 = vmatpush1.msra.mxu0 %v6187
      %6217 = vmatprep.subr.mxu0 0.0
      %6218 = vmatpush1.msra.mxu0 0.0
      %6219 = vmatprep.subr.mxu0 0.0
      %6220 = vmatpush1.msra.mxu0 0.0
      %6221 = vmatprep.subr.mxu0 0.0
      %6222 = vmatpush1.msra.mxu0 0.0
      %6223 = vmatprep.subr.mxu0 0.0
      %6224 = vmatpush1.msra.mxu0 0.0
      %6225 = vmatprep.subr.mxu0 0.0
      %6226 = vmatpush1.msra.mxu0 0.0
      %6227 = vmatprep.subr.mxu0 0.0
      %6228 = vmatpush1.msra.mxu0 0.0
      %6229 = vmatprep.subr.mxu0 0.0
      %6230 = vmatpush1.msra.mxu0 0.0
      %6231 = vmatprep.subr.mxu0 0.0
      %6232 = vmatpush1.msra.mxu0 0.0
      %6233 = vmatprep.subr.mxu0 0.0
      %6234 = vmatpush1.msra.mxu0 0.0
      %6235 = vmatprep.subr.mxu0 0.0
      %6236 = vmatpush1.msra.mxu0 0.0
      %6237 = vmatprep.subr.mxu0 0.0
      %6238 = vmatpush1.msra.mxu0 0.0
      %6239 = vmatprep.subr.mxu0 0.0
      %6240 = vmatpush1.msra.mxu0 0.0
      %6241 = vmatprep.subr.mxu0 0.0
      %6242 = vmatpush1.msra.mxu0 0.0
      %6243 = vmatprep.subr.mxu0 0.0
      %6244 = vmatpush1.msra.mxu0 0.0
      %6245 = vmatprep.subr.mxu0 0.0
      %6246 = vmatpush1.msra.mxu0 0.0
      %6247 = vmatprep.subr.mxu0 0.0
      %6248 = vmatpush1.msra.mxu0 0.0
      %6249 = vmatprep.subr.mxu0 0.0
      %6250 = vmatpush1.msra.mxu0 0.0
      %6251 = vmatprep.subr.mxu0 0.0
      %6252 = vmatpush1.msra.mxu0 0.0
      %6253 = vmatprep.subr.mxu0 0.0
      %6254 = vmatpush1.msra.mxu0 0.0
      %6255 = vmatprep.subr.mxu0 0.0
      %6256 = vmatpush1.msra.mxu0 0.0
      %6257 = vmatprep.subr.mxu0 0.0
      %6258 = vmatpush1.msra.mxu0 0.0
      %6259 = vmatprep.subr.mxu0 0.0
      %6260 = vmatpush1.msra.mxu0 0.0
      %6261 = vmatprep.subr.mxu0 0.0
      %6262 = vmatpush1.msra.mxu0 0.0
      %6263 = vmatprep.subr.mxu0 0.0
      %6264 = vmatpush1.msra.mxu0 0.0
      %6265 = vmatprep.subr.mxu0 0.0
      %6266 = vmatpush1.msra.mxu0 0.0
      %6267 = vmatprep.subr.mxu0 0.0
      %6268 = vmatpush1.msra.mxu0 0.0
      %6269 = vmatprep.subr.mxu0 0.0
      %6270 = vmatpush1.msra.mxu0 0.0
      %6271 = vmatprep.subr.mxu0 0.0
      %6272 = vmatpush1.msra.mxu0 0.0
      %6273 = vmatprep.mubr.f32.mxu0 0.0
      %6274 = vmatmul.mubr.f32.gmra.mrb[0].mxu0 %v6198
      %v6275 = vpop.f32.mrb[0].mxu0
      %v6276 = vadd.f32 0.0, %v6275
      %v6277 = vpop.f32.mrb[0].mxu0
      %v6278 = vadd.f32 0.0, %v6277
      %6279 = vmatprep.mubr.f32.mxu0 0.0
      %6280 = vmatmul.mubr.f32.gmra.mrb[0].mxu0 %v6201
      %v6281 = vpop.f32.mrb[0].mxu0
      %v6282 = vadd.f32 0.0, %v6281
      %v6283 = vpop.f32.mrb[0].mxu0
      %v6284 = vadd.f32 0.0, %v6283
      %6285 = vmatprep.mubr.f32.mxu0 0.0
      %6286 = vmatmul.mubr.f32.gmra.mrb[0].mxu0 %v6204
      %v6287 = vpop.f32.mrb[0].mxu0
      %v6288 = vadd.f32 0.0, %v6287
      %v6289 = vpop.f32.mrb[0].mxu0
      %v6290 = vadd.f32 0.0, %v6289
      %6291 = vmatprep.mubr.f32.mxu0 0.0
      %6292 = vmatmul.mubr.f32.gmra.mrb[0].mxu0 %v6207
      %v6293 = vpop.f32.mrb[0].mxu0
      %v6294 = vadd.f32 0.0, %v6293
      %v6295 = vpop.f32.mrb[0].mxu0
      %v6296 = vadd.f32 0.0, %v6295
      %6297 = vdwg.mxu0
      %v6298 = vsel %vm3462, %v6276, 0.0
      %v6299 = vsel %vm3463, %v6278, 0.0
      %v6300 = vsel %vm3462, %v6282, 0.0
      %v6301 = vsel %vm3463, %v6284, 0.0
      %v6302 = vsel %vm3462, %v6288, 0.0
      %v6303 = vsel %vm3463, %v6290, 0.0
      %v6304 = vsel %vm3462, %v6294, 0.0
      %v6305 = vsel %vm3463, %v6296, 0.0
      %v6306 = vadd.f32 %v6160, %v6298
      %v6307 = vadd.f32 %v6161, %v6299
      %v6308 = vadd.f32 %v6162, %v6300
      %v6309 = vadd.f32 %v6163, %v6301
      %v6310 = vadd.f32 %v6164, %v6302
      %v6311 = vadd.f32 %v6165, %v6303
      %v6312 = vadd.f32 %v6166, %v6304
      %v6313 = vadd.f32 %v6167, %v6305
      %6314 = vrot.lane.b32.xlu0 %v5325, 112
      %v6315 = vpop.permute.xlu0 %6314
      %6316 = vrot.lane.b32.xlu0 %v5327, 112
      %v6317 = vpop.permute.xlu0 %6316
      %6318 = vrot.lane.b32.xlu0 %v5329, 112
      %v6319 = vpop.permute.xlu0 %6318
      %6320 = vrot.lane.b32.xlu0 %v5331, 112
      %v6321 = vpop.permute.xlu0 %6320
      %6322 = vrot.lane.b32.xlu0 %v5326, 112
      %v6323 = vpop.permute.xlu0 %6322
      %6324 = vrot.lane.b32.xlu0 %v5328, 112
      %v6325 = vpop.permute.xlu0 %6324
      %6326 = vrot.lane.b32.xlu0 %v5330, 112
      %v6327 = vpop.permute.xlu0 %6326
      %6328 = vrot.lane.b32.xlu0 %v5332, 112
      %v6329 = vpop.permute.xlu0 %6328
      %v6330 = vsel %vm3484, %v6315, %v6323
      %v6331 = vsel %vm3484, %v6317, %v6325
      %v6332 = vsel %vm3484, %v6319, %v6327
      %v6333 = vsel %vm3484, %v6321, %v6329
      %v6334 = vsel %vm3484, %v6323, %v6315
      %v6335 = vsel %vm3484, %v6325, %v6317
      %v6336 = vsel %vm3484, %v6327, %v6319
      %v6337 = vsel %vm3484, %v6329, %v6321
      %s6338 = scalar_lea.vmem %s9, 224
      %v6339 = vld [vmem:[%s6338] sm:$0xff]
      %v6340 = vld [vmem:[%s6338 + $0x8] sm:$0xff]
      %v6341 = vld [vmem:[%s6338 + $0x10] sm:$0xff]
      %v6342 = vld [vmem:[%s6338 + $0x18] sm:$0xff]
      %v6344 = vsel %vm1672, %v6339, 0
      %v6347 = vsel %vm1672, %v6340, 0
      %v6350 = vsel %vm1672, %v6341, 0
      %v6353 = vsel %vm1672, %v6342, 0
      %6355 = vmatprep.subr.mxu0 %v6334
      %6356 = vmatpush1.msra.mxu0 %v6330
      %6357 = vmatprep.subr.mxu0 %v6335
      %6358 = vmatpush1.msra.mxu0 %v6331
      %6359 = vmatprep.subr.mxu0 %v6336
      %6360 = vmatpush1.msra.mxu0 %v6332
      %6361 = vmatprep.subr.mxu0 %v6337
      %6362 = vmatpush1.msra.mxu0 %v6333
      %6363 = vmatprep.subr.mxu0 0.0
      %6364 = vmatpush1.msra.mxu0 0.0
      %6365 = vmatprep.subr.mxu0 0.0
      %6366 = vmatpush1.msra.mxu0 0.0
      %6367 = vmatprep.subr.mxu0 0.0
      %6368 = vmatpush1.msra.mxu0 0.0
      %6369 = vmatprep.subr.mxu0 0.0
      %6370 = vmatpush1.msra.mxu0 0.0
      %6371 = vmatprep.subr.mxu0 0.0
      %6372 = vmatpush1.msra.mxu0 0.0
      %6373 = vmatprep.subr.mxu0 0.0
      %6374 = vmatpush1.msra.mxu0 0.0
      %6375 = vmatprep.subr.mxu0 0.0
      %6376 = vmatpush1.msra.mxu0 0.0
      %6377 = vmatprep.subr.mxu0 0.0
      %6378 = vmatpush1.msra.mxu0 0.0
      %6379 = vmatprep.subr.mxu0 0.0
      %6380 = vmatpush1.msra.mxu0 0.0
      %6381 = vmatprep.subr.mxu0 0.0
      %6382 = vmatpush1.msra.mxu0 0.0
      %6383 = vmatprep.subr.mxu0 0.0
      %6384 = vmatpush1.msra.mxu0 0.0
      %6385 = vmatprep.subr.mxu0 0.0
      %6386 = vmatpush1.msra.mxu0 0.0
      %6387 = vmatprep.subr.mxu0 0.0
      %6388 = vmatpush1.msra.mxu0 0.0
      %6389 = vmatprep.subr.mxu0 0.0
      %6390 = vmatpush1.msra.mxu0 0.0
      %6391 = vmatprep.subr.mxu0 0.0
      %6392 = vmatpush1.msra.mxu0 0.0
      %6393 = vmatprep.subr.mxu0 0.0
      %6394 = vmatpush1.msra.mxu0 0.0
      %6395 = vmatprep.subr.mxu0 0.0
      %6396 = vmatpush1.msra.mxu0 0.0
      %6397 = vmatprep.subr.mxu0 0.0
      %6398 = vmatpush1.msra.mxu0 0.0
      %6399 = vmatprep.subr.mxu0 0.0
      %6400 = vmatpush1.msra.mxu0 0.0
      %6401 = vmatprep.subr.mxu0 0.0
      %6402 = vmatpush1.msra.mxu0 0.0
      %6403 = vmatprep.subr.mxu0 0.0
      %6404 = vmatpush1.msra.mxu0 0.0
      %6405 = vmatprep.subr.mxu0 0.0
      %6406 = vmatpush1.msra.mxu0 0.0
      %6407 = vmatprep.subr.mxu0 0.0
      %6408 = vmatpush1.msra.mxu0 0.0
      %6409 = vmatprep.subr.mxu0 0.0
      %6410 = vmatpush1.msra.mxu0 0.0
      %6411 = vmatprep.subr.mxu0 0.0
      %6412 = vmatpush1.msra.mxu0 0.0
      %6413 = vmatprep.subr.mxu0 0.0
      %6414 = vmatpush1.msra.mxu0 0.0
      %6415 = vmatprep.subr.mxu0 0.0
      %6416 = vmatpush1.msra.mxu0 0.0
      %6417 = vmatprep.subr.mxu0 0.0
      %6418 = vmatpush1.msra.mxu0 0.0
      %6419 = vmatprep.mubr.f32.mxu0 0.0
      %6420 = vmatmul.mubr.f32.gmra.mrb[0].mxu0 %v6344
      %v6421 = vpop.f32.mrb[0].mxu0
      %v6422 = vadd.f32 0.0, %v6421
      %v6423 = vpop.f32.mrb[0].mxu0
      %v6424 = vadd.f32 0.0, %v6423
      %6425 = vmatprep.mubr.f32.mxu0 0.0
      %6426 = vmatmul.mubr.f32.gmra.mrb[0].mxu0 %v6347
      %v6427 = vpop.f32.mrb[0].mxu0
      %v6428 = vadd.f32 0.0, %v6427
      %v6429 = vpop.f32.mrb[0].mxu0
      %v6430 = vadd.f32 0.0, %v6429
      %6431 = vmatprep.mubr.f32.mxu0 0.0
      %6432 = vmatmul.mubr.f32.gmra.mrb[0].mxu0 %v6350
      %v6433 = vpop.f32.mrb[0].mxu0
      %v6434 = vadd.f32 0.0, %v6433
      %v6435 = vpop.f32.mrb[0].mxu0
      %v6436 = vadd.f32 0.0, %v6435
      %6437 = vmatprep.mubr.f32.mxu0 0.0
      %6438 = vmatmul.mubr.f32.gmra.mrb[0].mxu0 %v6353
      %v6439 = vpop.f32.mrb[0].mxu0
      %v6440 = vadd.f32 0.0, %v6439
      %v6441 = vpop.f32.mrb[0].mxu0
      %v6442 = vadd.f32 0.0, %v6441
      %6443 = vdwg.mxu0
      %v6444 = vsel %vm3731, %v6422, 0.0
      %v6445 = vsel %vm3732, %v6424, 0.0
      %v6446 = vsel %vm3731, %v6428, 0.0
      %v6447 = vsel %vm3732, %v6430, 0.0
      %v6448 = vsel %vm3731, %v6434, 0.0
      %v6449 = vsel %vm3732, %v6436, 0.0
      %v6450 = vsel %vm3731, %v6440, 0.0
      %v6451 = vsel %vm3732, %v6442, 0.0
      %v6452 = vadd.f32 %v6306, %v6444
      %v6453 = vadd.f32 %v6307, %v6445
      %v6454 = vadd.f32 %v6308, %v6446
      %v6455 = vadd.f32 %v6309, %v6447
      %v6456 = vadd.f32 %v6310, %v6448
      %v6457 = vadd.f32 %v6311, %v6449
      %v6458 = vadd.f32 %v6312, %v6450
      %v6459 = vadd.f32 %v6313, %v6451
      %6460 = vrot.lane.b32.xlu0 %v5325, 111
      %v6461 = vpop.permute.xlu0 %6460
      %6462 = vrot.lane.b32.xlu0 %v5327, 111
      %v6463 = vpop.permute.xlu0 %6462
      %6464 = vrot.lane.b32.xlu0 %v5329, 111
      %v6465 = vpop.permute.xlu0 %6464
      %6466 = vrot.lane.b32.xlu0 %v5331, 111
      %v6467 = vpop.permute.xlu0 %6466
      %6468 = vrot.lane.b32.xlu0 %v5326, 111
      %v6469 = vpop.permute.xlu0 %6468
      %6470 = vrot.lane.b32.xlu0 %v5328, 111
      %v6471 = vpop.permute.xlu0 %6470
      %6472 = vrot.lane.b32.xlu0 %v5330, 111
      %v6473 = vpop.permute.xlu0 %6472
      %6474 = vrot.lane.b32.xlu0 %v5332, 111
      %v6475 = vpop.permute.xlu0 %6474
      %v6476 = vsel %vm3753, %v6461, %v6469
      %v6477 = vsel %vm3753, %v6463, %v6471
      %v6478 = vsel %vm3753, %v6465, %v6473
      %v6479 = vsel %vm3753, %v6467, %v6475
      %v6480 = vsel %vm3753, %v6469, %v6461
      %v6481 = vsel %vm3753, %v6471, %v6463
      %v6482 = vsel %vm3753, %v6473, %v6465
      %v6483 = vsel %vm3753, %v6475, %v6467
      %s6484 = scalar_lea.vmem %s9, 256
      %v6485 = vld [vmem:[%s6484] sm:$0xff]
      %v6486 = vld [vmem:[%s6484 + $0x8] sm:$0xff]
      %v6487 = vld [vmem:[%s6484 + $0x10] sm:$0xff]
      %v6488 = vld [vmem:[%s6484 + $0x18] sm:$0xff]
      %v6490 = vsel %vm1672, %v6485, 0
      %v6493 = vsel %vm1672, %v6486, 0
      %v6496 = vsel %vm1672, %v6487, 0
      %v6499 = vsel %vm1672, %v6488, 0
      %6501 = vmatprep.subr.mxu0 %v6480
      %6502 = vmatpush1.msra.mxu0 %v6476
      %6503 = vmatprep.subr.mxu0 %v6481
      %6504 = vmatpush1.msra.mxu0 %v6477
      %6505 = vmatprep.subr.mxu0 %v6482
      %6506 = vmatpush1.msra.mxu0 %v6478
      %6507 = vmatprep.subr.mxu0 %v6483
      %6508 = vmatpush1.msra.mxu0 %v6479
      %6509 = vmatprep.subr.mxu0 0.0
      %6510 = vmatpush1.msra.mxu0 0.0
      %6511 = vmatprep.subr.mxu0 0.0
      %6512 = vmatpush1.msra.mxu0 0.0
      %6513 = vmatprep.subr.mxu0 0.0
      %6514 = vmatpush1.msra.mxu0 0.0
      %6515 = vmatprep.subr.mxu0 0.0
      %6516 = vmatpush1.msra.mxu0 0.0
      %6517 = vmatprep.subr.mxu0 0.0
      %6518 = vmatpush1.msra.mxu0 0.0
      %6519 = vmatprep.subr.mxu0 0.0
      %6520 = vmatpush1.msra.mxu0 0.0
      %6521 = vmatprep.subr.mxu0 0.0
      %6522 = vmatpush1.msra.mxu0 0.0
      %6523 = vmatprep.subr.mxu0 0.0
      %6524 = vmatpush1.msra.mxu0 0.0
      %6525 = vmatprep.subr.mxu0 0.0
      %6526 = vmatpush1.msra.mxu0 0.0
      %6527 = vmatprep.subr.mxu0 0.0
      %6528 = vmatpush1.msra.mxu0 0.0
      %6529 = vmatprep.subr.mxu0 0.0
      %6530 = vmatpush1.msra.mxu0 0.0
      %6531 = vmatprep.subr.mxu0 0.0
      %6532 = vmatpush1.msra.mxu0 0.0
      %6533 = vmatprep.subr.mxu0 0.0
      %6534 = vmatpush1.msra.mxu0 0.0
      %6535 = vmatprep.subr.mxu0 0.0
      %6536 = vmatpush1.msra.mxu0 0.0
      %6537 = vmatprep.subr.mxu0 0.0
      %6538 = vmatpush1.msra.mxu0 0.0
      %6539 = vmatprep.subr.mxu0 0.0
      %6540 = vmatpush1.msra.mxu0 0.0
      %6541 = vmatprep.subr.mxu0 0.0
      %6542 = vmatpush1.msra.mxu0 0.0
      %6543 = vmatprep.subr.mxu0 0.0
      %6544 = vmatpush1.msra.mxu0 0.0
      %6545 = vmatprep.subr.mxu0 0.0
      %6546 = vmatpush1.msra.mxu0 0.0
      %6547 = vmatprep.subr.mxu0 0.0
      %6548 = vmatpush1.msra.mxu0 0.0
      %6549 = vmatprep.subr.mxu0 0.0
      %6550 = vmatpush1.msra.mxu0 0.0
      %6551 = vmatprep.subr.mxu0 0.0
      %6552 = vmatpush1.msra.mxu0 0.0
      %6553 = vmatprep.subr.mxu0 0.0
      %6554 = vmatpush1.msra.mxu0 0.0
      %6555 = vmatprep.subr.mxu0 0.0
      %6556 = vmatpush1.msra.mxu0 0.0
      %6557 = vmatprep.subr.mxu0 0.0
      %6558 = vmatpush1.msra.mxu0 0.0
      %6559 = vmatprep.subr.mxu0 0.0
      %6560 = vmatpush1.msra.mxu0 0.0
      %6561 = vmatprep.subr.mxu0 0.0
      %6562 = vmatpush1.msra.mxu0 0.0
      %6563 = vmatprep.subr.mxu0 0.0
      %6564 = vmatpush1.msra.mxu0 0.0
      %6565 = vmatprep.mubr.f32.mxu0 0.0
      %6566 = vmatmul.mubr.f32.gmra.mrb[0].mxu0 %v6490
      %v6567 = vpop.f32.mrb[0].mxu0
      %v6568 = vadd.f32 0.0, %v6567
      %v6569 = vpop.f32.mrb[0].mxu0
      %v6570 = vadd.f32 0.0, %v6569
      %6571 = vmatprep.mubr.f32.mxu0 0.0
      %6572 = vmatmul.mubr.f32.gmra.mrb[0].mxu0 %v6493
      %v6573 = vpop.f32.mrb[0].mxu0
      %v6574 = vadd.f32 0.0, %v6573
      %v6575 = vpop.f32.mrb[0].mxu0
      %v6576 = vadd.f32 0.0, %v6575
      %6577 = vmatprep.mubr.f32.mxu0 0.0
      %6578 = vmatmul.mubr.f32.gmra.mrb[0].mxu0 %v6496
      %v6579 = vpop.f32.mrb[0].mxu0
      %v6580 = vadd.f32 0.0, %v6579
      %v6581 = vpop.f32.mrb[0].mxu0
      %v6582 = vadd.f32 0.0, %v6581
      %6583 = vmatprep.mubr.f32.mxu0 0.0
      %6584 = vmatmul.mubr.f32.gmra.mrb[0].mxu0 %v6499
      %v6585 = vpop.f32.mrb[0].mxu0
      %v6586 = vadd.f32 0.0, %v6585
      %v6587 = vpop.f32.mrb[0].mxu0
      %v6588 = vadd.f32 0.0, %v6587
      %6589 = vdwg.mxu0
      %v6590 = vsel %vm4002, %v6568, 0.0
      %v6591 = vsel %vm4003, %v6570, 0.0
      %v6592 = vsel %vm4002, %v6574, 0.0
      %v6593 = vsel %vm4003, %v6576, 0.0
      %v6594 = vsel %vm4002, %v6580, 0.0
      %v6595 = vsel %vm4003, %v6582, 0.0
      %v6596 = vsel %vm4002, %v6586, 0.0
      %v6597 = vsel %vm4003, %v6588, 0.0
      %v6598 = vadd.f32 %v6452, %v6590
      %v6599 = vadd.f32 %v6453, %v6591
      %v6600 = vadd.f32 %v6454, %v6592
      %v6601 = vadd.f32 %v6455, %v6593
      %v6602 = vadd.f32 %v6456, %v6594
      %v6603 = vadd.f32 %v6457, %v6595
      %v6604 = vadd.f32 %v6458, %v6596
      %v6605 = vadd.f32 %v6459, %v6597
      %v6606 = vld [vmem:[%s10] sm:$0xff]
      %v6607 = vld [vmem:[%s10 + $0x8] sm:$0xff]
      %v6608 = vld [vmem:[%s10 + $0x10] sm:$0xff]
      %v6609 = vld [vmem:[%s10 + $0x18] sm:$0xff]
      %6611 = vset.pattern.permute.xlu0 0
      %6612 = vperm.xlu0 %6611, %v6606
      %v6613 = vpop.permute.xlu0 %6612
      %6616 = vset.pattern.permute.xlu0 0
      %6617 = vperm.xlu0 %6616, %v6607
      %v6618 = vpop.permute.xlu0 %6617
      %6621 = vset.pattern.permute.xlu0 0
      %6622 = vperm.xlu0 %6621, %v6608
      %v6623 = vpop.permute.xlu0 %6622
      %6626 = vset.pattern.permute.xlu0 0
      %6627 = vperm.xlu0 %6626, %v6609
      %v6628 = vpop.permute.xlu0 %6627
      %v6630 = vadd.f32 %v6598, %v6613
      %v6631 = vadd.f32 %v6599, %v6613
      %v6632 = vadd.f32 %v6600, %v6618
      %v6633 = vadd.f32 %v6601, %v6618
      %v6634 = vadd.f32 %v6602, %v6623
      %v6635 = vadd.f32 %v6603, %v6623
      %v6636 = vadd.f32 %v6604, %v6628
      %v6637 = vadd.f32 %v6605, %v6628
      %v6638 = vadd.f32 %v6630, %v4012
      %v6639 = vadd.f32 %v6631, %v4013
      %v6640 = vadd.f32 %v6632, %v4014
      %v6641 = vadd.f32 %v6633, %v4015
      %v6642 = vadd.f32 %v6634, %v4016
      %v6643 = vadd.f32 %v6635, %v4017
      %v6644 = vadd.f32 %v6636, %v4018
      %v6645 = vadd.f32 %v6637, %v4019
      %6646 = vrot.lane.b32.xlu0 %v6638, 17
      %v6647 = vpop.permute.xlu0 %6646
      %6648 = vrot.lane.b32.xlu0 %v6640, 17
      %v6649 = vpop.permute.xlu0 %6648
      %6650 = vrot.lane.b32.xlu0 %v6642, 17
      %v6651 = vpop.permute.xlu0 %6650
      %6652 = vrot.lane.b32.xlu0 %v6644, 17
      %v6653 = vpop.permute.xlu0 %6652
      %6654 = vrot.lane.b32.xlu0 %v6639, 17
      %v6655 = vpop.permute.xlu0 %6654
      %6656 = vrot.lane.b32.xlu0 %v6641, 17
      %v6657 = vpop.permute.xlu0 %6656
      %6658 = vrot.lane.b32.xlu0 %v6643, 17
      %v6659 = vpop.permute.xlu0 %6658
      %6660 = vrot.lane.b32.xlu0 %v6645, 17
      %v6661 = vpop.permute.xlu0 %6660
      %v6662 = vsel %vm1637, %v6647, %v6655
      %v6663 = vsel %vm1637, %v6649, %v6657
      %v6664 = vsel %vm1637, %v6651, %v6659
      %v6665 = vsel %vm1637, %v6653, %v6661
      %v6666 = vsel %vm1637, %v6655, %v6647
      %v6667 = vsel %vm1637, %v6657, %v6649
      %v6668 = vsel %vm1637, %v6659, %v6651
      %v6669 = vsel %vm1637, %v6661, %v6653
      %v6670 = vld [vmem:[%s11] sm:$0xff]
      %v6671 = vld [vmem:[%s11 + $0x8] sm:$0xff]
      %v6672 = vld [vmem:[%s11 + $0x10] sm:$0xff]
      %v6673 = vld [vmem:[%s11 + $0x18] sm:$0xff]
      %v6675 = vsel %vm1672, %v6670, 0
      %v6678 = vsel %vm1672, %v6671, 0
      %v6681 = vsel %vm1672, %v6672, 0
      %v6684 = vsel %vm1672, %v6673, 0
      %6686 = vmatprep.subr.mxu0 %v6662
      %6687 = vmatpush1.msra.mxu0 %v6666
      %6688 = vmatprep.subr.mxu0 %v6663
      %6689 = vmatpush1.msra.mxu0 %v6667
      %6690 = vmatprep.subr.mxu0 %v6664
      %6691 = vmatpush1.msra.mxu0 %v6668
      %6692 = vmatprep.subr.mxu0 %v6665
      %6693 = vmatpush1.msra.mxu0 %v6669
      %6694 = vmatprep.subr.mxu0 0.0
      %6695 = vmatpush1.msra.mxu0 0.0
      %6696 = vmatprep.subr.mxu0 0.0
      %6697 = vmatpush1.msra.mxu0 0.0
      %6698 = vmatprep.subr.mxu0 0.0
      %6699 = vmatpush1.msra.mxu0 0.0
      %6700 = vmatprep.subr.mxu0 0.0
      %6701 = vmatpush1.msra.mxu0 0.0
      %6702 = vmatprep.subr.mxu0 0.0
      %6703 = vmatpush1.msra.mxu0 0.0
      %6704 = vmatprep.subr.mxu0 0.0
      %6705 = vmatpush1.msra.mxu0 0.0
      %6706 = vmatprep.subr.mxu0 0.0
      %6707 = vmatpush1.msra.mxu0 0.0
      %6708 = vmatprep.subr.mxu0 0.0
      %6709 = vmatpush1.msra.mxu0 0.0
      %6710 = vmatprep.subr.mxu0 0.0
      %6711 = vmatpush1.msra.mxu0 0.0
      %6712 = vmatprep.subr.mxu0 0.0
      %6713 = vmatpush1.msra.mxu0 0.0
      %6714 = vmatprep.subr.mxu0 0.0
      %6715 = vmatpush1.msra.mxu0 0.0
      %6716 = vmatprep.subr.mxu0 0.0
      %6717 = vmatpush1.msra.mxu0 0.0
      %6718 = vmatprep.subr.mxu0 0.0
      %6719 = vmatpush1.msra.mxu0 0.0
      %6720 = vmatprep.subr.mxu0 0.0
      %6721 = vmatpush1.msra.mxu0 0.0
      %6722 = vmatprep.subr.mxu0 0.0
      %6723 = vmatpush1.msra.mxu0 0.0
      %6724 = vmatprep.subr.mxu0 0.0
      %6725 = vmatpush1.msra.mxu0 0.0
      %6726 = vmatprep.subr.mxu0 0.0
      %6727 = vmatpush1.msra.mxu0 0.0
      %6728 = vmatprep.subr.mxu0 0.0
      %6729 = vmatpush1.msra.mxu0 0.0
      %6730 = vmatprep.subr.mxu0 0.0
      %6731 = vmatpush1.msra.mxu0 0.0
      %6732 = vmatprep.subr.mxu0 0.0
      %6733 = vmatpush1.msra.mxu0 0.0
      %6734 = vmatprep.subr.mxu0 0.0
      %6735 = vmatpush1.msra.mxu0 0.0
      %6736 = vmatprep.subr.mxu0 0.0
      %6737 = vmatpush1.msra.mxu0 0.0
      %6738 = vmatprep.subr.mxu0 0.0
      %6739 = vmatpush1.msra.mxu0 0.0
      %6740 = vmatprep.subr.mxu0 0.0
      %6741 = vmatpush1.msra.mxu0 0.0
      %6742 = vmatprep.subr.mxu0 0.0
      %6743 = vmatpush1.msra.mxu0 0.0
      %6744 = vmatprep.subr.mxu0 0.0
      %6745 = vmatpush1.msra.mxu0 0.0
      %6746 = vmatprep.subr.mxu0 0.0
      %6747 = vmatpush1.msra.mxu0 0.0
      %6748 = vmatprep.subr.mxu0 0.0
      %6749 = vmatpush1.msra.mxu0 0.0
      %6750 = vmatprep.mubr.f32.mxu0 0.0
      %6751 = vmatmul.mubr.f32.gmra.mrb[0].mxu0 %v6675
      %v6752 = vpop.f32.mrb[0].mxu0
      %v6753 = vadd.f32 0.0, %v6752
      %v6754 = vpop.f32.mrb[0].mxu0
      %v6755 = vadd.f32 0.0, %v6754
      %6756 = vmatprep.mubr.f32.mxu0 0.0
      %6757 = vmatmul.mubr.f32.gmra.mrb[0].mxu0 %v6678
      %v6758 = vpop.f32.mrb[0].mxu0
      %v6759 = vadd.f32 0.0, %v6758
      %v6760 = vpop.f32.mrb[0].mxu0
      %v6761 = vadd.f32 0.0, %v6760
      %6762 = vmatprep.mubr.f32.mxu0 0.0
      %6763 = vmatmul.mubr.f32.gmra.mrb[0].mxu0 %v6681
      %v6764 = vpop.f32.mrb[0].mxu0
      %v6765 = vadd.f32 0.0, %v6764
      %v6766 = vpop.f32.mrb[0].mxu0
      %v6767 = vadd.f32 0.0, %v6766
      %6768 = vmatprep.mubr.f32.mxu0 0.0
      %6769 = vmatmul.mubr.f32.gmra.mrb[0].mxu0 %v6684
      %v6770 = vpop.f32.mrb[0].mxu0
      %v6771 = vadd.f32 0.0, %v6770
      %v6772 = vpop.f32.mrb[0].mxu0
      %v6773 = vadd.f32 0.0, %v6772
      %6774 = vdwg.mxu0
      %v6775 = vsel %vm1891, %v6753, 0.0
      %v6776 = vsel %vm1892, %v6755, 0.0
      %v6777 = vsel %vm1891, %v6759, 0.0
      %v6778 = vsel %vm1892, %v6761, 0.0
      %v6779 = vsel %vm1891, %v6765, 0.0
      %v6780 = vsel %vm1892, %v6767, 0.0
      %v6781 = vsel %vm1891, %v6771, 0.0
      %v6782 = vsel %vm1892, %v6773, 0.0
      %6783 = vrot.lane.b32.xlu0 %v6638, 16
      %v6784 = vpop.permute.xlu0 %6783
      %6785 = vrot.lane.b32.xlu0 %v6640, 16
      %v6786 = vpop.permute.xlu0 %6785
      %6787 = vrot.lane.b32.xlu0 %v6642, 16
      %v6788 = vpop.permute.xlu0 %6787
      %6789 = vrot.lane.b32.xlu0 %v6644, 16
      %v6790 = vpop.permute.xlu0 %6789
      %6791 = vrot.lane.b32.xlu0 %v6639, 16
      %v6792 = vpop.permute.xlu0 %6791
      %6793 = vrot.lane.b32.xlu0 %v6641, 16
      %v6794 = vpop.permute.xlu0 %6793
      %6795 = vrot.lane.b32.xlu0 %v6643, 16
      %v6796 = vpop.permute.xlu0 %6795
      %6797 = vrot.lane.b32.xlu0 %v6645, 16
      %v6798 = vpop.permute.xlu0 %6797
      %v6799 = vsel %vm1905, %v6784, %v6792
      %v6800 = vsel %vm1905, %v6786, %v6794
      %v6801 = vsel %vm1905, %v6788, %v6796
      %v6802 = vsel %vm1905, %v6790, %v6798
      %v6803 = vsel %vm1905, %v6792, %v6784
      %v6804 = vsel %vm1905, %v6794, %v6786
      %v6805 = vsel %vm1905, %v6796, %v6788
      %v6806 = vsel %vm1905, %v6798, %v6790
      %s6807 = scalar_lea.vmem %s11, 32
      %v6808 = vld [vmem:[%s6807] sm:$0xff]
      %v6809 = vld [vmem:[%s6807 + $0x8] sm:$0xff]
      %v6810 = vld [vmem:[%s6807 + $0x10] sm:$0xff]
      %v6811 = vld [vmem:[%s6807 + $0x18] sm:$0xff]
      %v6813 = vsel %vm1672, %v6808, 0
      %v6816 = vsel %vm1672, %v6809, 0
      %v6819 = vsel %vm1672, %v6810, 0
      %v6822 = vsel %vm1672, %v6811, 0
      %6824 = vmatprep.subr.mxu0 %v6799
      %6825 = vmatpush1.msra.mxu0 %v6803
      %6826 = vmatprep.subr.mxu0 %v6800
      %6827 = vmatpush1.msra.mxu0 %v6804
      %6828 = vmatprep.subr.mxu0 %v6801
      %6829 = vmatpush1.msra.mxu0 %v6805
      %6830 = vmatprep.subr.mxu0 %v6802
      %6831 = vmatpush1.msra.mxu0 %v6806
      %6832 = vmatprep.subr.mxu0 0.0
      %6833 = vmatpush1.msra.mxu0 0.0
      %6834 = vmatprep.subr.mxu0 0.0
      %6835 = vmatpush1.msra.mxu0 0.0
      %6836 = vmatprep.subr.mxu0 0.0
      %6837 = vmatpush1.msra.mxu0 0.0
      %6838 = vmatprep.subr.mxu0 0.0
      %6839 = vmatpush1.msra.mxu0 0.0
      %6840 = vmatprep.subr.mxu0 0.0
      %6841 = vmatpush1.msra.mxu0 0.0
      %6842 = vmatprep.subr.mxu0 0.0
      %6843 = vmatpush1.msra.mxu0 0.0
      %6844 = vmatprep.subr.mxu0 0.0
      %6845 = vmatpush1.msra.mxu0 0.0
      %6846 = vmatprep.subr.mxu0 0.0
      %6847 = vmatpush1.msra.mxu0 0.0
      %6848 = vmatprep.subr.mxu0 0.0
      %6849 = vmatpush1.msra.mxu0 0.0
      %6850 = vmatprep.subr.mxu0 0.0
      %6851 = vmatpush1.msra.mxu0 0.0
      %6852 = vmatprep.subr.mxu0 0.0
      %6853 = vmatpush1.msra.mxu0 0.0
      %6854 = vmatprep.subr.mxu0 0.0
      %6855 = vmatpush1.msra.mxu0 0.0
      %6856 = vmatprep.subr.mxu0 0.0
      %6857 = vmatpush1.msra.mxu0 0.0
      %6858 = vmatprep.subr.mxu0 0.0
      %6859 = vmatpush1.msra.mxu0 0.0
      %6860 = vmatprep.subr.mxu0 0.0
      %6861 = vmatpush1.msra.mxu0 0.0
      %6862 = vmatprep.subr.mxu0 0.0
      %6863 = vmatpush1.msra.mxu0 0.0
      %6864 = vmatprep.subr.mxu0 0.0
      %6865 = vmatpush1.msra.mxu0 0.0
      %6866 = vmatprep.subr.mxu0 0.0
      %6867 = vmatpush1.msra.mxu0 0.0
      %6868 = vmatprep.subr.mxu0 0.0
      %6869 = vmatpush1.msra.mxu0 0.0
      %6870 = vmatprep.subr.mxu0 0.0
      %6871 = vmatpush1.msra.mxu0 0.0
      %6872 = vmatprep.subr.mxu0 0.0
      %6873 = vmatpush1.msra.mxu0 0.0
      %6874 = vmatprep.subr.mxu0 0.0
      %6875 = vmatpush1.msra.mxu0 0.0
      %6876 = vmatprep.subr.mxu0 0.0
      %6877 = vmatpush1.msra.mxu0 0.0
      %6878 = vmatprep.subr.mxu0 0.0
      %6879 = vmatpush1.msra.mxu0 0.0
      %6880 = vmatprep.subr.mxu0 0.0
      %6881 = vmatpush1.msra.mxu0 0.0
      %6882 = vmatprep.subr.mxu0 0.0
      %6883 = vmatpush1.msra.mxu0 0.0
      %6884 = vmatprep.subr.mxu0 0.0
      %6885 = vmatpush1.msra.mxu0 0.0
      %6886 = vmatprep.subr.mxu0 0.0
      %6887 = vmatpush1.msra.mxu0 0.0
      %6888 = vmatprep.mubr.f32.mxu0 0.0
      %6889 = vmatmul.mubr.f32.gmra.mrb[0].mxu0 %v6813
      %v6890 = vpop.f32.mrb[0].mxu0
      %v6891 = vadd.f32 0.0, %v6890
      %v6892 = vpop.f32.mrb[0].mxu0
      %v6893 = vadd.f32 0.0, %v6892
      %6894 = vmatprep.mubr.f32.mxu0 0.0
      %6895 = vmatmul.mubr.f32.gmra.mrb[0].mxu0 %v6816
      %v6896 = vpop.f32.mrb[0].mxu0
      %v6897 = vadd.f32 0.0, %v6896
      %v6898 = vpop.f32.mrb[0].mxu0
      %v6899 = vadd.f32 0.0, %v6898
      %6900 = vmatprep.mubr.f32.mxu0 0.0
      %6901 = vmatmul.mubr.f32.gmra.mrb[0].mxu0 %v6819
      %v6902 = vpop.f32.mrb[0].mxu0
      %v6903 = vadd.f32 0.0, %v6902
      %v6904 = vpop.f32.mrb[0].mxu0
      %v6905 = vadd.f32 0.0, %v6904
      %6906 = vmatprep.mubr.f32.mxu0 0.0
      %6907 = vmatmul.mubr.f32.gmra.mrb[0].mxu0 %v6822
      %v6908 = vpop.f32.mrb[0].mxu0
      %v6909 = vadd.f32 0.0, %v6908
      %v6910 = vpop.f32.mrb[0].mxu0
      %v6911 = vadd.f32 0.0, %v6910
      %6912 = vdwg.mxu0
      %v6913 = vsel %vm2152, %v6891, 0.0
      %v6914 = vsel %vm2153, %v6893, 0.0
      %v6915 = vsel %vm2152, %v6897, 0.0
      %v6916 = vsel %vm2153, %v6899, 0.0
      %v6917 = vsel %vm2152, %v6903, 0.0
      %v6918 = vsel %vm2153, %v6905, 0.0
      %v6919 = vsel %vm2152, %v6909, 0.0
      %v6920 = vsel %vm2153, %v6911, 0.0
      %v6921 = vadd.f32 %v6775, %v6913
      %v6922 = vadd.f32 %v6776, %v6914
      %v6923 = vadd.f32 %v6777, %v6915
      %v6924 = vadd.f32 %v6778, %v6916
      %v6925 = vadd.f32 %v6779, %v6917
      %v6926 = vadd.f32 %v6780, %v6918
      %v6927 = vadd.f32 %v6781, %v6919
      %v6928 = vadd.f32 %v6782, %v6920
      %6929 = vrot.lane.b32.xlu0 %v6638, 15
      %v6930 = vpop.permute.xlu0 %6929
      %6931 = vrot.lane.b32.xlu0 %v6640, 15
      %v6932 = vpop.permute.xlu0 %6931
      %6933 = vrot.lane.b32.xlu0 %v6642, 15
      %v6934 = vpop.permute.xlu0 %6933
      %6935 = vrot.lane.b32.xlu0 %v6644, 15
      %v6936 = vpop.permute.xlu0 %6935
      %6937 = vrot.lane.b32.xlu0 %v6639, 15
      %v6938 = vpop.permute.xlu0 %6937
      %6939 = vrot.lane.b32.xlu0 %v6641, 15
      %v6940 = vpop.permute.xlu0 %6939
      %6941 = vrot.lane.b32.xlu0 %v6643, 15
      %v6942 = vpop.permute.xlu0 %6941
      %6943 = vrot.lane.b32.xlu0 %v6645, 15
      %v6944 = vpop.permute.xlu0 %6943
      %v6945 = vsel %vm2174, %v6930, %v6938
      %v6946 = vsel %vm2174, %v6932, %v6940
      %v6947 = vsel %vm2174, %v6934, %v6942
      %v6948 = vsel %vm2174, %v6936, %v6944
      %v6949 = vsel %vm2174, %v6938, %v6930
      %v6950 = vsel %vm2174, %v6940, %v6932
      %v6951 = vsel %vm2174, %v6942, %v6934
      %v6952 = vsel %vm2174, %v6944, %v6936
      %s6953 = scalar_lea.vmem %s11, 64
      %v6954 = vld [vmem:[%s6953] sm:$0xff]
      %v6955 = vld [vmem:[%s6953 + $0x8] sm:$0xff]
      %v6956 = vld [vmem:[%s6953 + $0x10] sm:$0xff]
      %v6957 = vld [vmem:[%s6953 + $0x18] sm:$0xff]
      %v6959 = vsel %vm1672, %v6954, 0
      %v6962 = vsel %vm1672, %v6955, 0
      %v6965 = vsel %vm1672, %v6956, 0
      %v6968 = vsel %vm1672, %v6957, 0
      %6970 = vmatprep.subr.mxu0 %v6945
      %6971 = vmatpush1.msra.mxu0 %v6949
      %6972 = vmatprep.subr.mxu0 %v6946
      %6973 = vmatpush1.msra.mxu0 %v6950
      %6974 = vmatprep.subr.mxu0 %v6947
      %6975 = vmatpush1.msra.mxu0 %v6951
      %6976 = vmatprep.subr.mxu0 %v6948
      %6977 = vmatpush1.msra.mxu0 %v6952
      %6978 = vmatprep.subr.mxu0 0.0
      %6979 = vmatpush1.msra.mxu0 0.0
      %6980 = vmatprep.subr.mxu0 0.0
      %6981 = vmatpush1.msra.mxu0 0.0
      %6982 = vmatprep.subr.mxu0 0.0
      %6983 = vmatpush1.msra.mxu0 0.0
      %6984 = vmatprep.subr.mxu0 0.0
      %6985 = vmatpush1.msra.mxu0 0.0
      %6986 = vmatprep.subr.mxu0 0.0
      %6987 = vmatpush1.msra.mxu0 0.0
      %6988 = vmatprep.subr.mxu0 0.0
      %6989 = vmatpush1.msra.mxu0 0.0
      %6990 = vmatprep.subr.mxu0 0.0
      %6991 = vmatpush1.msra.mxu0 0.0
      %6992 = vmatprep.subr.mxu0 0.0
      %6993 = vmatpush1.msra.mxu0 0.0
      %6994 = vmatprep.subr.mxu0 0.0
      %6995 = vmatpush1.msra.mxu0 0.0
      %6996 = vmatprep.subr.mxu0 0.0
      %6997 = vmatpush1.msra.mxu0 0.0
      %6998 = vmatprep.subr.mxu0 0.0
      %6999 = vmatpush1.msra.mxu0 0.0
      %7000 = vmatprep.subr.mxu0 0.0
      %7001 = vmatpush1.msra.mxu0 0.0
      %7002 = vmatprep.subr.mxu0 0.0
      %7003 = vmatpush1.msra.mxu0 0.0
      %7004 = vmatprep.subr.mxu0 0.0
      %7005 = vmatpush1.msra.mxu0 0.0
      %7006 = vmatprep.subr.mxu0 0.0
      %7007 = vmatpush1.msra.mxu0 0.0
      %7008 = vmatprep.subr.mxu0 0.0
      %7009 = vmatpush1.msra.mxu0 0.0
      %7010 = vmatprep.subr.mxu0 0.0
      %7011 = vmatpush1.msra.mxu0 0.0
      %7012 = vmatprep.subr.mxu0 0.0
      %7013 = vmatpush1.msra.mxu0 0.0
      %7014 = vmatprep.subr.mxu0 0.0
      %7015 = vmatpush1.msra.mxu0 0.0
      %7016 = vmatprep.subr.mxu0 0.0
      %7017 = vmatpush1.msra.mxu0 0.0
      %7018 = vmatprep.subr.mxu0 0.0
      %7019 = vmatpush1.msra.mxu0 0.0
      %7020 = vmatprep.subr.mxu0 0.0
      %7021 = vmatpush1.msra.mxu0 0.0
      %7022 = vmatprep.subr.mxu0 0.0
      %7023 = vmatpush1.msra.mxu0 0.0
      %7024 = vmatprep.subr.mxu0 0.0
      %7025 = vmatpush1.msra.mxu0 0.0
      %7026 = vmatprep.subr.mxu0 0.0
      %7027 = vmatpush1.msra.mxu0 0.0
      %7028 = vmatprep.subr.mxu0 0.0
      %7029 = vmatpush1.msra.mxu0 0.0
      %7030 = vmatprep.subr.mxu0 0.0
      %7031 = vmatpush1.msra.mxu0 0.0
      %7032 = vmatprep.subr.mxu0 0.0
      %7033 = vmatpush1.msra.mxu0 0.0
      %7034 = vmatprep.mubr.f32.mxu0 0.0
      %7035 = vmatmul.mubr.f32.gmra.mrb[0].mxu0 %v6959
      %v7036 = vpop.f32.mrb[0].mxu0
      %v7037 = vadd.f32 0.0, %v7036
      %v7038 = vpop.f32.mrb[0].mxu0
      %v7039 = vadd.f32 0.0, %v7038
      %7040 = vmatprep.mubr.f32.mxu0 0.0
      %7041 = vmatmul.mubr.f32.gmra.mrb[0].mxu0 %v6962
      %v7042 = vpop.f32.mrb[0].mxu0
      %v7043 = vadd.f32 0.0, %v7042
      %v7044 = vpop.f32.mrb[0].mxu0
      %v7045 = vadd.f32 0.0, %v7044
      %7046 = vmatprep.mubr.f32.mxu0 0.0
      %7047 = vmatmul.mubr.f32.gmra.mrb[0].mxu0 %v6965
      %v7048 = vpop.f32.mrb[0].mxu0
      %v7049 = vadd.f32 0.0, %v7048
      %v7050 = vpop.f32.mrb[0].mxu0
      %v7051 = vadd.f32 0.0, %v7050
      %7052 = vmatprep.mubr.f32.mxu0 0.0
      %7053 = vmatmul.mubr.f32.gmra.mrb[0].mxu0 %v6968
      %v7054 = vpop.f32.mrb[0].mxu0
      %v7055 = vadd.f32 0.0, %v7054
      %v7056 = vpop.f32.mrb[0].mxu0
      %v7057 = vadd.f32 0.0, %v7056
      %7058 = vdwg.mxu0
      %v7059 = vsel %vm2425, %v7037, 0.0
      %v7060 = vsel %vm2426, %v7039, 0.0
      %v7061 = vsel %vm2425, %v7043, 0.0
      %v7062 = vsel %vm2426, %v7045, 0.0
      %v7063 = vsel %vm2425, %v7049, 0.0
      %v7064 = vsel %vm2426, %v7051, 0.0
      %v7065 = vsel %vm2425, %v7055, 0.0
      %v7066 = vsel %vm2426, %v7057, 0.0
      %v7067 = vadd.f32 %v6921, %v7059
      %v7068 = vadd.f32 %v6922, %v7060
      %v7069 = vadd.f32 %v6923, %v7061
      %v7070 = vadd.f32 %v6924, %v7062
      %v7071 = vadd.f32 %v6925, %v7063
      %v7072 = vadd.f32 %v6926, %v7064
      %v7073 = vadd.f32 %v6927, %v7065
      %v7074 = vadd.f32 %v6928, %v7066
      %7075 = vrot.lane.b32.xlu0 %v6638, 1
      %v7076 = vpop.permute.xlu0 %7075
      %7077 = vrot.lane.b32.xlu0 %v6640, 1
      %v7078 = vpop.permute.xlu0 %7077
      %7079 = vrot.lane.b32.xlu0 %v6642, 1
      %v7080 = vpop.permute.xlu0 %7079
      %7081 = vrot.lane.b32.xlu0 %v6644, 1
      %v7082 = vpop.permute.xlu0 %7081
      %7083 = vrot.lane.b32.xlu0 %v6639, 1
      %v7084 = vpop.permute.xlu0 %7083
      %7085 = vrot.lane.b32.xlu0 %v6641, 1
      %v7086 = vpop.permute.xlu0 %7085
      %7087 = vrot.lane.b32.xlu0 %v6643, 1
      %v7088 = vpop.permute.xlu0 %7087
      %7089 = vrot.lane.b32.xlu0 %v6645, 1
      %v7090 = vpop.permute.xlu0 %7089
      %v7091 = vsel %vm2447, %v7076, %v7084
      %v7092 = vsel %vm2447, %v7078, %v7086
      %v7093 = vsel %vm2447, %v7080, %v7088
      %v7094 = vsel %vm2447, %v7082, %v7090
      %v7095 = vsel %vm2447, %v7084, %v7076
      %v7096 = vsel %vm2447, %v7086, %v7078
      %v7097 = vsel %vm2447, %v7088, %v7080
      %v7098 = vsel %vm2447, %v7090, %v7082
      %s7099 = scalar_lea.vmem %s11, 96
      %v7100 = vld [vmem:[%s7099] sm:$0xff]
      %v7101 = vld [vmem:[%s7099 + $0x8] sm:$0xff]
      %v7102 = vld [vmem:[%s7099 + $0x10] sm:$0xff]
      %v7103 = vld [vmem:[%s7099 + $0x18] sm:$0xff]
      %v7105 = vsel %vm1672, %v7100, 0
      %v7108 = vsel %vm1672, %v7101, 0
      %v7111 = vsel %vm1672, %v7102, 0
      %v7114 = vsel %vm1672, %v7103, 0
      %7116 = vmatprep.subr.mxu0 %v7091
      %7117 = vmatpush1.msra.mxu0 %v7095
      %7118 = vmatprep.subr.mxu0 %v7092
      %7119 = vmatpush1.msra.mxu0 %v7096
      %7120 = vmatprep.subr.mxu0 %v7093
      %7121 = vmatpush1.msra.mxu0 %v7097
      %7122 = vmatprep.subr.mxu0 %v7094
      %7123 = vmatpush1.msra.mxu0 %v7098
      %7124 = vmatprep.subr.mxu0 0.0
      %7125 = vmatpush1.msra.mxu0 0.0
      %7126 = vmatprep.subr.mxu0 0.0
      %7127 = vmatpush1.msra.mxu0 0.0
      %7128 = vmatprep.subr.mxu0 0.0
      %7129 = vmatpush1.msra.mxu0 0.0
      %7130 = vmatprep.subr.mxu0 0.0
      %7131 = vmatpush1.msra.mxu0 0.0
      %7132 = vmatprep.subr.mxu0 0.0
      %7133 = vmatpush1.msra.mxu0 0.0
      %7134 = vmatprep.subr.mxu0 0.0
      %7135 = vmatpush1.msra.mxu0 0.0
      %7136 = vmatprep.subr.mxu0 0.0
      %7137 = vmatpush1.msra.mxu0 0.0
      %7138 = vmatprep.subr.mxu0 0.0
      %7139 = vmatpush1.msra.mxu0 0.0
      %7140 = vmatprep.subr.mxu0 0.0
      %7141 = vmatpush1.msra.mxu0 0.0
      %7142 = vmatprep.subr.mxu0 0.0
      %7143 = vmatpush1.msra.mxu0 0.0
      %7144 = vmatprep.subr.mxu0 0.0
      %7145 = vmatpush1.msra.mxu0 0.0
      %7146 = vmatprep.subr.mxu0 0.0
      %7147 = vmatpush1.msra.mxu0 0.0
      %7148 = vmatprep.subr.mxu0 0.0
      %7149 = vmatpush1.msra.mxu0 0.0
      %7150 = vmatprep.subr.mxu0 0.0
      %7151 = vmatpush1.msra.mxu0 0.0
      %7152 = vmatprep.subr.mxu0 0.0
      %7153 = vmatpush1.msra.mxu0 0.0
      %7154 = vmatprep.subr.mxu0 0.0
      %7155 = vmatpush1.msra.mxu0 0.0
      %7156 = vmatprep.subr.mxu0 0.0
      %7157 = vmatpush1.msra.mxu0 0.0
      %7158 = vmatprep.subr.mxu0 0.0
      %7159 = vmatpush1.msra.mxu0 0.0
      %7160 = vmatprep.subr.mxu0 0.0
      %7161 = vmatpush1.msra.mxu0 0.0
      %7162 = vmatprep.subr.mxu0 0.0
      %7163 = vmatpush1.msra.mxu0 0.0
      %7164 = vmatprep.subr.mxu0 0.0
      %7165 = vmatpush1.msra.mxu0 0.0
      %7166 = vmatprep.subr.mxu0 0.0
      %7167 = vmatpush1.msra.mxu0 0.0
      %7168 = vmatprep.subr.mxu0 0.0
      %7169 = vmatpush1.msra.mxu0 0.0
      %7170 = vmatprep.subr.mxu0 0.0
      %7171 = vmatpush1.msra.mxu0 0.0
      %7172 = vmatprep.subr.mxu0 0.0
      %7173 = vmatpush1.msra.mxu0 0.0
      %7174 = vmatprep.subr.mxu0 0.0
      %7175 = vmatpush1.msra.mxu0 0.0
      %7176 = vmatprep.subr.mxu0 0.0
      %7177 = vmatpush1.msra.mxu0 0.0
      %7178 = vmatprep.subr.mxu0 0.0
      %7179 = vmatpush1.msra.mxu0 0.0
      %7180 = vmatprep.mubr.f32.mxu0 0.0
      %7181 = vmatmul.mubr.f32.gmra.mrb[0].mxu0 %v7105
      %v7182 = vpop.f32.mrb[0].mxu0
      %v7183 = vadd.f32 0.0, %v7182
      %v7184 = vpop.f32.mrb[0].mxu0
      %v7185 = vadd.f32 0.0, %v7184
      %7186 = vmatprep.mubr.f32.mxu0 0.0
      %7187 = vmatmul.mubr.f32.gmra.mrb[0].mxu0 %v7108
      %v7188 = vpop.f32.mrb[0].mxu0
      %v7189 = vadd.f32 0.0, %v7188
      %v7190 = vpop.f32.mrb[0].mxu0
      %v7191 = vadd.f32 0.0, %v7190
      %7192 = vmatprep.mubr.f32.mxu0 0.0
      %7193 = vmatmul.mubr.f32.gmra.mrb[0].mxu0 %v7111
      %v7194 = vpop.f32.mrb[0].mxu0
      %v7195 = vadd.f32 0.0, %v7194
      %v7196 = vpop.f32.mrb[0].mxu0
      %v7197 = vadd.f32 0.0, %v7196
      %7198 = vmatprep.mubr.f32.mxu0 0.0
      %7199 = vmatmul.mubr.f32.gmra.mrb[0].mxu0 %v7114
      %v7200 = vpop.f32.mrb[0].mxu0
      %v7201 = vadd.f32 0.0, %v7200
      %v7202 = vpop.f32.mrb[0].mxu0
      %v7203 = vadd.f32 0.0, %v7202
      %7204 = vdwg.mxu0
      %v7205 = vsel %vm2694, %v7183, 0.0
      %v7206 = vsel %vm2695, %v7185, 0.0
      %v7207 = vsel %vm2694, %v7189, 0.0
      %v7208 = vsel %vm2695, %v7191, 0.0
      %v7209 = vsel %vm2694, %v7195, 0.0
      %v7210 = vsel %vm2695, %v7197, 0.0
      %v7211 = vsel %vm2694, %v7201, 0.0
      %v7212 = vsel %vm2695, %v7203, 0.0
      %v7213 = vadd.f32 %v7067, %v7205
      %v7214 = vadd.f32 %v7068, %v7206
      %v7215 = vadd.f32 %v7069, %v7207
      %v7216 = vadd.f32 %v7070, %v7208
      %v7217 = vadd.f32 %v7071, %v7209
      %v7218 = vadd.f32 %v7072, %v7210
      %v7219 = vadd.f32 %v7073, %v7211
      %v7220 = vadd.f32 %v7074, %v7212
      %s7221 = scalar_lea.vmem %s11, 128
      %v7222 = vld [vmem:[%s7221] sm:$0xff]
      %v7223 = vld [vmem:[%s7221 + $0x8] sm:$0xff]
      %v7224 = vld [vmem:[%s7221 + $0x10] sm:$0xff]
      %v7225 = vld [vmem:[%s7221 + $0x18] sm:$0xff]
      %v7227 = vsel %vm1672, %v7222, 0
      %v7230 = vsel %vm1672, %v7223, 0
      %v7233 = vsel %vm1672, %v7224, 0
      %v7236 = vsel %vm1672, %v7225, 0
      %7238 = vmatprep.subr.mxu0 %v6639
      %7239 = vmatpush1.msra.mxu0 %v6638
      %7240 = vmatprep.subr.mxu0 %v6641
      %7241 = vmatpush1.msra.mxu0 %v6640
      %7242 = vmatprep.subr.mxu0 %v6643
      %7243 = vmatpush1.msra.mxu0 %v6642
      %7244 = vmatprep.subr.mxu0 %v6645
      %7245 = vmatpush1.msra.mxu0 %v6644
      %7246 = vmatprep.subr.mxu0 0.0
      %7247 = vmatpush1.msra.mxu0 0.0
      %7248 = vmatprep.subr.mxu0 0.0
      %7249 = vmatpush1.msra.mxu0 0.0
      %7250 = vmatprep.subr.mxu0 0.0
      %7251 = vmatpush1.msra.mxu0 0.0
      %7252 = vmatprep.subr.mxu0 0.0
      %7253 = vmatpush1.msra.mxu0 0.0
      %7254 = vmatprep.subr.mxu0 0.0
      %7255 = vmatpush1.msra.mxu0 0.0
      %7256 = vmatprep.subr.mxu0 0.0
      %7257 = vmatpush1.msra.mxu0 0.0
      %7258 = vmatprep.subr.mxu0 0.0
      %7259 = vmatpush1.msra.mxu0 0.0
      %7260 = vmatprep.subr.mxu0 0.0
      %7261 = vmatpush1.msra.mxu0 0.0
      %7262 = vmatprep.subr.mxu0 0.0
      %7263 = vmatpush1.msra.mxu0 0.0
      %7264 = vmatprep.subr.mxu0 0.0
      %7265 = vmatpush1.msra.mxu0 0.0
      %7266 = vmatprep.subr.mxu0 0.0
      %7267 = vmatpush1.msra.mxu0 0.0
      %7268 = vmatprep.subr.mxu0 0.0
      %7269 = vmatpush1.msra.mxu0 0.0
      %7270 = vmatprep.subr.mxu0 0.0
      %7271 = vmatpush1.msra.mxu0 0.0
      %7272 = vmatprep.subr.mxu0 0.0
      %7273 = vmatpush1.msra.mxu0 0.0
      %7274 = vmatprep.subr.mxu0 0.0
      %7275 = vmatpush1.msra.mxu0 0.0
      %7276 = vmatprep.subr.mxu0 0.0
      %7277 = vmatpush1.msra.mxu0 0.0
      %7278 = vmatprep.subr.mxu0 0.0
      %7279 = vmatpush1.msra.mxu0 0.0
      %7280 = vmatprep.subr.mxu0 0.0
      %7281 = vmatpush1.msra.mxu0 0.0
      %7282 = vmatprep.subr.mxu0 0.0
      %7283 = vmatpush1.msra.mxu0 0.0
      %7284 = vmatprep.subr.mxu0 0.0
      %7285 = vmatpush1.msra.mxu0 0.0
      %7286 = vmatprep.subr.mxu0 0.0
      %7287 = vmatpush1.msra.mxu0 0.0
      %7288 = vmatprep.subr.mxu0 0.0
      %7289 = vmatpush1.msra.mxu0 0.0
      %7290 = vmatprep.subr.mxu0 0.0
      %7291 = vmatpush1.msra.mxu0 0.0
      %7292 = vmatprep.subr.mxu0 0.0
      %7293 = vmatpush1.msra.mxu0 0.0
      %7294 = vmatprep.subr.mxu0 0.0
      %7295 = vmatpush1.msra.mxu0 0.0
      %7296 = vmatprep.subr.mxu0 0.0
      %7297 = vmatpush1.msra.mxu0 0.0
      %7298 = vmatprep.subr.mxu0 0.0
      %7299 = vmatpush1.msra.mxu0 0.0
      %7300 = vmatprep.subr.mxu0 0.0
      %7301 = vmatpush1.msra.mxu0 0.0
      %7302 = vmatprep.mubr.f32.mxu0 0.0
      %7303 = vmatmul.mubr.f32.gmra.mrb[0].mxu0 %v7227
      %v7304 = vpop.f32.mrb[0].mxu0
      %v7305 = vadd.f32 0.0, %v7304
      %v7306 = vpop.f32.mrb[0].mxu0
      %v7307 = vadd.f32 0.0, %v7306
      %7308 = vmatprep.mubr.f32.mxu0 0.0
      %7309 = vmatmul.mubr.f32.gmra.mrb[0].mxu0 %v7230
      %v7310 = vpop.f32.mrb[0].mxu0
      %v7311 = vadd.f32 0.0, %v7310
      %v7312 = vpop.f32.mrb[0].mxu0
      %v7313 = vadd.f32 0.0, %v7312
      %7314 = vmatprep.mubr.f32.mxu0 0.0
      %7315 = vmatmul.mubr.f32.gmra.mrb[0].mxu0 %v7233
      %v7316 = vpop.f32.mrb[0].mxu0
      %v7317 = vadd.f32 0.0, %v7316
      %v7318 = vpop.f32.mrb[0].mxu0
      %v7319 = vadd.f32 0.0, %v7318
      %7320 = vmatprep.mubr.f32.mxu0 0.0
      %7321 = vmatmul.mubr.f32.gmra.mrb[0].mxu0 %v7236
      %v7322 = vpop.f32.mrb[0].mxu0
      %v7323 = vadd.f32 0.0, %v7322
      %v7324 = vpop.f32.mrb[0].mxu0
      %v7325 = vadd.f32 0.0, %v7324
      %7326 = vdwg.mxu0
      %v7327 = vadd.f32 %v7213, %v7305
      %v7328 = vadd.f32 %v7214, %v7307
      %v7329 = vadd.f32 %v7215, %v7311
      %v7330 = vadd.f32 %v7216, %v7313
      %v7331 = vadd.f32 %v7217, %v7317
      %v7332 = vadd.f32 %v7218, %v7319
      %v7333 = vadd.f32 %v7219, %v7323
      %v7334 = vadd.f32 %v7220, %v7325
      %7335 = vrot.lane.b32.xlu0 %v6638, 127
      %v7336 = vpop.permute.xlu0 %7335
      %7337 = vrot.lane.b32.xlu0 %v6640, 127
      %v7338 = vpop.permute.xlu0 %7337
      %7339 = vrot.lane.b32.xlu0 %v6642, 127
      %v7340 = vpop.permute.xlu0 %7339
      %7341 = vrot.lane.b32.xlu0 %v6644, 127
      %v7342 = vpop.permute.xlu0 %7341
      %7343 = vrot.lane.b32.xlu0 %v6639, 127
      %v7344 = vpop.permute.xlu0 %7343
      %7345 = vrot.lane.b32.xlu0 %v6641, 127
      %v7346 = vpop.permute.xlu0 %7345
      %7347 = vrot.lane.b32.xlu0 %v6643, 127
      %v7348 = vpop.permute.xlu0 %7347
      %7349 = vrot.lane.b32.xlu0 %v6645, 127
      %v7350 = vpop.permute.xlu0 %7349
      %v7351 = vsel %vm2942, %v7336, %v7344
      %v7352 = vsel %vm2942, %v7338, %v7346
      %v7353 = vsel %vm2942, %v7340, %v7348
      %v7354 = vsel %vm2942, %v7342, %v7350
      %v7355 = vsel %vm2942, %v7344, %v7336
      %v7356 = vsel %vm2942, %v7346, %v7338
      %v7357 = vsel %vm2942, %v7348, %v7340
      %v7358 = vsel %vm2942, %v7350, %v7342
      %s7359 = scalar_lea.vmem %s11, 160
      %v7360 = vld [vmem:[%s7359] sm:$0xff]
      %v7361 = vld [vmem:[%s7359 + $0x8] sm:$0xff]
      %v7362 = vld [vmem:[%s7359 + $0x10] sm:$0xff]
      %v7363 = vld [vmem:[%s7359 + $0x18] sm:$0xff]
      %v7365 = vsel %vm1672, %v7360, 0
      %v7368 = vsel %vm1672, %v7361, 0
      %v7371 = vsel %vm1672, %v7362, 0
      %v7374 = vsel %vm1672, %v7363, 0
      %7376 = vmatprep.subr.mxu0 %v7355
      %7377 = vmatpush1.msra.mxu0 %v7351
      %7378 = vmatprep.subr.mxu0 %v7356
      %7379 = vmatpush1.msra.mxu0 %v7352
      %7380 = vmatprep.subr.mxu0 %v7357
      %7381 = vmatpush1.msra.mxu0 %v7353
      %7382 = vmatprep.subr.mxu0 %v7358
      %7383 = vmatpush1.msra.mxu0 %v7354
      %7384 = vmatprep.subr.mxu0 0.0
      %7385 = vmatpush1.msra.mxu0 0.0
      %7386 = vmatprep.subr.mxu0 0.0
      %7387 = vmatpush1.msra.mxu0 0.0
      %7388 = vmatprep.subr.mxu0 0.0
      %7389 = vmatpush1.msra.mxu0 0.0
      %7390 = vmatprep.subr.mxu0 0.0
      %7391 = vmatpush1.msra.mxu0 0.0
      %7392 = vmatprep.subr.mxu0 0.0
      %7393 = vmatpush1.msra.mxu0 0.0
      %7394 = vmatprep.subr.mxu0 0.0
      %7395 = vmatpush1.msra.mxu0 0.0
      %7396 = vmatprep.subr.mxu0 0.0
      %7397 = vmatpush1.msra.mxu0 0.0
      %7398 = vmatprep.subr.mxu0 0.0
      %7399 = vmatpush1.msra.mxu0 0.0
      %7400 = vmatprep.subr.mxu0 0.0
      %7401 = vmatpush1.msra.mxu0 0.0
      %7402 = vmatprep.subr.mxu0 0.0
      %7403 = vmatpush1.msra.mxu0 0.0
      %7404 = vmatprep.subr.mxu0 0.0
      %7405 = vmatpush1.msra.mxu0 0.0
      %7406 = vmatprep.subr.mxu0 0.0
      %7407 = vmatpush1.msra.mxu0 0.0
      %7408 = vmatprep.subr.mxu0 0.0
      %7409 = vmatpush1.msra.mxu0 0.0
      %7410 = vmatprep.subr.mxu0 0.0
      %7411 = vmatpush1.msra.mxu0 0.0
      %7412 = vmatprep.subr.mxu0 0.0
      %7413 = vmatpush1.msra.mxu0 0.0
      %7414 = vmatprep.subr.mxu0 0.0
      %7415 = vmatpush1.msra.mxu0 0.0
      %7416 = vmatprep.subr.mxu0 0.0
      %7417 = vmatpush1.msra.mxu0 0.0
      %7418 = vmatprep.subr.mxu0 0.0
      %7419 = vmatpush1.msra.mxu0 0.0
      %7420 = vmatprep.subr.mxu0 0.0
      %7421 = vmatpush1.msra.mxu0 0.0
      %7422 = vmatprep.subr.mxu0 0.0
      %7423 = vmatpush1.msra.mxu0 0.0
      %7424 = vmatprep.subr.mxu0 0.0
      %7425 = vmatpush1.msra.mxu0 0.0
      %7426 = vmatprep.subr.mxu0 0.0
      %7427 = vmatpush1.msra.mxu0 0.0
      %7428 = vmatprep.subr.mxu0 0.0
      %7429 = vmatpush1.msra.mxu0 0.0
      %7430 = vmatprep.subr.mxu0 0.0
      %7431 = vmatpush1.msra.mxu0 0.0
      %7432 = vmatprep.subr.mxu0 0.0
      %7433 = vmatpush1.msra.mxu0 0.0
      %7434 = vmatprep.subr.mxu0 0.0
      %7435 = vmatpush1.msra.mxu0 0.0
      %7436 = vmatprep.subr.mxu0 0.0
      %7437 = vmatpush1.msra.mxu0 0.0
      %7438 = vmatprep.subr.mxu0 0.0
      %7439 = vmatpush1.msra.mxu0 0.0
      %7440 = vmatprep.mubr.f32.mxu0 0.0
      %7441 = vmatmul.mubr.f32.gmra.mrb[0].mxu0 %v7365
      %v7442 = vpop.f32.mrb[0].mxu0
      %v7443 = vadd.f32 0.0, %v7442
      %v7444 = vpop.f32.mrb[0].mxu0
      %v7445 = vadd.f32 0.0, %v7444
      %7446 = vmatprep.mubr.f32.mxu0 0.0
      %7447 = vmatmul.mubr.f32.gmra.mrb[0].mxu0 %v7368
      %v7448 = vpop.f32.mrb[0].mxu0
      %v7449 = vadd.f32 0.0, %v7448
      %v7450 = vpop.f32.mrb[0].mxu0
      %v7451 = vadd.f32 0.0, %v7450
      %7452 = vmatprep.mubr.f32.mxu0 0.0
      %7453 = vmatmul.mubr.f32.gmra.mrb[0].mxu0 %v7371
      %v7454 = vpop.f32.mrb[0].mxu0
      %v7455 = vadd.f32 0.0, %v7454
      %v7456 = vpop.f32.mrb[0].mxu0
      %v7457 = vadd.f32 0.0, %v7456
      %7458 = vmatprep.mubr.f32.mxu0 0.0
      %7459 = vmatmul.mubr.f32.gmra.mrb[0].mxu0 %v7374
      %v7460 = vpop.f32.mrb[0].mxu0
      %v7461 = vadd.f32 0.0, %v7460
      %v7462 = vpop.f32.mrb[0].mxu0
      %v7463 = vadd.f32 0.0, %v7462
      %7464 = vdwg.mxu0
      %v7465 = vsel %vm3189, %v7443, 0.0
      %v7466 = vsel %vm3190, %v7445, 0.0
      %v7467 = vsel %vm3189, %v7449, 0.0
      %v7468 = vsel %vm3190, %v7451, 0.0
      %v7469 = vsel %vm3189, %v7455, 0.0
      %v7470 = vsel %vm3190, %v7457, 0.0
      %v7471 = vsel %vm3189, %v7461, 0.0
      %v7472 = vsel %vm3190, %v7463, 0.0
      %v7473 = vadd.f32 %v7327, %v7465
      %v7474 = vadd.f32 %v7328, %v7466
      %v7475 = vadd.f32 %v7329, %v7467
      %v7476 = vadd.f32 %v7330, %v7468
      %v7477 = vadd.f32 %v7331, %v7469
      %v7478 = vadd.f32 %v7332, %v7470
      %v7479 = vadd.f32 %v7333, %v7471
      %v7480 = vadd.f32 %v7334, %v7472
      %7481 = vrot.lane.b32.xlu0 %v6638, 113
      %v7482 = vpop.permute.xlu0 %7481
      %7483 = vrot.lane.b32.xlu0 %v6640, 113
      %v7484 = vpop.permute.xlu0 %7483
      %7485 = vrot.lane.b32.xlu0 %v6642, 113
      %v7486 = vpop.permute.xlu0 %7485
      %7487 = vrot.lane.b32.xlu0 %v6644, 113
      %v7488 = vpop.permute.xlu0 %7487
      %7489 = vrot.lane.b32.xlu0 %v6639, 113
      %v7490 = vpop.permute.xlu0 %7489
      %7491 = vrot.lane.b32.xlu0 %v6641, 113
      %v7492 = vpop.permute.xlu0 %7491
      %7493 = vrot.lane.b32.xlu0 %v6643, 113
      %v7494 = vpop.permute.xlu0 %7493
      %7495 = vrot.lane.b32.xlu0 %v6645, 113
      %v7496 = vpop.permute.xlu0 %7495
      %v7497 = vsel %vm3211, %v7482, %v7490
      %v7498 = vsel %vm3211, %v7484, %v7492
      %v7499 = vsel %vm3211, %v7486, %v7494
      %v7500 = vsel %vm3211, %v7488, %v7496
      %v7501 = vsel %vm3211, %v7490, %v7482
      %v7502 = vsel %vm3211, %v7492, %v7484
      %v7503 = vsel %vm3211, %v7494, %v7486
      %v7504 = vsel %vm3211, %v7496, %v7488
      %s7505 = scalar_lea.vmem %s11, 192
      %v7506 = vld [vmem:[%s7505] sm:$0xff]
      %v7507 = vld [vmem:[%s7505 + $0x8] sm:$0xff]
      %v7508 = vld [vmem:[%s7505 + $0x10] sm:$0xff]
      %v7509 = vld [vmem:[%s7505 + $0x18] sm:$0xff]
      %v7511 = vsel %vm1672, %v7506, 0
      %v7514 = vsel %vm1672, %v7507, 0
      %v7517 = vsel %vm1672, %v7508, 0
      %v7520 = vsel %vm1672, %v7509, 0
      %7522 = vmatprep.subr.mxu0 %v7501
      %7523 = vmatpush1.msra.mxu0 %v7497
      %7524 = vmatprep.subr.mxu0 %v7502
      %7525 = vmatpush1.msra.mxu0 %v7498
      %7526 = vmatprep.subr.mxu0 %v7503
      %7527 = vmatpush1.msra.mxu0 %v7499
      %7528 = vmatprep.subr.mxu0 %v7504
      %7529 = vmatpush1.msra.mxu0 %v7500
      %7530 = vmatprep.subr.mxu0 0.0
      %7531 = vmatpush1.msra.mxu0 0.0
      %7532 = vmatprep.subr.mxu0 0.0
      %7533 = vmatpush1.msra.mxu0 0.0
      %7534 = vmatprep.subr.mxu0 0.0
      %7535 = vmatpush1.msra.mxu0 0.0
      %7536 = vmatprep.subr.mxu0 0.0
      %7537 = vmatpush1.msra.mxu0 0.0
      %7538 = vmatprep.subr.mxu0 0.0
      %7539 = vmatpush1.msra.mxu0 0.0
      %7540 = vmatprep.subr.mxu0 0.0
      %7541 = vmatpush1.msra.mxu0 0.0
      %7542 = vmatprep.subr.mxu0 0.0
      %7543 = vmatpush1.msra.mxu0 0.0
      %7544 = vmatprep.subr.mxu0 0.0
      %7545 = vmatpush1.msra.mxu0 0.0
      %7546 = vmatprep.subr.mxu0 0.0
      %7547 = vmatpush1.msra.mxu0 0.0
      %7548 = vmatprep.subr.mxu0 0.0
      %7549 = vmatpush1.msra.mxu0 0.0
      %7550 = vmatprep.subr.mxu0 0.0
      %7551 = vmatpush1.msra.mxu0 0.0
      %7552 = vmatprep.subr.mxu0 0.0
      %7553 = vmatpush1.msra.mxu0 0.0
      %7554 = vmatprep.subr.mxu0 0.0
      %7555 = vmatpush1.msra.mxu0 0.0
      %7556 = vmatprep.subr.mxu0 0.0
      %7557 = vmatpush1.msra.mxu0 0.0
      %7558 = vmatprep.subr.mxu0 0.0
      %7559 = vmatpush1.msra.mxu0 0.0
      %7560 = vmatprep.subr.mxu0 0.0
      %7561 = vmatpush1.msra.mxu0 0.0
      %7562 = vmatprep.subr.mxu0 0.0
      %7563 = vmatpush1.msra.mxu0 0.0
      %7564 = vmatprep.subr.mxu0 0.0
      %7565 = vmatpush1.msra.mxu0 0.0
      %7566 = vmatprep.subr.mxu0 0.0
      %7567 = vmatpush1.msra.mxu0 0.0
      %7568 = vmatprep.subr.mxu0 0.0
      %7569 = vmatpush1.msra.mxu0 0.0
      %7570 = vmatprep.subr.mxu0 0.0
      %7571 = vmatpush1.msra.mxu0 0.0
      %7572 = vmatprep.subr.mxu0 0.0
      %7573 = vmatpush1.msra.mxu0 0.0
      %7574 = vmatprep.subr.mxu0 0.0
      %7575 = vmatpush1.msra.mxu0 0.0
      %7576 = vmatprep.subr.mxu0 0.0
      %7577 = vmatpush1.msra.mxu0 0.0
      %7578 = vmatprep.subr.mxu0 0.0
      %7579 = vmatpush1.msra.mxu0 0.0
      %7580 = vmatprep.subr.mxu0 0.0
      %7581 = vmatpush1.msra.mxu0 0.0
      %7582 = vmatprep.subr.mxu0 0.0
      %7583 = vmatpush1.msra.mxu0 0.0
      %7584 = vmatprep.subr.mxu0 0.0
      %7585 = vmatpush1.msra.mxu0 0.0
      %7586 = vmatprep.mubr.f32.mxu0 0.0
      %7587 = vmatmul.mubr.f32.gmra.mrb[0].mxu0 %v7511
      %v7588 = vpop.f32.mrb[0].mxu0
      %v7589 = vadd.f32 0.0, %v7588
      %v7590 = vpop.f32.mrb[0].mxu0
      %v7591 = vadd.f32 0.0, %v7590
      %7592 = vmatprep.mubr.f32.mxu0 0.0
      %7593 = vmatmul.mubr.f32.gmra.mrb[0].mxu0 %v7514
      %v7594 = vpop.f32.mrb[0].mxu0
      %v7595 = vadd.f32 0.0, %v7594
      %v7596 = vpop.f32.mrb[0].mxu0
      %v7597 = vadd.f32 0.0, %v7596
      %7598 = vmatprep.mubr.f32.mxu0 0.0
      %7599 = vmatmul.mubr.f32.gmra.mrb[0].mxu0 %v7517
      %v7600 = vpop.f32.mrb[0].mxu0
      %v7601 = vadd.f32 0.0, %v7600
      %v7602 = vpop.f32.mrb[0].mxu0
      %v7603 = vadd.f32 0.0, %v7602
      %7604 = vmatprep.mubr.f32.mxu0 0.0
      %7605 = vmatmul.mubr.f32.gmra.mrb[0].mxu0 %v7520
      %v7606 = vpop.f32.mrb[0].mxu0
      %v7607 = vadd.f32 0.0, %v7606
      %v7608 = vpop.f32.mrb[0].mxu0
      %v7609 = vadd.f32 0.0, %v7608
      %7610 = vdwg.mxu0
      %v7611 = vsel %vm3462, %v7589, 0.0
      %v7612 = vsel %vm3463, %v7591, 0.0
      %v7613 = vsel %vm3462, %v7595, 0.0
      %v7614 = vsel %vm3463, %v7597, 0.0
      %v7615 = vsel %vm3462, %v7601, 0.0
      %v7616 = vsel %vm3463, %v7603, 0.0
      %v7617 = vsel %vm3462, %v7607, 0.0
      %v7618 = vsel %vm3463, %v7609, 0.0
      %v7619 = vadd.f32 %v7473, %v7611
      %v7620 = vadd.f32 %v7474, %v7612
      %v7621 = vadd.f32 %v7475, %v7613
      %v7622 = vadd.f32 %v7476, %v7614
      %v7623 = vadd.f32 %v7477, %v7615
      %v7624 = vadd.f32 %v7478, %v7616
      %v7625 = vadd.f32 %v7479, %v7617
      %v7626 = vadd.f32 %v7480, %v7618
      %7627 = vrot.lane.b32.xlu0 %v6638, 112
      %v7628 = vpop.permute.xlu0 %7627
      %7629 = vrot.lane.b32.xlu0 %v6640, 112
      %v7630 = vpop.permute.xlu0 %7629
      %7631 = vrot.lane.b32.xlu0 %v6642, 112
      %v7632 = vpop.permute.xlu0 %7631
      %7633 = vrot.lane.b32.xlu0 %v6644, 112
      %v7634 = vpop.permute.xlu0 %7633
      %7635 = vrot.lane.b32.xlu0 %v6639, 112
      %v7636 = vpop.permute.xlu0 %7635
      %7637 = vrot.lane.b32.xlu0 %v6641, 112
      %v7638 = vpop.permute.xlu0 %7637
      %7639 = vrot.lane.b32.xlu0 %v6643, 112
      %v7640 = vpop.permute.xlu0 %7639
      %7641 = vrot.lane.b32.xlu0 %v6645, 112
      %v7642 = vpop.permute.xlu0 %7641
      %v7643 = vsel %vm3484, %v7628, %v7636
      %v7644 = vsel %vm3484, %v7630, %v7638
      %v7645 = vsel %vm3484, %v7632, %v7640
      %v7646 = vsel %vm3484, %v7634, %v7642
      %v7647 = vsel %vm3484, %v7636, %v7628
      %v7648 = vsel %vm3484, %v7638, %v7630
      %v7649 = vsel %vm3484, %v7640, %v7632
      %v7650 = vsel %vm3484, %v7642, %v7634
      %s7651 = scalar_lea.vmem %s11, 224
      %v7652 = vld [vmem:[%s7651] sm:$0xff]
      %v7653 = vld [vmem:[%s7651 + $0x8] sm:$0xff]
      %v7654 = vld [vmem:[%s7651 + $0x10] sm:$0xff]
      %v7655 = vld [vmem:[%s7651 + $0x18] sm:$0xff]
      %v7657 = vsel %vm1672, %v7652, 0
      %v7660 = vsel %vm1672, %v7653, 0
      %v7663 = vsel %vm1672, %v7654, 0
      %v7666 = vsel %vm1672, %v7655, 0
      %7668 = vmatprep.subr.mxu0 %v7647
      %7669 = vmatpush1.msra.mxu0 %v7643
      %7670 = vmatprep.subr.mxu0 %v7648
      %7671 = vmatpush1.msra.mxu0 %v7644
      %7672 = vmatprep.subr.mxu0 %v7649
      %7673 = vmatpush1.msra.mxu0 %v7645
      %7674 = vmatprep.subr.mxu0 %v7650
      %7675 = vmatpush1.msra.mxu0 %v7646
      %7676 = vmatprep.subr.mxu0 0.0
      %7677 = vmatpush1.msra.mxu0 0.0
      %7678 = vmatprep.subr.mxu0 0.0
      %7679 = vmatpush1.msra.mxu0 0.0
      %7680 = vmatprep.subr.mxu0 0.0
      %7681 = vmatpush1.msra.mxu0 0.0
      %7682 = vmatprep.subr.mxu0 0.0
      %7683 = vmatpush1.msra.mxu0 0.0
      %7684 = vmatprep.subr.mxu0 0.0
      %7685 = vmatpush1.msra.mxu0 0.0
      %7686 = vmatprep.subr.mxu0 0.0
      %7687 = vmatpush1.msra.mxu0 0.0
      %7688 = vmatprep.subr.mxu0 0.0
      %7689 = vmatpush1.msra.mxu0 0.0
      %7690 = vmatprep.subr.mxu0 0.0
      %7691 = vmatpush1.msra.mxu0 0.0
      %7692 = vmatprep.subr.mxu0 0.0
      %7693 = vmatpush1.msra.mxu0 0.0
      %7694 = vmatprep.subr.mxu0 0.0
      %7695 = vmatpush1.msra.mxu0 0.0
      %7696 = vmatprep.subr.mxu0 0.0
      %7697 = vmatpush1.msra.mxu0 0.0
      %7698 = vmatprep.subr.mxu0 0.0
      %7699 = vmatpush1.msra.mxu0 0.0
      %7700 = vmatprep.subr.mxu0 0.0
      %7701 = vmatpush1.msra.mxu0 0.0
      %7702 = vmatprep.subr.mxu0 0.0
      %7703 = vmatpush1.msra.mxu0 0.0
      %7704 = vmatprep.subr.mxu0 0.0
      %7705 = vmatpush1.msra.mxu0 0.0
      %7706 = vmatprep.subr.mxu0 0.0
      %7707 = vmatpush1.msra.mxu0 0.0
      %7708 = vmatprep.subr.mxu0 0.0
      %7709 = vmatpush1.msra.mxu0 0.0
      %7710 = vmatprep.subr.mxu0 0.0
      %7711 = vmatpush1.msra.mxu0 0.0
      %7712 = vmatprep.subr.mxu0 0.0
      %7713 = vmatpush1.msra.mxu0 0.0
      %7714 = vmatprep.subr.mxu0 0.0
      %7715 = vmatpush1.msra.mxu0 0.0
      %7716 = vmatprep.subr.mxu0 0.0
      %7717 = vmatpush1.msra.mxu0 0.0
      %7718 = vmatprep.subr.mxu0 0.0
      %7719 = vmatpush1.msra.mxu0 0.0
      %7720 = vmatprep.subr.mxu0 0.0
      %7721 = vmatpush1.msra.mxu0 0.0
      %7722 = vmatprep.subr.mxu0 0.0
      %7723 = vmatpush1.msra.mxu0 0.0
      %7724 = vmatprep.subr.mxu0 0.0
      %7725 = vmatpush1.msra.mxu0 0.0
      %7726 = vmatprep.subr.mxu0 0.0
      %7727 = vmatpush1.msra.mxu0 0.0
      %7728 = vmatprep.subr.mxu0 0.0
      %7729 = vmatpush1.msra.mxu0 0.0
      %7730 = vmatprep.subr.mxu0 0.0
      %7731 = vmatpush1.msra.mxu0 0.0
      %7732 = vmatprep.mubr.f32.mxu0 0.0
      %7733 = vmatmul.mubr.f32.gmra.mrb[0].mxu0 %v7657
      %v7734 = vpop.f32.mrb[0].mxu0
      %v7735 = vadd.f32 0.0, %v7734
      %v7736 = vpop.f32.mrb[0].mxu0
      %v7737 = vadd.f32 0.0, %v7736
      %7738 = vmatprep.mubr.f32.mxu0 0.0
      %7739 = vmatmul.mubr.f32.gmra.mrb[0].mxu0 %v7660
      %v7740 = vpop.f32.mrb[0].mxu0
      %v7741 = vadd.f32 0.0, %v7740
      %v7742 = vpop.f32.mrb[0].mxu0
      %v7743 = vadd.f32 0.0, %v7742
      %7744 = vmatprep.mubr.f32.mxu0 0.0
      %7745 = vmatmul.mubr.f32.gmra.mrb[0].mxu0 %v7663
      %v7746 = vpop.f32.mrb[0].mxu0
      %v7747 = vadd.f32 0.0, %v7746
      %v7748 = vpop.f32.mrb[0].mxu0
      %v7749 = vadd.f32 0.0, %v7748
      %7750 = vmatprep.mubr.f32.mxu0 0.0
      %7751 = vmatmul.mubr.f32.gmra.mrb[0].mxu0 %v7666
      %v7752 = vpop.f32.mrb[0].mxu0
      %v7753 = vadd.f32 0.0, %v7752
      %v7754 = vpop.f32.mrb[0].mxu0
      %v7755 = vadd.f32 0.0, %v7754
      %7756 = vdwg.mxu0
      %v7757 = vsel %vm3731, %v7735, 0.0
      %v7758 = vsel %vm3732, %v7737, 0.0
      %v7759 = vsel %vm3731, %v7741, 0.0
      %v7760 = vsel %vm3732, %v7743, 0.0
      %v7761 = vsel %vm3731, %v7747, 0.0
      %v7762 = vsel %vm3732, %v7749, 0.0
      %v7763 = vsel %vm3731, %v7753, 0.0
      %v7764 = vsel %vm3732, %v7755, 0.0
      %v7765 = vadd.f32 %v7619, %v7757
      %v7766 = vadd.f32 %v7620, %v7758
      %v7767 = vadd.f32 %v7621, %v7759
      %v7768 = vadd.f32 %v7622, %v7760
      %v7769 = vadd.f32 %v7623, %v7761
      %v7770 = vadd.f32 %v7624, %v7762
      %v7771 = vadd.f32 %v7625, %v7763
      %v7772 = vadd.f32 %v7626, %v7764
      %7773 = vrot.lane.b32.xlu0 %v6638, 111
      %v7774 = vpop.permute.xlu0 %7773
      %7775 = vrot.lane.b32.xlu0 %v6640, 111
      %v7776 = vpop.permute.xlu0 %7775
      %7777 = vrot.lane.b32.xlu0 %v6642, 111
      %v7778 = vpop.permute.xlu0 %7777
      %7779 = vrot.lane.b32.xlu0 %v6644, 111
      %v7780 = vpop.permute.xlu0 %7779
      %7781 = vrot.lane.b32.xlu0 %v6639, 111
      %v7782 = vpop.permute.xlu0 %7781
      %7783 = vrot.lane.b32.xlu0 %v6641, 111
      %v7784 = vpop.permute.xlu0 %7783
      %7785 = vrot.lane.b32.xlu0 %v6643, 111
      %v7786 = vpop.permute.xlu0 %7785
      %7787 = vrot.lane.b32.xlu0 %v6645, 111
      %v7788 = vpop.permute.xlu0 %7787
      %v7789 = vsel %vm3753, %v7774, %v7782
      %v7790 = vsel %vm3753, %v7776, %v7784
      %v7791 = vsel %vm3753, %v7778, %v7786
      %v7792 = vsel %vm3753, %v7780, %v7788
      %v7793 = vsel %vm3753, %v7782, %v7774
      %v7794 = vsel %vm3753, %v7784, %v7776
      %v7795 = vsel %vm3753, %v7786, %v7778
      %v7796 = vsel %vm3753, %v7788, %v7780
      %s7797 = scalar_lea.vmem %s11, 256
      %v7798 = vld [vmem:[%s7797] sm:$0xff]
      %v7799 = vld [vmem:[%s7797 + $0x8] sm:$0xff]
      %v7800 = vld [vmem:[%s7797 + $0x10] sm:$0xff]
      %v7801 = vld [vmem:[%s7797 + $0x18] sm:$0xff]
      %v7803 = vsel %vm1672, %v7798, 0
      %v7806 = vsel %vm1672, %v7799, 0
      %v7809 = vsel %vm1672, %v7800, 0
      %v7812 = vsel %vm1672, %v7801, 0
      %7814 = vmatprep.subr.mxu0 %v7793
      %7815 = vmatpush1.msra.mxu0 %v7789
      %7816 = vmatprep.subr.mxu0 %v7794
      %7817 = vmatpush1.msra.mxu0 %v7790
      %7818 = vmatprep.subr.mxu0 %v7795
      %7819 = vmatpush1.msra.mxu0 %v7791
      %7820 = vmatprep.subr.mxu0 %v7796
      %7821 = vmatpush1.msra.mxu0 %v7792
      %7822 = vmatprep.subr.mxu0 0.0
      %7823 = vmatpush1.msra.mxu0 0.0
      %7824 = vmatprep.subr.mxu0 0.0
      %7825 = vmatpush1.msra.mxu0 0.0
      %7826 = vmatprep.subr.mxu0 0.0
      %7827 = vmatpush1.msra.mxu0 0.0
      %7828 = vmatprep.subr.mxu0 0.0
      %7829 = vmatpush1.msra.mxu0 0.0
      %7830 = vmatprep.subr.mxu0 0.0
      %7831 = vmatpush1.msra.mxu0 0.0
      %7832 = vmatprep.subr.mxu0 0.0
      %7833 = vmatpush1.msra.mxu0 0.0
      %7834 = vmatprep.subr.mxu0 0.0
      %7835 = vmatpush1.msra.mxu0 0.0
      %7836 = vmatprep.subr.mxu0 0.0
      %7837 = vmatpush1.msra.mxu0 0.0
      %7838 = vmatprep.subr.mxu0 0.0
      %7839 = vmatpush1.msra.mxu0 0.0
      %7840 = vmatprep.subr.mxu0 0.0
      %7841 = vmatpush1.msra.mxu0 0.0
      %7842 = vmatprep.subr.mxu0 0.0
      %7843 = vmatpush1.msra.mxu0 0.0
      %7844 = vmatprep.subr.mxu0 0.0
      %7845 = vmatpush1.msra.mxu0 0.0
      %7846 = vmatprep.subr.mxu0 0.0
      %7847 = vmatpush1.msra.mxu0 0.0
      %7848 = vmatprep.subr.mxu0 0.0
      %7849 = vmatpush1.msra.mxu0 0.0
      %7850 = vmatprep.subr.mxu0 0.0
      %7851 = vmatpush1.msra.mxu0 0.0
      %7852 = vmatprep.subr.mxu0 0.0
      %7853 = vmatpush1.msra.mxu0 0.0
      %7854 = vmatprep.subr.mxu0 0.0
      %7855 = vmatpush1.msra.mxu0 0.0
      %7856 = vmatprep.subr.mxu0 0.0
      %7857 = vmatpush1.msra.mxu0 0.0
      %7858 = vmatprep.subr.mxu0 0.0
      %7859 = vmatpush1.msra.mxu0 0.0
      %7860 = vmatprep.subr.mxu0 0.0
      %7861 = vmatpush1.msra.mxu0 0.0
      %7862 = vmatprep.subr.mxu0 0.0
      %7863 = vmatpush1.msra.mxu0 0.0
      %7864 = vmatprep.subr.mxu0 0.0
      %7865 = vmatpush1.msra.mxu0 0.0
      %7866 = vmatprep.subr.mxu0 0.0
      %7867 = vmatpush1.msra.mxu0 0.0
      %7868 = vmatprep.subr.mxu0 0.0
      %7869 = vmatpush1.msra.mxu0 0.0
      %7870 = vmatprep.subr.mxu0 0.0
      %7871 = vmatpush1.msra.mxu0 0.0
      %7872 = vmatprep.subr.mxu0 0.0
      %7873 = vmatpush1.msra.mxu0 0.0
      %7874 = vmatprep.subr.mxu0 0.0
      %7875 = vmatpush1.msra.mxu0 0.0
      %7876 = vmatprep.subr.mxu0 0.0
      %7877 = vmatpush1.msra.mxu0 0.0
      %7878 = vmatprep.mubr.f32.mxu0 0.0
      %7879 = vmatmul.mubr.f32.gmra.mrb[0].mxu0 %v7803
      %v7880 = vpop.f32.mrb[0].mxu0
      %v7881 = vadd.f32 0.0, %v7880
      %v7882 = vpop.f32.mrb[0].mxu0
      %v7883 = vadd.f32 0.0, %v7882
      %7884 = vmatprep.mubr.f32.mxu0 0.0
      %7885 = vmatmul.mubr.f32.gmra.mrb[0].mxu0 %v7806
      %v7886 = vpop.f32.mrb[0].mxu0
      %v7887 = vadd.f32 0.0, %v7886
      %v7888 = vpop.f32.mrb[0].mxu0
      %v7889 = vadd.f32 0.0, %v7888
      %7890 = vmatprep.mubr.f32.mxu0 0.0
      %7891 = vmatmul.mubr.f32.gmra.mrb[0].mxu0 %v7809
      %v7892 = vpop.f32.mrb[0].mxu0
      %v7893 = vadd.f32 0.0, %v7892
      %v7894 = vpop.f32.mrb[0].mxu0
      %v7895 = vadd.f32 0.0, %v7894
      %7896 = vmatprep.mubr.f32.mxu0 0.0
      %7897 = vmatmul.mubr.f32.gmra.mrb[0].mxu0 %v7812
      %v7898 = vpop.f32.mrb[0].mxu0
      %v7899 = vadd.f32 0.0, %v7898
      %v7900 = vpop.f32.mrb[0].mxu0
      %v7901 = vadd.f32 0.0, %v7900
      %7902 = vdwg.mxu0
      %v7903 = vsel %vm4002, %v7881, 0.0
      %v7904 = vsel %vm4003, %v7883, 0.0
      %v7905 = vsel %vm4002, %v7887, 0.0
      %v7906 = vsel %vm4003, %v7889, 0.0
      %v7907 = vsel %vm4002, %v7893, 0.0
      %v7908 = vsel %vm4003, %v7895, 0.0
      %v7909 = vsel %vm4002, %v7899, 0.0
      %v7910 = vsel %vm4003, %v7901, 0.0
      %v7911 = vadd.f32 %v7765, %v7903
      %v7912 = vadd.f32 %v7766, %v7904
      %v7913 = vadd.f32 %v7767, %v7905
      %v7914 = vadd.f32 %v7768, %v7906
      %v7915 = vadd.f32 %v7769, %v7907
      %v7916 = vadd.f32 %v7770, %v7908
      %v7917 = vadd.f32 %v7771, %v7909
      %v7918 = vadd.f32 %v7772, %v7910
      %v7919 = vld [vmem:[%s12] sm:$0xff]
      %v7920 = vld [vmem:[%s12 + $0x8] sm:$0xff]
      %v7921 = vld [vmem:[%s12 + $0x10] sm:$0xff]
      %v7922 = vld [vmem:[%s12 + $0x18] sm:$0xff]
      %7924 = vset.pattern.permute.xlu0 0
      %7925 = vperm.xlu0 %7924, %v7919
      %v7926 = vpop.permute.xlu0 %7925
      %7929 = vset.pattern.permute.xlu0 0
      %7930 = vperm.xlu0 %7929, %v7920
      %v7931 = vpop.permute.xlu0 %7930
      %7934 = vset.pattern.permute.xlu0 0
      %7935 = vperm.xlu0 %7934, %v7921
      %v7936 = vpop.permute.xlu0 %7935
      %7939 = vset.pattern.permute.xlu0 0
      %7940 = vperm.xlu0 %7939, %v7922
      %v7941 = vpop.permute.xlu0 %7940
      %v7943 = vadd.f32 %v7911, %v7926
      %v7944 = vadd.f32 %v7912, %v7926
      %v7945 = vadd.f32 %v7913, %v7931
      %v7946 = vadd.f32 %v7914, %v7931
      %v7947 = vadd.f32 %v7915, %v7936
      %v7948 = vadd.f32 %v7916, %v7936
      %v7949 = vadd.f32 %v7917, %v7941
      %v7950 = vadd.f32 %v7918, %v7941
      %v7951 = vmax.f32 %v7943, 0.0
      %v7952 = vmax.f32 %v7944, 0.0
      %v7953 = vmax.f32 %v7945, 0.0
      %v7954 = vmax.f32 %v7946, 0.0
      %v7955 = vmax.f32 %v7947, 0.0
      %v7956 = vmax.f32 %v7948, 0.0
      %v7957 = vmax.f32 %v7949, 0.0
      %v7958 = vmax.f32 %v7950, 0.0
      %7959 = vrot.lane.b32.xlu0 %v7951, 17
      %v7960 = vpop.permute.xlu0 %7959
      %7961 = vrot.lane.b32.xlu0 %v7953, 17
      %v7962 = vpop.permute.xlu0 %7961
      %7963 = vrot.lane.b32.xlu0 %v7955, 17
      %v7964 = vpop.permute.xlu0 %7963
      %7965 = vrot.lane.b32.xlu0 %v7957, 17
      %v7966 = vpop.permute.xlu0 %7965
      %7967 = vrot.lane.b32.xlu0 %v7952, 17
      %v7968 = vpop.permute.xlu0 %7967
      %7969 = vrot.lane.b32.xlu0 %v7954, 17
      %v7970 = vpop.permute.xlu0 %7969
      %7971 = vrot.lane.b32.xlu0 %v7956, 17
      %v7972 = vpop.permute.xlu0 %7971
      %7973 = vrot.lane.b32.xlu0 %v7958, 17
      %v7974 = vpop.permute.xlu0 %7973
      %v7975 = vsel %vm1637, %v7960, %v7968
      %v7976 = vsel %vm1637, %v7962, %v7970
      %v7977 = vsel %vm1637, %v7964, %v7972
      %v7978 = vsel %vm1637, %v7966, %v7974
      %v7979 = vsel %vm1637, %v7968, %v7960
      %v7980 = vsel %vm1637, %v7970, %v7962
      %v7981 = vsel %vm1637, %v7972, %v7964
      %v7982 = vsel %vm1637, %v7974, %v7966
      %v7983 = vld [vmem:[%s13] sm:$0xff]
      %v7984 = vld [vmem:[%s13 + $0x8] sm:$0xff]
      %v7985 = vld [vmem:[%s13 + $0x10] sm:$0xff]
      %v7986 = vld [vmem:[%s13 + $0x18] sm:$0xff]
      %v7988 = vsel %vm1672, %v7983, 0
      %v7991 = vsel %vm1672, %v7984, 0
      %v7994 = vsel %vm1672, %v7985, 0
      %v7997 = vsel %vm1672, %v7986, 0
      %7999 = vmatprep.subr.mxu0 %v7975
      %8000 = vmatpush1.msra.mxu0 %v7979
      %8001 = vmatprep.subr.mxu0 %v7976
      %8002 = vmatpush1.msra.mxu0 %v7980
      %8003 = vmatprep.subr.mxu0 %v7977
      %8004 = vmatpush1.msra.mxu0 %v7981
      %8005 = vmatprep.subr.mxu0 %v7978
      %8006 = vmatpush1.msra.mxu0 %v7982
      %8007 = vmatprep.subr.mxu0 0.0
      %8008 = vmatpush1.msra.mxu0 0.0
      %8009 = vmatprep.subr.mxu0 0.0
      %8010 = vmatpush1.msra.mxu0 0.0
      %8011 = vmatprep.subr.mxu0 0.0
      %8012 = vmatpush1.msra.mxu0 0.0
      %8013 = vmatprep.subr.mxu0 0.0
      %8014 = vmatpush1.msra.mxu0 0.0
      %8015 = vmatprep.subr.mxu0 0.0
      %8016 = vmatpush1.msra.mxu0 0.0
      %8017 = vmatprep.subr.mxu0 0.0
      %8018 = vmatpush1.msra.mxu0 0.0
      %8019 = vmatprep.subr.mxu0 0.0
      %8020 = vmatpush1.msra.mxu0 0.0
      %8021 = vmatprep.subr.mxu0 0.0
      %8022 = vmatpush1.msra.mxu0 0.0
      %8023 = vmatprep.subr.mxu0 0.0
      %8024 = vmatpush1.msra.mxu0 0.0
      %8025 = vmatprep.subr.mxu0 0.0
      %8026 = vmatpush1.msra.mxu0 0.0
      %8027 = vmatprep.subr.mxu0 0.0
      %8028 = vmatpush1.msra.mxu0 0.0
      %8029 = vmatprep.subr.mxu0 0.0
      %8030 = vmatpush1.msra.mxu0 0.0
      %8031 = vmatprep.subr.mxu0 0.0
      %8032 = vmatpush1.msra.mxu0 0.0
      %8033 = vmatprep.subr.mxu0 0.0
      %8034 = vmatpush1.msra.mxu0 0.0
      %8035 = vmatprep.subr.mxu0 0.0
      %8036 = vmatpush1.msra.mxu0 0.0
      %8037 = vmatprep.subr.mxu0 0.0
      %8038 = vmatpush1.msra.mxu0 0.0
      %8039 = vmatprep.subr.mxu0 0.0
      %8040 = vmatpush1.msra.mxu0 0.0
      %8041 = vmatprep.subr.mxu0 0.0
      %8042 = vmatpush1.msra.mxu0 0.0
      %8043 = vmatprep.subr.mxu0 0.0
      %8044 = vmatpush1.msra.mxu0 0.0
      %8045 = vmatprep.subr.mxu0 0.0
      %8046 = vmatpush1.msra.mxu0 0.0
      %8047 = vmatprep.subr.mxu0 0.0
      %8048 = vmatpush1.msra.mxu0 0.0
      %8049 = vmatprep.subr.mxu0 0.0
      %8050 = vmatpush1.msra.mxu0 0.0
      %8051 = vmatprep.subr.mxu0 0.0
      %8052 = vmatpush1.msra.mxu0 0.0
      %8053 = vmatprep.subr.mxu0 0.0
      %8054 = vmatpush1.msra.mxu0 0.0
      %8055 = vmatprep.subr.mxu0 0.0
      %8056 = vmatpush1.msra.mxu0 0.0
      %8057 = vmatprep.subr.mxu0 0.0
      %8058 = vmatpush1.msra.mxu0 0.0
      %8059 = vmatprep.subr.mxu0 0.0
      %8060 = vmatpush1.msra.mxu0 0.0
      %8061 = vmatprep.subr.mxu0 0.0
      %8062 = vmatpush1.msra.mxu0 0.0
      %8063 = vmatprep.mubr.f32.mxu0 0.0
      %8064 = vmatmul.mubr.f32.gmra.mrb[0].mxu0 %v7988
      %v8065 = vpop.f32.mrb[0].mxu0
      %v8066 = vadd.f32 0.0, %v8065
      %v8067 = vpop.f32.mrb[0].mxu0
      %v8068 = vadd.f32 0.0, %v8067
      %8069 = vmatprep.mubr.f32.mxu0 0.0
      %8070 = vmatmul.mubr.f32.gmra.mrb[0].mxu0 %v7991
      %v8071 = vpop.f32.mrb[0].mxu0
      %v8072 = vadd.f32 0.0, %v8071
      %v8073 = vpop.f32.mrb[0].mxu0
      %v8074 = vadd.f32 0.0, %v8073
      %8075 = vmatprep.mubr.f32.mxu0 0.0
      %8076 = vmatmul.mubr.f32.gmra.mrb[0].mxu0 %v7994
      %v8077 = vpop.f32.mrb[0].mxu0
      %v8078 = vadd.f32 0.0, %v8077
      %v8079 = vpop.f32.mrb[0].mxu0
      %v8080 = vadd.f32 0.0, %v8079
      %8081 = vmatprep.mubr.f32.mxu0 0.0
      %8082 = vmatmul.mubr.f32.gmra.mrb[0].mxu0 %v7997
      %v8083 = vpop.f32.mrb[0].mxu0
      %v8084 = vadd.f32 0.0, %v8083
      %v8085 = vpop.f32.mrb[0].mxu0
      %v8086 = vadd.f32 0.0, %v8085
      %8087 = vdwg.mxu0
      %v8088 = vsel %vm1891, %v8066, 0.0
      %v8089 = vsel %vm1892, %v8068, 0.0
      %v8090 = vsel %vm1891, %v8072, 0.0
      %v8091 = vsel %vm1892, %v8074, 0.0
      %v8092 = vsel %vm1891, %v8078, 0.0
      %v8093 = vsel %vm1892, %v8080, 0.0
      %v8094 = vsel %vm1891, %v8084, 0.0
      %v8095 = vsel %vm1892, %v8086, 0.0
      %8096 = vrot.lane.b32.xlu0 %v7951, 16
      %v8097 = vpop.permute.xlu0 %8096
      %8098 = vrot.lane.b32.xlu0 %v7953, 16
      %v8099 = vpop.permute.xlu0 %8098
      %8100 = vrot.lane.b32.xlu0 %v7955, 16
      %v8101 = vpop.permute.xlu0 %8100
      %8102 = vrot.lane.b32.xlu0 %v7957, 16
      %v8103 = vpop.permute.xlu0 %8102
      %8104 = vrot.lane.b32.xlu0 %v7952, 16
      %v8105 = vpop.permute.xlu0 %8104
      %8106 = vrot.lane.b32.xlu0 %v7954, 16
      %v8107 = vpop.permute.xlu0 %8106
      %8108 = vrot.lane.b32.xlu0 %v7956, 16
      %v8109 = vpop.permute.xlu0 %8108
      %8110 = vrot.lane.b32.xlu0 %v7958, 16
      %v8111 = vpop.permute.xlu0 %8110
      %v8112 = vsel %vm1905, %v8097, %v8105
      %v8113 = vsel %vm1905, %v8099, %v8107
      %v8114 = vsel %vm1905, %v8101, %v8109
      %v8115 = vsel %vm1905, %v8103, %v8111
      %v8116 = vsel %vm1905, %v8105, %v8097
      %v8117 = vsel %vm1905, %v8107, %v8099
      %v8118 = vsel %vm1905, %v8109, %v8101
      %v8119 = vsel %vm1905, %v8111, %v8103
      %s8120 = scalar_lea.vmem %s13, 32
      %v8121 = vld [vmem:[%s8120] sm:$0xff]
      %v8122 = vld [vmem:[%s8120 + $0x8] sm:$0xff]
      %v8123 = vld [vmem:[%s8120 + $0x10] sm:$0xff]
      %v8124 = vld [vmem:[%s8120 + $0x18] sm:$0xff]
      %v8126 = vsel %vm1672, %v8121, 0
      %v8129 = vsel %vm1672, %v8122, 0
      %v8132 = vsel %vm1672, %v8123, 0
      %v8135 = vsel %vm1672, %v8124, 0
      %8137 = vmatprep.subr.mxu0 %v8112
      %8138 = vmatpush1.msra.mxu0 %v8116
      %8139 = vmatprep.subr.mxu0 %v8113
      %8140 = vmatpush1.msra.mxu0 %v8117
      %8141 = vmatprep.subr.mxu0 %v8114
      %8142 = vmatpush1.msra.mxu0 %v8118
      %8143 = vmatprep.subr.mxu0 %v8115
      %8144 = vmatpush1.msra.mxu0 %v8119
      %8145 = vmatprep.subr.mxu0 0.0
      %8146 = vmatpush1.msra.mxu0 0.0
      %8147 = vmatprep.subr.mxu0 0.0
      %8148 = vmatpush1.msra.mxu0 0.0
      %8149 = vmatprep.subr.mxu0 0.0
      %8150 = vmatpush1.msra.mxu0 0.0
      %8151 = vmatprep.subr.mxu0 0.0
      %8152 = vmatpush1.msra.mxu0 0.0
      %8153 = vmatprep.subr.mxu0 0.0
      %8154 = vmatpush1.msra.mxu0 0.0
      %8155 = vmatprep.subr.mxu0 0.0
      %8156 = vmatpush1.msra.mxu0 0.0
      %8157 = vmatprep.subr.mxu0 0.0
      %8158 = vmatpush1.msra.mxu0 0.0
      %8159 = vmatprep.subr.mxu0 0.0
      %8160 = vmatpush1.msra.mxu0 0.0
      %8161 = vmatprep.subr.mxu0 0.0
      %8162 = vmatpush1.msra.mxu0 0.0
      %8163 = vmatprep.subr.mxu0 0.0
      %8164 = vmatpush1.msra.mxu0 0.0
      %8165 = vmatprep.subr.mxu0 0.0
      %8166 = vmatpush1.msra.mxu0 0.0
      %8167 = vmatprep.subr.mxu0 0.0
      %8168 = vmatpush1.msra.mxu0 0.0
      %8169 = vmatprep.subr.mxu0 0.0
      %8170 = vmatpush1.msra.mxu0 0.0
      %8171 = vmatprep.subr.mxu0 0.0
      %8172 = vmatpush1.msra.mxu0 0.0
      %8173 = vmatprep.subr.mxu0 0.0
      %8174 = vmatpush1.msra.mxu0 0.0
      %8175 = vmatprep.subr.mxu0 0.0
      %8176 = vmatpush1.msra.mxu0 0.0
      %8177 = vmatprep.subr.mxu0 0.0
      %8178 = vmatpush1.msra.mxu0 0.0
      %8179 = vmatprep.subr.mxu0 0.0
      %8180 = vmatpush1.msra.mxu0 0.0
      %8181 = vmatprep.subr.mxu0 0.0
      %8182 = vmatpush1.msra.mxu0 0.0
      %8183 = vmatprep.subr.mxu0 0.0
      %8184 = vmatpush1.msra.mxu0 0.0
      %8185 = vmatprep.subr.mxu0 0.0
      %8186 = vmatpush1.msra.mxu0 0.0
      %8187 = vmatprep.subr.mxu0 0.0
      %8188 = vmatpush1.msra.mxu0 0.0
      %8189 = vmatprep.subr.mxu0 0.0
      %8190 = vmatpush1.msra.mxu0 0.0
      %8191 = vmatprep.subr.mxu0 0.0
      %8192 = vmatpush1.msra.mxu0 0.0
      %8193 = vmatprep.subr.mxu0 0.0
      %8194 = vmatpush1.msra.mxu0 0.0
      %8195 = vmatprep.subr.mxu0 0.0
      %8196 = vmatpush1.msra.mxu0 0.0
      %8197 = vmatprep.subr.mxu0 0.0
      %8198 = vmatpush1.msra.mxu0 0.0
      %8199 = vmatprep.subr.mxu0 0.0
      %8200 = vmatpush1.msra.mxu0 0.0
      %8201 = vmatprep.mubr.f32.mxu0 0.0
      %8202 = vmatmul.mubr.f32.gmra.mrb[0].mxu0 %v8126
      %v8203 = vpop.f32.mrb[0].mxu0
      %v8204 = vadd.f32 0.0, %v8203
      %v8205 = vpop.f32.mrb[0].mxu0
      %v8206 = vadd.f32 0.0, %v8205
      %8207 = vmatprep.mubr.f32.mxu0 0.0
      %8208 = vmatmul.mubr.f32.gmra.mrb[0].mxu0 %v8129
      %v8209 = vpop.f32.mrb[0].mxu0
      %v8210 = vadd.f32 0.0, %v8209
      %v8211 = vpop.f32.mrb[0].mxu0
      %v8212 = vadd.f32 0.0, %v8211
      %8213 = vmatprep.mubr.f32.mxu0 0.0
      %8214 = vmatmul.mubr.f32.gmra.mrb[0].mxu0 %v8132
      %v8215 = vpop.f32.mrb[0].mxu0
      %v8216 = vadd.f32 0.0, %v8215
      %v8217 = vpop.f32.mrb[0].mxu0
      %v8218 = vadd.f32 0.0, %v8217
      %8219 = vmatprep.mubr.f32.mxu0 0.0
      %8220 = vmatmul.mubr.f32.gmra.mrb[0].mxu0 %v8135
      %v8221 = vpop.f32.mrb[0].mxu0
      %v8222 = vadd.f32 0.0, %v8221
      %v8223 = vpop.f32.mrb[0].mxu0
      %v8224 = vadd.f32 0.0, %v8223
      %8225 = vdwg.mxu0
      %v8226 = vsel %vm2152, %v8204, 0.0
      %v8227 = vsel %vm2153, %v8206, 0.0
      %v8228 = vsel %vm2152, %v8210, 0.0
      %v8229 = vsel %vm2153, %v8212, 0.0
      %v8230 = vsel %vm2152, %v8216, 0.0
      %v8231 = vsel %vm2153, %v8218, 0.0
      %v8232 = vsel %vm2152, %v8222, 0.0
      %v8233 = vsel %vm2153, %v8224, 0.0
      %v8234 = vadd.f32 %v8088, %v8226
      %v8235 = vadd.f32 %v8089, %v8227
      %v8236 = vadd.f32 %v8090, %v8228
      %v8237 = vadd.f32 %v8091, %v8229
      %v8238 = vadd.f32 %v8092, %v8230
      %v8239 = vadd.f32 %v8093, %v8231
      %v8240 = vadd.f32 %v8094, %v8232
      %v8241 = vadd.f32 %v8095, %v8233
      %8242 = vrot.lane.b32.xlu0 %v7951, 15
      %v8243 = vpop.permute.xlu0 %8242
      %8244 = vrot.lane.b32.xlu0 %v7953, 15
      %v8245 = vpop.permute.xlu0 %8244
      %8246 = vrot.lane.b32.xlu0 %v7955, 15
      %v8247 = vpop.permute.xlu0 %8246
      %8248 = vrot.lane.b32.xlu0 %v7957, 15
      %v8249 = vpop.permute.xlu0 %8248
      %8250 = vrot.lane.b32.xlu0 %v7952, 15
      %v8251 = vpop.permute.xlu0 %8250
      %8252 = vrot.lane.b32.xlu0 %v7954, 15
      %v8253 = vpop.permute.xlu0 %8252
      %8254 = vrot.lane.b32.xlu0 %v7956, 15
      %v8255 = vpop.permute.xlu0 %8254
      %8256 = vrot.lane.b32.xlu0 %v7958, 15
      %v8257 = vpop.permute.xlu0 %8256
      %v8258 = vsel %vm2174, %v8243, %v8251
      %v8259 = vsel %vm2174, %v8245, %v8253
      %v8260 = vsel %vm2174, %v8247, %v8255
      %v8261 = vsel %vm2174, %v8249, %v8257
      %v8262 = vsel %vm2174, %v8251, %v8243
      %v8263 = vsel %vm2174, %v8253, %v8245
      %v8264 = vsel %vm2174, %v8255, %v8247
      %v8265 = vsel %vm2174, %v8257, %v8249
      %s8266 = scalar_lea.vmem %s13, 64
      %v8267 = vld [vmem:[%s8266] sm:$0xff]
      %v8268 = vld [vmem:[%s8266 + $0x8] sm:$0xff]
      %v8269 = vld [vmem:[%s8266 + $0x10] sm:$0xff]
      %v8270 = vld [vmem:[%s8266 + $0x18] sm:$0xff]
      %v8272 = vsel %vm1672, %v8267, 0
      %v8275 = vsel %vm1672, %v8268, 0
      %v8278 = vsel %vm1672, %v8269, 0
      %v8281 = vsel %vm1672, %v8270, 0
      %8283 = vmatprep.subr.mxu0 %v8258
      %8284 = vmatpush1.msra.mxu0 %v8262
      %8285 = vmatprep.subr.mxu0 %v8259
      %8286 = vmatpush1.msra.mxu0 %v8263
      %8287 = vmatprep.subr.mxu0 %v8260
      %8288 = vmatpush1.msra.mxu0 %v8264
      %8289 = vmatprep.subr.mxu0 %v8261
      %8290 = vmatpush1.msra.mxu0 %v8265
      %8291 = vmatprep.subr.mxu0 0.0
      %8292 = vmatpush1.msra.mxu0 0.0
      %8293 = vmatprep.subr.mxu0 0.0
      %8294 = vmatpush1.msra.mxu0 0.0
      %8295 = vmatprep.subr.mxu0 0.0
      %8296 = vmatpush1.msra.mxu0 0.0
      %8297 = vmatprep.subr.mxu0 0.0
      %8298 = vmatpush1.msra.mxu0 0.0
      %8299 = vmatprep.subr.mxu0 0.0
      %8300 = vmatpush1.msra.mxu0 0.0
      %8301 = vmatprep.subr.mxu0 0.0
      %8302 = vmatpush1.msra.mxu0 0.0
      %8303 = vmatprep.subr.mxu0 0.0
      %8304 = vmatpush1.msra.mxu0 0.0
      %8305 = vmatprep.subr.mxu0 0.0
      %8306 = vmatpush1.msra.mxu0 0.0
      %8307 = vmatprep.subr.mxu0 0.0
      %8308 = vmatpush1.msra.mxu0 0.0
      %8309 = vmatprep.subr.mxu0 0.0
      %8310 = vmatpush1.msra.mxu0 0.0
      %8311 = vmatprep.subr.mxu0 0.0
      %8312 = vmatpush1.msra.mxu0 0.0
      %8313 = vmatprep.subr.mxu0 0.0
      %8314 = vmatpush1.msra.mxu0 0.0
      %8315 = vmatprep.subr.mxu0 0.0
      %8316 = vmatpush1.msra.mxu0 0.0
      %8317 = vmatprep.subr.mxu0 0.0
      %8318 = vmatpush1.msra.mxu0 0.0
      %8319 = vmatprep.subr.mxu0 0.0
      %8320 = vmatpush1.msra.mxu0 0.0
      %8321 = vmatprep.subr.mxu0 0.0
      %8322 = vmatpush1.msra.mxu0 0.0
      %8323 = vmatprep.subr.mxu0 0.0
      %8324 = vmatpush1.msra.mxu0 0.0
      %8325 = vmatprep.subr.mxu0 0.0
      %8326 = vmatpush1.msra.mxu0 0.0
      %8327 = vmatprep.subr.mxu0 0.0
      %8328 = vmatpush1.msra.mxu0 0.0
      %8329 = vmatprep.subr.mxu0 0.0
      %8330 = vmatpush1.msra.mxu0 0.0
      %8331 = vmatprep.subr.mxu0 0.0
      %8332 = vmatpush1.msra.mxu0 0.0
      %8333 = vmatprep.subr.mxu0 0.0
      %8334 = vmatpush1.msra.mxu0 0.0
      %8335 = vmatprep.subr.mxu0 0.0
      %8336 = vmatpush1.msra.mxu0 0.0
      %8337 = vmatprep.subr.mxu0 0.0
      %8338 = vmatpush1.msra.mxu0 0.0
      %8339 = vmatprep.subr.mxu0 0.0
      %8340 = vmatpush1.msra.mxu0 0.0
      %8341 = vmatprep.subr.mxu0 0.0
      %8342 = vmatpush1.msra.mxu0 0.0
      %8343 = vmatprep.subr.mxu0 0.0
      %8344 = vmatpush1.msra.mxu0 0.0
      %8345 = vmatprep.subr.mxu0 0.0
      %8346 = vmatpush1.msra.mxu0 0.0
      %8347 = vmatprep.mubr.f32.mxu0 0.0
      %8348 = vmatmul.mubr.f32.gmra.mrb[0].mxu0 %v8272
      %v8349 = vpop.f32.mrb[0].mxu0
      %v8350 = vadd.f32 0.0, %v8349
      %v8351 = vpop.f32.mrb[0].mxu0
      %v8352 = vadd.f32 0.0, %v8351
      %8353 = vmatprep.mubr.f32.mxu0 0.0
      %8354 = vmatmul.mubr.f32.gmra.mrb[0].mxu0 %v8275
      %v8355 = vpop.f32.mrb[0].mxu0
      %v8356 = vadd.f32 0.0, %v8355
      %v8357 = vpop.f32.mrb[0].mxu0
      %v8358 = vadd.f32 0.0, %v8357
      %8359 = vmatprep.mubr.f32.mxu0 0.0
      %8360 = vmatmul.mubr.f32.gmra.mrb[0].mxu0 %v8278
      %v8361 = vpop.f32.mrb[0].mxu0
      %v8362 = vadd.f32 0.0, %v8361
      %v8363 = vpop.f32.mrb[0].mxu0
      %v8364 = vadd.f32 0.0, %v8363
      %8365 = vmatprep.mubr.f32.mxu0 0.0
      %8366 = vmatmul.mubr.f32.gmra.mrb[0].mxu0 %v8281
      %v8367 = vpop.f32.mrb[0].mxu0
      %v8368 = vadd.f32 0.0, %v8367
      %v8369 = vpop.f32.mrb[0].mxu0
      %v8370 = vadd.f32 0.0, %v8369
      %8371 = vdwg.mxu0
      %v8372 = vsel %vm2425, %v8350, 0.0
      %v8373 = vsel %vm2426, %v8352, 0.0
      %v8374 = vsel %vm2425, %v8356, 0.0
      %v8375 = vsel %vm2426, %v8358, 0.0
      %v8376 = vsel %vm2425, %v8362, 0.0
      %v8377 = vsel %vm2426, %v8364, 0.0
      %v8378 = vsel %vm2425, %v8368, 0.0
      %v8379 = vsel %vm2426, %v8370, 0.0
      %v8380 = vadd.f32 %v8234, %v8372
      %v8381 = vadd.f32 %v8235, %v8373
      %v8382 = vadd.f32 %v8236, %v8374
      %v8383 = vadd.f32 %v8237, %v8375
      %v8384 = vadd.f32 %v8238, %v8376
      %v8385 = vadd.f32 %v8239, %v8377
      %v8386 = vadd.f32 %v8240, %v8378
      %v8387 = vadd.f32 %v8241, %v8379
      %8388 = vrot.lane.b32.xlu0 %v7951, 1
      %v8389 = vpop.permute.xlu0 %8388
      %8390 = vrot.lane.b32.xlu0 %v7953, 1
      %v8391 = vpop.permute.xlu0 %8390
      %8392 = vrot.lane.b32.xlu0 %v7955, 1
      %v8393 = vpop.permute.xlu0 %8392
      %8394 = vrot.lane.b32.xlu0 %v7957, 1
      %v8395 = vpop.permute.xlu0 %8394
      %8396 = vrot.lane.b32.xlu0 %v7952, 1
      %v8397 = vpop.permute.xlu0 %8396
      %8398 = vrot.lane.b32.xlu0 %v7954, 1
      %v8399 = vpop.permute.xlu0 %8398
      %8400 = vrot.lane.b32.xlu0 %v7956, 1
      %v8401 = vpop.permute.xlu0 %8400
      %8402 = vrot.lane.b32.xlu0 %v7958, 1
      %v8403 = vpop.permute.xlu0 %8402
      %v8404 = vsel %vm2447, %v8389, %v8397
      %v8405 = vsel %vm2447, %v8391, %v8399
      %v8406 = vsel %vm2447, %v8393, %v8401
      %v8407 = vsel %vm2447, %v8395, %v8403
      %v8408 = vsel %vm2447, %v8397, %v8389
      %v8409 = vsel %vm2447, %v8399, %v8391
      %v8410 = vsel %vm2447, %v8401, %v8393
      %v8411 = vsel %vm2447, %v8403, %v8395
      %s8412 = scalar_lea.vmem %s13, 96
      %v8413 = vld [vmem:[%s8412] sm:$0xff]
      %v8414 = vld [vmem:[%s8412 + $0x8] sm:$0xff]
      %v8415 = vld [vmem:[%s8412 + $0x10] sm:$0xff]
      %v8416 = vld [vmem:[%s8412 + $0x18] sm:$0xff]
      %v8418 = vsel %vm1672, %v8413, 0
      %v8421 = vsel %vm1672, %v8414, 0
      %v8424 = vsel %vm1672, %v8415, 0
      %v8427 = vsel %vm1672, %v8416, 0
      %8429 = vmatprep.subr.mxu0 %v8404
      %8430 = vmatpush1.msra.mxu0 %v8408
      %8431 = vmatprep.subr.mxu0 %v8405
      %8432 = vmatpush1.msra.mxu0 %v8409
      %8433 = vmatprep.subr.mxu0 %v8406
      %8434 = vmatpush1.msra.mxu0 %v8410
      %8435 = vmatprep.subr.mxu0 %v8407
      %8436 = vmatpush1.msra.mxu0 %v8411
      %8437 = vmatprep.subr.mxu0 0.0
      %8438 = vmatpush1.msra.mxu0 0.0
      %8439 = vmatprep.subr.mxu0 0.0
      %8440 = vmatpush1.msra.mxu0 0.0
      %8441 = vmatprep.subr.mxu0 0.0
      %8442 = vmatpush1.msra.mxu0 0.0
      %8443 = vmatprep.subr.mxu0 0.0
      %8444 = vmatpush1.msra.mxu0 0.0
      %8445 = vmatprep.subr.mxu0 0.0
      %8446 = vmatpush1.msra.mxu0 0.0
      %8447 = vmatprep.subr.mxu0 0.0
      %8448 = vmatpush1.msra.mxu0 0.0
      %8449 = vmatprep.subr.mxu0 0.0
      %8450 = vmatpush1.msra.mxu0 0.0
      %8451 = vmatprep.subr.mxu0 0.0
      %8452 = vmatpush1.msra.mxu0 0.0
      %8453 = vmatprep.subr.mxu0 0.0
      %8454 = vmatpush1.msra.mxu0 0.0
      %8455 = vmatprep.subr.mxu0 0.0
      %8456 = vmatpush1.msra.mxu0 0.0
      %8457 = vmatprep.subr.mxu0 0.0
      %8458 = vmatpush1.msra.mxu0 0.0
      %8459 = vmatprep.subr.mxu0 0.0
      %8460 = vmatpush1.msra.mxu0 0.0
      %8461 = vmatprep.subr.mxu0 0.0
      %8462 = vmatpush1.msra.mxu0 0.0
      %8463 = vmatprep.subr.mxu0 0.0
      %8464 = vmatpush1.msra.mxu0 0.0
      %8465 = vmatprep.subr.mxu0 0.0
      %8466 = vmatpush1.msra.mxu0 0.0
      %8467 = vmatprep.subr.mxu0 0.0
      %8468 = vmatpush1.msra.mxu0 0.0
      %8469 = vmatprep.subr.mxu0 0.0
      %8470 = vmatpush1.msra.mxu0 0.0
      %8471 = vmatprep.subr.mxu0 0.0
      %8472 = vmatpush1.msra.mxu0 0.0
      %8473 = vmatprep.subr.mxu0 0.0
      %8474 = vmatpush1.msra.mxu0 0.0
      %8475 = vmatprep.subr.mxu0 0.0
      %8476 = vmatpush1.msra.mxu0 0.0
      %8477 = vmatprep.subr.mxu0 0.0
      %8478 = vmatpush1.msra.mxu0 0.0
      %8479 = vmatprep.subr.mxu0 0.0
      %8480 = vmatpush1.msra.mxu0 0.0
      %8481 = vmatprep.subr.mxu0 0.0
      %8482 = vmatpush1.msra.mxu0 0.0
      %8483 = vmatprep.subr.mxu0 0.0
      %8484 = vmatpush1.msra.mxu0 0.0
      %8485 = vmatprep.subr.mxu0 0.0
      %8486 = vmatpush1.msra.mxu0 0.0
      %8487 = vmatprep.subr.mxu0 0.0
      %8488 = vmatpush1.msra.mxu0 0.0
      %8489 = vmatprep.subr.mxu0 0.0
      %8490 = vmatpush1.msra.mxu0 0.0
      %8491 = vmatprep.subr.mxu0 0.0
      %8492 = vmatpush1.msra.mxu0 0.0
      %8493 = vmatprep.mubr.f32.mxu0 0.0
      %8494 = vmatmul.mubr.f32.gmra.mrb[0].mxu0 %v8418
      %v8495 = vpop.f32.mrb[0].mxu0
      %v8496 = vadd.f32 0.0, %v8495
      %v8497 = vpop.f32.mrb[0].mxu0
      %v8498 = vadd.f32 0.0, %v8497
      %8499 = vmatprep.mubr.f32.mxu0 0.0
      %8500 = vmatmul.mubr.f32.gmra.mrb[0].mxu0 %v8421
      %v8501 = vpop.f32.mrb[0].mxu0
      %v8502 = vadd.f32 0.0, %v8501
      %v8503 = vpop.f32.mrb[0].mxu0
      %v8504 = vadd.f32 0.0, %v8503
      %8505 = vmatprep.mubr.f32.mxu0 0.0
      %8506 = vmatmul.mubr.f32.gmra.mrb[0].mxu0 %v8424
      %v8507 = vpop.f32.mrb[0].mxu0
      %v8508 = vadd.f32 0.0, %v8507
      %v8509 = vpop.f32.mrb[0].mxu0
      %v8510 = vadd.f32 0.0, %v8509
      %8511 = vmatprep.mubr.f32.mxu0 0.0
      %8512 = vmatmul.mubr.f32.gmra.mrb[0].mxu0 %v8427
      %v8513 = vpop.f32.mrb[0].mxu0
      %v8514 = vadd.f32 0.0, %v8513
      %v8515 = vpop.f32.mrb[0].mxu0
      %v8516 = vadd.f32 0.0, %v8515
      %8517 = vdwg.mxu0
      %v8518 = vsel %vm2694, %v8496, 0.0
      %v8519 = vsel %vm2695, %v8498, 0.0
      %v8520 = vsel %vm2694, %v8502, 0.0
      %v8521 = vsel %vm2695, %v8504, 0.0
      %v8522 = vsel %vm2694, %v8508, 0.0
      %v8523 = vsel %vm2695, %v8510, 0.0
      %v8524 = vsel %vm2694, %v8514, 0.0
      %v8525 = vsel %vm2695, %v8516, 0.0
      %v8526 = vadd.f32 %v8380, %v8518
      %v8527 = vadd.f32 %v8381, %v8519
      %v8528 = vadd.f32 %v8382, %v8520
      %v8529 = vadd.f32 %v8383, %v8521
      %v8530 = vadd.f32 %v8384, %v8522
      %v8531 = vadd.f32 %v8385, %v8523
      %v8532 = vadd.f32 %v8386, %v8524
      %v8533 = vadd.f32 %v8387, %v8525
      %s8534 = scalar_lea.vmem %s13, 128
      %v8535 = vld [vmem:[%s8534] sm:$0xff]
      %v8536 = vld [vmem:[%s8534 + $0x8] sm:$0xff]
      %v8537 = vld [vmem:[%s8534 + $0x10] sm:$0xff]
      %v8538 = vld [vmem:[%s8534 + $0x18] sm:$0xff]
      %v8540 = vsel %vm1672, %v8535, 0
      %v8543 = vsel %vm1672, %v8536, 0
      %v8546 = vsel %vm1672, %v8537, 0
      %v8549 = vsel %vm1672, %v8538, 0
      %8551 = vmatprep.subr.mxu0 %v7952
      %8552 = vmatpush1.msra.mxu0 %v7951
      %8553 = vmatprep.subr.mxu0 %v7954
      %8554 = vmatpush1.msra.mxu0 %v7953
      %8555 = vmatprep.subr.mxu0 %v7956
      %8556 = vmatpush1.msra.mxu0 %v7955
      %8557 = vmatprep.subr.mxu0 %v7958
      %8558 = vmatpush1.msra.mxu0 %v7957
      %8559 = vmatprep.subr.mxu0 0.0
      %8560 = vmatpush1.msra.mxu0 0.0
      %8561 = vmatprep.subr.mxu0 0.0
      %8562 = vmatpush1.msra.mxu0 0.0
      %8563 = vmatprep.subr.mxu0 0.0
      %8564 = vmatpush1.msra.mxu0 0.0
      %8565 = vmatprep.subr.mxu0 0.0
      %8566 = vmatpush1.msra.mxu0 0.0
      %8567 = vmatprep.subr.mxu0 0.0
      %8568 = vmatpush1.msra.mxu0 0.0
      %8569 = vmatprep.subr.mxu0 0.0
      %8570 = vmatpush1.msra.mxu0 0.0
      %8571 = vmatprep.subr.mxu0 0.0
      %8572 = vmatpush1.msra.mxu0 0.0
      %8573 = vmatprep.subr.mxu0 0.0
      %8574 = vmatpush1.msra.mxu0 0.0
      %8575 = vmatprep.subr.mxu0 0.0
      %8576 = vmatpush1.msra.mxu0 0.0
      %8577 = vmatprep.subr.mxu0 0.0
      %8578 = vmatpush1.msra.mxu0 0.0
      %8579 = vmatprep.subr.mxu0 0.0
      %8580 = vmatpush1.msra.mxu0 0.0
      %8581 = vmatprep.subr.mxu0 0.0
      %8582 = vmatpush1.msra.mxu0 0.0
      %8583 = vmatprep.subr.mxu0 0.0
      %8584 = vmatpush1.msra.mxu0 0.0
      %8585 = vmatprep.subr.mxu0 0.0
      %8586 = vmatpush1.msra.mxu0 0.0
      %8587 = vmatprep.subr.mxu0 0.0
      %8588 = vmatpush1.msra.mxu0 0.0
      %8589 = vmatprep.subr.mxu0 0.0
      %8590 = vmatpush1.msra.mxu0 0.0
      %8591 = vmatprep.subr.mxu0 0.0
      %8592 = vmatpush1.msra.mxu0 0.0
      %8593 = vmatprep.subr.mxu0 0.0
      %8594 = vmatpush1.msra.mxu0 0.0
      %8595 = vmatprep.subr.mxu0 0.0
      %8596 = vmatpush1.msra.mxu0 0.0
      %8597 = vmatprep.subr.mxu0 0.0
      %8598 = vmatpush1.msra.mxu0 0.0
      %8599 = vmatprep.subr.mxu0 0.0
      %8600 = vmatpush1.msra.mxu0 0.0
      %8601 = vmatprep.subr.mxu0 0.0
      %8602 = vmatpush1.msra.mxu0 0.0
      %8603 = vmatprep.subr.mxu0 0.0
      %8604 = vmatpush1.msra.mxu0 0.0
      %8605 = vmatprep.subr.mxu0 0.0
      %8606 = vmatpush1.msra.mxu0 0.0
      %8607 = vmatprep.subr.mxu0 0.0
      %8608 = vmatpush1.msra.mxu0 0.0
      %8609 = vmatprep.subr.mxu0 0.0
      %8610 = vmatpush1.msra.mxu0 0.0
      %8611 = vmatprep.subr.mxu0 0.0
      %8612 = vmatpush1.msra.mxu0 0.0
      %8613 = vmatprep.subr.mxu0 0.0
      %8614 = vmatpush1.msra.mxu0 0.0
      %8615 = vmatprep.mubr.f32.mxu0 0.0
      %8616 = vmatmul.mubr.f32.gmra.mrb[0].mxu0 %v8540
      %v8617 = vpop.f32.mrb[0].mxu0
      %v8618 = vadd.f32 0.0, %v8617
      %v8619 = vpop.f32.mrb[0].mxu0
      %v8620 = vadd.f32 0.0, %v8619
      %8621 = vmatprep.mubr.f32.mxu0 0.0
      %8622 = vmatmul.mubr.f32.gmra.mrb[0].mxu0 %v8543
      %v8623 = vpop.f32.mrb[0].mxu0
      %v8624 = vadd.f32 0.0, %v8623
      %v8625 = vpop.f32.mrb[0].mxu0
      %v8626 = vadd.f32 0.0, %v8625
      %8627 = vmatprep.mubr.f32.mxu0 0.0
      %8628 = vmatmul.mubr.f32.gmra.mrb[0].mxu0 %v8546
      %v8629 = vpop.f32.mrb[0].mxu0
      %v8630 = vadd.f32 0.0, %v8629
      %v8631 = vpop.f32.mrb[0].mxu0
      %v8632 = vadd.f32 0.0, %v8631
      %8633 = vmatprep.mubr.f32.mxu0 0.0
      %8634 = vmatmul.mubr.f32.gmra.mrb[0].mxu0 %v8549
      %v8635 = vpop.f32.mrb[0].mxu0
      %v8636 = vadd.f32 0.0, %v8635
      %v8637 = vpop.f32.mrb[0].mxu0
      %v8638 = vadd.f32 0.0, %v8637
      %8639 = vdwg.mxu0
      %v8640 = vadd.f32 %v8526, %v8618
      %v8641 = vadd.f32 %v8527, %v8620
      %v8642 = vadd.f32 %v8528, %v8624
      %v8643 = vadd.f32 %v8529, %v8626
      %v8644 = vadd.f32 %v8530, %v8630
      %v8645 = vadd.f32 %v8531, %v8632
      %v8646 = vadd.f32 %v8532, %v8636
      %v8647 = vadd.f32 %v8533, %v8638
      %8648 = vrot.lane.b32.xlu0 %v7951, 127
      %v8649 = vpop.permute.xlu0 %8648
      %8650 = vrot.lane.b32.xlu0 %v7953, 127
      %v8651 = vpop.permute.xlu0 %8650
      %8652 = vrot.lane.b32.xlu0 %v7955, 127
      %v8653 = vpop.permute.xlu0 %8652
      %8654 = vrot.lane.b32.xlu0 %v7957, 127
      %v8655 = vpop.permute.xlu0 %8654
      %8656 = vrot.lane.b32.xlu0 %v7952, 127
      %v8657 = vpop.permute.xlu0 %8656
      %8658 = vrot.lane.b32.xlu0 %v7954, 127
      %v8659 = vpop.permute.xlu0 %8658
      %8660 = vrot.lane.b32.xlu0 %v7956, 127
      %v8661 = vpop.permute.xlu0 %8660
      %8662 = vrot.lane.b32.xlu0 %v7958, 127
      %v8663 = vpop.permute.xlu0 %8662
      %v8664 = vsel %vm2942, %v8649, %v8657
      %v8665 = vsel %vm2942, %v8651, %v8659
      %v8666 = vsel %vm2942, %v8653, %v8661
      %v8667 = vsel %vm2942, %v8655, %v8663
      %v8668 = vsel %vm2942, %v8657, %v8649
      %v8669 = vsel %vm2942, %v8659, %v8651
      %v8670 = vsel %vm2942, %v8661, %v8653
      %v8671 = vsel %vm2942, %v8663, %v8655
      %s8672 = scalar_lea.vmem %s13, 160
      %v8673 = vld [vmem:[%s8672] sm:$0xff]
      %v8674 = vld [vmem:[%s8672 + $0x8] sm:$0xff]
      %v8675 = vld [vmem:[%s8672 + $0x10] sm:$0xff]
      %v8676 = vld [vmem:[%s8672 + $0x18] sm:$0xff]
      %v8678 = vsel %vm1672, %v8673, 0
      %v8681 = vsel %vm1672, %v8674, 0
      %v8684 = vsel %vm1672, %v8675, 0
      %v8687 = vsel %vm1672, %v8676, 0
      %8689 = vmatprep.subr.mxu0 %v8668
      %8690 = vmatpush1.msra.mxu0 %v8664
      %8691 = vmatprep.subr.mxu0 %v8669
      %8692 = vmatpush1.msra.mxu0 %v8665
      %8693 = vmatprep.subr.mxu0 %v8670
      %8694 = vmatpush1.msra.mxu0 %v8666
      %8695 = vmatprep.subr.mxu0 %v8671
      %8696 = vmatpush1.msra.mxu0 %v8667
      %8697 = vmatprep.subr.mxu0 0.0
      %8698 = vmatpush1.msra.mxu0 0.0
      %8699 = vmatprep.subr.mxu0 0.0
      %8700 = vmatpush1.msra.mxu0 0.0
      %8701 = vmatprep.subr.mxu0 0.0
      %8702 = vmatpush1.msra.mxu0 0.0
      %8703 = vmatprep.subr.mxu0 0.0
      %8704 = vmatpush1.msra.mxu0 0.0
      %8705 = vmatprep.subr.mxu0 0.0
      %8706 = vmatpush1.msra.mxu0 0.0
      %8707 = vmatprep.subr.mxu0 0.0
      %8708 = vmatpush1.msra.mxu0 0.0
      %8709 = vmatprep.subr.mxu0 0.0
      %8710 = vmatpush1.msra.mxu0 0.0
      %8711 = vmatprep.subr.mxu0 0.0
      %8712 = vmatpush1.msra.mxu0 0.0
      %8713 = vmatprep.subr.mxu0 0.0
      %8714 = vmatpush1.msra.mxu0 0.0
      %8715 = vmatprep.subr.mxu0 0.0
      %8716 = vmatpush1.msra.mxu0 0.0
      %8717 = vmatprep.subr.mxu0 0.0
      %8718 = vmatpush1.msra.mxu0 0.0
      %8719 = vmatprep.subr.mxu0 0.0
      %8720 = vmatpush1.msra.mxu0 0.0
      %8721 = vmatprep.subr.mxu0 0.0
      %8722 = vmatpush1.msra.mxu0 0.0
      %8723 = vmatprep.subr.mxu0 0.0
      %8724 = vmatpush1.msra.mxu0 0.0
      %8725 = vmatprep.subr.mxu0 0.0
      %8726 = vmatpush1.msra.mxu0 0.0
      %8727 = vmatprep.subr.mxu0 0.0
      %8728 = vmatpush1.msra.mxu0 0.0
      %8729 = vmatprep.subr.mxu0 0.0
      %8730 = vmatpush1.msra.mxu0 0.0
      %8731 = vmatprep.subr.mxu0 0.0
      %8732 = vmatpush1.msra.mxu0 0.0
      %8733 = vmatprep.subr.mxu0 0.0
      %8734 = vmatpush1.msra.mxu0 0.0
      %8735 = vmatprep.subr.mxu0 0.0
      %8736 = vmatpush1.msra.mxu0 0.0
      %8737 = vmatprep.subr.mxu0 0.0
      %8738 = vmatpush1.msra.mxu0 0.0
      %8739 = vmatprep.subr.mxu0 0.0
      %8740 = vmatpush1.msra.mxu0 0.0
      %8741 = vmatprep.subr.mxu0 0.0
      %8742 = vmatpush1.msra.mxu0 0.0
      %8743 = vmatprep.subr.mxu0 0.0
      %8744 = vmatpush1.msra.mxu0 0.0
      %8745 = vmatprep.subr.mxu0 0.0
      %8746 = vmatpush1.msra.mxu0 0.0
      %8747 = vmatprep.subr.mxu0 0.0
      %8748 = vmatpush1.msra.mxu0 0.0
      %8749 = vmatprep.subr.mxu0 0.0
      %8750 = vmatpush1.msra.mxu0 0.0
      %8751 = vmatprep.subr.mxu0 0.0
      %8752 = vmatpush1.msra.mxu0 0.0
      %8753 = vmatprep.mubr.f32.mxu0 0.0
      %8754 = vmatmul.mubr.f32.gmra.mrb[0].mxu0 %v8678
      %v8755 = vpop.f32.mrb[0].mxu0
      %v8756 = vadd.f32 0.0, %v8755
      %v8757 = vpop.f32.mrb[0].mxu0
      %v8758 = vadd.f32 0.0, %v8757
      %8759 = vmatprep.mubr.f32.mxu0 0.0
      %8760 = vmatmul.mubr.f32.gmra.mrb[0].mxu0 %v8681
      %v8761 = vpop.f32.mrb[0].mxu0
      %v8762 = vadd.f32 0.0, %v8761
      %v8763 = vpop.f32.mrb[0].mxu0
      %v8764 = vadd.f32 0.0, %v8763
      %8765 = vmatprep.mubr.f32.mxu0 0.0
      %8766 = vmatmul.mubr.f32.gmra.mrb[0].mxu0 %v8684
      %v8767 = vpop.f32.mrb[0].mxu0
      %v8768 = vadd.f32 0.0, %v8767
      %v8769 = vpop.f32.mrb[0].mxu0
      %v8770 = vadd.f32 0.0, %v8769
      %8771 = vmatprep.mubr.f32.mxu0 0.0
      %8772 = vmatmul.mubr.f32.gmra.mrb[0].mxu0 %v8687
      %v8773 = vpop.f32.mrb[0].mxu0
      %v8774 = vadd.f32 0.0, %v8773
      %v8775 = vpop.f32.mrb[0].mxu0
      %v8776 = vadd.f32 0.0, %v8775
      %8777 = vdwg.mxu0
      %v8778 = vsel %vm3189, %v8756, 0.0
      %v8779 = vsel %vm3190, %v8758, 0.0
      %v8780 = vsel %vm3189, %v8762, 0.0
      %v8781 = vsel %vm3190, %v8764, 0.0
      %v8782 = vsel %vm3189, %v8768, 0.0
      %v8783 = vsel %vm3190, %v8770, 0.0
      %v8784 = vsel %vm3189, %v8774, 0.0
      %v8785 = vsel %vm3190, %v8776, 0.0
      %v8786 = vadd.f32 %v8640, %v8778
      %v8787 = vadd.f32 %v8641, %v8779
      %v8788 = vadd.f32 %v8642, %v8780
      %v8789 = vadd.f32 %v8643, %v8781
      %v8790 = vadd.f32 %v8644, %v8782
      %v8791 = vadd.f32 %v8645, %v8783
      %v8792 = vadd.f32 %v8646, %v8784
      %v8793 = vadd.f32 %v8647, %v8785
      %8794 = vrot.lane.b32.xlu0 %v7951, 113
      %v8795 = vpop.permute.xlu0 %8794
      %8796 = vrot.lane.b32.xlu0 %v7953, 113
      %v8797 = vpop.permute.xlu0 %8796
      %8798 = vrot.lane.b32.xlu0 %v7955, 113
      %v8799 = vpop.permute.xlu0 %8798
      %8800 = vrot.lane.b32.xlu0 %v7957, 113
      %v8801 = vpop.permute.xlu0 %8800
      %8802 = vrot.lane.b32.xlu0 %v7952, 113
      %v8803 = vpop.permute.xlu0 %8802
      %8804 = vrot.lane.b32.xlu0 %v7954, 113
      %v8805 = vpop.permute.xlu0 %8804
      %8806 = vrot.lane.b32.xlu0 %v7956, 113
      %v8807 = vpop.permute.xlu0 %8806
      %8808 = vrot.lane.b32.xlu0 %v7958, 113
      %v8809 = vpop.permute.xlu0 %8808
      %v8810 = vsel %vm3211, %v8795, %v8803
      %v8811 = vsel %vm3211, %v8797, %v8805
      %v8812 = vsel %vm3211, %v8799, %v8807
      %v8813 = vsel %vm3211, %v8801, %v8809
      %v8814 = vsel %vm3211, %v8803, %v8795
      %v8815 = vsel %vm3211, %v8805, %v8797
      %v8816 = vsel %vm3211, %v8807, %v8799
      %v8817 = vsel %vm3211, %v8809, %v8801
      %s8818 = scalar_lea.vmem %s13, 192
      %v8819 = vld [vmem:[%s8818] sm:$0xff]
      %v8820 = vld [vmem:[%s8818 + $0x8] sm:$0xff]
      %v8821 = vld [vmem:[%s8818 + $0x10] sm:$0xff]
      %v8822 = vld [vmem:[%s8818 + $0x18] sm:$0xff]
      %v8824 = vsel %vm1672, %v8819, 0
      %v8827 = vsel %vm1672, %v8820, 0
      %v8830 = vsel %vm1672, %v8821, 0
      %v8833 = vsel %vm1672, %v8822, 0
      %8835 = vmatprep.subr.mxu0 %v8814
      %8836 = vmatpush1.msra.mxu0 %v8810
      %8837 = vmatprep.subr.mxu0 %v8815
      %8838 = vmatpush1.msra.mxu0 %v8811
      %8839 = vmatprep.subr.mxu0 %v8816
      %8840 = vmatpush1.msra.mxu0 %v8812
      %8841 = vmatprep.subr.mxu0 %v8817
      %8842 = vmatpush1.msra.mxu0 %v8813
      %8843 = vmatprep.subr.mxu0 0.0
      %8844 = vmatpush1.msra.mxu0 0.0
      %8845 = vmatprep.subr.mxu0 0.0
      %8846 = vmatpush1.msra.mxu0 0.0
      %8847 = vmatprep.subr.mxu0 0.0
      %8848 = vmatpush1.msra.mxu0 0.0
      %8849 = vmatprep.subr.mxu0 0.0
      %8850 = vmatpush1.msra.mxu0 0.0
      %8851 = vmatprep.subr.mxu0 0.0
      %8852 = vmatpush1.msra.mxu0 0.0
      %8853 = vmatprep.subr.mxu0 0.0
      %8854 = vmatpush1.msra.mxu0 0.0
      %8855 = vmatprep.subr.mxu0 0.0
      %8856 = vmatpush1.msra.mxu0 0.0
      %8857 = vmatprep.subr.mxu0 0.0
      %8858 = vmatpush1.msra.mxu0 0.0
      %8859 = vmatprep.subr.mxu0 0.0
      %8860 = vmatpush1.msra.mxu0 0.0
      %8861 = vmatprep.subr.mxu0 0.0
      %8862 = vmatpush1.msra.mxu0 0.0
      %8863 = vmatprep.subr.mxu0 0.0
      %8864 = vmatpush1.msra.mxu0 0.0
      %8865 = vmatprep.subr.mxu0 0.0
      %8866 = vmatpush1.msra.mxu0 0.0
      %8867 = vmatprep.subr.mxu0 0.0
      %8868 = vmatpush1.msra.mxu0 0.0
      %8869 = vmatprep.subr.mxu0 0.0
      %8870 = vmatpush1.msra.mxu0 0.0
      %8871 = vmatprep.subr.mxu0 0.0
      %8872 = vmatpush1.msra.mxu0 0.0
      %8873 = vmatprep.subr.mxu0 0.0
      %8874 = vmatpush1.msra.mxu0 0.0
      %8875 = vmatprep.subr.mxu0 0.0
      %8876 = vmatpush1.msra.mxu0 0.0
      %8877 = vmatprep.subr.mxu0 0.0
      %8878 = vmatpush1.msra.mxu0 0.0
      %8879 = vmatprep.subr.mxu0 0.0
      %8880 = vmatpush1.msra.mxu0 0.0
      %8881 = vmatprep.subr.mxu0 0.0
      %8882 = vmatpush1.msra.mxu0 0.0
      %8883 = vmatprep.subr.mxu0 0.0
      %8884 = vmatpush1.msra.mxu0 0.0
      %8885 = vmatprep.subr.mxu0 0.0
      %8886 = vmatpush1.msra.mxu0 0.0
      %8887 = vmatprep.subr.mxu0 0.0
      %8888 = vmatpush1.msra.mxu0 0.0
      %8889 = vmatprep.subr.mxu0 0.0
      %8890 = vmatpush1.msra.mxu0 0.0
      %8891 = vmatprep.subr.mxu0 0.0
      %8892 = vmatpush1.msra.mxu0 0.0
      %8893 = vmatprep.subr.mxu0 0.0
      %8894 = vmatpush1.msra.mxu0 0.0
      %8895 = vmatprep.subr.mxu0 0.0
      %8896 = vmatpush1.msra.mxu0 0.0
      %8897 = vmatprep.subr.mxu0 0.0
      %8898 = vmatpush1.msra.mxu0 0.0
      %8899 = vmatprep.mubr.f32.mxu0 0.0
      %8900 = vmatmul.mubr.f32.gmra.mrb[0].mxu0 %v8824
      %v8901 = vpop.f32.mrb[0].mxu0
      %v8902 = vadd.f32 0.0, %v8901
      %v8903 = vpop.f32.mrb[0].mxu0
      %v8904 = vadd.f32 0.0, %v8903
      %8905 = vmatprep.mubr.f32.mxu0 0.0
      %8906 = vmatmul.mubr.f32.gmra.mrb[0].mxu0 %v8827
      %v8907 = vpop.f32.mrb[0].mxu0
      %v8908 = vadd.f32 0.0, %v8907
      %v8909 = vpop.f32.mrb[0].mxu0
      %v8910 = vadd.f32 0.0, %v8909
      %8911 = vmatprep.mubr.f32.mxu0 0.0
      %8912 = vmatmul.mubr.f32.gmra.mrb[0].mxu0 %v8830
      %v8913 = vpop.f32.mrb[0].mxu0
      %v8914 = vadd.f32 0.0, %v8913
      %v8915 = vpop.f32.mrb[0].mxu0
      %v8916 = vadd.f32 0.0, %v8915
      %8917 = vmatprep.mubr.f32.mxu0 0.0
      %8918 = vmatmul.mubr.f32.gmra.mrb[0].mxu0 %v8833
      %v8919 = vpop.f32.mrb[0].mxu0
      %v8920 = vadd.f32 0.0, %v8919
      %v8921 = vpop.f32.mrb[0].mxu0
      %v8922 = vadd.f32 0.0, %v8921
      %8923 = vdwg.mxu0
      %v8924 = vsel %vm3462, %v8902, 0.0
      %v8925 = vsel %vm3463, %v8904, 0.0
      %v8926 = vsel %vm3462, %v8908, 0.0
      %v8927 = vsel %vm3463, %v8910, 0.0
      %v8928 = vsel %vm3462, %v8914, 0.0
      %v8929 = vsel %vm3463, %v8916, 0.0
      %v8930 = vsel %vm3462, %v8920, 0.0
      %v8931 = vsel %vm3463, %v8922, 0.0
      %v8932 = vadd.f32 %v8786, %v8924
      %v8933 = vadd.f32 %v8787, %v8925
      %v8934 = vadd.f32 %v8788, %v8926
      %v8935 = vadd.f32 %v8789, %v8927
      %v8936 = vadd.f32 %v8790, %v8928
      %v8937 = vadd.f32 %v8791, %v8929
      %v8938 = vadd.f32 %v8792, %v8930
      %v8939 = vadd.f32 %v8793, %v8931
      %8940 = vrot.lane.b32.xlu0 %v7951, 112
      %v8941 = vpop.permute.xlu0 %8940
      %8942 = vrot.lane.b32.xlu0 %v7953, 112
      %v8943 = vpop.permute.xlu0 %8942
      %8944 = vrot.lane.b32.xlu0 %v7955, 112
      %v8945 = vpop.permute.xlu0 %8944
      %8946 = vrot.lane.b32.xlu0 %v7957, 112
      %v8947 = vpop.permute.xlu0 %8946
      %8948 = vrot.lane.b32.xlu0 %v7952, 112
      %v8949 = vpop.permute.xlu0 %8948
      %8950 = vrot.lane.b32.xlu0 %v7954, 112
      %v8951 = vpop.permute.xlu0 %8950
      %8952 = vrot.lane.b32.xlu0 %v7956, 112
      %v8953 = vpop.permute.xlu0 %8952
      %8954 = vrot.lane.b32.xlu0 %v7958, 112
      %v8955 = vpop.permute.xlu0 %8954
      %v8956 = vsel %vm3484, %v8941, %v8949
      %v8957 = vsel %vm3484, %v8943, %v8951
      %v8958 = vsel %vm3484, %v8945, %v8953
      %v8959 = vsel %vm3484, %v8947, %v8955
      %v8960 = vsel %vm3484, %v8949, %v8941
      %v8961 = vsel %vm3484, %v8951, %v8943
      %v8962 = vsel %vm3484, %v8953, %v8945
      %v8963 = vsel %vm3484, %v8955, %v8947
      %s8964 = scalar_lea.vmem %s13, 224
      %v8965 = vld [vmem:[%s8964] sm:$0xff]
      %v8966 = vld [vmem:[%s8964 + $0x8] sm:$0xff]
      %v8967 = vld [vmem:[%s8964 + $0x10] sm:$0xff]
      %v8968 = vld [vmem:[%s8964 + $0x18] sm:$0xff]
      %v8970 = vsel %vm1672, %v8965, 0
      %v8973 = vsel %vm1672, %v8966, 0
      %v8976 = vsel %vm1672, %v8967, 0
      %v8979 = vsel %vm1672, %v8968, 0
      %8981 = vmatprep.subr.mxu0 %v8960
      %8982 = vmatpush1.msra.mxu0 %v8956
      %8983 = vmatprep.subr.mxu0 %v8961
      %8984 = vmatpush1.msra.mxu0 %v8957
      %8985 = vmatprep.subr.mxu0 %v8962
      %8986 = vmatpush1.msra.mxu0 %v8958
      %8987 = vmatprep.subr.mxu0 %v8963
      %8988 = vmatpush1.msra.mxu0 %v8959
      %8989 = vmatprep.subr.mxu0 0.0
      %8990 = vmatpush1.msra.mxu0 0.0
      %8991 = vmatprep.subr.mxu0 0.0
      %8992 = vmatpush1.msra.mxu0 0.0
      %8993 = vmatprep.subr.mxu0 0.0
      %8994 = vmatpush1.msra.mxu0 0.0
      %8995 = vmatprep.subr.mxu0 0.0
      %8996 = vmatpush1.msra.mxu0 0.0
      %8997 = vmatprep.subr.mxu0 0.0
      %8998 = vmatpush1.msra.mxu0 0.0
      %8999 = vmatprep.subr.mxu0 0.0
      %9000 = vmatpush1.msra.mxu0 0.0
      %9001 = vmatprep.subr.mxu0 0.0
      %9002 = vmatpush1.msra.mxu0 0.0
      %9003 = vmatprep.subr.mxu0 0.0
      %9004 = vmatpush1.msra.mxu0 0.0
      %9005 = vmatprep.subr.mxu0 0.0
      %9006 = vmatpush1.msra.mxu0 0.0
      %9007 = vmatprep.subr.mxu0 0.0
      %9008 = vmatpush1.msra.mxu0 0.0
      %9009 = vmatprep.subr.mxu0 0.0
      %9010 = vmatpush1.msra.mxu0 0.0
      %9011 = vmatprep.subr.mxu0 0.0
      %9012 = vmatpush1.msra.mxu0 0.0
      %9013 = vmatprep.subr.mxu0 0.0
      %9014 = vmatpush1.msra.mxu0 0.0
      %9015 = vmatprep.subr.mxu0 0.0
      %9016 = vmatpush1.msra.mxu0 0.0
      %9017 = vmatprep.subr.mxu0 0.0
      %9018 = vmatpush1.msra.mxu0 0.0
      %9019 = vmatprep.subr.mxu0 0.0
      %9020 = vmatpush1.msra.mxu0 0.0
      %9021 = vmatprep.subr.mxu0 0.0
      %9022 = vmatpush1.msra.mxu0 0.0
      %9023 = vmatprep.subr.mxu0 0.0
      %9024 = vmatpush1.msra.mxu0 0.0
      %9025 = vmatprep.subr.mxu0 0.0
      %9026 = vmatpush1.msra.mxu0 0.0
      %9027 = vmatprep.subr.mxu0 0.0
      %9028 = vmatpush1.msra.mxu0 0.0
      %9029 = vmatprep.subr.mxu0 0.0
      %9030 = vmatpush1.msra.mxu0 0.0
      %9031 = vmatprep.subr.mxu0 0.0
      %9032 = vmatpush1.msra.mxu0 0.0
      %9033 = vmatprep.subr.mxu0 0.0
      %9034 = vmatpush1.msra.mxu0 0.0
      %9035 = vmatprep.subr.mxu0 0.0
      %9036 = vmatpush1.msra.mxu0 0.0
      %9037 = vmatprep.subr.mxu0 0.0
      %9038 = vmatpush1.msra.mxu0 0.0
      %9039 = vmatprep.subr.mxu0 0.0
      %9040 = vmatpush1.msra.mxu0 0.0
      %9041 = vmatprep.subr.mxu0 0.0
      %9042 = vmatpush1.msra.mxu0 0.0
      %9043 = vmatprep.subr.mxu0 0.0
      %9044 = vmatpush1.msra.mxu0 0.0
      %9045 = vmatprep.mubr.f32.mxu0 0.0
      %9046 = vmatmul.mubr.f32.gmra.mrb[0].mxu0 %v8970
      %v9047 = vpop.f32.mrb[0].mxu0
      %v9048 = vadd.f32 0.0, %v9047
      %v9049 = vpop.f32.mrb[0].mxu0
      %v9050 = vadd.f32 0.0, %v9049
      %9051 = vmatprep.mubr.f32.mxu0 0.0
      %9052 = vmatmul.mubr.f32.gmra.mrb[0].mxu0 %v8973
      %v9053 = vpop.f32.mrb[0].mxu0
      %v9054 = vadd.f32 0.0, %v9053
      %v9055 = vpop.f32.mrb[0].mxu0
      %v9056 = vadd.f32 0.0, %v9055
      %9057 = vmatprep.mubr.f32.mxu0 0.0
      %9058 = vmatmul.mubr.f32.gmra.mrb[0].mxu0 %v8976
      %v9059 = vpop.f32.mrb[0].mxu0
      %v9060 = vadd.f32 0.0, %v9059
      %v9061 = vpop.f32.mrb[0].mxu0
      %v9062 = vadd.f32 0.0, %v9061
      %9063 = vmatprep.mubr.f32.mxu0 0.0
      %9064 = vmatmul.mubr.f32.gmra.mrb[0].mxu0 %v8979
      %v9065 = vpop.f32.mrb[0].mxu0
      %v9066 = vadd.f32 0.0, %v9065
      %v9067 = vpop.f32.mrb[0].mxu0
      %v9068 = vadd.f32 0.0, %v9067
      %9069 = vdwg.mxu0
      %v9070 = vsel %vm3731, %v9048, 0.0
      %v9071 = vsel %vm3732, %v9050, 0.0
      %v9072 = vsel %vm3731, %v9054, 0.0
      %v9073 = vsel %vm3732, %v9056, 0.0
      %v9074 = vsel %vm3731, %v9060, 0.0
      %v9075 = vsel %vm3732, %v9062, 0.0
      %v9076 = vsel %vm3731, %v9066, 0.0
      %v9077 = vsel %vm3732, %v9068, 0.0
      %v9078 = vadd.f32 %v8932, %v9070
      %v9079 = vadd.f32 %v8933, %v9071
      %v9080 = vadd.f32 %v8934, %v9072
      %v9081 = vadd.f32 %v8935, %v9073
      %v9082 = vadd.f32 %v8936, %v9074
      %v9083 = vadd.f32 %v8937, %v9075
      %v9084 = vadd.f32 %v8938, %v9076
      %v9085 = vadd.f32 %v8939, %v9077
      %9086 = vrot.lane.b32.xlu0 %v7951, 111
      %v9087 = vpop.permute.xlu0 %9086
      %9088 = vrot.lane.b32.xlu0 %v7953, 111
      %v9089 = vpop.permute.xlu0 %9088
      %9090 = vrot.lane.b32.xlu0 %v7955, 111
      %v9091 = vpop.permute.xlu0 %9090
      %9092 = vrot.lane.b32.xlu0 %v7957, 111
      %v9093 = vpop.permute.xlu0 %9092
      %9094 = vrot.lane.b32.xlu0 %v7952, 111
      %v9095 = vpop.permute.xlu0 %9094
      %9096 = vrot.lane.b32.xlu0 %v7954, 111
      %v9097 = vpop.permute.xlu0 %9096
      %9098 = vrot.lane.b32.xlu0 %v7956, 111
      %v9099 = vpop.permute.xlu0 %9098
      %9100 = vrot.lane.b32.xlu0 %v7958, 111
      %v9101 = vpop.permute.xlu0 %9100
      %v9102 = vsel %vm3753, %v9087, %v9095
      %v9103 = vsel %vm3753, %v9089, %v9097
      %v9104 = vsel %vm3753, %v9091, %v9099
      %v9105 = vsel %vm3753, %v9093, %v9101
      %v9106 = vsel %vm3753, %v9095, %v9087
      %v9107 = vsel %vm3753, %v9097, %v9089
      %v9108 = vsel %vm3753, %v9099, %v9091
      %v9109 = vsel %vm3753, %v9101, %v9093
      %s9110 = scalar_lea.vmem %s13, 256
      %v9111 = vld [vmem:[%s9110] sm:$0xff]
      %v9112 = vld [vmem:[%s9110 + $0x8] sm:$0xff]
      %v9113 = vld [vmem:[%s9110 + $0x10] sm:$0xff]
      %v9114 = vld [vmem:[%s9110 + $0x18] sm:$0xff]
      %v9116 = vsel %vm1672, %v9111, 0
      %v9119 = vsel %vm1672, %v9112, 0
      %v9122 = vsel %vm1672, %v9113, 0
      %v9125 = vsel %vm1672, %v9114, 0
      %9127 = vmatprep.subr.mxu0 %v9106
      %9128 = vmatpush1.msra.mxu0 %v9102
      %9129 = vmatprep.subr.mxu0 %v9107
      %9130 = vmatpush1.msra.mxu0 %v9103
      %9131 = vmatprep.subr.mxu0 %v9108
      %9132 = vmatpush1.msra.mxu0 %v9104
      %9133 = vmatprep.subr.mxu0 %v9109
      %9134 = vmatpush1.msra.mxu0 %v9105
      %9135 = vmatprep.subr.mxu0 0.0
      %9136 = vmatpush1.msra.mxu0 0.0
      %9137 = vmatprep.subr.mxu0 0.0
      %9138 = vmatpush1.msra.mxu0 0.0
      %9139 = vmatprep.subr.mxu0 0.0
      %9140 = vmatpush1.msra.mxu0 0.0
      %9141 = vmatprep.subr.mxu0 0.0
      %9142 = vmatpush1.msra.mxu0 0.0
      %9143 = vmatprep.subr.mxu0 0.0
      %9144 = vmatpush1.msra.mxu0 0.0
      %9145 = vmatprep.subr.mxu0 0.0
      %9146 = vmatpush1.msra.mxu0 0.0
      %9147 = vmatprep.subr.mxu0 0.0
      %9148 = vmatpush1.msra.mxu0 0.0
      %9149 = vmatprep.subr.mxu0 0.0
      %9150 = vmatpush1.msra.mxu0 0.0
      %9151 = vmatprep.subr.mxu0 0.0
      %9152 = vmatpush1.msra.mxu0 0.0
      %9153 = vmatprep.subr.mxu0 0.0
      %9154 = vmatpush1.msra.mxu0 0.0
      %9155 = vmatprep.subr.mxu0 0.0
      %9156 = vmatpush1.msra.mxu0 0.0
      %9157 = vmatprep.subr.mxu0 0.0
      %9158 = vmatpush1.msra.mxu0 0.0
      %9159 = vmatprep.subr.mxu0 0.0
      %9160 = vmatpush1.msra.mxu0 0.0
      %9161 = vmatprep.subr.mxu0 0.0
      %9162 = vmatpush1.msra.mxu0 0.0
      %9163 = vmatprep.subr.mxu0 0.0
      %9164 = vmatpush1.msra.mxu0 0.0
      %9165 = vmatprep.subr.mxu0 0.0
      %9166 = vmatpush1.msra.mxu0 0.0
      %9167 = vmatprep.subr.mxu0 0.0
      %9168 = vmatpush1.msra.mxu0 0.0
      %9169 = vmatprep.subr.mxu0 0.0
      %9170 = vmatpush1.msra.mxu0 0.0
      %9171 = vmatprep.subr.mxu0 0.0
      %9172 = vmatpush1.msra.mxu0 0.0
      %9173 = vmatprep.subr.mxu0 0.0
      %9174 = vmatpush1.msra.mxu0 0.0
      %9175 = vmatprep.subr.mxu0 0.0
      %9176 = vmatpush1.msra.mxu0 0.0
      %9177 = vmatprep.subr.mxu0 0.0
      %9178 = vmatpush1.msra.mxu0 0.0
      %9179 = vmatprep.subr.mxu0 0.0
      %9180 = vmatpush1.msra.mxu0 0.0
      %9181 = vmatprep.subr.mxu0 0.0
      %9182 = vmatpush1.msra.mxu0 0.0
      %9183 = vmatprep.subr.mxu0 0.0
      %9184 = vmatpush1.msra.mxu0 0.0
      %9185 = vmatprep.subr.mxu0 0.0
      %9186 = vmatpush1.msra.mxu0 0.0
      %9187 = vmatprep.subr.mxu0 0.0
      %9188 = vmatpush1.msra.mxu0 0.0
      %9189 = vmatprep.subr.mxu0 0.0
      %9190 = vmatpush1.msra.mxu0 0.0
      %9191 = vmatprep.mubr.f32.mxu0 0.0
      %9192 = vmatmul.mubr.f32.gmra.mrb[0].mxu0 %v9116
      %v9193 = vpop.f32.mrb[0].mxu0
      %v9194 = vadd.f32 0.0, %v9193
      %v9195 = vpop.f32.mrb[0].mxu0
      %v9196 = vadd.f32 0.0, %v9195
      %9197 = vmatprep.mubr.f32.mxu0 0.0
      %9198 = vmatmul.mubr.f32.gmra.mrb[0].mxu0 %v9119
      %v9199 = vpop.f32.mrb[0].mxu0
      %v9200 = vadd.f32 0.0, %v9199
      %v9201 = vpop.f32.mrb[0].mxu0
      %v9202 = vadd.f32 0.0, %v9201
      %9203 = vmatprep.mubr.f32.mxu0 0.0
      %9204 = vmatmul.mubr.f32.gmra.mrb[0].mxu0 %v9122
      %v9205 = vpop.f32.mrb[0].mxu0
      %v9206 = vadd.f32 0.0, %v9205
      %v9207 = vpop.f32.mrb[0].mxu0
      %v9208 = vadd.f32 0.0, %v9207
      %9209 = vmatprep.mubr.f32.mxu0 0.0
      %9210 = vmatmul.mubr.f32.gmra.mrb[0].mxu0 %v9125
      %v9211 = vpop.f32.mrb[0].mxu0
      %v9212 = vadd.f32 0.0, %v9211
      %v9213 = vpop.f32.mrb[0].mxu0
      %v9214 = vadd.f32 0.0, %v9213
      %9215 = vdwg.mxu0
      %v9216 = vsel %vm4002, %v9194, 0.0
      %v9217 = vsel %vm4003, %v9196, 0.0
      %v9218 = vsel %vm4002, %v9200, 0.0
      %v9219 = vsel %vm4003, %v9202, 0.0
      %v9220 = vsel %vm4002, %v9206, 0.0
      %v9221 = vsel %vm4003, %v9208, 0.0
      %v9222 = vsel %vm4002, %v9212, 0.0
      %v9223 = vsel %vm4003, %v9214, 0.0
      %v9224 = vadd.f32 %v9078, %v9216
      %v9225 = vadd.f32 %v9079, %v9217
      %v9226 = vadd.f32 %v9080, %v9218
      %v9227 = vadd.f32 %v9081, %v9219
      %v9228 = vadd.f32 %v9082, %v9220
      %v9229 = vadd.f32 %v9083, %v9221
      %v9230 = vadd.f32 %v9084, %v9222
      %v9231 = vadd.f32 %v9085, %v9223
      %v9232 = vld [vmem:[%s14] sm:$0xff]
      %v9233 = vld [vmem:[%s14 + $0x8] sm:$0xff]
      %v9234 = vld [vmem:[%s14 + $0x10] sm:$0xff]
      %v9235 = vld [vmem:[%s14 + $0x18] sm:$0xff]
      %9237 = vset.pattern.permute.xlu0 0
      %9238 = vperm.xlu0 %9237, %v9232
      %v9239 = vpop.permute.xlu0 %9238
      %9242 = vset.pattern.permute.xlu0 0
      %9243 = vperm.xlu0 %9242, %v9233
      %v9244 = vpop.permute.xlu0 %9243
      %9247 = vset.pattern.permute.xlu0 0
      %9248 = vperm.xlu0 %9247, %v9234
      %v9249 = vpop.permute.xlu0 %9248
      %9252 = vset.pattern.permute.xlu0 0
      %9253 = vperm.xlu0 %9252, %v9235
      %v9254 = vpop.permute.xlu0 %9253
      %v9256 = vadd.f32 %v9224, %v9239
      %v9257 = vadd.f32 %v9225, %v9239
      %v9258 = vadd.f32 %v9226, %v9244
      %v9259 = vadd.f32 %v9227, %v9244
      %v9260 = vadd.f32 %v9228, %v9249
      %v9261 = vadd.f32 %v9229, %v9249
      %v9262 = vadd.f32 %v9230, %v9254
      %v9263 = vadd.f32 %v9231, %v9254
      %v9264 = vadd.f32 %v9256, %v6638
      %v9265 = vadd.f32 %v9257, %v6639
      %v9266 = vadd.f32 %v9258, %v6640
      %v9267 = vadd.f32 %v9259, %v6641
      %v9268 = vadd.f32 %v9260, %v6642
      %v9269 = vadd.f32 %v9261, %v6643
      %v9270 = vadd.f32 %v9262, %v6644
      %v9271 = vadd.f32 %v9263, %v6645
      %9272 = vrot.lane.b32.xlu0 %v9264, 17
      %v9273 = vpop.permute.xlu0 %9272
      %9274 = vrot.lane.b32.xlu0 %v9266, 17
      %v9275 = vpop.permute.xlu0 %9274
      %9276 = vrot.lane.b32.xlu0 %v9268, 17
      %v9277 = vpop.permute.xlu0 %9276
      %9278 = vrot.lane.b32.xlu0 %v9270, 17
      %v9279 = vpop.permute.xlu0 %9278
      %9280 = vrot.lane.b32.xlu0 %v9265, 17
      %v9281 = vpop.permute.xlu0 %9280
      %9282 = vrot.lane.b32.xlu0 %v9267, 17
      %v9283 = vpop.permute.xlu0 %9282
      %9284 = vrot.lane.b32.xlu0 %v9269, 17
      %v9285 = vpop.permute.xlu0 %9284
      %9286 = vrot.lane.b32.xlu0 %v9271, 17
      %v9287 = vpop.permute.xlu0 %9286
      %v9288 = vsel %vm1637, %v9273, %v9281
      %v9289 = vsel %vm1637, %v9275, %v9283
      %v9290 = vsel %vm1637, %v9277, %v9285
      %v9291 = vsel %vm1637, %v9279, %v9287
      %v9292 = vsel %vm1637, %v9281, %v9273
      %v9293 = vsel %vm1637, %v9283, %v9275
      %v9294 = vsel %vm1637, %v9285, %v9277
      %v9295 = vsel %vm1637, %v9287, %v9279
      %v9296 = vld [vmem:[%s15] sm:$0x3]
      %v9298 = vsel %vm1672, %v9296, 0
      %9300 = vmatprep.subr.mxu0 %v9288
      %9301 = vmatpush1.msra.mxu0 %v9292
      %9302 = vmatprep.subr.mxu0 %v9289
      %9303 = vmatpush1.msra.mxu0 %v9293
      %9304 = vmatprep.subr.mxu0 %v9290
      %9305 = vmatpush1.msra.mxu0 %v9294
      %9306 = vmatprep.subr.mxu0 %v9291
      %9307 = vmatpush1.msra.mxu0 %v9295
      %9308 = vmatprep.subr.mxu0 0.0
      %9309 = vmatpush1.msra.mxu0 0.0
      %9310 = vmatprep.subr.mxu0 0.0
      %9311 = vmatpush1.msra.mxu0 0.0
      %9312 = vmatprep.subr.mxu0 0.0
      %9313 = vmatpush1.msra.mxu0 0.0
      %9314 = vmatprep.subr.mxu0 0.0
      %9315 = vmatpush1.msra.mxu0 0.0
      %9316 = vmatprep.subr.mxu0 0.0
      %9317 = vmatpush1.msra.mxu0 0.0
      %9318 = vmatprep.subr.mxu0 0.0
      %9319 = vmatpush1.msra.mxu0 0.0
      %9320 = vmatprep.subr.mxu0 0.0
      %9321 = vmatpush1.msra.mxu0 0.0
      %9322 = vmatprep.subr.mxu0 0.0
      %9323 = vmatpush1.msra.mxu0 0.0
      %9324 = vmatprep.subr.mxu0 0.0
      %9325 = vmatpush1.msra.mxu0 0.0
      %9326 = vmatprep.subr.mxu0 0.0
      %9327 = vmatpush1.msra.mxu0 0.0
      %9328 = vmatprep.subr.mxu0 0.0
      %9329 = vmatpush1.msra.mxu0 0.0
      %9330 = vmatprep.subr.mxu0 0.0
      %9331 = vmatpush1.msra.mxu0 0.0
      %9332 = vmatprep.subr.mxu0 0.0
      %9333 = vmatpush1.msra.mxu0 0.0
      %9334 = vmatprep.subr.mxu0 0.0
      %9335 = vmatpush1.msra.mxu0 0.0
      %9336 = vmatprep.subr.mxu0 0.0
      %9337 = vmatpush1.msra.mxu0 0.0
      %9338 = vmatprep.subr.mxu0 0.0
      %9339 = vmatpush1.msra.mxu0 0.0
      %9340 = vmatprep.subr.mxu0 0.0
      %9341 = vmatpush1.msra.mxu0 0.0
      %9342 = vmatprep.subr.mxu0 0.0
      %9343 = vmatpush1.msra.mxu0 0.0
      %9344 = vmatprep.subr.mxu0 0.0
      %9345 = vmatpush1.msra.mxu0 0.0
      %9346 = vmatprep.subr.mxu0 0.0
      %9347 = vmatpush1.msra.mxu0 0.0
      %9348 = vmatprep.subr.mxu0 0.0
      %9349 = vmatpush1.msra.mxu0 0.0
      %9350 = vmatprep.subr.mxu0 0.0
      %9351 = vmatpush1.msra.mxu0 0.0
      %9352 = vmatprep.subr.mxu0 0.0
      %9353 = vmatpush1.msra.mxu0 0.0
      %9354 = vmatprep.subr.mxu0 0.0
      %9355 = vmatpush1.msra.mxu0 0.0
      %9356 = vmatprep.subr.mxu0 0.0
      %9357 = vmatpush1.msra.mxu0 0.0
      %9358 = vmatprep.subr.mxu0 0.0
      %9359 = vmatpush1.msra.mxu0 0.0
      %9360 = vmatprep.subr.mxu0 0.0
      %9361 = vmatpush1.msra.mxu0 0.0
      %9362 = vmatprep.subr.mxu0 0.0
      %9363 = vmatpush1.msra.mxu0 0.0
      %9364 = vmatprep.mubr.f32.mxu0 0.0
      %9365 = vmatmul.mubr.f32.gmra.mrb[0].mxu0 %v9298
      %v9366 = vpop.f32.mrb[0].mxu0
      %v9367 = vadd.f32 0.0, %v9366
      %v9368 = vpop.f32.mrb[0].mxu0
      %v9369 = vadd.f32 0.0, %v9368
      %9370 = vdwg.mxu0
      %v9371 = vsel %vm1891, %v9367, 0.0
      %v9372 = vsel %vm1892, %v9369, 0.0
      %9373 = vrot.lane.b32.xlu0 %v9264, 16
      %v9374 = vpop.permute.xlu0 %9373
      %9375 = vrot.lane.b32.xlu0 %v9266, 16
      %v9376 = vpop.permute.xlu0 %9375
      %9377 = vrot.lane.b32.xlu0 %v9268, 16
      %v9378 = vpop.permute.xlu0 %9377
      %9379 = vrot.lane.b32.xlu0 %v9270, 16
      %v9380 = vpop.permute.xlu0 %9379
      %9381 = vrot.lane.b32.xlu0 %v9265, 16
      %v9382 = vpop.permute.xlu0 %9381
      %9383 = vrot.lane.b32.xlu0 %v9267, 16
      %v9384 = vpop.permute.xlu0 %9383
      %9385 = vrot.lane.b32.xlu0 %v9269, 16
      %v9386 = vpop.permute.xlu0 %9385
      %9387 = vrot.lane.b32.xlu0 %v9271, 16
      %v9388 = vpop.permute.xlu0 %9387
      %v9389 = vsel %vm1905, %v9374, %v9382
      %v9390 = vsel %vm1905, %v9376, %v9384
      %v9391 = vsel %vm1905, %v9378, %v9386
      %v9392 = vsel %vm1905, %v9380, %v9388
      %v9393 = vsel %vm1905, %v9382, %v9374
      %v9394 = vsel %vm1905, %v9384, %v9376
      %v9395 = vsel %vm1905, %v9386, %v9378
      %v9396 = vsel %vm1905, %v9388, %v9380
      %s9397 = scalar_lea.vmem %s15, 2
      %v9398 = vld [vmem:[%s9397] sm:$0x3]
      %v9400 = vsel %vm1672, %v9398, 0
      %9402 = vmatprep.subr.mxu0 %v9389
      %9403 = vmatpush1.msra.mxu0 %v9393
      %9404 = vmatprep.subr.mxu0 %v9390
      %9405 = vmatpush1.msra.mxu0 %v9394
      %9406 = vmatprep.subr.mxu0 %v9391
      %9407 = vmatpush1.msra.mxu0 %v9395
      %9408 = vmatprep.subr.mxu0 %v9392
      %9409 = vmatpush1.msra.mxu0 %v9396
      %9410 = vmatprep.subr.mxu0 0.0
      %9411 = vmatpush1.msra.mxu0 0.0
      %9412 = vmatprep.subr.mxu0 0.0
      %9413 = vmatpush1.msra.mxu0 0.0
      %9414 = vmatprep.subr.mxu0 0.0
      %9415 = vmatpush1.msra.mxu0 0.0
      %9416 = vmatprep.subr.mxu0 0.0
      %9417 = vmatpush1.msra.mxu0 0.0
      %9418 = vmatprep.subr.mxu0 0.0
      %9419 = vmatpush1.msra.mxu0 0.0
      %9420 = vmatprep.subr.mxu0 0.0
      %9421 = vmatpush1.msra.mxu0 0.0
      %9422 = vmatprep.subr.mxu0 0.0
      %9423 = vmatpush1.msra.mxu0 0.0
      %9424 = vmatprep.subr.mxu0 0.0
      %9425 = vmatpush1.msra.mxu0 0.0
      %9426 = vmatprep.subr.mxu0 0.0
      %9427 = vmatpush1.msra.mxu0 0.0
      %9428 = vmatprep.subr.mxu0 0.0
      %9429 = vmatpush1.msra.mxu0 0.0
      %9430 = vmatprep.subr.mxu0 0.0
      %9431 = vmatpush1.msra.mxu0 0.0
      %9432 = vmatprep.subr.mxu0 0.0
      %9433 = vmatpush1.msra.mxu0 0.0
      %9434 = vmatprep.subr.mxu0 0.0
      %9435 = vmatpush1.msra.mxu0 0.0
      %9436 = vmatprep.subr.mxu0 0.0
      %9437 = vmatpush1.msra.mxu0 0.0
      %9438 = vmatprep.subr.mxu0 0.0
      %9439 = vmatpush1.msra.mxu0 0.0
      %9440 = vmatprep.subr.mxu0 0.0
      %9441 = vmatpush1.msra.mxu0 0.0
      %9442 = vmatprep.subr.mxu0 0.0
      %9443 = vmatpush1.msra.mxu0 0.0
      %9444 = vmatprep.subr.mxu0 0.0
      %9445 = vmatpush1.msra.mxu0 0.0
      %9446 = vmatprep.subr.mxu0 0.0
      %9447 = vmatpush1.msra.mxu0 0.0
      %9448 = vmatprep.subr.mxu0 0.0
      %9449 = vmatpush1.msra.mxu0 0.0
      %9450 = vmatprep.subr.mxu0 0.0
      %9451 = vmatpush1.msra.mxu0 0.0
      %9452 = vmatprep.subr.mxu0 0.0
      %9453 = vmatpush1.msra.mxu0 0.0
      %9454 = vmatprep.subr.mxu0 0.0
      %9455 = vmatpush1.msra.mxu0 0.0
      %9456 = vmatprep.subr.mxu0 0.0
      %9457 = vmatpush1.msra.mxu0 0.0
      %9458 = vmatprep.subr.mxu0 0.0
      %9459 = vmatpush1.msra.mxu0 0.0
      %9460 = vmatprep.subr.mxu0 0.0
      %9461 = vmatpush1.msra.mxu0 0.0
      %9462 = vmatprep.subr.mxu0 0.0
      %9463 = vmatpush1.msra.mxu0 0.0
      %9464 = vmatprep.subr.mxu0 0.0
      %9465 = vmatpush1.msra.mxu0 0.0
      %9466 = vmatprep.mubr.f32.mxu0 0.0
      %9467 = vmatmul.mubr.f32.gmra.mrb[0].mxu0 %v9400
      %v9468 = vpop.f32.mrb[0].mxu0
      %v9469 = vadd.f32 0.0, %v9468
      %v9470 = vpop.f32.mrb[0].mxu0
      %v9471 = vadd.f32 0.0, %v9470
      %9472 = vdwg.mxu0
      %v9473 = vsel %vm2152, %v9469, 0.0
      %v9474 = vsel %vm2153, %v9471, 0.0
      %v9475 = vadd.f32 %v9371, %v9473
      %v9476 = vadd.f32 %v9372, %v9474
      %9477 = vrot.lane.b32.xlu0 %v9264, 15
      %v9478 = vpop.permute.xlu0 %9477
      %9479 = vrot.lane.b32.xlu0 %v9266, 15
      %v9480 = vpop.permute.xlu0 %9479
      %9481 = vrot.lane.b32.xlu0 %v9268, 15
      %v9482 = vpop.permute.xlu0 %9481
      %9483 = vrot.lane.b32.xlu0 %v9270, 15
      %v9484 = vpop.permute.xlu0 %9483
      %9485 = vrot.lane.b32.xlu0 %v9265, 15
      %v9486 = vpop.permute.xlu0 %9485
      %9487 = vrot.lane.b32.xlu0 %v9267, 15
      %v9488 = vpop.permute.xlu0 %9487
      %9489 = vrot.lane.b32.xlu0 %v9269, 15
      %v9490 = vpop.permute.xlu0 %9489
      %9491 = vrot.lane.b32.xlu0 %v9271, 15
      %v9492 = vpop.permute.xlu0 %9491
      %v9493 = vsel %vm2174, %v9478, %v9486
      %v9494 = vsel %vm2174, %v9480, %v9488
      %v9495 = vsel %vm2174, %v9482, %v9490
      %v9496 = vsel %vm2174, %v9484, %v9492
      %v9497 = vsel %vm2174, %v9486, %v9478
      %v9498 = vsel %vm2174, %v9488, %v9480
      %v9499 = vsel %vm2174, %v9490, %v9482
      %v9500 = vsel %vm2174, %v9492, %v9484
      %s9501 = scalar_lea.vmem %s15, 4
      %v9502 = vld [vmem:[%s9501] sm:$0x3]
      %v9504 = vsel %vm1672, %v9502, 0
      %9506 = vmatprep.subr.mxu0 %v9493
      %9507 = vmatpush1.msra.mxu0 %v9497
      %9508 = vmatprep.subr.mxu0 %v9494
      %9509 = vmatpush1.msra.mxu0 %v9498
      %9510 = vmatprep.subr.mxu0 %v9495
      %9511 = vmatpush1.msra.mxu0 %v9499
      %9512 = vmatprep.subr.mxu0 %v9496
      %9513 = vmatpush1.msra.mxu0 %v9500
      %9514 = vmatprep.subr.mxu0 0.0
      %9515 = vmatpush1.msra.mxu0 0.0
      %9516 = vmatprep.subr.mxu0 0.0
      %9517 = vmatpush1.msra.mxu0 0.0
      %9518 = vmatprep.subr.mxu0 0.0
      %9519 = vmatpush1.msra.mxu0 0.0
      %9520 = vmatprep.subr.mxu0 0.0
      %9521 = vmatpush1.msra.mxu0 0.0
      %9522 = vmatprep.subr.mxu0 0.0
      %9523 = vmatpush1.msra.mxu0 0.0
      %9524 = vmatprep.subr.mxu0 0.0
      %9525 = vmatpush1.msra.mxu0 0.0
      %9526 = vmatprep.subr.mxu0 0.0
      %9527 = vmatpush1.msra.mxu0 0.0
      %9528 = vmatprep.subr.mxu0 0.0
      %9529 = vmatpush1.msra.mxu0 0.0
      %9530 = vmatprep.subr.mxu0 0.0
      %9531 = vmatpush1.msra.mxu0 0.0
      %9532 = vmatprep.subr.mxu0 0.0
      %9533 = vmatpush1.msra.mxu0 0.0
      %9534 = vmatprep.subr.mxu0 0.0
      %9535 = vmatpush1.msra.mxu0 0.0
      %9536 = vmatprep.subr.mxu0 0.0
      %9537 = vmatpush1.msra.mxu0 0.0
      %9538 = vmatprep.subr.mxu0 0.0
      %9539 = vmatpush1.msra.mxu0 0.0
      %9540 = vmatprep.subr.mxu0 0.0
      %9541 = vmatpush1.msra.mxu0 0.0
      %9542 = vmatprep.subr.mxu0 0.0
      %9543 = vmatpush1.msra.mxu0 0.0
      %9544 = vmatprep.subr.mxu0 0.0
      %9545 = vmatpush1.msra.mxu0 0.0
      %9546 = vmatprep.subr.mxu0 0.0
      %9547 = vmatpush1.msra.mxu0 0.0
      %9548 = vmatprep.subr.mxu0 0.0
      %9549 = vmatpush1.msra.mxu0 0.0
      %9550 = vmatprep.subr.mxu0 0.0
      %9551 = vmatpush1.msra.mxu0 0.0
      %9552 = vmatprep.subr.mxu0 0.0
      %9553 = vmatpush1.msra.mxu0 0.0
      %9554 = vmatprep.subr.mxu0 0.0
      %9555 = vmatpush1.msra.mxu0 0.0
      %9556 = vmatprep.subr.mxu0 0.0
      %9557 = vmatpush1.msra.mxu0 0.0
      %9558 = vmatprep.subr.mxu0 0.0
      %9559 = vmatpush1.msra.mxu0 0.0
      %9560 = vmatprep.subr.mxu0 0.0
      %9561 = vmatpush1.msra.mxu0 0.0
      %9562 = vmatprep.subr.mxu0 0.0
      %9563 = vmatpush1.msra.mxu0 0.0
      %9564 = vmatprep.subr.mxu0 0.0
      %9565 = vmatpush1.msra.mxu0 0.0
      %9566 = vmatprep.subr.mxu0 0.0
      %9567 = vmatpush1.msra.mxu0 0.0
      %9568 = vmatprep.subr.mxu0 0.0
      %9569 = vmatpush1.msra.mxu0 0.0
      %9570 = vmatprep.mubr.f32.mxu0 0.0
      %9571 = vmatmul.mubr.f32.gmra.mrb[0].mxu0 %v9504
      %v9572 = vpop.f32.mrb[0].mxu0
      %v9573 = vadd.f32 0.0, %v9572
      %v9574 = vpop.f32.mrb[0].mxu0
      %v9575 = vadd.f32 0.0, %v9574
      %9576 = vdwg.mxu0
      %v9577 = vsel %vm2425, %v9573, 0.0
      %v9578 = vsel %vm2426, %v9575, 0.0
      %v9579 = vadd.f32 %v9475, %v9577
      %v9580 = vadd.f32 %v9476, %v9578
      %9581 = vrot.lane.b32.xlu0 %v9264, 1
      %v9582 = vpop.permute.xlu0 %9581
      %9583 = vrot.lane.b32.xlu0 %v9266, 1
      %v9584 = vpop.permute.xlu0 %9583
      %9585 = vrot.lane.b32.xlu0 %v9268, 1
      %v9586 = vpop.permute.xlu0 %9585
      %9587 = vrot.lane.b32.xlu0 %v9270, 1
      %v9588 = vpop.permute.xlu0 %9587
      %9589 = vrot.lane.b32.xlu0 %v9265, 1
      %v9590 = vpop.permute.xlu0 %9589
      %9591 = vrot.lane.b32.xlu0 %v9267, 1
      %v9592 = vpop.permute.xlu0 %9591
      %9593 = vrot.lane.b32.xlu0 %v9269, 1
      %v9594 = vpop.permute.xlu0 %9593
      %9595 = vrot.lane.b32.xlu0 %v9271, 1
      %v9596 = vpop.permute.xlu0 %9595
      %v9597 = vsel %vm2447, %v9582, %v9590
      %v9598 = vsel %vm2447, %v9584, %v9592
      %v9599 = vsel %vm2447, %v9586, %v9594
      %v9600 = vsel %vm2447, %v9588, %v9596
      %v9601 = vsel %vm2447, %v9590, %v9582
      %v9602 = vsel %vm2447, %v9592, %v9584
      %v9603 = vsel %vm2447, %v9594, %v9586
      %v9604 = vsel %vm2447, %v9596, %v9588
      %s9605 = scalar_lea.vmem %s15, 6
      %v9606 = vld [vmem:[%s9605] sm:$0x3]
      %v9608 = vsel %vm1672, %v9606, 0
      %9610 = vmatprep.subr.mxu0 %v9597
      %9611 = vmatpush1.msra.mxu0 %v9601
      %9612 = vmatprep.subr.mxu0 %v9598
      %9613 = vmatpush1.msra.mxu0 %v9602
      %9614 = vmatprep.subr.mxu0 %v9599
      %9615 = vmatpush1.msra.mxu0 %v9603
      %9616 = vmatprep.subr.mxu0 %v9600
      %9617 = vmatpush1.msra.mxu0 %v9604
      %9618 = vmatprep.subr.mxu0 0.0
      %9619 = vmatpush1.msra.mxu0 0.0
      %9620 = vmatprep.subr.mxu0 0.0
      %9621 = vmatpush1.msra.mxu0 0.0
      %9622 = vmatprep.subr.mxu0 0.0
      %9623 = vmatpush1.msra.mxu0 0.0
      %9624 = vmatprep.subr.mxu0 0.0
      %9625 = vmatpush1.msra.mxu0 0.0
      %9626 = vmatprep.subr.mxu0 0.0
      %9627 = vmatpush1.msra.mxu0 0.0
      %9628 = vmatprep.subr.mxu0 0.0
      %9629 = vmatpush1.msra.mxu0 0.0
      %9630 = vmatprep.subr.mxu0 0.0
      %9631 = vmatpush1.msra.mxu0 0.0
      %9632 = vmatprep.subr.mxu0 0.0
      %9633 = vmatpush1.msra.mxu0 0.0
      %9634 = vmatprep.subr.mxu0 0.0
      %9635 = vmatpush1.msra.mxu0 0.0
      %9636 = vmatprep.subr.mxu0 0.0
      %9637 = vmatpush1.msra.mxu0 0.0
      %9638 = vmatprep.subr.mxu0 0.0
      %9639 = vmatpush1.msra.mxu0 0.0
      %9640 = vmatprep.subr.mxu0 0.0
      %9641 = vmatpush1.msra.mxu0 0.0
      %9642 = vmatprep.subr.mxu0 0.0
      %9643 = vmatpush1.msra.mxu0 0.0
      %9644 = vmatprep.subr.mxu0 0.0
      %9645 = vmatpush1.msra.mxu0 0.0
      %9646 = vmatprep.subr.mxu0 0.0
      %9647 = vmatpush1.msra.mxu0 0.0
      %9648 = vmatprep.subr.mxu0 0.0
      %9649 = vmatpush1.msra.mxu0 0.0
      %9650 = vmatprep.subr.mxu0 0.0
      %9651 = vmatpush1.msra.mxu0 0.0
      %9652 = vmatprep.subr.mxu0 0.0
      %9653 = vmatpush1.msra.mxu0 0.0
      %9654 = vmatprep.subr.mxu0 0.0
      %9655 = vmatpush1.msra.mxu0 0.0
      %9656 = vmatprep.subr.mxu0 0.0
      %9657 = vmatpush1.msra.mxu0 0.0
      %9658 = vmatprep.subr.mxu0 0.0
      %9659 = vmatpush1.msra.mxu0 0.0
      %9660 = vmatprep.subr.mxu0 0.0
      %9661 = vmatpush1.msra.mxu0 0.0
      %9662 = vmatprep.subr.mxu0 0.0
      %9663 = vmatpush1.msra.mxu0 0.0
      %9664 = vmatprep.subr.mxu0 0.0
      %9665 = vmatpush1.msra.mxu0 0.0
      %9666 = vmatprep.subr.mxu0 0.0
      %9667 = vmatpush1.msra.mxu0 0.0
      %9668 = vmatprep.subr.mxu0 0.0
      %9669 = vmatpush1.msra.mxu0 0.0
      %9670 = vmatprep.subr.mxu0 0.0
      %9671 = vmatpush1.msra.mxu0 0.0
      %9672 = vmatprep.subr.mxu0 0.0
      %9673 = vmatpush1.msra.mxu0 0.0
      %9674 = vmatprep.mubr.f32.mxu0 0.0
      %9675 = vmatmul.mubr.f32.gmra.mrb[0].mxu0 %v9608
      %v9676 = vpop.f32.mrb[0].mxu0
      %v9677 = vadd.f32 0.0, %v9676
      %v9678 = vpop.f32.mrb[0].mxu0
      %v9679 = vadd.f32 0.0, %v9678
      %9680 = vdwg.mxu0
      %v9681 = vsel %vm2694, %v9677, 0.0
      %v9682 = vsel %vm2695, %v9679, 0.0
      %v9683 = vadd.f32 %v9579, %v9681
      %v9684 = vadd.f32 %v9580, %v9682
      %s9685 = scalar_lea.vmem %s15, 8
      %v9686 = vld [vmem:[%s9685] sm:$0x3]
      %v9688 = vsel %vm1672, %v9686, 0
      %9690 = vmatprep.subr.mxu0 %v9265
      %9691 = vmatpush1.msra.mxu0 %v9264
      %9692 = vmatprep.subr.mxu0 %v9267
      %9693 = vmatpush1.msra.mxu0 %v9266
      %9694 = vmatprep.subr.mxu0 %v9269
      %9695 = vmatpush1.msra.mxu0 %v9268
      %9696 = vmatprep.subr.mxu0 %v9271
      %9697 = vmatpush1.msra.mxu0 %v9270
      %9698 = vmatprep.subr.mxu0 0.0
      %9699 = vmatpush1.msra.mxu0 0.0
      %9700 = vmatprep.subr.mxu0 0.0
      %9701 = vmatpush1.msra.mxu0 0.0
      %9702 = vmatprep.subr.mxu0 0.0
      %9703 = vmatpush1.msra.mxu0 0.0
      %9704 = vmatprep.subr.mxu0 0.0
      %9705 = vmatpush1.msra.mxu0 0.0
      %9706 = vmatprep.subr.mxu0 0.0
      %9707 = vmatpush1.msra.mxu0 0.0
      %9708 = vmatprep.subr.mxu0 0.0
      %9709 = vmatpush1.msra.mxu0 0.0
      %9710 = vmatprep.subr.mxu0 0.0
      %9711 = vmatpush1.msra.mxu0 0.0
      %9712 = vmatprep.subr.mxu0 0.0
      %9713 = vmatpush1.msra.mxu0 0.0
      %9714 = vmatprep.subr.mxu0 0.0
      %9715 = vmatpush1.msra.mxu0 0.0
      %9716 = vmatprep.subr.mxu0 0.0
      %9717 = vmatpush1.msra.mxu0 0.0
      %9718 = vmatprep.subr.mxu0 0.0
      %9719 = vmatpush1.msra.mxu0 0.0
      %9720 = vmatprep.subr.mxu0 0.0
      %9721 = vmatpush1.msra.mxu0 0.0
      %9722 = vmatprep.subr.mxu0 0.0
      %9723 = vmatpush1.msra.mxu0 0.0
      %9724 = vmatprep.subr.mxu0 0.0
      %9725 = vmatpush1.msra.mxu0 0.0
      %9726 = vmatprep.subr.mxu0 0.0
      %9727 = vmatpush1.msra.mxu0 0.0
      %9728 = vmatprep.subr.mxu0 0.0
      %9729 = vmatpush1.msra.mxu0 0.0
      %9730 = vmatprep.subr.mxu0 0.0
      %9731 = vmatpush1.msra.mxu0 0.0
      %9732 = vmatprep.subr.mxu0 0.0
      %9733 = vmatpush1.msra.mxu0 0.0
      %9734 = vmatprep.subr.mxu0 0.0
      %9735 = vmatpush1.msra.mxu0 0.0
      %9736 = vmatprep.subr.mxu0 0.0
      %9737 = vmatpush1.msra.mxu0 0.0
      %9738 = vmatprep.subr.mxu0 0.0
      %9739 = vmatpush1.msra.mxu0 0.0
      %9740 = vmatprep.subr.mxu0 0.0
      %9741 = vmatpush1.msra.mxu0 0.0
      %9742 = vmatprep.subr.mxu0 0.0
      %9743 = vmatpush1.msra.mxu0 0.0
      %9744 = vmatprep.subr.mxu0 0.0
      %9745 = vmatpush1.msra.mxu0 0.0
      %9746 = vmatprep.subr.mxu0 0.0
      %9747 = vmatpush1.msra.mxu0 0.0
      %9748 = vmatprep.subr.mxu0 0.0
      %9749 = vmatpush1.msra.mxu0 0.0
      %9750 = vmatprep.subr.mxu0 0.0
      %9751 = vmatpush1.msra.mxu0 0.0
      %9752 = vmatprep.subr.mxu0 0.0
      %9753 = vmatpush1.msra.mxu0 0.0
      %9754 = vmatprep.mubr.f32.mxu0 0.0
      %9755 = vmatmul.mubr.f32.gmra.mrb[0].mxu0 %v9688
      %v9756 = vpop.f32.mrb[0].mxu0
      %v9757 = vadd.f32 0.0, %v9756
      %v9758 = vpop.f32.mrb[0].mxu0
      %v9759 = vadd.f32 0.0, %v9758
      %9760 = vdwg.mxu0
      %v9761 = vadd.f32 %v9683, %v9757
      %v9762 = vadd.f32 %v9684, %v9759
      %9763 = vrot.lane.b32.xlu0 %v9264, 127
      %v9764 = vpop.permute.xlu0 %9763
      %9765 = vrot.lane.b32.xlu0 %v9266, 127
      %v9766 = vpop.permute.xlu0 %9765
      %9767 = vrot.lane.b32.xlu0 %v9268, 127
      %v9768 = vpop.permute.xlu0 %9767
      %9769 = vrot.lane.b32.xlu0 %v9270, 127
      %v9770 = vpop.permute.xlu0 %9769
      %9771 = vrot.lane.b32.xlu0 %v9265, 127
      %v9772 = vpop.permute.xlu0 %9771
      %9773 = vrot.lane.b32.xlu0 %v9267, 127
      %v9774 = vpop.permute.xlu0 %9773
      %9775 = vrot.lane.b32.xlu0 %v9269, 127
      %v9776 = vpop.permute.xlu0 %9775
      %9777 = vrot.lane.b32.xlu0 %v9271, 127
      %v9778 = vpop.permute.xlu0 %9777
      %v9779 = vsel %vm2942, %v9764, %v9772
      %v9780 = vsel %vm2942, %v9766, %v9774
      %v9781 = vsel %vm2942, %v9768, %v9776
      %v9782 = vsel %vm2942, %v9770, %v9778
      %v9783 = vsel %vm2942, %v9772, %v9764
      %v9784 = vsel %vm2942, %v9774, %v9766
      %v9785 = vsel %vm2942, %v9776, %v9768
      %v9786 = vsel %vm2942, %v9778, %v9770
      %s9787 = scalar_lea.vmem %s15, 10
      %v9788 = vld [vmem:[%s9787] sm:$0x3]
      %v9790 = vsel %vm1672, %v9788, 0
      %9792 = vmatprep.subr.mxu0 %v9783
      %9793 = vmatpush1.msra.mxu0 %v9779
      %9794 = vmatprep.subr.mxu0 %v9784
      %9795 = vmatpush1.msra.mxu0 %v9780
      %9796 = vmatprep.subr.mxu0 %v9785
      %9797 = vmatpush1.msra.mxu0 %v9781
      %9798 = vmatprep.subr.mxu0 %v9786
      %9799 = vmatpush1.msra.mxu0 %v9782
      %9800 = vmatprep.subr.mxu0 0.0
      %9801 = vmatpush1.msra.mxu0 0.0
      %9802 = vmatprep.subr.mxu0 0.0
      %9803 = vmatpush1.msra.mxu0 0.0
      %9804 = vmatprep.subr.mxu0 0.0
      %9805 = vmatpush1.msra.mxu0 0.0
      %9806 = vmatprep.subr.mxu0 0.0
      %9807 = vmatpush1.msra.mxu0 0.0
      %9808 = vmatprep.subr.mxu0 0.0
      %9809 = vmatpush1.msra.mxu0 0.0
      %9810 = vmatprep.subr.mxu0 0.0
      %9811 = vmatpush1.msra.mxu0 0.0
      %9812 = vmatprep.subr.mxu0 0.0
      %9813 = vmatpush1.msra.mxu0 0.0
      %9814 = vmatprep.subr.mxu0 0.0
      %9815 = vmatpush1.msra.mxu0 0.0
      %9816 = vmatprep.subr.mxu0 0.0
      %9817 = vmatpush1.msra.mxu0 0.0
      %9818 = vmatprep.subr.mxu0 0.0
      %9819 = vmatpush1.msra.mxu0 0.0
      %9820 = vmatprep.subr.mxu0 0.0
      %9821 = vmatpush1.msra.mxu0 0.0
      %9822 = vmatprep.subr.mxu0 0.0
      %9823 = vmatpush1.msra.mxu0 0.0
      %9824 = vmatprep.subr.mxu0 0.0
      %9825 = vmatpush1.msra.mxu0 0.0
      %9826 = vmatprep.subr.mxu0 0.0
      %9827 = vmatpush1.msra.mxu0 0.0
      %9828 = vmatprep.subr.mxu0 0.0
      %9829 = vmatpush1.msra.mxu0 0.0
      %9830 = vmatprep.subr.mxu0 0.0
      %9831 = vmatpush1.msra.mxu0 0.0
      %9832 = vmatprep.subr.mxu0 0.0
      %9833 = vmatpush1.msra.mxu0 0.0
      %9834 = vmatprep.subr.mxu0 0.0
      %9835 = vmatpush1.msra.mxu0 0.0
      %9836 = vmatprep.subr.mxu0 0.0
      %9837 = vmatpush1.msra.mxu0 0.0
      %9838 = vmatprep.subr.mxu0 0.0
      %9839 = vmatpush1.msra.mxu0 0.0
      %9840 = vmatprep.subr.mxu0 0.0
      %9841 = vmatpush1.msra.mxu0 0.0
      %9842 = vmatprep.subr.mxu0 0.0
      %9843 = vmatpush1.msra.mxu0 0.0
      %9844 = vmatprep.subr.mxu0 0.0
      %9845 = vmatpush1.msra.mxu0 0.0
      %9846 = vmatprep.subr.mxu0 0.0
      %9847 = vmatpush1.msra.mxu0 0.0
      %9848 = vmatprep.subr.mxu0 0.0
      %9849 = vmatpush1.msra.mxu0 0.0
      %9850 = vmatprep.subr.mxu0 0.0
      %9851 = vmatpush1.msra.mxu0 0.0
      %9852 = vmatprep.subr.mxu0 0.0
      %9853 = vmatpush1.msra.mxu0 0.0
      %9854 = vmatprep.subr.mxu0 0.0
      %9855 = vmatpush1.msra.mxu0 0.0
      %9856 = vmatprep.mubr.f32.mxu0 0.0
      %9857 = vmatmul.mubr.f32.gmra.mrb[0].mxu0 %v9790
      %v9858 = vpop.f32.mrb[0].mxu0
      %v9859 = vadd.f32 0.0, %v9858
      %v9860 = vpop.f32.mrb[0].mxu0
      %v9861 = vadd.f32 0.0, %v9860
      %9862 = vdwg.mxu0
      %v9863 = vsel %vm3189, %v9859, 0.0
      %v9864 = vsel %vm3190, %v9861, 0.0
      %v9865 = vadd.f32 %v9761, %v9863
      %v9866 = vadd.f32 %v9762, %v9864
      %9867 = vrot.lane.b32.xlu0 %v9264, 113
      %v9868 = vpop.permute.xlu0 %9867
      %9869 = vrot.lane.b32.xlu0 %v9266, 113
      %v9870 = vpop.permute.xlu0 %9869
      %9871 = vrot.lane.b32.xlu0 %v9268, 113
      %v9872 = vpop.permute.xlu0 %9871
      %9873 = vrot.lane.b32.xlu0 %v9270, 113
      %v9874 = vpop.permute.xlu0 %9873
      %9875 = vrot.lane.b32.xlu0 %v9265, 113
      %v9876 = vpop.permute.xlu0 %9875
      %9877 = vrot.lane.b32.xlu0 %v9267, 113
      %v9878 = vpop.permute.xlu0 %9877
      %9879 = vrot.lane.b32.xlu0 %v9269, 113
      %v9880 = vpop.permute.xlu0 %9879
      %9881 = vrot.lane.b32.xlu0 %v9271, 113
      %v9882 = vpop.permute.xlu0 %9881
      %v9883 = vsel %vm3211, %v9868, %v9876
      %v9884 = vsel %vm3211, %v9870, %v9878
      %v9885 = vsel %vm3211, %v9872, %v9880
      %v9886 = vsel %vm3211, %v9874, %v9882
      %v9887 = vsel %vm3211, %v9876, %v9868
      %v9888 = vsel %vm3211, %v9878, %v9870
      %v9889 = vsel %vm3211, %v9880, %v9872
      %v9890 = vsel %vm3211, %v9882, %v9874
      %s9891 = scalar_lea.vmem %s15, 12
      %v9892 = vld [vmem:[%s9891] sm:$0x3]
      %v9894 = vsel %vm1672, %v9892, 0
      %9896 = vmatprep.subr.mxu0 %v9887
      %9897 = vmatpush1.msra.mxu0 %v9883
      %9898 = vmatprep.subr.mxu0 %v9888
      %9899 = vmatpush1.msra.mxu0 %v9884
      %9900 = vmatprep.subr.mxu0 %v9889
      %9901 = vmatpush1.msra.mxu0 %v9885
      %9902 = vmatprep.subr.mxu0 %v9890
      %9903 = vmatpush1.msra.mxu0 %v9886
      %9904 = vmatprep.subr.mxu0 0.0
      %9905 = vmatpush1.msra.mxu0 0.0
      %9906 = vmatprep.subr.mxu0 0.0
      %9907 = vmatpush1.msra.mxu0 0.0
      %9908 = vmatprep.subr.mxu0 0.0
      %9909 = vmatpush1.msra.mxu0 0.0
      %9910 = vmatprep.subr.mxu0 0.0
      %9911 = vmatpush1.msra.mxu0 0.0
      %9912 = vmatprep.subr.mxu0 0.0
      %9913 = vmatpush1.msra.mxu0 0.0
      %9914 = vmatprep.subr.mxu0 0.0
      %9915 = vmatpush1.msra.mxu0 0.0
      %9916 = vmatprep.subr.mxu0 0.0
      %9917 = vmatpush1.msra.mxu0 0.0
      %9918 = vmatprep.subr.mxu0 0.0
      %9919 = vmatpush1.msra.mxu0 0.0
      %9920 = vmatprep.subr.mxu0 0.0
      %9921 = vmatpush1.msra.mxu0 0.0
      %9922 = vmatprep.subr.mxu0 0.0
      %9923 = vmatpush1.msra.mxu0 0.0
      %9924 = vmatprep.subr.mxu0 0.0
      %9925 = vmatpush1.msra.mxu0 0.0
      %9926 = vmatprep.subr.mxu0 0.0
      %9927 = vmatpush1.msra.mxu0 0.0
      %9928 = vmatprep.subr.mxu0 0.0
      %9929 = vmatpush1.msra.mxu0 0.0
      %9930 = vmatprep.subr.mxu0 0.0
      %9931 = vmatpush1.msra.mxu0 0.0
      %9932 = vmatprep.subr.mxu0 0.0
      %9933 = vmatpush1.msra.mxu0 0.0
      %9934 = vmatprep.subr.mxu0 0.0
      %9935 = vmatpush1.msra.mxu0 0.0
      %9936 = vmatprep.subr.mxu0 0.0
      %9937 = vmatpush1.msra.mxu0 0.0
      %9938 = vmatprep.subr.mxu0 0.0
      %9939 = vmatpush1.msra.mxu0 0.0
      %9940 = vmatprep.subr.mxu0 0.0
      %9941 = vmatpush1.msra.mxu0 0.0
      %9942 = vmatprep.subr.mxu0 0.0
      %9943 = vmatpush1.msra.mxu0 0.0
      %9944 = vmatprep.subr.mxu0 0.0
      %9945 = vmatpush1.msra.mxu0 0.0
      %9946 = vmatprep.subr.mxu0 0.0
      %9947 = vmatpush1.msra.mxu0 0.0
      %9948 = vmatprep.subr.mxu0 0.0
      %9949 = vmatpush1.msra.mxu0 0.0
      %9950 = vmatprep.subr.mxu0 0.0
      %9951 = vmatpush1.msra.mxu0 0.0
      %9952 = vmatprep.subr.mxu0 0.0
      %9953 = vmatpush1.msra.mxu0 0.0
      %9954 = vmatprep.subr.mxu0 0.0
      %9955 = vmatpush1.msra.mxu0 0.0
      %9956 = vmatprep.subr.mxu0 0.0
      %9957 = vmatpush1.msra.mxu0 0.0
      %9958 = vmatprep.subr.mxu0 0.0
      %9959 = vmatpush1.msra.mxu0 0.0
      %9960 = vmatprep.mubr.f32.mxu0 0.0
      %9961 = vmatmul.mubr.f32.gmra.mrb[0].mxu0 %v9894
      %v9962 = vpop.f32.mrb[0].mxu0
      %v9963 = vadd.f32 0.0, %v9962
      %v9964 = vpop.f32.mrb[0].mxu0
      %v9965 = vadd.f32 0.0, %v9964
      %9966 = vdwg.mxu0
      %v9967 = vsel %vm3462, %v9963, 0.0
      %v9968 = vsel %vm3463, %v9965, 0.0
      %v9969 = vadd.f32 %v9865, %v9967
      %v9970 = vadd.f32 %v9866, %v9968
      %9971 = vrot.lane.b32.xlu0 %v9264, 112
      %v9972 = vpop.permute.xlu0 %9971
      %9973 = vrot.lane.b32.xlu0 %v9266, 112
      %v9974 = vpop.permute.xlu0 %9973
      %9975 = vrot.lane.b32.xlu0 %v9268, 112
      %v9976 = vpop.permute.xlu0 %9975
      %9977 = vrot.lane.b32.xlu0 %v9270, 112
      %v9978 = vpop.permute.xlu0 %9977
      %9979 = vrot.lane.b32.xlu0 %v9265, 112
      %v9980 = vpop.permute.xlu0 %9979
      %9981 = vrot.lane.b32.xlu0 %v9267, 112
      %v9982 = vpop.permute.xlu0 %9981
      %9983 = vrot.lane.b32.xlu0 %v9269, 112
      %v9984 = vpop.permute.xlu0 %9983
      %9985 = vrot.lane.b32.xlu0 %v9271, 112
      %v9986 = vpop.permute.xlu0 %9985
      %v9987 = vsel %vm3484, %v9972, %v9980
      %v9988 = vsel %vm3484, %v9974, %v9982
      %v9989 = vsel %vm3484, %v9976, %v9984
      %v9990 = vsel %vm3484, %v9978, %v9986
      %v9991 = vsel %vm3484, %v9980, %v9972
      %v9992 = vsel %vm3484, %v9982, %v9974
      %v9993 = vsel %vm3484, %v9984, %v9976
      %v9994 = vsel %vm3484, %v9986, %v9978
      %s9995 = scalar_lea.vmem %s15, 14
      %v9996 = vld [vmem:[%s9995] sm:$0x3]
      %v9998 = vsel %vm1672, %v9996, 0
      %10000 = vmatprep.subr.mxu0 %v9991
      %10001 = vmatpush1.msra.mxu0 %v9987
      %10002 = vmatprep.subr.mxu0 %v9992
      %10003 = vmatpush1.msra.mxu0 %v9988
      %10004 = vmatprep.subr.mxu0 %v9993
      %10005 = vmatpush1.msra.mxu0 %v9989
      %10006 = vmatprep.subr.mxu0 %v9994
      %10007 = vmatpush1.msra.mxu0 %v9990
      %10008 = vmatprep.subr.mxu0 0.0
      %10009 = vmatpush1.msra.mxu0 0.0
      %10010 = vmatprep.subr.mxu0 0.0
      %10011 = vmatpush1.msra.mxu0 0.0
      %10012 = vmatprep.subr.mxu0 0.0
      %10013 = vmatpush1.msra.mxu0 0.0
      %10014 = vmatprep.subr.mxu0 0.0
      %10015 = vmatpush1.msra.mxu0 0.0
      %10016 = vmatprep.subr.mxu0 0.0
      %10017 = vmatpush1.msra.mxu0 0.0
      %10018 = vmatprep.subr.mxu0 0.0
      %10019 = vmatpush1.msra.mxu0 0.0
      %10020 = vmatprep.subr.mxu0 0.0
      %10021 = vmatpush1.msra.mxu0 0.0
      %10022 = vmatprep.subr.mxu0 0.0
      %10023 = vmatpush1.msra.mxu0 0.0
      %10024 = vmatprep.subr.mxu0 0.0
      %10025 = vmatpush1.msra.mxu0 0.0
      %10026 = vmatprep.subr.mxu0 0.0
      %10027 = vmatpush1.msra.mxu0 0.0
      %10028 = vmatprep.subr.mxu0 0.0
      %10029 = vmatpush1.msra.mxu0 0.0
      %10030 = vmatprep.subr.mxu0 0.0
      %10031 = vmatpush1.msra.mxu0 0.0
      %10032 = vmatprep.subr.mxu0 0.0
      %10033 = vmatpush1.msra.mxu0 0.0
      %10034 = vmatprep.subr.mxu0 0.0
      %10035 = vmatpush1.msra.mxu0 0.0
      %10036 = vmatprep.subr.mxu0 0.0
      %10037 = vmatpush1.msra.mxu0 0.0
      %10038 = vmatprep.subr.mxu0 0.0
      %10039 = vmatpush1.msra.mxu0 0.0
      %10040 = vmatprep.subr.mxu0 0.0
      %10041 = vmatpush1.msra.mxu0 0.0
      %10042 = vmatprep.subr.mxu0 0.0
      %10043 = vmatpush1.msra.mxu0 0.0
      %10044 = vmatprep.subr.mxu0 0.0
      %10045 = vmatpush1.msra.mxu0 0.0
      %10046 = vmatprep.subr.mxu0 0.0
      %10047 = vmatpush1.msra.mxu0 0.0
      %10048 = vmatprep.subr.mxu0 0.0
      %10049 = vmatpush1.msra.mxu0 0.0
      %10050 = vmatprep.subr.mxu0 0.0
      %10051 = vmatpush1.msra.mxu0 0.0
      %10052 = vmatprep.subr.mxu0 0.0
      %10053 = vmatpush1.msra.mxu0 0.0
      %10054 = vmatprep.subr.mxu0 0.0
      %10055 = vmatpush1.msra.mxu0 0.0
      %10056 = vmatprep.subr.mxu0 0.0
      %10057 = vmatpush1.msra.mxu0 0.0
      %10058 = vmatprep.subr.mxu0 0.0
      %10059 = vmatpush1.msra.mxu0 0.0
      %10060 = vmatprep.subr.mxu0 0.0
      %10061 = vmatpush1.msra.mxu0 0.0
      %10062 = vmatprep.subr.mxu0 0.0
      %10063 = vmatpush1.msra.mxu0 0.0
      %10064 = vmatprep.mubr.f32.mxu0 0.0
      %10065 = vmatmul.mubr.f32.gmra.mrb[0].mxu0 %v9998
      %v10066 = vpop.f32.mrb[0].mxu0
      %v10067 = vadd.f32 0.0, %v10066
      %v10068 = vpop.f32.mrb[0].mxu0
      %v10069 = vadd.f32 0.0, %v10068
      %10070 = vdwg.mxu0
      %v10071 = vsel %vm3731, %v10067, 0.0
      %v10072 = vsel %vm3732, %v10069, 0.0
      %v10073 = vadd.f32 %v9969, %v10071
      %v10074 = vadd.f32 %v9970, %v10072
      %10075 = vrot.lane.b32.xlu0 %v9264, 111
      %v10076 = vpop.permute.xlu0 %10075
      %10077 = vrot.lane.b32.xlu0 %v9266, 111
      %v10078 = vpop.permute.xlu0 %10077
      %10079 = vrot.lane.b32.xlu0 %v9268, 111
      %v10080 = vpop.permute.xlu0 %10079
      %10081 = vrot.lane.b32.xlu0 %v9270, 111
      %v10082 = vpop.permute.xlu0 %10081
      %10083 = vrot.lane.b32.xlu0 %v9265, 111
      %v10084 = vpop.permute.xlu0 %10083
      %10085 = vrot.lane.b32.xlu0 %v9267, 111
      %v10086 = vpop.permute.xlu0 %10085
      %10087 = vrot.lane.b32.xlu0 %v9269, 111
      %v10088 = vpop.permute.xlu0 %10087
      %10089 = vrot.lane.b32.xlu0 %v9271, 111
      %v10090 = vpop.permute.xlu0 %10089
      %v10091 = vsel %vm3753, %v10076, %v10084
      %v10092 = vsel %vm3753, %v10078, %v10086
      %v10093 = vsel %vm3753, %v10080, %v10088
      %v10094 = vsel %vm3753, %v10082, %v10090
      %v10095 = vsel %vm3753, %v10084, %v10076
      %v10096 = vsel %vm3753, %v10086, %v10078
      %v10097 = vsel %vm3753, %v10088, %v10080
      %v10098 = vsel %vm3753, %v10090, %v10082
      %s10099 = scalar_lea.vmem %s15, 16
      %v10100 = vld [vmem:[%s10099] sm:$0x3]
      %v10102 = vsel %vm1672, %v10100, 0
      %10104 = vmatprep.subr.mxu0 %v10095
      %10105 = vmatpush1.msra.mxu0 %v10091
      %10106 = vmatprep.subr.mxu0 %v10096
      %10107 = vmatpush1.msra.mxu0 %v10092
      %10108 = vmatprep.subr.mxu0 %v10097
      %10109 = vmatpush1.msra.mxu0 %v10093
      %10110 = vmatprep.subr.mxu0 %v10098
      %10111 = vmatpush1.msra.mxu0 %v10094
      %10112 = vmatprep.subr.mxu0 0.0
      %10113 = vmatpush1.msra.mxu0 0.0
      %10114 = vmatprep.subr.mxu0 0.0
      %10115 = vmatpush1.msra.mxu0 0.0
      %10116 = vmatprep.subr.mxu0 0.0
      %10117 = vmatpush1.msra.mxu0 0.0
      %10118 = vmatprep.subr.mxu0 0.0
      %10119 = vmatpush1.msra.mxu0 0.0
      %10120 = vmatprep.subr.mxu0 0.0
      %10121 = vmatpush1.msra.mxu0 0.0
      %10122 = vmatprep.subr.mxu0 0.0
      %10123 = vmatpush1.msra.mxu0 0.0
      %10124 = vmatprep.subr.mxu0 0.0
      %10125 = vmatpush1.msra.mxu0 0.0
      %10126 = vmatprep.subr.mxu0 0.0
      %10127 = vmatpush1.msra.mxu0 0.0
      %10128 = vmatprep.subr.mxu0 0.0
      %10129 = vmatpush1.msra.mxu0 0.0
      %10130 = vmatprep.subr.mxu0 0.0
      %10131 = vmatpush1.msra.mxu0 0.0
      %10132 = vmatprep.subr.mxu0 0.0
      %10133 = vmatpush1.msra.mxu0 0.0
      %10134 = vmatprep.subr.mxu0 0.0
      %10135 = vmatpush1.msra.mxu0 0.0
      %10136 = vmatprep.subr.mxu0 0.0
      %10137 = vmatpush1.msra.mxu0 0.0
      %10138 = vmatprep.subr.mxu0 0.0
      %10139 = vmatpush1.msra.mxu0 0.0
      %10140 = vmatprep.subr.mxu0 0.0
      %10141 = vmatpush1.msra.mxu0 0.0
      %10142 = vmatprep.subr.mxu0 0.0
      %10143 = vmatpush1.msra.mxu0 0.0
      %10144 = vmatprep.subr.mxu0 0.0
      %10145 = vmatpush1.msra.mxu0 0.0
      %10146 = vmatprep.subr.mxu0 0.0
      %10147 = vmatpush1.msra.mxu0 0.0
      %10148 = vmatprep.subr.mxu0 0.0
      %10149 = vmatpush1.msra.mxu0 0.0
      %10150 = vmatprep.subr.mxu0 0.0
      %10151 = vmatpush1.msra.mxu0 0.0
      %10152 = vmatprep.subr.mxu0 0.0
      %10153 = vmatpush1.msra.mxu0 0.0
      %10154 = vmatprep.subr.mxu0 0.0
      %10155 = vmatpush1.msra.mxu0 0.0
      %10156 = vmatprep.subr.mxu0 0.0
      %10157 = vmatpush1.msra.mxu0 0.0
      %10158 = vmatprep.subr.mxu0 0.0
      %10159 = vmatpush1.msra.mxu0 0.0
      %10160 = vmatprep.subr.mxu0 0.0
      %10161 = vmatpush1.msra.mxu0 0.0
      %10162 = vmatprep.subr.mxu0 0.0
      %10163 = vmatpush1.msra.mxu0 0.0
      %10164 = vmatprep.subr.mxu0 0.0
      %10165 = vmatpush1.msra.mxu0 0.0
      %10166 = vmatprep.subr.mxu0 0.0
      %10167 = vmatpush1.msra.mxu0 0.0
      %10168 = vmatprep.mubr.f32.mxu0 0.0
      %10169 = vmatmul.mubr.f32.gmra.mrb[0].mxu0 %v10102
      %v10170 = vpop.f32.mrb[0].mxu0
      %v10171 = vadd.f32 0.0, %v10170
      %v10172 = vpop.f32.mrb[0].mxu0
      %v10173 = vadd.f32 0.0, %v10172
      %10174 = vdwg.mxu0
      %v10175 = vsel %vm4002, %v10171, 0.0
      %v10176 = vsel %vm4003, %v10173, 0.0
      %v10177 = vadd.f32 %v10073, %v10175
      %v10178 = vadd.f32 %v10074, %v10176
      %v10179 = vadd.f32 %v1616, %v10177
      %v10180 = vadd.f32 %v1617, %v10178
      %v10183 = vcombine.low %v10179, %v10180
      %v10185 = vunpack.c.l.s4 1983009808
      %v10186 = vunpack.c.0.s8 %v10185
      %v10187 = vlaneseq
      %v10188 = vshrl.u32 %v10187, 7
      %v10189 = vsub.s32 %v10186, %v10188
      %v10190 = vrot.slane %v10183, %v10189
      %10192 = vst [vmem:[%s591] sm:$0xf] %v10190
      %10193 = vst [vmem:[%s596] sm:$0xff] %v9264
      %10194 = vst [vmem:[%s596 + $0x8] sm:$0xff] %v9265
      %10195 = vst [vmem:[%s596 + $0x10] sm:$0xff] %v9266
      %10196 = vst [vmem:[%s596 + $0x18] sm:$0xff] %v9267
      %10197 = vst [vmem:[%s596 + $0x20] sm:$0xff] %v9268
      %10198 = vst [vmem:[%s596 + $0x28] sm:$0xff] %v9269
      %10199 = vst [vmem:[%s596 + $0x30] sm:$0xff] %v9270
      %10200 = vst [vmem:[%s596 + $0x38] sm:$0xff] %v9271
      %p10201 = scmp.lt.s32.totalorder %s30, 1
      %s10202 = scalar_select %p10201, %s30, 1
      %s10203 = smul.addr %s10202, 2
      %s10204 = smul.addr %s10203, 2
      %s10205 = scalar_lea.vmem %s16, %s10204
      %p10206 = scmp.lt.s32.totalorder %s30, 1
      %s10207 = scalar_select %p10206, %s30, 1
      %s10208 = smul.addr %s10207, 8
      %s10209 = smul.addr %s10208, 8
      %s10210 = scalar_lea.vmem %s17, %s10209
      // Predicated region
      $region85: #{basic_block_forward.1} parent=83 // pred_check
        %p10211 = pneg %p399
      $region86: #{basic_block_forward.1} parent=83 // pred_check_branch
        %10213 = sbr.rel (%p10211) target = $region88
      $region87: #{basic_block_forward.1} parent=83 // pred_region
        _
      $region88: #{basic_block_forward.1} parent=83 // pred_fallthru
        _
      // Predicated region
      $region89: #{basic_block_forward.1} parent=83 // pred_check
        %p10214 = pneg %p425
      $region90: #{basic_block_forward.1} parent=83 // pred_check_branch
        %10216 = sbr.rel (%p10214) target = $region92
      $region91: #{basic_block_forward.1} parent=83 // pred_region
        _
      $region92: #{basic_block_forward.1} parent=83 // pred_fallthru
        _
    $region84: #{basic_block_forward.1} parent=5 // pred_fallthru
      _
    %p10217 = scmp.le.s32.totalorder 2, %s25
    // Predicated region
    $region93: #{basic_block_forward.1} parent=5 // pred_check
      %p10218 = pneg %p10217
    $region94: #{basic_block_forward.1} parent=5 // pred_check_branch
      %10220 = sbr.rel (%p10218) target = $region96
    $region95: #{basic_block_forward.1} parent=5 // pred_region
      %s10221 = ssub.s32 %s25, 2
      // Predicated region
      $region97: #{basic_block_forward.1} parent=95 // pred_check
        %p10222 = pneg %p405
      $region98: #{basic_block_forward.1} parent=95 // pred_check_branch
        %10224 = sbr.rel (%p10222) target = $region100
      $region99: #{basic_block_forward.1} parent=95 // pred_region
        %p10225 = scmp.lt.s32.totalorder %s31, 1
        %s10226 = scalar_select %p10225, %s31, 1
        %s10227 = smul.addr %s10226, 2
        %s10228 = smul.addr %s10227, 2
        %s10229 = scalar_lea.vmem %s16, %s10228
      $region100: #{basic_block_forward.1} parent=95 // pred_fallthru
        _
      // Predicated region
      $region101: #{basic_block_forward.1} parent=95 // pred_check
        %p10230 = pneg %p431
      $region102: #{basic_block_forward.1} parent=95 // pred_check_branch
        %10232 = sbr.rel (%p10230) target = $region104
      $region103: #{basic_block_forward.1} parent=95 // pred_region
        %p10233 = scmp.lt.s32.totalorder %s31, 1
        %s10234 = scalar_select %p10233, %s31, 1
        %s10235 = smul.addr %s10234, 8
        %s10236 = smul.addr %s10235, 8
        %s10237 = scalar_lea.vmem %s17, %s10236
      $region104: #{basic_block_forward.1} parent=95 // pred_fallthru
        _
    $region96: #{basic_block_forward.1} parent=5 // pred_fallthru
      _
  $region6: #{basic_block_forward.1} parent=0 // loop_footer
    %s29 = sadd.s32 1, %s25
  $region7: #{basic_block_forward.1} parent=0 // loop_footer_branch
    %24 = sbr.rel target = $region3
  $region8: #{basic_block_forward.1} parent=0 // loop_exit
    _

</llo_original>
